<compile_context>
chip_gen: v7x
topology: tpu7x:2x2x1
jax: 0.10.0
libtpu: 0.0.40
codegen_flags: <defaults>
</compile_context>

<pallas_src>
import functools

import jax
import jax.numpy as jnp
from jax.experimental import pallas as pl
from jax.experimental.pallas import tpu as pltpu


# ------------------------------ fused kernel --------------------------------

def _disc_fused_kernel(p1_ref, w1_ref, b1_ref, w2_ref, b2_ref,
                       w3_ref, b3_ref, w4_ref, b4_ref, o_ref, q_ref,
                       *, B, H2, eps=1e-5):
    """conv1+LReLU -> conv2+BN2d+LReLU -> fc1+BN1d+LReLU -> fc2+sigmoid.

    p1:  (4*H2*H2*B, 16*Cin) bf16  conv1 im2col patches; rows grouped by the
                                   (h%2, w%2) parity of the conv1 OUTPUT pixel
                                   and ordered (dh, dw, i, j, b).
    w1:  (16*Cin, 64)   bf16       conv1 weight, rows in (kh, kw, cin) order.
    w2:  (16, 64, 128)  bf16       conv2 weight per tap (kh*4+kw).
    w3:  (H2*H2, 128, 1024) bf16   fc1 weight split per conv2 spatial position.
    w4:  (1024, 128)    bf16       fc2 weight padded to 128 lanes.
    q_ref: VMEM scratch (4, H2+1, (H2+1)*B, 64) f32 — zero-padded conv1 output
           map, phase-split so every stride-2 conv2 tap is a contiguous slice:
           q[2*ph+pw, I, J*B+b, c] == padded_h1[b, 2*I+ph, 2*J+pw, c].
    """
    nb = H2 * H2 * B      # rows per parity block == conv2 output rows (B*H2*H2)

    # ---- conv1 (spectral-norm Conv2d Cin->64, k4 s2 p1) + LeakyReLU(0.2) ----
    h1 = jnp.dot(p1_ref[...], w1_ref[...], preferred_element_type=jnp.float32)
    h1 = h1 + b1_ref[...]
    h1 = jnp.where(h1 >= 0, h1, 0.2 * h1)                       # (4*nb, 64) f32

    # ---- in-kernel im2col for conv2: scatter conv1 output into the phase- ---
    # ---- split zero-padded map (contiguous stores only) --------------------
    q_ref[...] = jnp.zeros_like(q_ref)
    for dh in range(2):
        for dw in range(2):
            bidx = 2 * dh + dw
            blk = h1[bidx * nb:(bidx + 1) * nb, :].reshape(H2, H2 * B, 64)
            q_ref[2 * (1 - dh) + (1 - dw),
                  dh:dh + H2, dw * B:(dw + H2) * B, :] = blk

    # ---- conv2 (64->128, k4 s2 p1) as 16 tap matmuls, f32 accumulation -----
    acc2 = jnp.zeros((nb, 128), jnp.float32)
    for kh in range(4):
        for kw in range(4):
            qh, ph = kh // 2, kh % 2
            qw, pw = kw // 2, kw % 2
            tap = q_ref[2 * ph + pw, qh:qh + H2, qw * B:(qw + H2) * B, :]
            tap = tap.reshape(nb, 64).astype(jnp.bfloat16)
            acc2 = acc2 + jnp.dot(tap, w2_ref[4 * kh + kw],
                                  preferred_element_type=jnp.float32)

    # ---- BatchNorm2d (train-mode batch stats, gamma=1, beta=0) + LReLU -----
    y2 = acc2 + b2_ref[...]
    m2 = jnp.mean(y2, axis=0, keepdims=True)
    v2 = jnp.mean((y2 - m2) ** 2, axis=0, keepdims=True)
    y2 = (y2 - m2) * jax.lax.rsqrt(v2 + eps)
    h2 = jnp.where(y2 >= 0, y2, 0.2 * y2).astype(jnp.bfloat16)   # rows (h,w,b)

    # ---- fc1 (feat -> 1024): sum over the H2*H2 spatial positions so the ---
    # ---- (h,w,b)-ordered conv output never needs a lane-crossing reshape ---
    # TODO(synk): for large input_size (feat >> 2048) K-tile w3 with a grid
    # axis + pl.when epilogue so the stream pipelines and VMEM stays bounded.
    acc3 = jnp.zeros((B, 1024), jnp.float32)
    for hw in range(H2 * H2):
        acc3 = acc3 + jnp.dot(h2[hw * B:(hw + 1) * B, :], w3_ref[hw],
                              preferred_element_type=jnp.float32)

    # ---- BatchNorm1d + LeakyReLU(0.2) ---------------------------------------
    y3 = acc3 + b3_ref[...]
    m3 = jnp.mean(y3, axis=0, keepdims=True)
    v3 = jnp.mean((y3 - m3) ** 2, axis=0, keepdims=True)
    y3 = (y3 - m3) * jax.lax.rsqrt(v3 + eps)
    y3 = jnp.where(y3 >= 0, y3, 0.2 * y3)

    # ---- fc2 (1024 -> output_dim, lane-dense 128-wide store) + sigmoid ------
    z = jnp.dot(y3.astype(jnp.bfloat16), w4_ref[...],
                preferred_element_type=jnp.float32)
    o_ref[...] = jax.nn.sigmoid(z + b4_ref[...])


def disc_fused(p1, w1, b1, w2, b2, w3, b3, w4, b4, *, B, H2):
    kernel = functools.partial(_disc_fused_kernel, B=B, H2=H2)

    def full(shape):
        n = len(shape)
        return pl.BlockSpec(shape, lambda i, n=n: (0,) * n)

    return pl.pallas_call(
        kernel,
        out_shape=jax.ShapeDtypeStruct((B, 128), jnp.float32),
        grid=(1,),
        in_specs=[full(p1.shape), full(w1.shape), full(b1.shape),
                  full(w2.shape), full(b2.shape), full(w3.shape),
                  full(b3.shape), full(w4.shape), full(b4.shape)],
        out_specs=full((B, 128)),
        scratch_shapes=[pltpu.VMEM((4, H2 + 1, (H2 + 1) * B, 64), jnp.float32)],
        compiler_params=pltpu.CompilerParams(
            dimension_semantics=("arbitrary",),
            # ~9.5 MiB live (w3 bf16 dominates); 24 MiB leaves headroom on
            # every generation without claiming half of v7x's 64 MiB VMEM.
            vmem_limit_bytes=24 << 20,
        ),
    )(p1, w1, b1, w2, b2, w3, b3, w4, b4)


# ------------------------------ JAX glue -------------------------------------

def spectral_normalize(w2d, n_iter=50):
    """W / sigma_max(W) via power iteration (deterministic init)."""
    u = jnp.ones((w2d.shape[0],), jnp.float32)
    u = u / jnp.linalg.norm(u)
    v = None
    for _ in range(n_iter):
        v = w2d.T @ u
        v = v / (jnp.linalg.norm(v) + 1e-12)
        u = w2d @ v
        u = u / (jnp.linalg.norm(u) + 1e-12)
    sigma = u @ (w2d @ v)
    return w2d / sigma


def init_params(key, input_dim, output_dim, input_size):
    h2s = input_size // 4                      # conv2 / fc spatial size
    feat = 128 * h2s * h2s
    k1, k2, k3, k4, k5, k6 = jax.random.split(key, 6)

    # Conv/Linear weights: normal_(0, 0.02); conv biases zeroed (initialize_weights).
    w1 = 0.02 * jax.random.normal(k1, (64, input_dim, 4, 4), jnp.float32)
    w2 = 0.02 * jax.random.normal(k2, (128, 64, 4, 4), jnp.float32)
    w3 = 0.02 * jax.random.normal(k3, (1024, feat), jnp.float32)
    w4 = 0.02 * jax.random.normal(k4, (output_dim, 1024), jnp.float32)
    # Linear biases keep PyTorch's default U(-1/sqrt(fan_in), 1/sqrt(fan_in)).
    b3 = jax.random.uniform(k5, (1024,), jnp.float32,
                            -1.0 / float(feat) ** 0.5, 1.0 / float(feat) ** 0.5)
    b4 = jax.random.uniform(k6, (output_dim,), jnp.float32,
                            -1.0 / 32.0, 1.0 / 32.0)

    # Spectral norm on the (out, fan_in)-flattened weights (scalar sigma, so
    # re-permuting columns afterwards is exact).
    w1_sn = spectral_normalize(w1.reshape(64, -1))
    w2_sn = spectral_normalize(w2.reshape(128, -1))
    w3_sn = spectral_normalize(w3)
    w4_sn = spectral_normalize(w4)

    # conv1 weight as im2col columns, rows in (kh, kw, cin) order.
    w1_col = (w1_sn.reshape(64, input_dim, 4, 4).transpose(0, 2, 3, 1)
              .reshape(64, 16 * input_dim).T).astype(jnp.bfloat16)
    # conv2 weight per tap: w2_tap[kh*4+kw, cin, cout] = W2[cout, cin, kh, kw].
    w2_tap = (w2_sn.reshape(128, 64, 4, 4).transpose(2, 3, 1, 0)
              .reshape(16, 64, 128)).astype(jnp.bfloat16)
    # fc1 weight split per spatial position: w3_tap[h*h2s+w, c, n] = W3[n, c,h,w].
    w3_tap = (w3_sn.reshape(1024, 128, h2s, h2s).transpose(2, 3, 1, 0)
              .reshape(h2s * h2s, 128, 1024)).astype(jnp.bfloat16)
    # fc2 padded to a lane-dense 128-wide output; extra columns are zero.
    w4p = jnp.zeros((1024, 128), jnp.float32).at[:, :output_dim].set(w4_sn.T)
    b4p = jnp.zeros((128,), jnp.float32).at[:output_dim].set(b4)

    return {
        "w1": w1_col, "b1": jnp.zeros((1, 64), jnp.float32),
        "w2": w2_tap, "b2": jnp.zeros((1, 128), jnp.float32),
        "w3": w3_tap, "b3": b3.reshape(1, 1024),
        "w4": w4p.astype(jnp.bfloat16), "b4": b4p.reshape(1, 128),
    }


def discriminator_forward(x, params, *, output_dim=1):
    B, Cin, H, W = x.shape
    assert H == W and H % 4 == 0 and B >= 2
    H1, H2 = H // 2, H // 4

    # conv1 im2col on the raw (tiny) input — pure layout glue kept in JAX.
    x_nhwc = jnp.transpose(x, (0, 2, 3, 1))
    xp = jnp.pad(x_nhwc, ((0, 0), (1, 1), (1, 1), (0, 0)))
    cols = [xp[:, kh:kh + 2 * H1:2, kw:kw + 2 * H1:2, :]
            for kh in range(4) for kw in range(4)]
    p = jnp.stack(cols, axis=3).reshape(B, H1, H1, 16 * Cin)
    # Regroup rows by conv1-output parity as (dh, dw, i, j, b) so the fused
    # kernel can scatter into its phase-split padded map with contiguous stores.
    p = p.reshape(B, H2, 2, H2, 2, 16 * Cin).transpose(2, 4, 1, 3, 0, 5)
    p1 = p.reshape(4 * H2 * H2 * B, 16 * Cin).astype(jnp.bfloat16)

    out = disc_fused(p1, params["w1"], params["b1"], params["w2"], params["b2"],
                     params["w3"], params["b3"], params["w4"], params["b4"],
                     B=B, H2=H2)
    return out[:, :output_dim]


if __name__ == "__main__":
    B, INPUT_DIM, OUTPUT_DIM, INPUT_SIZE = 2, 1, 1, 16

    key = jax.random.PRNGKey(0)
    kx, kp = jax.random.split(key)
    x = jax.random.normal(kx, (B, INPUT_DIM, INPUT_SIZE, INPUT_SIZE),
                          jnp.float32)
    params = init_params(kp, INPUT_DIM, OUTPUT_DIM, INPUT_SIZE)

    fwd = jax.jit(functools.partial(discriminator_forward,
                                    output_dim=OUTPUT_DIM))
    out = jax.block_until_ready(fwd(x, params))
    assert out.shape == (B, OUTPUT_DIM)
    assert bool(jnp.all(jnp.isfinite(out)))
    assert bool(jnp.all((out >= 0.0) & (out <= 1.0)))
    print("KERNEL_OK")
</pallas_src>

<mosaic_0001>
module attributes {stable_mosaic.version = 11 : i64} {
  func.func @_disc_fused_kernel(%arg0: i32, %arg1: memref<128x16xbf16, #tpu.memory_space<vmem>>, %arg2: memref<16x64xbf16, #tpu.memory_space<vmem>>, %arg3: memref<1x64xf32, #tpu.memory_space<vmem>>, %arg4: memref<16x64x128xbf16, #tpu.memory_space<vmem>>, %arg5: memref<1x128xf32, #tpu.memory_space<vmem>>, %arg6: memref<16x128x1024xbf16, #tpu.memory_space<vmem>>, %arg7: memref<1x1024xf32, #tpu.memory_space<vmem>>, %arg8: memref<1024x128xbf16, #tpu.memory_space<vmem>>, %arg9: memref<1x128xf32, #tpu.memory_space<vmem>>, %arg10: memref<2x128xf32, #tpu.memory_space<vmem>>, %arg11: memref<4x5x10x64xf32, #tpu.memory_space<vmem>>) attributes {dimension_semantics = [#tpu.dimension_semantics<arbitrary>], iteration_bounds = array<i64: 1>, scalar_prefetch = 0 : i64, scratch_operands = 1 : i64, tpu.core_type = #tpu.core_type<tc>, window_params = [{pipeline_mode = #tpu.pipeline_mode<synchronous>, transform_indices = @transform_0, window_bounds = array<i64: 128, 16>}, {pipeline_mode = #tpu.pipeline_mode<synchronous>, transform_indices = @transform_1, window_bounds = array<i64: 16, 64>}, {pipeline_mode = #tpu.pipeline_mode<synchronous>, transform_indices = @transform_2, window_bounds = array<i64: 1, 64>}, {pipeline_mode = #tpu.pipeline_mode<synchronous>, transform_indices = @transform_3, window_bounds = array<i64: 16, 64, 128>}, {pipeline_mode = #tpu.pipeline_mode<synchronous>, transform_indices = @transform_4, window_bounds = array<i64: 1, 128>}, {pipeline_mode = #tpu.pipeline_mode<synchronous>, transform_indices = @transform_5, window_bounds = array<i64: 16, 128, 1024>}, {pipeline_mode = #tpu.pipeline_mode<synchronous>, transform_indices = @transform_6, window_bounds = array<i64: 1, 1024>}, {pipeline_mode = #tpu.pipeline_mode<synchronous>, transform_indices = @transform_7, window_bounds = array<i64: 1024, 128>}, {pipeline_mode = #tpu.pipeline_mode<synchronous>, transform_indices = @transform_8, window_bounds = array<i64: 1, 128>}, {pipeline_mode = #tpu.pipeline_mode<synchronous>, transform_indices = @transform_9, window_bounds = array<i64: 2, 128>}]} {
    %c0 = arith.constant 0 : index
    %c0_0 = arith.constant 0 : index
    %0 = vector.load %arg1[%c0, %c0_0] : memref<128x16xbf16, #tpu.memory_space<vmem>>, vector<128x16xbf16>
    %c0_1 = arith.constant 0 : index
    %c0_2 = arith.constant 0 : index
    %1 = vector.load %arg2[%c0_1, %c0_2] : memref<16x64xbf16, #tpu.memory_space<vmem>>, vector<16x64xbf16>
    %cst = arith.constant dense<0.000000e+00> : vector<128x64xf32>
    %2 = tpu.matmul %0, %1, %cst {dimension_numbers = #tpu.dot_dimension_numbers<[1], [0], [0], [1], [0, 0, 1, 1], [], []>} : vector<128x16xbf16>, vector<16x64xbf16>, vector<128x64xf32> -> vector<128x64xf32>
    %c0_3 = arith.constant 0 : index
    %c0_4 = arith.constant 0 : index
    %3 = vector.load %arg3[%c0_3, %c0_4] : memref<1x64xf32, #tpu.memory_space<vmem>>, vector<1x64xf32>
    %4 = vector.broadcast %3 : vector<1x64xf32> to vector<128x64xf32>
    %5 = arith.addf %2, %4 : vector<128x64xf32>
    %cst_5 = arith.constant 0.000000e+00 : f32
    %6 = vector.broadcast %cst_5 : f32 to vector<128x64xf32>
    %7 = arith.cmpf oge, %5, %6 : vector<128x64xf32>
    %cst_6 = arith.constant 2.000000e-01 : f32
    %8 = vector.broadcast %cst_6 : f32 to vector<128x64xf32>
    %9 = arith.mulf %8, %5 : vector<128x64xf32>
    %10 = arith.select %7, %5, %9 : vector<128x64xi1>, vector<128x64xf32>
    %cst_7 = arith.constant 0.000000e+00 : f32
    %11 = vector.broadcast %cst_7 : f32 to vector<4x5x10x64xf32>
    %c0_8 = arith.constant 0 : index
    %c0_9 = arith.constant 0 : index
    %c0_10 = arith.constant 0 : index
    %c0_11 = arith.constant 0 : index
    %12 = vector.load %arg11[%c0_8, %c0_9, %c0_10, %c0_11] : memref<4x5x10x64xf32, #tpu.memory_space<vmem>>, vector<4x5x10x64xf32>
    tpu.vector_store %arg11[%c0_8, %c0_9, %c0_10, %c0_11], %11 {strides = array<i32>} : memref<4x5x10x64xf32, #tpu.memory_space<vmem>>, vector<4x5x10x64xf32>,
    %13 = vector.extract_strided_slice %10 {offsets = [0, 0], sizes = [32, 64], strides = [1, 1]} : vector<128x64xf32> to vector<32x64xf32>
    %14 = vector.shape_cast %13 : vector<32x64xf32> to vector<4x8x64xf32>
    %c3 = arith.constant 3 : index
    %c0_12 = arith.constant 0 : index
    %c0_13 = arith.constant 0 : index
    %c0_14 = arith.constant 0 : index
    %15 = vector.load %arg11[%c3, %c0_12, %c0_13, %c0_14] : memref<4x5x10x64xf32, #tpu.memory_space<vmem>>, vector<1x4x8x64xf32>
    %16 = vector.shape_cast %15 : vector<1x4x8x64xf32> to vector<4x8x64xf32>
    %17 = vector.shape_cast %14 : vector<4x8x64xf32> to vector<1x4x8x64xf32>
    tpu.vector_store %arg11[%c3, %c0_12, %c0_13, %c0_14], %17 {strides = array<i32>} : memref<4x5x10x64xf32, #tpu.memory_space<vmem>>, vector<1x4x8x64xf32>,
    %18 = vector.extract_strided_slice %10 {offsets = [32, 0], sizes = [32, 64], strides = [1, 1]} : vector<128x64xf32> to vector<32x64xf32>
    %19 = vector.shape_cast %18 : vector<32x64xf32> to vector<4x8x64xf32>
    %c2 = arith.constant 2 : index
    %c0_15 = arith.constant 0 : index
    %c2_16 = arith.constant 2 : index
    %c0_17 = arith.constant 0 : index
    %20 = vector.load %arg11[%c2, %c0_15, %c2_16, %c0_17] : memref<4x5x10x64xf32, #tpu.memory_space<vmem>>, vector<1x4x8x64xf32>
    %21 = vector.shape_cast %20 : vector<1x4x8x64xf32> to vector<4x8x64xf32>
    %22 = vector.shape_cast %19 : vector<4x8x64xf32> to vector<1x4x8x64xf32>
    tpu.vector_store %arg11[%c2, %c0_15, %c2_16, %c0_17], %22 {strides = array<i32>} : memref<4x5x10x64xf32, #tpu.memory_space<vmem>>, vector<1x4x8x64xf32>,
    %23 = vector.extract_strided_slice %10 {offsets = [64, 0], sizes = [32, 64], strides = [1, 1]} : vector<128x64xf32> to vector<32x64xf32>
    %24 = vector.shape_cast %23 : vector<32x64xf32> to vector<4x8x64xf32>
    %c1 = arith.constant 1 : index
    %c1_18 = arith.constant 1 : index
    %c0_19 = arith.constant 0 : index
    %c0_20 = arith.constant 0 : index
    %25 = vector.load %arg11[%c1, %c1_18, %c0_19, %c0_20] : memref<4x5x10x64xf32, #tpu.memory_space<vmem>>, vector<1x4x8x64xf32>
    %26 = vector.shape_cast %25 : vector<1x4x8x64xf32> to vector<4x8x64xf32>
    %27 = vector.shape_cast %24 : vector<4x8x64xf32> to vector<1x4x8x64xf32>
    tpu.vector_store %arg11[%c1, %c1_18, %c0_19, %c0_20], %27 {strides = array<i32>} : memref<4x5x10x64xf32, #tpu.memory_space<vmem>>, vector<1x4x8x64xf32>,
    %28 = vector.extract_strided_slice %10 {offsets = [96, 0], sizes = [32, 64], strides = [1, 1]} : vector<128x64xf32> to vector<32x64xf32>
    %29 = vector.shape_cast %28 : vector<32x64xf32> to vector<4x8x64xf32>
    %c0_21 = arith.constant 0 : index
    %c1_22 = arith.constant 1 : index
    %c2_23 = arith.constant 2 : index
    %c0_24 = arith.constant 0 : index
    %30 = vector.load %arg11[%c0_21, %c1_22, %c2_23, %c0_24] : memref<4x5x10x64xf32, #tpu.memory_space<vmem>>, vector<1x4x8x64xf32>
    %31 = vector.shape_cast %30 : vector<1x4x8x64xf32> to vector<4x8x64xf32>
    %32 = vector.shape_cast %29 : vector<4x8x64xf32> to vector<1x4x8x64xf32>
    tpu.vector_store %arg11[%c0_21, %c1_22, %c2_23, %c0_24], %32 {strides = array<i32>} : memref<4x5x10x64xf32, #tpu.memory_space<vmem>>, vector<1x4x8x64xf32>,
    %cst_25 = arith.constant 0.000000e+00 : f32
    %33 = vector.broadcast %cst_25 : f32 to vector<32x128xf32>
    %c0_26 = arith.constant 0 : index
    %c0_27 = arith.constant 0 : index
    %c0_28 = arith.constant 0 : index
    %c0_29 = arith.constant 0 : index
    %34 = vector.load %arg11[%c0_26, %c0_27, %c0_28, %c0_29] : memref<4x5x10x64xf32, #tpu.memory_space<vmem>>, vector<1x4x8x64xf32>
    %35 = vector.shape_cast %34 : vector<1x4x8x64xf32> to vector<4x8x64xf32>
    %36 = vector.shape_cast %35 : vector<4x8x64xf32> to vector<32x64xf32>
    %37 = arith.truncf %36 : vector<32x64xf32> to vector<32x64xbf16>
    %c0_30 = arith.constant 0 : index
    %c0_31 = arith.constant 0 : index
    %c0_32 = arith.constant 0 : index
    %38 = vector.load %arg4[%c0_30, %c0_31, %c0_32] : memref<16x64x128xbf16, #tpu.memory_space<vmem>>, vector<1x64x128xbf16>
    %39 = vector.shape_cast %38 : vector<1x64x128xbf16> to vector<64x128xbf16>
    %cst_33 = arith.constant dense<0.000000e+00> : vector<32x128xf32>
    %40 = tpu.matmul %37, %39, %cst_33 {dimension_numbers = #tpu.dot_dimension_numbers<[1], [0], [0], [1], [0, 0, 1, 1], [], []>} : vector<32x64xbf16>, vector<64x128xbf16>, vector<32x128xf32> -> vector<32x128xf32>
    %41 = arith.addf %33, %40 : vector<32x128xf32>
    %c1_34 = arith.constant 1 : index
    %c0_35 = arith.constant 0 : index
    %c0_36 = arith.constant 0 : index
    %c0_37 = arith.constant 0 : index
    %42 = vector.load %arg11[%c1_34, %c0_35, %c0_36, %c0_37] : memref<4x5x10x64xf32, #tpu.memory_space<vmem>>, vector<1x4x8x64xf32>
    %43 = vector.shape_cast %42 : vector<1x4x8x64xf32> to vector<4x8x64xf32>
    %44 = vector.shape_cast %43 : vector<4x8x64xf32> to vector<32x64xf32>
    %45 = arith.truncf %44 : vector<32x64xf32> to vector<32x64xbf16>
    %c1_38 = arith.constant 1 : index
    %c0_39 = arith.constant 0 : index
    %c0_40 = arith.constant 0 : index
    %46 = vector.load %arg4[%c1_38, %c0_39, %c0_40] : memref<16x64x128xbf16, #tpu.memory_space<vmem>>, vector<1x64x128xbf16>
    %47 = vector.shape_cast %46 : vector<1x64x128xbf16> to vector<64x128xbf16>
    %cst_41 = arith.constant dense<0.000000e+00> : vector<32x128xf32>
    %48 = tpu.matmul %45, %47, %cst_41 {dimension_numbers = #tpu.dot_dimension_numbers<[1], [0], [0], [1], [0, 0, 1, 1], [], []>} : vector<32x64xbf16>, vector<64x128xbf16>, vector<32x128xf32> -> vector<32x128xf32>
    %49 = arith.addf %41, %48 : vector<32x128xf32>
    %c0_42 = arith.constant 0 : index
    %c0_43 = arith.constant 0 : index
    %c2_44 = arith.constant 2 : index
    %c0_45 = arith.constant 0 : index
    %50 = vector.load %arg11[%c0_42, %c0_43, %c2_44, %c0_45] : memref<4x5x10x64xf32, #tpu.memory_space<vmem>>, vector<1x4x8x64xf32>
    %51 = vector.shape_cast %50 : vector<1x4x8x64xf32> to vector<4x8x64xf32>
    %52 = vector.shape_cast %51 : vector<4x8x64xf32> to vector<32x64xf32>
    %53 = arith.truncf %52 : vector<32x64xf32> to vector<32x64xbf16>
    %c2_46 = arith.constant 2 : index
    %c0_47 = arith.constant 0 : index
    %c0_48 = arith.constant 0 : index
    %54 = vector.load %arg4[%c2_46, %c0_47, %c0_48] : memref<16x64x128xbf16, #tpu.memory_space<vmem>>, vector<1x64x128xbf16>
    %55 = vector.shape_cast %54 : vector<1x64x128xbf16> to vector<64x128xbf16>
    %cst_49 = arith.constant dense<0.000000e+00> : vector<32x128xf32>
    %56 = tpu.matmul %53, %55, %cst_49 {dimension_numbers = #tpu.dot_dimension_numbers<[1], [0], [0], [1], [0, 0, 1, 1], [], []>} : vector<32x64xbf16>, vector<64x128xbf16>, vector<32x128xf32> -> vector<32x128xf32>
    %57 = arith.addf %49, %56 : vector<32x128xf32>
    %c1_50 = arith.constant 1 : index
    %c0_51 = arith.constant 0 : index
    %c2_52 = arith.constant 2 : index
    %c0_53 = arith.constant 0 : index
    %58 = vector.load %arg11[%c1_50, %c0_51, %c2_52, %c0_53] : memref<4x5x10x64xf32, #tpu.memory_space<vmem>>, vector<1x4x8x64xf32>
    %59 = vector.shape_cast %58 : vector<1x4x8x64xf32> to vector<4x8x64xf32>
    %60 = vector.shape_cast %59 : vector<4x8x64xf32> to vector<32x64xf32>
    %61 = arith.truncf %60 : vector<32x64xf32> to vector<32x64xbf16>
    %c3_54 = arith.constant 3 : index
    %c0_55 = arith.constant 0 : index
    %c0_56 = arith.constant 0 : index
    %62 = vector.load %arg4[%c3_54, %c0_55, %c0_56] : memref<16x64x128xbf16, #tpu.memory_space<vmem>>, vector<1x64x128xbf16>
    %63 = vector.shape_cast %62 : vector<1x64x128xbf16> to vector<64x128xbf16>
    %cst_57 = arith.constant dense<0.000000e+00> : vector<32x128xf32>
    %64 = tpu.matmul %61, %63, %cst_57 {dimension_numbers = #tpu.dot_dimension_numbers<[1], [0], [0], [1], [0, 0, 1, 1], [], []>} : vector<32x64xbf16>, vector<64x128xbf16>, vector<32x128xf32> -> vector<32x128xf32>
    %65 = arith.addf %57, %64 : vector<32x128xf32>
    %c2_58 = arith.constant 2 : index
    %c0_59 = arith.constant 0 : index
    %c0_60 = arith.constant 0 : index
    %c0_61 = arith.constant 0 : index
    %66 = vector.load %arg11[%c2_58, %c0_59, %c0_60, %c0_61] : memref<4x5x10x64xf32, #tpu.memory_space<vmem>>, vector<1x4x8x64xf32>
    %67 = vector.shape_cast %66 : vector<1x4x8x64xf32> to vector<4x8x64xf32>
    %68 = vector.shape_cast %67 : vector<4x8x64xf32> to vector<32x64xf32>
    %69 = arith.truncf %68 : vector<32x64xf32> to vector<32x64xbf16>
    %c4 = arith.constant 4 : index
    %c0_62 = arith.constant 0 : index
    %c0_63 = arith.constant 0 : index
    %70 = vector.load %arg4[%c4, %c0_62, %c0_63] : memref<16x64x128xbf16, #tpu.memory_space<vmem>>, vector<1x64x128xbf16>
    %71 = vector.shape_cast %70 : vector<1x64x128xbf16> to vector<64x128xbf16>
    %cst_64 = arith.constant dense<0.000000e+00> : vector<32x128xf32>
    %72 = tpu.matmul %69, %71, %cst_64 {dimension_numbers = #tpu.dot_dimension_numbers<[1], [0], [0], [1], [0, 0, 1, 1], [], []>} : vector<32x64xbf16>, vector<64x128xbf16>, vector<32x128xf32> -> vector<32x128xf32>
    %73 = arith.addf %65, %72 : vector<32x128xf32>
    %c3_65 = arith.constant 3 : index
    %c0_66 = arith.constant 0 : index
    %c0_67 = arith.constant 0 : index
    %c0_68 = arith.constant 0 : index
    %74 = vector.load %arg11[%c3_65, %c0_66, %c0_67, %c0_68] : memref<4x5x10x64xf32, #tpu.memory_space<vmem>>, vector<1x4x8x64xf32>
    %75 = vector.shape_cast %74 : vector<1x4x8x64xf32> to vector<4x8x64xf32>
    %76 = vector.shape_cast %75 : vector<4x8x64xf32> to vector<32x64xf32>
    %77 = arith.truncf %76 : vector<32x64xf32> to vector<32x64xbf16>
    %c5 = arith.constant 5 : index
    %c0_69 = arith.constant 0 : index
    %c0_70 = arith.constant 0 : index
    %78 = vector.load %arg4[%c5, %c0_69, %c0_70] : memref<16x64x128xbf16, #tpu.memory_space<vmem>>, vector<1x64x128xbf16>
    %79 = vector.shape_cast %78 : vector<1x64x128xbf16> to vector<64x128xbf16>
    %cst_71 = arith.constant dense<0.000000e+00> : vector<32x128xf32>
    %80 = tpu.matmul %77, %79, %cst_71 {dimension_numbers = #tpu.dot_dimension_numbers<[1], [0], [0], [1], [0, 0, 1, 1], [], []>} : vector<32x64xbf16>, vector<64x128xbf16>, vector<32x128xf32> -> vector<32x128xf32>
    %81 = arith.addf %73, %80 : vector<32x128xf32>
    %c2_72 = arith.constant 2 : index
    %c0_73 = arith.constant 0 : index
    %c2_74 = arith.constant 2 : index
    %c0_75 = arith.constant 0 : index
    %82 = vector.load %arg11[%c2_72, %c0_73, %c2_74, %c0_75] : memref<4x5x10x64xf32, #tpu.memory_space<vmem>>, vector<1x4x8x64xf32>
    %83 = vector.shape_cast %82 : vector<1x4x8x64xf32> to vector<4x8x64xf32>
    %84 = vector.shape_cast %83 : vector<4x8x64xf32> to vector<32x64xf32>
    %85 = arith.truncf %84 : vector<32x64xf32> to vector<32x64xbf16>
    %c6 = arith.constant 6 : index
    %c0_76 = arith.constant 0 : index
    %c0_77 = arith.constant 0 : index
    %86 = vector.load %arg4[%c6, %c0_76, %c0_77] : memref<16x64x128xbf16, #tpu.memory_space<vmem>>, vector<1x64x128xbf16>
    %87 = vector.shape_cast %86 : vector<1x64x128xbf16> to vector<64x128xbf16>
    %cst_78 = arith.constant dense<0.000000e+00> : vector<32x128xf32>
    %88 = tpu.matmul %85, %87, %cst_78 {dimension_numbers = #tpu.dot_dimension_numbers<[1], [0], [0], [1], [0, 0, 1, 1], [], []>} : vector<32x64xbf16>, vector<64x128xbf16>, vector<32x128xf32> -> vector<32x128xf32>
    %89 = arith.addf %81, %88 : vector<32x128xf32>
    %c3_79 = arith.constant 3 : index
    %c0_80 = arith.constant 0 : index
    %c2_81 = arith.constant 2 : index
    %c0_82 = arith.constant 0 : index
    %90 = vector.load %arg11[%c3_79, %c0_80, %c2_81, %c0_82] : memref<4x5x10x64xf32, #tpu.memory_space<vmem>>, vector<1x4x8x64xf32>
    %91 = vector.shape_cast %90 : vector<1x4x8x64xf32> to vector<4x8x64xf32>
    %92 = vector.shape_cast %91 : vector<4x8x64xf32> to vector<32x64xf32>
    %93 = arith.truncf %92 : vector<32x64xf32> to vector<32x64xbf16>
    %c7 = arith.constant 7 : index
    %c0_83 = arith.constant 0 : index
    %c0_84 = arith.constant 0 : index
    %94 = vector.load %arg4[%c7, %c0_83, %c0_84] : memref<16x64x128xbf16, #tpu.memory_space<vmem>>, vector<1x64x128xbf16>
    %95 = vector.shape_cast %94 : vector<1x64x128xbf16> to vector<64x128xbf16>
    %cst_85 = arith.constant dense<0.000000e+00> : vector<32x128xf32>
    %96 = tpu.matmul %93, %95, %cst_85 {dimension_numbers = #tpu.dot_dimension_numbers<[1], [0], [0], [1], [0, 0, 1, 1], [], []>} : vector<32x64xbf16>, vector<64x128xbf16>, vector<32x128xf32> -> vector<32x128xf32>
    %97 = arith.addf %89, %96 : vector<32x128xf32>
    %c0_86 = arith.constant 0 : index
    %c1_87 = arith.constant 1 : index
    %c0_88 = arith.constant 0 : index
    %c0_89 = arith.constant 0 : index
    %98 = vector.load %arg11[%c0_86, %c1_87, %c0_88, %c0_89] : memref<4x5x10x64xf32, #tpu.memory_space<vmem>>, vector<1x4x8x64xf32>
    %99 = vector.shape_cast %98 : vector<1x4x8x64xf32> to vector<4x8x64xf32>
    %100 = vector.shape_cast %99 : vector<4x8x64xf32> to vector<32x64xf32>
    %101 = arith.truncf %100 : vector<32x64xf32> to vector<32x64xbf16>
    %c8 = arith.constant 8 : index
    %c0_90 = arith.constant 0 : index
    %c0_91 = arith.constant 0 : index
    %102 = vector.load %arg4[%c8, %c0_90, %c0_91] : memref<16x64x128xbf16, #tpu.memory_space<vmem>>, vector<1x64x128xbf16>
    %103 = vector.shape_cast %102 : vector<1x64x128xbf16> to vector<64x128xbf16>
    %cst_92 = arith.constant dense<0.000000e+00> : vector<32x128xf32>
    %104 = tpu.matmul %101, %103, %cst_92 {dimension_numbers = #tpu.dot_dimension_numbers<[1], [0], [0], [1], [0, 0, 1, 1], [], []>} : vector<32x64xbf16>, vector<64x128xbf16>, vector<32x128xf32> -> vector<32x128xf32>
    %105 = arith.addf %97, %104 : vector<32x128xf32>
    %c1_93 = arith.constant 1 : index
    %c1_94 = arith.constant 1 : index
    %c0_95 = arith.constant 0 : index
    %c0_96 = arith.constant 0 : index
    %106 = vector.load %arg11[%c1_93, %c1_94, %c0_95, %c0_96] : memref<4x5x10x64xf32, #tpu.memory_space<vmem>>, vector<1x4x8x64xf32>
    %107 = vector.shape_cast %106 : vector<1x4x8x64xf32> to vector<4x8x64xf32>
    %108 = vector.shape_cast %107 : vector<4x8x64xf32> to vector<32x64xf32>
    %109 = arith.truncf %108 : vector<32x64xf32> to vector<32x64xbf16>
    %c9 = arith.constant 9 : index
    %c0_97 = arith.constant 0 : index
    %c0_98 = arith.constant 0 : index
    %110 = vector.load %arg4[%c9, %c0_97, %c0_98] : memref<16x64x128xbf16, #tpu.memory_space<vmem>>, vector<1x64x128xbf16>
    %111 = vector.shape_cast %110 : vector<1x64x128xbf16> to vector<64x128xbf16>
    %cst_99 = arith.constant dense<0.000000e+00> : vector<32x128xf32>
    %112 = tpu.matmul %109, %111, %cst_99 {dimension_numbers = #tpu.dot_dimension_numbers<[1], [0], [0], [1], [0, 0, 1, 1], [], []>} : vector<32x64xbf16>, vector<64x128xbf16>, vector<32x128xf32> -> vector<32x128xf32>
    %113 = arith.addf %105, %112 : vector<32x128xf32>
    %c0_100 = arith.constant 0 : index
    %c1_101 = arith.constant 1 : index
    %c2_102 = arith.constant 2 : index
    %c0_103 = arith.constant 0 : index
    %114 = vector.load %arg11[%c0_100, %c1_101, %c2_102, %c0_103] : memref<4x5x10x64xf32, #tpu.memory_space<vmem>>, vector<1x4x8x64xf32>
    %115 = vector.shape_cast %114 : vector<1x4x8x64xf32> to vector<4x8x64xf32>
    %116 = vector.shape_cast %115 : vector<4x8x64xf32> to vector<32x64xf32>
    %117 = arith.truncf %116 : vector<32x64xf32> to vector<32x64xbf16>
    %c10 = arith.constant 10 : index
    %c0_104 = arith.constant 0 : index
    %c0_105 = arith.constant 0 : index
    %118 = vector.load %arg4[%c10, %c0_104, %c0_105] : memref<16x64x128xbf16, #tpu.memory_space<vmem>>, vector<1x64x128xbf16>
    %119 = vector.shape_cast %118 : vector<1x64x128xbf16> to vector<64x128xbf16>
    %cst_106 = arith.constant dense<0.000000e+00> : vector<32x128xf32>
    %120 = tpu.matmul %117, %119, %cst_106 {dimension_numbers = #tpu.dot_dimension_numbers<[1], [0], [0], [1], [0, 0, 1, 1], [], []>} : vector<32x64xbf16>, vector<64x128xbf16>, vector<32x128xf32> -> vector<32x128xf32>
    %121 = arith.addf %113, %120 : vector<32x128xf32>
    %c1_107 = arith.constant 1 : index
    %c1_108 = arith.constant 1 : index
    %c2_109 = arith.constant 2 : index
    %c0_110 = arith.constant 0 : index
    %122 = vector.load %arg11[%c1_107, %c1_108, %c2_109, %c0_110] : memref<4x5x10x64xf32, #tpu.memory_space<vmem>>, vector<1x4x8x64xf32>
    %123 = vector.shape_cast %122 : vector<1x4x8x64xf32> to vector<4x8x64xf32>
    %124 = vector.shape_cast %123 : vector<4x8x64xf32> to vector<32x64xf32>
    %125 = arith.truncf %124 : vector<32x64xf32> to vector<32x64xbf16>
    %c11 = arith.constant 11 : index
    %c0_111 = arith.constant 0 : index
    %c0_112 = arith.constant 0 : index
    %126 = vector.load %arg4[%c11, %c0_111, %c0_112] : memref<16x64x128xbf16, #tpu.memory_space<vmem>>, vector<1x64x128xbf16>
    %127 = vector.shape_cast %126 : vector<1x64x128xbf16> to vector<64x128xbf16>
    %cst_113 = arith.constant dense<0.000000e+00> : vector<32x128xf32>
    %128 = tpu.matmul %125, %127, %cst_113 {dimension_numbers = #tpu.dot_dimension_numbers<[1], [0], [0], [1], [0, 0, 1, 1], [], []>} : vector<32x64xbf16>, vector<64x128xbf16>, vector<32x128xf32> -> vector<32x128xf32>
    %129 = arith.addf %121, %128 : vector<32x128xf32>
    %c2_114 = arith.constant 2 : index
    %c1_115 = arith.constant 1 : index
    %c0_116 = arith.constant 0 : index
    %c0_117 = arith.constant 0 : index
    %130 = vector.load %arg11[%c2_114, %c1_115, %c0_116, %c0_117] : memref<4x5x10x64xf32, #tpu.memory_space<vmem>>, vector<1x4x8x64xf32>
    %131 = vector.shape_cast %130 : vector<1x4x8x64xf32> to vector<4x8x64xf32>
    %132 = vector.shape_cast %131 : vector<4x8x64xf32> to vector<32x64xf32>
    %133 = arith.truncf %132 : vector<32x64xf32> to vector<32x64xbf16>
    %c12 = arith.constant 12 : index
    %c0_118 = arith.constant 0 : index
    %c0_119 = arith.constant 0 : index
    %134 = vector.load %arg4[%c12, %c0_118, %c0_119] : memref<16x64x128xbf16, #tpu.memory_space<vmem>>, vector<1x64x128xbf16>
    %135 = vector.shape_cast %134 : vector<1x64x128xbf16> to vector<64x128xbf16>
    %cst_120 = arith.constant dense<0.000000e+00> : vector<32x128xf32>
    %136 = tpu.matmul %133, %135, %cst_120 {dimension_numbers = #tpu.dot_dimension_numbers<[1], [0], [0], [1], [0, 0, 1, 1], [], []>} : vector<32x64xbf16>, vector<64x128xbf16>, vector<32x128xf32> -> vector<32x128xf32>
    %137 = arith.addf %129, %136 : vector<32x128xf32>
    %c3_121 = arith.constant 3 : index
    %c1_122 = arith.constant 1 : index
    %c0_123 = arith.constant 0 : index
    %c0_124 = arith.constant 0 : index
    %138 = vector.load %arg11[%c3_121, %c1_122, %c0_123, %c0_124] : memref<4x5x10x64xf32, #tpu.memory_space<vmem>>, vector<1x4x8x64xf32>
    %139 = vector.shape_cast %138 : vector<1x4x8x64xf32> to vector<4x8x64xf32>
    %140 = vector.shape_cast %139 : vector<4x8x64xf32> to vector<32x64xf32>
    %141 = arith.truncf %140 : vector<32x64xf32> to vector<32x64xbf16>
    %c13 = arith.constant 13 : index
    %c0_125 = arith.constant 0 : index
    %c0_126 = arith.constant 0 : index
    %142 = vector.load %arg4[%c13, %c0_125, %c0_126] : memref<16x64x128xbf16, #tpu.memory_space<vmem>>, vector<1x64x128xbf16>
    %143 = vector.shape_cast %142 : vector<1x64x128xbf16> to vector<64x128xbf16>
    %cst_127 = arith.constant dense<0.000000e+00> : vector<32x128xf32>
    %144 = tpu.matmul %141, %143, %cst_127 {dimension_numbers = #tpu.dot_dimension_numbers<[1], [0], [0], [1], [0, 0, 1, 1], [], []>} : vector<32x64xbf16>, vector<64x128xbf16>, vector<32x128xf32> -> vector<32x128xf32>
    %145 = arith.addf %137, %144 : vector<32x128xf32>
    %c2_128 = arith.constant 2 : index
    %c1_129 = arith.constant 1 : index
    %c2_130 = arith.constant 2 : index
    %c0_131 = arith.constant 0 : index
    %146 = vector.load %arg11[%c2_128, %c1_129, %c2_130, %c0_131] : memref<4x5x10x64xf32, #tpu.memory_space<vmem>>, vector<1x4x8x64xf32>
    %147 = vector.shape_cast %146 : vector<1x4x8x64xf32> to vector<4x8x64xf32>
    %148 = vector.shape_cast %147 : vector<4x8x64xf32> to vector<32x64xf32>
    %149 = arith.truncf %148 : vector<32x64xf32> to vector<32x64xbf16>
    %c14 = arith.constant 14 : index
    %c0_132 = arith.constant 0 : index
    %c0_133 = arith.constant 0 : index
    %150 = vector.load %arg4[%c14, %c0_132, %c0_133] : memref<16x64x128xbf16, #tpu.memory_space<vmem>>, vector<1x64x128xbf16>
    %151 = vector.shape_cast %150 : vector<1x64x128xbf16> to vector<64x128xbf16>
    %cst_134 = arith.constant dense<0.000000e+00> : vector<32x128xf32>
    %152 = tpu.matmul %149, %151, %cst_134 {dimension_numbers = #tpu.dot_dimension_numbers<[1], [0], [0], [1], [0, 0, 1, 1], [], []>} : vector<32x64xbf16>, vector<64x128xbf16>, vector<32x128xf32> -> vector<32x128xf32>
    %153 = arith.addf %145, %152 : vector<32x128xf32>
    %c3_135 = arith.constant 3 : index
    %c1_136 = arith.constant 1 : index
    %c2_137 = arith.constant 2 : index
    %c0_138 = arith.constant 0 : index
    %154 = vector.load %arg11[%c3_135, %c1_136, %c2_137, %c0_138] : memref<4x5x10x64xf32, #tpu.memory_space<vmem>>, vector<1x4x8x64xf32>
    %155 = vector.shape_cast %154 : vector<1x4x8x64xf32> to vector<4x8x64xf32>
    %156 = vector.shape_cast %155 : vector<4x8x64xf32> to vector<32x64xf32>
    %157 = arith.truncf %156 : vector<32x64xf32> to vector<32x64xbf16>
    %c15 = arith.constant 15 : index
    %c0_139 = arith.constant 0 : index
    %c0_140 = arith.constant 0 : index
    %158 = vector.load %arg4[%c15, %c0_139, %c0_140] : memref<16x64x128xbf16, #tpu.memory_space<vmem>>, vector<1x64x128xbf16>
    %159 = vector.shape_cast %158 : vector<1x64x128xbf16> to vector<64x128xbf16>
    %cst_141 = arith.constant dense<0.000000e+00> : vector<32x128xf32>
    %160 = tpu.matmul %157, %159, %cst_141 {dimension_numbers = #tpu.dot_dimension_numbers<[1], [0], [0], [1], [0, 0, 1, 1], [], []>} : vector<32x64xbf16>, vector<64x128xbf16>, vector<32x128xf32> -> vector<32x128xf32>
    %161 = arith.addf %153, %160 : vector<32x128xf32>
    %c0_142 = arith.constant 0 : index
    %c0_143 = arith.constant 0 : index
    %162 = vector.load %arg5[%c0_142, %c0_143] : memref<1x128xf32, #tpu.memory_space<vmem>>, vector<1x128xf32>
    %163 = vector.broadcast %162 : vector<1x128xf32> to vector<32x128xf32>
    %164 = arith.addf %161, %163 : vector<32x128xf32>
    %cst_144 = arith.constant dense<0.000000e+00> : vector<128xf32>
    %165 = vector.multi_reduction <add>, %164, %cst_144 [0] : vector<32x128xf32> to vector<128xf32>
    %166 = vector.shape_cast %165 : vector<128xf32> to vector<1x128xf32>
    %cst_145 = arith.constant 3.200000e+01 : f32
    %167 = vector.broadcast %cst_145 : f32 to vector<1x128xf32>
    %168 = arith.divf %166, %167 : vector<1x128xf32>
    %169 = vector.broadcast %168 : vector<1x128xf32> to vector<32x128xf32>
    %170 = arith.subf %164, %169 : vector<32x128xf32>
    %171 = arith.mulf %170, %170 : vector<32x128xf32>
    %cst_146 = arith.constant dense<0.000000e+00> : vector<128xf32>
    %172 = vector.multi_reduction <add>, %171, %cst_146 [0] : vector<32x128xf32> to vector<128xf32>
    %173 = vector.shape_cast %172 : vector<128xf32> to vector<1x128xf32>
    %cst_147 = arith.constant 3.200000e+01 : f32
    %174 = vector.broadcast %cst_147 : f32 to vector<1x128xf32>
    %175 = arith.divf %173, %174 : vector<1x128xf32>
    %176 = vector.broadcast %168 : vector<1x128xf32> to vector<32x128xf32>
    %177 = arith.subf %164, %176 : vector<32x128xf32>
    %cst_148 = arith.constant 9.99999974E-6 : f32
    %178 = vector.broadcast %cst_148 : f32 to vector<1x128xf32>
    %179 = arith.addf %175, %178 : vector<1x128xf32>
    %180 = math.rsqrt %179 : vector<1x128xf32>
    %181 = vector.broadcast %180 : vector<1x128xf32> to vector<32x128xf32>
    %182 = arith.mulf %177, %181 : vector<32x128xf32>
    %cst_149 = arith.constant 0.000000e+00 : f32
    %183 = vector.broadcast %cst_149 : f32 to vector<32x128xf32>
    %184 = arith.cmpf oge, %182, %183 : vector<32x128xf32>
    %cst_150 = arith.constant 2.000000e-01 : f32
    %185 = vector.broadcast %cst_150 : f32 to vector<32x128xf32>
    %186 = arith.mulf %185, %182 : vector<32x128xf32>
    %187 = arith.select %184, %182, %186 : vector<32x128xi1>, vector<32x128xf32>
    %188 = arith.truncf %187 : vector<32x128xf32> to vector<32x128xbf16>
    %cst_151 = arith.constant 0.000000e+00 : f32
    %189 = vector.broadcast %cst_151 : f32 to vector<2x1024xf32>
    %190 = vector.extract_strided_slice %188 {offsets = [0, 0], sizes = [2, 128], strides = [1, 1]} : vector<32x128xbf16> to vector<2x128xbf16>
    %c0_152 = arith.constant 0 : index
    %c0_153 = arith.constant 0 : index
    %c0_154 = arith.constant 0 : index
    %191 = vector.load %arg6[%c0_152, %c0_153, %c0_154] : memref<16x128x1024xbf16, #tpu.memory_space<vmem>>, vector<1x128x1024xbf16>
    %192 = vector.shape_cast %191 : vector<1x128x1024xbf16> to vector<128x1024xbf16>
    %cst_155 = arith.constant dense<0.000000e+00> : vector<2x1024xf32>
    %193 = tpu.matmul %190, %192, %cst_155 {dimension_numbers = #tpu.dot_dimension_numbers<[1], [0], [0], [1], [0, 0, 1, 1], [], []>} : vector<2x128xbf16>, vector<128x1024xbf16>, vector<2x1024xf32> -> vector<2x1024xf32>
    %194 = arith.addf %189, %193 : vector<2x1024xf32>
    %195 = vector.extract_strided_slice %188 {offsets = [2, 0], sizes = [2, 128], strides = [1, 1]} : vector<32x128xbf16> to vector<2x128xbf16>
    %c1_156 = arith.constant 1 : index
    %c0_157 = arith.constant 0 : index
    %c0_158 = arith.constant 0 : index
    %196 = vector.load %arg6[%c1_156, %c0_157, %c0_158] : memref<16x128x1024xbf16, #tpu.memory_space<vmem>>, vector<1x128x1024xbf16>
    %197 = vector.shape_cast %196 : vector<1x128x1024xbf16> to vector<128x1024xbf16>
    %cst_159 = arith.constant dense<0.000000e+00> : vector<2x1024xf32>
    %198 = tpu.matmul %195, %197, %cst_159 {dimension_numbers = #tpu.dot_dimension_numbers<[1], [0], [0], [1], [0, 0, 1, 1], [], []>} : vector<2x128xbf16>, vector<128x1024xbf16>, vector<2x1024xf32> -> vector<2x1024xf32>
    %199 = arith.addf %194, %198 : vector<2x1024xf32>
    %200 = vector.extract_strided_slice %188 {offsets = [4, 0], sizes = [2, 128], strides = [1, 1]} : vector<32x128xbf16> to vector<2x128xbf16>
    %c2_160 = arith.constant 2 : index
    %c0_161 = arith.constant 0 : index
    %c0_162 = arith.constant 0 : index
    %201 = vector.load %arg6[%c2_160, %c0_161, %c0_162] : memref<16x128x1024xbf16, #tpu.memory_space<vmem>>, vector<1x128x1024xbf16>
    %202 = vector.shape_cast %201 : vector<1x128x1024xbf16> to vector<128x1024xbf16>
    %cst_163 = arith.constant dense<0.000000e+00> : vector<2x1024xf32>
    %203 = tpu.matmul %200, %202, %cst_163 {dimension_numbers = #tpu.dot_dimension_numbers<[1], [0], [0], [1], [0, 0, 1, 1], [], []>} : vector<2x128xbf16>, vector<128x1024xbf16>, vector<2x1024xf32> -> vector<2x1024xf32>
    %204 = arith.addf %199, %203 : vector<2x1024xf32>
    %205 = vector.extract_strided_slice %188 {offsets = [6, 0], sizes = [2, 128], strides = [1, 1]} : vector<32x128xbf16> to vector<2x128xbf16>
    %c3_164 = arith.constant 3 : index
    %c0_165 = arith.constant 0 : index
    %c0_166 = arith.constant 0 : index
    %206 = vector.load %arg6[%c3_164, %c0_165, %c0_166] : memref<16x128x1024xbf16, #tpu.memory_space<vmem>>, vector<1x128x1024xbf16>
    %207 = vector.shape_cast %206 : vector<1x128x1024xbf16> to vector<128x1024xbf16>
    %cst_167 = arith.constant dense<0.000000e+00> : vector<2x1024xf32>
    %208 = tpu.matmul %205, %207, %cst_167 {dimension_numbers = #tpu.dot_dimension_numbers<[1], [0], [0], [1], [0, 0, 1, 1], [], []>} : vector<2x128xbf16>, vector<128x1024xbf16>, vector<2x1024xf32> -> vector<2x1024xf32>
    %209 = arith.addf %204, %208 : vector<2x1024xf32>
    %210 = vector.extract_strided_slice %188 {offsets = [8, 0], sizes = [2, 128], strides = [1, 1]} : vector<32x128xbf16> to vector<2x128xbf16>
    %c4_168 = arith.constant 4 : index
    %c0_169 = arith.constant 0 : index
    %c0_170 = arith.constant 0 : index
    %211 = vector.load %arg6[%c4_168, %c0_169, %c0_170] : memref<16x128x1024xbf16, #tpu.memory_space<vmem>>, vector<1x128x1024xbf16>
    %212 = vector.shape_cast %211 : vector<1x128x1024xbf16> to vector<128x1024xbf16>
    %cst_171 = arith.constant dense<0.000000e+00> : vector<2x1024xf32>
    %213 = tpu.matmul %210, %212, %cst_171 {dimension_numbers = #tpu.dot_dimension_numbers<[1], [0], [0], [1], [0, 0, 1, 1], [], []>} : vector<2x128xbf16>, vector<128x1024xbf16>, vector<2x1024xf32> -> vector<2x1024xf32>
    %214 = arith.addf %209, %213 : vector<2x1024xf32>
    %215 = vector.extract_strided_slice %188 {offsets = [10, 0], sizes = [2, 128], strides = [1, 1]} : vector<32x128xbf16> to vector<2x128xbf16>
    %c5_172 = arith.constant 5 : index
    %c0_173 = arith.constant 0 : index
    %c0_174 = arith.constant 0 : index
    %216 = vector.load %arg6[%c5_172, %c0_173, %c0_174] : memref<16x128x1024xbf16, #tpu.memory_space<vmem>>, vector<1x128x1024xbf16>
    %217 = vector.shape_cast %216 : vector<1x128x1024xbf16> to vector<128x1024xbf16>
    %cst_175 = arith.constant dense<0.000000e+00> : vector<2x1024xf32>
    %218 = tpu.matmul %215, %217, %cst_175 {dimension_numbers = #tpu.dot_dimension_numbers<[1], [0], [0], [1], [0, 0, 1, 1], [], []>} : vector<2x128xbf16>, vector<128x1024xbf16>, vector<2x1024xf32> -> vector<2x1024xf32>
    %219 = arith.addf %214, %218 : vector<2x1024xf32>
    %220 = vector.extract_strided_slice %188 {offsets = [12, 0], sizes = [2, 128], strides = [1, 1]} : vector<32x128xbf16> to vector<2x128xbf16>
    %c6_176 = arith.constant 6 : index
    %c0_177 = arith.constant 0 : index
    %c0_178 = arith.constant 0 : index
    %221 = vector.load %arg6[%c6_176, %c0_177, %c0_178] : memref<16x128x1024xbf16, #tpu.memory_space<vmem>>, vector<1x128x1024xbf16>
    %222 = vector.shape_cast %221 : vector<1x128x1024xbf16> to vector<128x1024xbf16>
    %cst_179 = arith.constant dense<0.000000e+00> : vector<2x1024xf32>
    %223 = tpu.matmul %220, %222, %cst_179 {dimension_numbers = #tpu.dot_dimension_numbers<[1], [0], [0], [1], [0, 0, 1, 1], [], []>} : vector<2x128xbf16>, vector<128x1024xbf16>, vector<2x1024xf32> -> vector<2x1024xf32>
    %224 = arith.addf %219, %223 : vector<2x1024xf32>
    %225 = vector.extract_strided_slice %188 {offsets = [14, 0], sizes = [2, 128], strides = [1, 1]} : vector<32x128xbf16> to vector<2x128xbf16>
    %c7_180 = arith.constant 7 : index
    %c0_181 = arith.constant 0 : index
    %c0_182 = arith.constant 0 : index
    %226 = vector.load %arg6[%c7_180, %c0_181, %c0_182] : memref<16x128x1024xbf16, #tpu.memory_space<vmem>>, vector<1x128x1024xbf16>
    %227 = vector.shape_cast %226 : vector<1x128x1024xbf16> to vector<128x1024xbf16>
    %cst_183 = arith.constant dense<0.000000e+00> : vector<2x1024xf32>
    %228 = tpu.matmul %225, %227, %cst_183 {dimension_numbers = #tpu.dot_dimension_numbers<[1], [0], [0], [1], [0, 0, 1, 1], [], []>} : vector<2x128xbf16>, vector<128x1024xbf16>, vector<2x1024xf32> -> vector<2x1024xf32>
    %229 = arith.addf %224, %228 : vector<2x1024xf32>
    %230 = vector.extract_strided_slice %188 {offsets = [16, 0], sizes = [2, 128], strides = [1, 1]} : vector<32x128xbf16> to vector<2x128xbf16>
    %c8_184 = arith.constant 8 : index
    %c0_185 = arith.constant 0 : index
    %c0_186 = arith.constant 0 : index
    %231 = vector.load %arg6[%c8_184, %c0_185, %c0_186] : memref<16x128x1024xbf16, #tpu.memory_space<vmem>>, vector<1x128x1024xbf16>
    %232 = vector.shape_cast %231 : vector<1x128x1024xbf16> to vector<128x1024xbf16>
    %cst_187 = arith.constant dense<0.000000e+00> : vector<2x1024xf32>
    %233 = tpu.matmul %230, %232, %cst_187 {dimension_numbers = #tpu.dot_dimension_numbers<[1], [0], [0], [1], [0, 0, 1, 1], [], []>} : vector<2x128xbf16>, vector<128x1024xbf16>, vector<2x1024xf32> -> vector<2x1024xf32>
    %234 = arith.addf %229, %233 : vector<2x1024xf32>
    %235 = vector.extract_strided_slice %188 {offsets = [18, 0], sizes = [2, 128], strides = [1, 1]} : vector<32x128xbf16> to vector<2x128xbf16>
    %c9_188 = arith.constant 9 : index
    %c0_189 = arith.constant 0 : index
    %c0_190 = arith.constant 0 : index
    %236 = vector.load %arg6[%c9_188, %c0_189, %c0_190] : memref<16x128x1024xbf16, #tpu.memory_space<vmem>>, vector<1x128x1024xbf16>
    %237 = vector.shape_cast %236 : vector<1x128x1024xbf16> to vector<128x1024xbf16>
    %cst_191 = arith.constant dense<0.000000e+00> : vector<2x1024xf32>
    %238 = tpu.matmul %235, %237, %cst_191 {dimension_numbers = #tpu.dot_dimension_numbers<[1], [0], [0], [1], [0, 0, 1, 1], [], []>} : vector<2x128xbf16>, vector<128x1024xbf16>, vector<2x1024xf32> -> vector<2x1024xf32>
    %239 = arith.addf %234, %238 : vector<2x1024xf32>
    %240 = vector.extract_strided_slice %188 {offsets = [20, 0], sizes = [2, 128], strides = [1, 1]} : vector<32x128xbf16> to vector<2x128xbf16>
    %c10_192 = arith.constant 10 : index
    %c0_193 = arith.constant 0 : index
    %c0_194 = arith.constant 0 : index
    %241 = vector.load %arg6[%c10_192, %c0_193, %c0_194] : memref<16x128x1024xbf16, #tpu.memory_space<vmem>>, vector<1x128x1024xbf16>
    %242 = vector.shape_cast %241 : vector<1x128x1024xbf16> to vector<128x1024xbf16>
    %cst_195 = arith.constant dense<0.000000e+00> : vector<2x1024xf32>
    %243 = tpu.matmul %240, %242, %cst_195 {dimension_numbers = #tpu.dot_dimension_numbers<[1], [0], [0], [1], [0, 0, 1, 1], [], []>} : vector<2x128xbf16>, vector<128x1024xbf16>, vector<2x1024xf32> -> vector<2x1024xf32>
    %244 = arith.addf %239, %243 : vector<2x1024xf32>
    %245 = vector.extract_strided_slice %188 {offsets = [22, 0], sizes = [2, 128], strides = [1, 1]} : vector<32x128xbf16> to vector<2x128xbf16>
    %c11_196 = arith.constant 11 : index
    %c0_197 = arith.constant 0 : index
    %c0_198 = arith.constant 0 : index
    %246 = vector.load %arg6[%c11_196, %c0_197, %c0_198] : memref<16x128x1024xbf16, #tpu.memory_space<vmem>>, vector<1x128x1024xbf16>
    %247 = vector.shape_cast %246 : vector<1x128x1024xbf16> to vector<128x1024xbf16>
    %cst_199 = arith.constant dense<0.000000e+00> : vector<2x1024xf32>
    %248 = tpu.matmul %245, %247, %cst_199 {dimension_numbers = #tpu.dot_dimension_numbers<[1], [0], [0], [1], [0, 0, 1, 1], [], []>} : vector<2x128xbf16>, vector<128x1024xbf16>, vector<2x1024xf32> -> vector<2x1024xf32>
    %249 = arith.addf %244, %248 : vector<2x1024xf32>
    %250 = vector.extract_strided_slice %188 {offsets = [24, 0], sizes = [2, 128], strides = [1, 1]} : vector<32x128xbf16> to vector<2x128xbf16>
    %c12_200 = arith.constant 12 : index
    %c0_201 = arith.constant 0 : index
    %c0_202 = arith.constant 0 : index
    %251 = vector.load %arg6[%c12_200, %c0_201, %c0_202] : memref<16x128x1024xbf16, #tpu.memory_space<vmem>>, vector<1x128x1024xbf16>
    %252 = vector.shape_cast %251 : vector<1x128x1024xbf16> to vector<128x1024xbf16>
    %cst_203 = arith.constant dense<0.000000e+00> : vector<2x1024xf32>
    %253 = tpu.matmul %250, %252, %cst_203 {dimension_numbers = #tpu.dot_dimension_numbers<[1], [0], [0], [1], [0, 0, 1, 1], [], []>} : vector<2x128xbf16>, vector<128x1024xbf16>, vector<2x1024xf32> -> vector<2x1024xf32>
    %254 = arith.addf %249, %253 : vector<2x1024xf32>
    %255 = vector.extract_strided_slice %188 {offsets = [26, 0], sizes = [2, 128], strides = [1, 1]} : vector<32x128xbf16> to vector<2x128xbf16>
    %c13_204 = arith.constant 13 : index
    %c0_205 = arith.constant 0 : index
    %c0_206 = arith.constant 0 : index
    %256 = vector.load %arg6[%c13_204, %c0_205, %c0_206] : memref<16x128x1024xbf16, #tpu.memory_space<vmem>>, vector<1x128x1024xbf16>
    %257 = vector.shape_cast %256 : vector<1x128x1024xbf16> to vector<128x1024xbf16>
    %cst_207 = arith.constant dense<0.000000e+00> : vector<2x1024xf32>
    %258 = tpu.matmul %255, %257, %cst_207 {dimension_numbers = #tpu.dot_dimension_numbers<[1], [0], [0], [1], [0, 0, 1, 1], [], []>} : vector<2x128xbf16>, vector<128x1024xbf16>, vector<2x1024xf32> -> vector<2x1024xf32>
    %259 = arith.addf %254, %258 : vector<2x1024xf32>
    %260 = vector.extract_strided_slice %188 {offsets = [28, 0], sizes = [2, 128], strides = [1, 1]} : vector<32x128xbf16> to vector<2x128xbf16>
    %c14_208 = arith.constant 14 : index
    %c0_209 = arith.constant 0 : index
    %c0_210 = arith.constant 0 : index
    %261 = vector.load %arg6[%c14_208, %c0_209, %c0_210] : memref<16x128x1024xbf16, #tpu.memory_space<vmem>>, vector<1x128x1024xbf16>
    %262 = vector.shape_cast %261 : vector<1x128x1024xbf16> to vector<128x1024xbf16>
    %cst_211 = arith.constant dense<0.000000e+00> : vector<2x1024xf32>
    %263 = tpu.matmul %260, %262, %cst_211 {dimension_numbers = #tpu.dot_dimension_numbers<[1], [0], [0], [1], [0, 0, 1, 1], [], []>} : vector<2x128xbf16>, vector<128x1024xbf16>, vector<2x1024xf32> -> vector<2x1024xf32>
    %264 = arith.addf %259, %263 : vector<2x1024xf32>
    %265 = vector.extract_strided_slice %188 {offsets = [30, 0], sizes = [2, 128], strides = [1, 1]} : vector<32x128xbf16> to vector<2x128xbf16>
    %c15_212 = arith.constant 15 : index
    %c0_213 = arith.constant 0 : index
    %c0_214 = arith.constant 0 : index
    %266 = vector.load %arg6[%c15_212, %c0_213, %c0_214] : memref<16x128x1024xbf16, #tpu.memory_space<vmem>>, vector<1x128x1024xbf16>
    %267 = vector.shape_cast %266 : vector<1x128x1024xbf16> to vector<128x1024xbf16>
    %cst_215 = arith.constant dense<0.000000e+00> : vector<2x1024xf32>
    %268 = tpu.matmul %265, %267, %cst_215 {dimension_numbers = #tpu.dot_dimension_numbers<[1], [0], [0], [1], [0, 0, 1, 1], [], []>} : vector<2x128xbf16>, vector<128x1024xbf16>, vector<2x1024xf32> -> vector<2x1024xf32>
    %269 = arith.addf %264, %268 : vector<2x1024xf32>
    %c0_216 = arith.constant 0 : index
    %c0_217 = arith.constant 0 : index
    %270 = vector.load %arg7[%c0_216, %c0_217] : memref<1x1024xf32, #tpu.memory_space<vmem>>, vector<1x1024xf32>
    %271 = vector.broadcast %270 : vector<1x1024xf32> to vector<2x1024xf32>
    %272 = arith.addf %269, %271 : vector<2x1024xf32>
    %cst_218 = arith.constant dense<0.000000e+00> : vector<1024xf32>
    %273 = vector.multi_reduction <add>, %272, %cst_218 [0] : vector<2x1024xf32> to vector<1024xf32>
    %274 = vector.shape_cast %273 : vector<1024xf32> to vector<1x1024xf32>
    %cst_219 = arith.constant 2.000000e+00 : f32
    %275 = vector.broadcast %cst_219 : f32 to vector<1x1024xf32>
    %276 = arith.divf %274, %275 : vector<1x1024xf32>
    %277 = vector.broadcast %276 : vector<1x1024xf32> to vector<2x1024xf32>
    %278 = arith.subf %272, %277 : vector<2x1024xf32>
    %279 = arith.mulf %278, %278 : vector<2x1024xf32>
    %cst_220 = arith.constant dense<0.000000e+00> : vector<1024xf32>
    %280 = vector.multi_reduction <add>, %279, %cst_220 [0] : vector<2x1024xf32> to vector<1024xf32>
    %281 = vector.shape_cast %280 : vector<1024xf32> to vector<1x1024xf32>
    %cst_221 = arith.constant 2.000000e+00 : f32
    %282 = vector.broadcast %cst_221 : f32 to vector<1x1024xf32>
    %283 = arith.divf %281, %282 : vector<1x1024xf32>
    %284 = vector.broadcast %276 : vector<1x1024xf32> to vector<2x1024xf32>
    %285 = arith.subf %272, %284 : vector<2x1024xf32>
    %cst_222 = arith.constant 9.99999974E-6 : f32
    %286 = vector.broadcast %cst_222 : f32 to vector<1x1024xf32>
    %287 = arith.addf %283, %286 : vector<1x1024xf32>
    %288 = math.rsqrt %287 : vector<1x1024xf32>
    %289 = vector.broadcast %288 : vector<1x1024xf32> to vector<2x1024xf32>
    %290 = arith.mulf %285, %289 : vector<2x1024xf32>
    %cst_223 = arith.constant 0.000000e+00 : f32
    %291 = vector.broadcast %cst_223 : f32 to vector<2x1024xf32>
    %292 = arith.cmpf oge, %290, %291 : vector<2x1024xf32>
    %cst_224 = arith.constant 2.000000e-01 : f32
    %293 = vector.broadcast %cst_224 : f32 to vector<2x1024xf32>
    %294 = arith.mulf %293, %290 : vector<2x1024xf32>
    %295 = arith.select %292, %290, %294 : vector<2x1024xi1>, vector<2x1024xf32>
    %296 = arith.truncf %295 : vector<2x1024xf32> to vector<2x1024xbf16>
    %c0_225 = arith.constant 0 : index
    %c0_226 = arith.constant 0 : index
    %297 = vector.load %arg8[%c0_225, %c0_226] : memref<1024x128xbf16, #tpu.memory_space<vmem>>, vector<1024x128xbf16>
    %cst_227 = arith.constant dense<0.000000e+00> : vector<2x128xf32>
    %298 = tpu.matmul %296, %297, %cst_227 {dimension_numbers = #tpu.dot_dimension_numbers<[1], [0], [0], [1], [0, 0, 1, 1], [], []>} : vector<2x1024xbf16>, vector<1024x128xbf16>, vector<2x128xf32> -> vector<2x128xf32>
    %c0_228 = arith.constant 0 : index
    %c0_229 = arith.constant 0 : index
    %299 = vector.load %arg9[%c0_228, %c0_229] : memref<1x128xf32, #tpu.memory_space<vmem>>, vector<1x128xf32>
    %300 = vector.broadcast %299 : vector<1x128xf32> to vector<2x128xf32>
    %301 = arith.addf %298, %300 : vector<2x128xf32>
    %302 = arith.negf %301 : vector<2x128xf32>
    %303 = math.exp %302 : vector<2x128xf32>
    %cst_230 = arith.constant 1.000000e+00 : f32
    %304 = vector.broadcast %cst_230 : f32 to vector<2x128xf32>
    %305 = arith.addf %304, %303 : vector<2x128xf32>
    %306 = arith.divf %304, %305 : vector<2x128xf32>
    %c0_231 = arith.constant 0 : index
    %c0_232 = arith.constant 0 : index
    %307 = vector.load %arg10[%c0_231, %c0_232] : memref<2x128xf32, #tpu.memory_space<vmem>>, vector<2x128xf32>
    tpu.vector_store %arg10[%c0_231, %c0_232], %306 {strides = array<i32>} : memref<2x128xf32, #tpu.memory_space<vmem>>, vector<2x128xf32>,
    return
  }
  func.func @transform_0(%arg0: i32) -> (i32, i32) {
    %c0_i32 = arith.constant 0 : i32
    %c0_i32_0 = arith.constant 0 : i32
    %c0_i32_1 = arith.constant 0 : i32
    return %c0_i32, %c0_i32_0 : i32, i32
  }
  func.func @transform_1(%arg0: i32) -> (i32, i32) {
    %c0_i32 = arith.constant 0 : i32
    %c0_i32_0 = arith.constant 0 : i32
    %c0_i32_1 = arith.constant 0 : i32
    return %c0_i32, %c0_i32_0 : i32, i32
  }
  func.func @transform_2(%arg0: i32) -> (i32, i32) {
    %c0_i32 = arith.constant 0 : i32
    %c0_i32_0 = arith.constant 0 : i32
    %c0_i32_1 = arith.constant 0 : i32
    return %c0_i32, %c0_i32_0 : i32, i32
  }
  func.func @transform_3(%arg0: i32) -> (i32, i32, i32) {
    %c0_i32 = arith.constant 0 : i32
    %c0_i32_0 = arith.constant 0 : i32
    %c0_i32_1 = arith.constant 0 : i32
    %c0_i32_2 = arith.constant 0 : i32
    return %c0_i32, %c0_i32_0, %c0_i32_1 : i32, i32, i32
  }
  func.func @transform_4(%arg0: i32) -> (i32, i32) {
    %c0_i32 = arith.constant 0 : i32
    %c0_i32_0 = arith.constant 0 : i32
    %c0_i32_1 = arith.constant 0 : i32
    return %c0_i32, %c0_i32_0 : i32, i32
  }
  func.func @transform_5(%arg0: i32) -> (i32, i32, i32) {
    %c0_i32 = arith.constant 0 : i32
    %c0_i32_0 = arith.constant 0 : i32
    %c0_i32_1 = arith.constant 0 : i32
    %c0_i32_2 = arith.constant 0 : i32
    return %c0_i32, %c0_i32_0, %c0_i32_1 : i32, i32, i32
  }
  func.func @transform_6(%arg0: i32) -> (i32, i32) {
    %c0_i32 = arith.constant 0 : i32
    %c0_i32_0 = arith.constant 0 : i32
    %c0_i32_1 = arith.constant 0 : i32
    return %c0_i32, %c0_i32_0 : i32, i32
  }
  func.func @transform_7(%arg0: i32) -> (i32, i32) {
    %c0_i32 = arith.constant 0 : i32
    %c0_i32_0 = arith.constant 0 : i32
    %c0_i32_1 = arith.constant 0 : i32
    return %c0_i32, %c0_i32_0 : i32, i32
  }
  func.func @transform_8(%arg0: i32) -> (i32, i32) {
    %c0_i32 = arith.constant 0 : i32
    %c0_i32_0 = arith.constant 0 : i32
    %c0_i32_1 = arith.constant 0 : i32
    return %c0_i32, %c0_i32_0 : i32, i32
  }
  func.func @transform_9(%arg0: i32) -> (i32, i32) {
    %c0_i32 = arith.constant 0 : i32
    %c0_i32_0 = arith.constant 0 : i32
    %c0_i32_1 = arith.constant 0 : i32
    return %c0_i32, %c0_i32_0 : i32, i32
  }
}

</mosaic_0001>

<llo_original>
// kernel: discriminator_forward.1
$region0: #{discriminator_forward.1}
  #allocation0 [shape = 'u32[]', space=smem, size = 0x4, offset = 0x4, fixed_abs, tag = 'smem constant byte address 0x4 - core index']
  #allocation1 [shape = 'u32[144,128]{1,0:T(1,128)}', space=vmem, size = 0x12000, scoped, tag = 'internal scratch']
  #allocation2 [shape = 'f32[4,5,10,64]{3,2,1,0:T(8,128)}', space=vmem, size = 0x28000, scoped, tag = 'scratch operand']
  %s0 = inlined_call_operand.vmem [shape: bf16[128,16], index: 0, kind: input, shape index: {}]
  %s1 = inlined_call_operand.hbm [shape: bf16[16,64], index: 1, kind: input, shape index: {}]
  %s2 = inlined_call_operand.hbm [shape: f32[1,64], index: 2, kind: input, shape index: {}]
  %s3 = inlined_call_operand.hbm [shape: bf16[16,64,128], index: 3, kind: input, shape index: {}]
  %s4 = inlined_call_operand.hbm [shape: f32[1,128], index: 4, kind: input, shape index: {}]
  %s5 = inlined_call_operand.hbm [shape: bf16[16,128,1024], index: 5, kind: input, shape index: {}]
  %s6 = inlined_call_operand.hbm [shape: f32[1,1024], index: 6, kind: input, shape index: {}]
  %s7 = inlined_call_operand.hbm [shape: bf16[1024,128], index: 7, kind: input, shape index: {}]
  %s8 = inlined_call_operand.hbm [shape: f32[1,128], index: 8, kind: input, shape index: {}]
  %s9 = inlined_call_operand.vmem [shape: f32[2,128], index: 9, kind: output, shape index: {}]
  %s10 = sld [smem:[#allocation0]]
  $region78: #{discriminator_forward.1} parent=0
    _
  %s12 = ssub.s32 1, %s10
  %s13 = scalar_select 0, %s12, %s10
  $region1: #{discriminator_forward.1} parent=0
    #allocation3 [shape = 'u8[4096]{0}', space=vmem, size = 0x1000, scoped, tag = 'input window, operand 1, single buffered']
    #allocation4 [shape = 's32[1]{0}', space=sflag, size = 0x4, scoped, tag = 'scoped memory for discriminator_forward.1']
    #allocation5 [shape = 'u8[512]{0}', space=vmem, size = 0x400, scoped, tag = 'input window, operand 2, single buffered']
    #allocation6 [shape = 's32[1]{0}', space=sflag, size = 0x4, scoped, tag = 'scoped memory for discriminator_forward.1']
    #allocation7 [shape = 'u8[262144]{0}', space=vmem, size = 0x40000, scoped, tag = 'input window, operand 3, single buffered']
    #allocation8 [shape = 'u8[512]{0}', space=vmem, size = 0x400, scoped, tag = 'input window, operand 4, single buffered']
    #allocation9 [shape = 's32[1]{0}', space=sflag, size = 0x4, scoped, tag = 'scoped memory for discriminator_forward.1']
    #allocation10 [shape = 'u8[4194304]{0}', space=vmem, size = 0x400000, scoped, tag = 'input window, operand 5, single buffered']
    #allocation11 [shape = 'u8[4096]{0}', space=vmem, size = 0x1000, scoped, tag = 'input window, operand 6, single buffered']
    #allocation12 [shape = 's32[1]{0}', space=sflag, size = 0x4, scoped, tag = 'scoped memory for discriminator_forward.1']
    #allocation13 [shape = 'u8[262144]{0}', space=vmem, size = 0x40000, scoped, tag = 'input window, operand 7, single buffered']
    #allocation14 [shape = 'u8[512]{0}', space=vmem, size = 0x400, scoped, tag = 'input window, operand 8, single buffered']
    #allocation15 [shape = 's32[1]{0}', space=sflag, size = 0x4, scoped, tag = 'scoped memory for discriminator_forward.1']
    %14 = vsyncpa [#allocation4], 0
    %15 = vsyncpa [#allocation6], 0
    %16 = vsyncpa [#allocation9], 0
    %17 = vsyncpa [#allocation12], 0
    %18 = vsyncpa [#allocation15], 0
    // Predicated region
    $region2: #{discriminator_forward.1} parent=1 // pred_check
      _
    $region3: #{discriminator_forward.1} parent=1 // pred_check_branch
      %20 = sbr.rel (0) target = $region5
    $region4: #{discriminator_forward.1} parent=1 // pred_region
      _
    $region5: #{discriminator_forward.1} parent=1 // pred_fallthru
      _
    // Predicated region
    $region6: #{discriminator_forward.1} parent=1 // pred_check
      _
    $region7: #{discriminator_forward.1} parent=1 // pred_check_branch
      %22 = sbr.rel (0) target = $region9
    $region8: #{discriminator_forward.1} parent=1 // pred_region
      %s24 = ssub.s32 128, 128
      %25 = vsyncadd [#allocation4], %s24
      %s26 = sshll.u32 [#allocation3], 4
      %s27 = int_to_ptr.vmem [resolvable:$true] %s26
      %32 = dma.hbm_to_vmem [thread:$0]  %s1, 128, %s27, [#allocation4], 64, 64, 4
    $region9: #{discriminator_forward.1} parent=1 // pred_fallthru
      _
    // Predicated region
    $region10: #{discriminator_forward.1} parent=1 // pred_check
      _
    $region11: #{discriminator_forward.1} parent=1 // pred_check_branch
      %34 = sbr.rel (0) target = $region13
    $region12: #{discriminator_forward.1} parent=1 // pred_region
      %s36 = ssub.s32 16, 16
      %37 = vsyncadd [#allocation6], %s36
      %s39 = sshll.u32 [#allocation5], 4
      %s40 = int_to_ptr.vmem [resolvable:$true] %s39
      %42 = dma.hbm_to_vmem [thread:$0]  %s2, 16, %s40, [#allocation6]
    $region13: #{discriminator_forward.1} parent=1 // pred_fallthru
      _
    // Predicated region
    $region14: #{discriminator_forward.1} parent=1 // pred_check
      _
    $region15: #{discriminator_forward.1} parent=1 // pred_check_branch
      %44 = sbr.rel (0) target = $region17
    $region16: #{discriminator_forward.1} parent=1 // pred_region
      %s46 = ssub.s32 8192, 8192
      %47 = vsyncadd [#allocation6], %s46
      %s48 = sshll.u32 [#allocation7], 4
      %s49 = int_to_ptr.vmem [resolvable:$true] %s48
      %54 = dma.hbm_to_vmem [thread:$0]  %s3, 8192, %s49, [#allocation6], 64, 64, 4
    $region17: #{discriminator_forward.1} parent=1 // pred_fallthru
      _
    // Predicated region
    $region18: #{discriminator_forward.1} parent=1 // pred_check
      _
    $region19: #{discriminator_forward.1} parent=1 // pred_check_branch
      %56 = sbr.rel (0) target = $region21
    $region20: #{discriminator_forward.1} parent=1 // pred_region
      %s58 = ssub.s32 16, 16
      %59 = vsyncadd [#allocation9], %s58
      %s61 = sshll.u32 [#allocation8], 4
      %s62 = int_to_ptr.vmem [resolvable:$true] %s61
      %64 = dma.hbm_to_vmem [thread:$0]  %s4, 16, %s62, [#allocation9]
    $region21: #{discriminator_forward.1} parent=1 // pred_fallthru
      _
    // Predicated region
    $region22: #{discriminator_forward.1} parent=1 // pred_check
      _
    $region23: #{discriminator_forward.1} parent=1 // pred_check_branch
      %66 = sbr.rel (0) target = $region25
    $region24: #{discriminator_forward.1} parent=1 // pred_region
      %s68 = ssub.s32 131072, 131072
      %69 = vsyncadd [#allocation9], %s68
      %s70 = sshll.u32 [#allocation10], 4
      %s71 = int_to_ptr.vmem [resolvable:$true] %s70
      %76 = dma.hbm_to_vmem [thread:$0]  %s5, 131072, %s71, [#allocation9], 512, 512, 32
    $region25: #{discriminator_forward.1} parent=1 // pred_fallthru
      _
    // Predicated region
    $region26: #{discriminator_forward.1} parent=1 // pred_check
      _
    $region27: #{discriminator_forward.1} parent=1 // pred_check_branch
      %78 = sbr.rel (0) target = $region29
    $region28: #{discriminator_forward.1} parent=1 // pred_region
      %s80 = ssub.s32 128, 128
      %81 = vsyncadd [#allocation12], %s80
      %s83 = sshll.u32 [#allocation11], 4
      %s84 = int_to_ptr.vmem [resolvable:$true] %s83
      %86 = dma.hbm_to_vmem [thread:$0]  %s6, 128, %s84, [#allocation12]
    $region29: #{discriminator_forward.1} parent=1 // pred_fallthru
      _
    // Predicated region
    $region30: #{discriminator_forward.1} parent=1 // pred_check
      _
    $region31: #{discriminator_forward.1} parent=1 // pred_check_branch
      %88 = sbr.rel (0) target = $region33
    $region32: #{discriminator_forward.1} parent=1 // pred_region
      %s90 = ssub.s32 8192, 8192
      %91 = vsyncadd [#allocation12], %s90
      %s92 = sshll.u32 [#allocation13], 4
      %s93 = int_to_ptr.vmem [resolvable:$true] %s92
      %98 = dma.hbm_to_vmem [thread:$0]  %s7, 8192, %s93, [#allocation12], 64, 64, 4
    $region33: #{discriminator_forward.1} parent=1 // pred_fallthru
      _
    // Predicated region
    $region34: #{discriminator_forward.1} parent=1 // pred_check
      _
    $region35: #{discriminator_forward.1} parent=1 // pred_check_branch
      %100 = sbr.rel (0) target = $region37
    $region36: #{discriminator_forward.1} parent=1 // pred_region
      %s102 = ssub.s32 16, 16
      %103 = vsyncadd [#allocation15], %s102
      %s105 = sshll.u32 [#allocation14], 4
      %s106 = int_to_ptr.vmem [resolvable:$true] %s105
      %108 = dma.hbm_to_vmem [thread:$0]  %s8, 16, %s106, [#allocation15]
    $region37: #{discriminator_forward.1} parent=1 // pred_fallthru
      _
    // Predicated region
    $region38: #{discriminator_forward.1} parent=1 // pred_check
      _
    $region39: #{discriminator_forward.1} parent=1 // pred_check_branch
      %110 = sbr.rel (0) target = $region41
    $region40: #{discriminator_forward.1} parent=1 // pred_region
      %111 = dma.done [#allocation4], 128
    $region41: #{discriminator_forward.1} parent=1 // pred_fallthru
      _
    // Predicated region
    $region42: #{discriminator_forward.1} parent=1 // pred_check
      _
    $region43: #{discriminator_forward.1} parent=1 // pred_check_branch
      %113 = sbr.rel (0) target = $region45
    $region44: #{discriminator_forward.1} parent=1 // pred_region
      %114 = dma.done [#allocation6], 16
    $region45: #{discriminator_forward.1} parent=1 // pred_fallthru
      _
    // Predicated region
    $region46: #{discriminator_forward.1} parent=1 // pred_check
      _
    $region47: #{discriminator_forward.1} parent=1 // pred_check_branch
      %116 = sbr.rel (0) target = $region49
    $region48: #{discriminator_forward.1} parent=1 // pred_region
      %117 = dma.done [#allocation6], 8192
    $region49: #{discriminator_forward.1} parent=1 // pred_fallthru
      _
    // Predicated region
    $region50: #{discriminator_forward.1} parent=1 // pred_check
      _
    $region51: #{discriminator_forward.1} parent=1 // pred_check_branch
      %119 = sbr.rel (0) target = $region53
    $region52: #{discriminator_forward.1} parent=1 // pred_region
      %120 = dma.done [#allocation9], 16
    $region53: #{discriminator_forward.1} parent=1 // pred_fallthru
      _
    // Predicated region
    $region54: #{discriminator_forward.1} parent=1 // pred_check
      _
    $region55: #{discriminator_forward.1} parent=1 // pred_check_branch
      %122 = sbr.rel (0) target = $region57
    $region56: #{discriminator_forward.1} parent=1 // pred_region
      %123 = dma.done [#allocation9], 131072
    $region57: #{discriminator_forward.1} parent=1 // pred_fallthru
      _
    // Predicated region
    $region58: #{discriminator_forward.1} parent=1 // pred_check
      _
    $region59: #{discriminator_forward.1} parent=1 // pred_check_branch
      %125 = sbr.rel (0) target = $region61
    $region60: #{discriminator_forward.1} parent=1 // pred_region
      %126 = dma.done [#allocation12], 128
    $region61: #{discriminator_forward.1} parent=1 // pred_fallthru
      _
    // Predicated region
    $region62: #{discriminator_forward.1} parent=1 // pred_check
      _
    $region63: #{discriminator_forward.1} parent=1 // pred_check_branch
      %128 = sbr.rel (0) target = $region65
    $region64: #{discriminator_forward.1} parent=1 // pred_region
      %129 = dma.done [#allocation12], 8192
    $region65: #{discriminator_forward.1} parent=1 // pred_fallthru
      _
    // Predicated region
    $region66: #{discriminator_forward.1} parent=1 // pred_check
      _
    $region67: #{discriminator_forward.1} parent=1 // pred_check_branch
      %131 = sbr.rel (0) target = $region69
    $region68: #{discriminator_forward.1} parent=1 // pred_region
      %132 = dma.done [#allocation15], 16
    $region69: #{discriminator_forward.1} parent=1 // pred_fallthru
      _
    %v134 = vld [vmem:[%s0] sm:$0xf]
    %v135 = vld [vmem:[%s0 + $0x4] sm:$0xf]
    %v136 = vld [vmem:[%s0 + $0x8] sm:$0xf]
    %v137 = vld [vmem:[%s0 + $0xc] sm:$0xf]
    %v138 = vld [vmem:[%s0 + $0x10] sm:$0xf]
    %v139 = vld [vmem:[%s0 + $0x14] sm:$0xf]
    %v140 = vld [vmem:[%s0 + $0x18] sm:$0xf]
    %v141 = vld [vmem:[%s0 + $0x1c] sm:$0xf]
    %v142 = vld [vmem:[%s0 + $0x20] sm:$0xf]
    %v143 = vld [vmem:[%s0 + $0x24] sm:$0xf]
    %v144 = vld [vmem:[%s0 + $0x28] sm:$0xf]
    %v145 = vld [vmem:[%s0 + $0x2c] sm:$0xf]
    %v146 = vld [vmem:[%s0 + $0x30] sm:$0xf]
    %v147 = vld [vmem:[%s0 + $0x34] sm:$0xf]
    %v148 = vld [vmem:[%s0 + $0x38] sm:$0xf]
    %v149 = vld [vmem:[%s0 + $0x3c] sm:$0xf]
    %v150 = vld [vmem:[#allocation3] sm:$0xf]
    %v151 = vld [vmem:[#allocation3 + $0x4] sm:$0xf]
    %v152 = vld [vmem:[#allocation5] sm:$0x1]
    %v154 = vlaneseq
    %v155 = vshrl.u32 %v154, 7
    %v156 = vsub.s32 0, %v155
    %v157 = vrot.slane %v152, %v156
    %v175 = vunpack.c.l.b16 %v134
    %v176 = vunpack.c.l.b16 %v135
    %v177 = vunpack.c.l.b16 %v136
    %v178 = vunpack.c.l.b16 %v137
    %v179 = vunpack.c.l.b16 %v138
    %v180 = vunpack.c.l.b16 %v139
    %v181 = vunpack.c.l.b16 %v140
    %v182 = vunpack.c.l.b16 %v141
    %v183 = vunpack.c.l.b16 %v142
    %v184 = vunpack.c.l.b16 %v143
    %v185 = vunpack.c.l.b16 %v144
    %v186 = vunpack.c.l.b16 %v145
    %v187 = vunpack.c.l.b16 %v146
    %v188 = vunpack.c.l.b16 %v147
    %v189 = vunpack.c.l.b16 %v148
    %v190 = vunpack.c.l.b16 %v149
    %v191 = vpack.c.b16 %v176, %v175
    %v192 = vpack.c.b16 %v178, %v177
    %v193 = vpack.c.b16 %v180, %v179
    %v194 = vpack.c.b16 %v182, %v181
    %v195 = vpack.c.b16 %v184, %v183
    %v196 = vpack.c.b16 %v186, %v185
    %v197 = vpack.c.b16 %v188, %v187
    %v198 = vpack.c.b16 %v190, %v189
    %v201 = vunpack.c.l.b16 %v150
    %v202 = vunpack.c.l.b16 %v151
    %v203 = vpack.c.b16 %v202, %v201
    %vm205 = vcmask 130048
    %v207 = vsel %vm205, %v191, 0
    %v210 = vsel %vm205, %v192, 0
    %v213 = vsel %vm205, %v193, 0
    %v216 = vsel %vm205, %v194, 0
    %v219 = vsel %vm205, %v195, 0
    %v222 = vsel %vm205, %v196, 0
    %v225 = vsel %vm205, %v197, 0
    %v228 = vsel %vm205, %v198, 0
    %230 = vmatprep.subr.bf16.mxu0 0
    %231 = vmatpush1.bf16.msra.mxu0 %v203
    %232 = vmatprep.subr.bf16.mxu0 0
    %233 = vmatpush1.bf16.msra.mxu0 0
    %234 = vmatprep.subr.bf16.mxu0 0
    %235 = vmatpush1.bf16.msra.mxu0 0
    %236 = vmatprep.subr.bf16.mxu0 0
    %237 = vmatpush1.bf16.msra.mxu0 0
    %238 = vmatprep.subr.bf16.mxu0 0
    %239 = vmatpush1.bf16.msra.mxu0 0
    %240 = vmatprep.subr.bf16.mxu0 0
    %241 = vmatpush1.bf16.msra.mxu0 0
    %242 = vmatprep.subr.bf16.mxu0 0
    %243 = vmatpush1.bf16.msra.mxu0 0
    %244 = vmatprep.subr.bf16.mxu0 0
    %245 = vmatpush1.bf16.msra.mxu0 0
    %246 = vmatprep.subr.bf16.mxu0 0
    %247 = vmatpush1.bf16.msra.mxu0 0
    %248 = vmatprep.subr.bf16.mxu0 0
    %249 = vmatpush1.bf16.msra.mxu0 0
    %250 = vmatprep.subr.bf16.mxu0 0
    %251 = vmatpush1.bf16.msra.mxu0 0
    %252 = vmatprep.subr.bf16.mxu0 0
    %253 = vmatpush1.bf16.msra.mxu0 0
    %254 = vmatprep.subr.bf16.mxu0 0
    %255 = vmatpush1.bf16.msra.mxu0 0
    %256 = vmatprep.subr.bf16.mxu0 0
    %257 = vmatpush1.bf16.msra.mxu0 0
    %258 = vmatprep.subr.bf16.mxu0 0
    %259 = vmatpush1.bf16.msra.mxu0 0
    %260 = vmatprep.subr.bf16.mxu0 0
    %261 = vmatpush1.bf16.msra.mxu0 0
    %262 = vmatprep.mubr.bf16.mxu0 0
    %263 = vmatmul.mubr.bf16.gmra.mrb[0].mxu0 %v207
    %v264 = vpop.f32.mrb[0].mxu0
    %v265 = vadd.f32 %v157, %v264
    %v266 = vpop.f32.mrb[0].mxu0
    %v267 = vpop.f32.mrb[0].mxu0
    %v268 = vadd.f32 %v157, %v267
    %v269 = vpop.f32.mrb[0].mxu0
    %270 = vmatprep.mubr.bf16.mxu0 0
    %271 = vmatmul.mubr.bf16.gmra.mrb[0].mxu0 %v210
    %v272 = vpop.f32.mrb[0].mxu0
    %v273 = vadd.f32 %v157, %v272
    %v274 = vpop.f32.mrb[0].mxu0
    %v275 = vpop.f32.mrb[0].mxu0
    %v276 = vadd.f32 %v157, %v275
    %v277 = vpop.f32.mrb[0].mxu0
    %278 = vmatprep.mubr.bf16.mxu0 0
    %279 = vmatmul.mubr.bf16.gmra.mrb[0].mxu0 %v213
    %v280 = vpop.f32.mrb[0].mxu0
    %v281 = vadd.f32 %v157, %v280
    %v282 = vpop.f32.mrb[0].mxu0
    %v283 = vpop.f32.mrb[0].mxu0
    %v284 = vadd.f32 %v157, %v283
    %v285 = vpop.f32.mrb[0].mxu0
    %286 = vmatprep.mubr.bf16.mxu0 0
    %287 = vmatmul.mubr.bf16.gmra.mrb[0].mxu0 %v216
    %v288 = vpop.f32.mrb[0].mxu0
    %v289 = vadd.f32 %v157, %v288
    %v290 = vpop.f32.mrb[0].mxu0
    %v291 = vpop.f32.mrb[0].mxu0
    %v292 = vadd.f32 %v157, %v291
    %v293 = vpop.f32.mrb[0].mxu0
    %294 = vmatprep.mubr.bf16.mxu0 0
    %295 = vmatmul.mubr.bf16.gmra.mrb[0].mxu0 %v219
    %v296 = vpop.f32.mrb[0].mxu0
    %v297 = vadd.f32 %v157, %v296
    %v298 = vpop.f32.mrb[0].mxu0
    %v299 = vpop.f32.mrb[0].mxu0
    %v300 = vadd.f32 %v157, %v299
    %v301 = vpop.f32.mrb[0].mxu0
    %302 = vmatprep.mubr.bf16.mxu0 0
    %303 = vmatmul.mubr.bf16.gmra.mrb[0].mxu0 %v222
    %v304 = vpop.f32.mrb[0].mxu0
    %v305 = vadd.f32 %v157, %v304
    %v306 = vpop.f32.mrb[0].mxu0
    %v307 = vpop.f32.mrb[0].mxu0
    %v308 = vadd.f32 %v157, %v307
    %v309 = vpop.f32.mrb[0].mxu0
    %310 = vmatprep.mubr.bf16.mxu0 0
    %311 = vmatmul.mubr.bf16.gmra.mrb[0].mxu0 %v225
    %v312 = vpop.f32.mrb[0].mxu0
    %v313 = vadd.f32 %v157, %v312
    %v314 = vpop.f32.mrb[0].mxu0
    %v315 = vpop.f32.mrb[0].mxu0
    %v316 = vadd.f32 %v157, %v315
    %v317 = vpop.f32.mrb[0].mxu0
    %318 = vmatprep.mubr.bf16.mxu0 0
    %319 = vmatmul.mubr.bf16.gmra.mrb[0].mxu0 %v228
    %v320 = vpop.f32.mrb[0].mxu0
    %v321 = vadd.f32 %v157, %v320
    %v322 = vpop.f32.mrb[0].mxu0
    %v323 = vpop.f32.mrb[0].mxu0
    %v324 = vadd.f32 %v157, %v323
    %v325 = vpop.f32.mrb[0].mxu0
    %326 = vdwg.mxu0
    %vm327 = vcmp.ge.f32.partialorder %v265, 0.0
    %vm328 = vcmp.ge.f32.partialorder %v268, 0.0
    %vm329 = vcmp.ge.f32.partialorder %v273, 0.0
    %vm330 = vcmp.ge.f32.partialorder %v276, 0.0
    %vm331 = vcmp.ge.f32.partialorder %v281, 0.0
    %vm332 = vcmp.ge.f32.partialorder %v284, 0.0
    %vm333 = vcmp.ge.f32.partialorder %v289, 0.0
    %vm334 = vcmp.ge.f32.partialorder %v292, 0.0
    %vm335 = vcmp.ge.f32.partialorder %v297, 0.0
    %vm336 = vcmp.ge.f32.partialorder %v300, 0.0
    %vm337 = vcmp.ge.f32.partialorder %v305, 0.0
    %vm338 = vcmp.ge.f32.partialorder %v308, 0.0
    %vm339 = vcmp.ge.f32.partialorder %v313, 0.0
    %vm340 = vcmp.ge.f32.partialorder %v316, 0.0
    %vm341 = vcmp.ge.f32.partialorder %v321, 0.0
    %vm342 = vcmp.ge.f32.partialorder %v324, 0.0
    %v343 = vmul.f32 %v265, 0.2
    %v344 = vmul.f32 %v268, 0.2
    %v345 = vmul.f32 %v273, 0.2
    %v346 = vmul.f32 %v276, 0.2
    %v347 = vmul.f32 %v281, 0.2
    %v348 = vmul.f32 %v284, 0.2
    %v349 = vmul.f32 %v289, 0.2
    %v350 = vmul.f32 %v292, 0.2
    %v351 = vmul.f32 %v297, 0.2
    %v352 = vmul.f32 %v300, 0.2
    %v353 = vmul.f32 %v305, 0.2
    %v354 = vmul.f32 %v308, 0.2
    %v355 = vmul.f32 %v313, 0.2
    %v356 = vmul.f32 %v316, 0.2
    %v357 = vmul.f32 %v321, 0.2
    %v358 = vmul.f32 %v324, 0.2
    %v359 = vsel %vm327, %v265, %v343
    %v360 = vsel %vm328, %v268, %v344
    %v361 = vsel %vm329, %v273, %v345
    %v362 = vsel %vm330, %v276, %v346
    %v363 = vsel %vm331, %v281, %v347
    %v364 = vsel %vm332, %v284, %v348
    %v365 = vsel %vm333, %v289, %v349
    %v366 = vsel %vm334, %v292, %v350
    %v367 = vsel %vm335, %v297, %v351
    %v368 = vsel %vm336, %v300, %v352
    %v369 = vsel %vm337, %v305, %v353
    %v370 = vsel %vm338, %v308, %v354
    %v371 = vsel %vm339, %v313, %v355
    %v372 = vsel %vm340, %v316, %v356
    %v373 = vsel %vm341, %v321, %v357
    %v374 = vsel %vm342, %v324, %v358
    %vm375 = vcmask 523264
    %376 = vst.msk [vmem:[#allocation2] sm:$0xff] %vm375, 0.0
    %vm377 = vcmask 517120
    %378 = vst.msk [vmem:[#allocation2 + $0x8] sm:$0x3] %vm377, 0.0
    %379 = vst.msk [vmem:[#allocation2 + $0x10] sm:$0xff] %vm375, 0.0
    %380 = vst.msk [vmem:[#allocation2 + $0x18] sm:$0x3] %vm377, 0.0
    %381 = vst.msk [vmem:[#allocation2 + $0x20] sm:$0xff] %vm375, 0.0
    %382 = vst.msk [vmem:[#allocation2 + $0x28] sm:$0x3] %vm377, 0.0
    %383 = vst.msk [vmem:[#allocation2 + $0x30] sm:$0xff] %vm375, 0.0
    %384 = vst.msk [vmem:[#allocation2 + $0x38] sm:$0x3] %vm377, 0.0
    %385 = vst.msk [vmem:[#allocation2 + $0x40] sm:$0xff] %vm375, 0.0
    %386 = vst.msk [vmem:[#allocation2 + $0x48] sm:$0x3] %vm377, 0.0
    %387 = vst.msk [vmem:[#allocation2 + $0x50] sm:$0xff] %vm375, 0.0
    %388 = vst.msk [vmem:[#allocation2 + $0x58] sm:$0x3] %vm377, 0.0
    %389 = vst.msk [vmem:[#allocation2 + $0x60] sm:$0xff] %vm375, 0.0
    %390 = vst.msk [vmem:[#allocation2 + $0x68] sm:$0x3] %vm377, 0.0
    %391 = vst.msk [vmem:[#allocation2 + $0x70] sm:$0xff] %vm375, 0.0
    %392 = vst.msk [vmem:[#allocation2 + $0x78] sm:$0x3] %vm377, 0.0
    %393 = vst.msk [vmem:[#allocation2 + $0x80] sm:$0xff] %vm375, 0.0
    %394 = vst.msk [vmem:[#allocation2 + $0x88] sm:$0x3] %vm377, 0.0
    %395 = vst.msk [vmem:[#allocation2 + $0x90] sm:$0xff] %vm375, 0.0
    %396 = vst.msk [vmem:[#allocation2 + $0x98] sm:$0x3] %vm377, 0.0
    %397 = vst.msk [vmem:[#allocation2 + $0xa0] sm:$0xff] %vm375, 0.0
    %398 = vst.msk [vmem:[#allocation2 + $0xa8] sm:$0x3] %vm377, 0.0
    %399 = vst.msk [vmem:[#allocation2 + $0xb0] sm:$0xff] %vm375, 0.0
    %400 = vst.msk [vmem:[#allocation2 + $0xb8] sm:$0x3] %vm377, 0.0
    %401 = vst.msk [vmem:[#allocation2 + $0xc0] sm:$0xff] %vm375, 0.0
    %402 = vst.msk [vmem:[#allocation2 + $0xc8] sm:$0x3] %vm377, 0.0
    %403 = vst.msk [vmem:[#allocation2 + $0xd0] sm:$0xff] %vm375, 0.0
    %404 = vst.msk [vmem:[#allocation2 + $0xd8] sm:$0x3] %vm377, 0.0
    %405 = vst.msk [vmem:[#allocation2 + $0xe0] sm:$0xff] %vm375, 0.0
    %406 = vst.msk [vmem:[#allocation2 + $0xe8] sm:$0x3] %vm377, 0.0
    %407 = vst.msk [vmem:[#allocation2 + $0xf0] sm:$0xff] %vm375, 0.0
    %408 = vst.msk [vmem:[#allocation2 + $0xf8] sm:$0x3] %vm377, 0.0
    %409 = vst.msk [vmem:[#allocation2 + $0x100] sm:$0xff] %vm375, 0.0
    %410 = vst.msk [vmem:[#allocation2 + $0x108] sm:$0x3] %vm377, 0.0
    %411 = vst.msk [vmem:[#allocation2 + $0x110] sm:$0xff] %vm375, 0.0
    %412 = vst.msk [vmem:[#allocation2 + $0x118] sm:$0x3] %vm377, 0.0
    %413 = vst.msk [vmem:[#allocation2 + $0x120] sm:$0xff] %vm375, 0.0
    %414 = vst.msk [vmem:[#allocation2 + $0x128] sm:$0x3] %vm377, 0.0
    %415 = vst.msk [vmem:[#allocation2 + $0x130] sm:$0xff] %vm375, 0.0
    %416 = vst.msk [vmem:[#allocation2 + $0x138] sm:$0x3] %vm377, 0.0
    %s417 = scalar_lea.vmem [#allocation2], 240
    %418 = vst.msk [vmem:[%s417] sm:$0xff] %vm375, %v359
    %419 = vst.msk [vmem:[%s417 + $0x10] sm:$0xff] %vm375, %v360
    %420 = vst.msk [vmem:[%s417 + $0x20] sm:$0xff] %vm375, %v361
    %421 = vst.msk [vmem:[%s417 + $0x30] sm:$0xff] %vm375, %v362
    %s422 = scalar_lea.vmem [#allocation2], 160
    %423 = vst.msk [vmem:[%s422 + $0x2] sm:$0xff] %vm375, %v363
    %424 = vst.msk [vmem:[%s422 + $0x12] sm:$0xff] %vm375, %v364
    %425 = vst.msk [vmem:[%s422 + $0x22] sm:$0xff] %vm375, %v365
    %426 = vst.msk [vmem:[%s422 + $0x32] sm:$0xff] %vm375, %v366
    %s427 = scalar_lea.vmem [#allocation2], 96
    %428 = vst.msk [vmem:[%s427] sm:$0xff] %vm375, %v367
    %429 = vst.msk [vmem:[%s427 + $0x10] sm:$0xff] %vm375, %v368
    %430 = vst.msk [vmem:[%s427 + $0x20] sm:$0xff] %vm375, %v369
    %431 = vst.msk [vmem:[%s427 + $0x30] sm:$0xff] %vm375, %v370
    %s432 = scalar_lea.vmem [#allocation2], 16
    %433 = vst.msk [vmem:[%s432 + $0x2] sm:$0xff] %vm375, %v371
    %434 = vst.msk [vmem:[%s432 + $0x12] sm:$0xff] %vm375, %v372
    %435 = vst.msk [vmem:[%s432 + $0x22] sm:$0xff] %vm375, %v373
    %436 = vst.msk [vmem:[%s432 + $0x32] sm:$0xff] %vm375, %v374
    %v437 = vld [vmem:[#allocation2] sm:$0xff]
    %v438 = vld [vmem:[#allocation2 + $0x10] sm:$0xff]
    %v439 = vld [vmem:[#allocation2 + $0x20] sm:$0xff]
    %v440 = vld [vmem:[#allocation2 + $0x30] sm:$0xff]
    %v441 = vpack.c.bf16 %v438, %v437
    %v442 = vpack.c.bf16 %v440, %v439
    %v443 = vld [vmem:[#allocation7] sm:$0xf]
    %v444 = vld [vmem:[#allocation7 + $0x4] sm:$0xf]
    %v445 = vld [vmem:[#allocation7 + $0x8] sm:$0xf]
    %v446 = vld [vmem:[#allocation7 + $0xc] sm:$0xf]
    %v447 = vld [vmem:[#allocation7 + $0x10] sm:$0xf]
    %v448 = vld [vmem:[#allocation7 + $0x14] sm:$0xf]
    %v449 = vld [vmem:[#allocation7 + $0x18] sm:$0xf]
    %v450 = vld [vmem:[#allocation7 + $0x1c] sm:$0xf]
    %s451 = scalar_lea.vmem [#allocation2], 80
    %v452 = vld [vmem:[%s451] sm:$0xff]
    %v453 = vld [vmem:[%s451 + $0x10] sm:$0xff]
    %v454 = vld [vmem:[%s451 + $0x20] sm:$0xff]
    %v455 = vld [vmem:[%s451 + $0x30] sm:$0xff]
    %v456 = vpack.c.bf16 %v453, %v452
    %v457 = vpack.c.bf16 %v455, %v454
    %s458 = scalar_lea.vmem [#allocation7], 32
    %v459 = vld [vmem:[%s458] sm:$0xf]
    %v460 = vld [vmem:[%s458 + $0x4] sm:$0xf]
    %v461 = vld [vmem:[%s458 + $0x8] sm:$0xf]
    %v462 = vld [vmem:[%s458 + $0xc] sm:$0xf]
    %v463 = vld [vmem:[%s458 + $0x10] sm:$0xf]
    %v464 = vld [vmem:[%s458 + $0x14] sm:$0xf]
    %v465 = vld [vmem:[%s458 + $0x18] sm:$0xf]
    %v466 = vld [vmem:[%s458 + $0x1c] sm:$0xf]
    %v475 = vunpack.c.l.b16 %v459
    %v476 = vunpack.c.l.b16 %v460
    %v477 = vunpack.c.l.b16 %v461
    %v478 = vunpack.c.l.b16 %v462
    %v479 = vunpack.c.l.b16 %v463
    %v480 = vunpack.c.l.b16 %v464
    %v481 = vunpack.c.l.b16 %v465
    %v482 = vunpack.c.l.b16 %v466
    %v483 = vpack.c.b16 %v476, %v475
    %v484 = vpack.c.b16 %v478, %v477
    %v485 = vpack.c.b16 %v480, %v479
    %v486 = vpack.c.b16 %v482, %v481
    %v492 = vsel %vm375, %v456, 0
    %v495 = vsel %vm375, %v457, 0
    %497 = vmatprep.subr.bf16.mxu0 0
    %498 = vmatpush1.bf16.msra.mxu0 %v483
    %499 = vmatprep.subr.bf16.mxu0 0
    %500 = vmatpush1.bf16.msra.mxu0 %v484
    %501 = vmatprep.subr.bf16.mxu0 0
    %502 = vmatpush1.bf16.msra.mxu0 %v485
    %503 = vmatprep.subr.bf16.mxu0 0
    %504 = vmatpush1.bf16.msra.mxu0 %v486
    %505 = vmatprep.subr.bf16.mxu0 0
    %506 = vmatpush1.bf16.msra.mxu0 0
    %507 = vmatprep.subr.bf16.mxu0 0
    %508 = vmatpush1.bf16.msra.mxu0 0
    %509 = vmatprep.subr.bf16.mxu0 0
    %510 = vmatpush1.bf16.msra.mxu0 0
    %511 = vmatprep.subr.bf16.mxu0 0
    %512 = vmatpush1.bf16.msra.mxu0 0
    %513 = vmatprep.subr.bf16.mxu0 0
    %514 = vmatpush1.bf16.msra.mxu0 0
    %515 = vmatprep.subr.bf16.mxu0 0
    %516 = vmatpush1.bf16.msra.mxu0 0
    %517 = vmatprep.subr.bf16.mxu0 0
    %518 = vmatpush1.bf16.msra.mxu0 0
    %519 = vmatprep.subr.bf16.mxu0 0
    %520 = vmatpush1.bf16.msra.mxu0 0
    %521 = vmatprep.subr.bf16.mxu0 0
    %522 = vmatpush1.bf16.msra.mxu0 0
    %523 = vmatprep.subr.bf16.mxu0 0
    %524 = vmatpush1.bf16.msra.mxu0 0
    %525 = vmatprep.subr.bf16.mxu0 0
    %526 = vmatpush1.bf16.msra.mxu0 0
    %527 = vmatprep.subr.bf16.mxu0 0
    %528 = vmatpush1.bf16.msra.mxu0 0
    %529 = vmatprep.mubr.bf16.mxu0 0
    %530 = vmatmul.mubr.bf16.gmra.mrb[0].mxu0 %v492
    %v531 = vpop.f32.mrb[0].mxu0
    %v532 = vadd.f32 0.0, %v531
    %v533 = vpop.f32.mrb[0].mxu0
    %v534 = vpop.f32.mrb[0].mxu0
    %v535 = vadd.f32 0.0, %v534
    %v536 = vpop.f32.mrb[0].mxu0
    %537 = vmatprep.mubr.bf16.mxu0 0
    %538 = vmatmul.mubr.bf16.gmra.mrb[0].mxu0 %v495
    %v539 = vpop.f32.mrb[0].mxu0
    %v540 = vadd.f32 0.0, %v539
    %v541 = vpop.f32.mrb[0].mxu0
    %v542 = vpop.f32.mrb[0].mxu0
    %v543 = vadd.f32 0.0, %v542
    %v544 = vpop.f32.mrb[0].mxu0
    %545 = vdwg.mxu0
    %v554 = vunpack.c.l.b16 %v443
    %v555 = vunpack.c.l.b16 %v444
    %v556 = vunpack.c.l.b16 %v445
    %v557 = vunpack.c.l.b16 %v446
    %v558 = vunpack.c.l.b16 %v447
    %v559 = vunpack.c.l.b16 %v448
    %v560 = vunpack.c.l.b16 %v449
    %v561 = vunpack.c.l.b16 %v450
    %v562 = vpack.c.b16 %v555, %v554
    %v563 = vpack.c.b16 %v557, %v556
    %v564 = vpack.c.b16 %v559, %v558
    %v565 = vpack.c.b16 %v561, %v560
    %v571 = vsel %vm375, %v441, 0
    %v574 = vsel %vm375, %v442, 0
    %576 = vmatprep.subr.bf16.mxu0 0
    %577 = vmatpush1.bf16.msra.mxu0 %v562
    %578 = vmatprep.subr.bf16.mxu0 0
    %579 = vmatpush1.bf16.msra.mxu0 %v563
    %580 = vmatprep.subr.bf16.mxu0 0
    %581 = vmatpush1.bf16.msra.mxu0 %v564
    %582 = vmatprep.subr.bf16.mxu0 0
    %583 = vmatpush1.bf16.msra.mxu0 %v565
    %584 = vmatprep.subr.bf16.mxu0 0
    %585 = vmatpush1.bf16.msra.mxu0 0
    %586 = vmatprep.subr.bf16.mxu0 0
    %587 = vmatpush1.bf16.msra.mxu0 0
    %588 = vmatprep.subr.bf16.mxu0 0
    %589 = vmatpush1.bf16.msra.mxu0 0
    %590 = vmatprep.subr.bf16.mxu0 0
    %591 = vmatpush1.bf16.msra.mxu0 0
    %592 = vmatprep.subr.bf16.mxu0 0
    %593 = vmatpush1.bf16.msra.mxu0 0
    %594 = vmatprep.subr.bf16.mxu0 0
    %595 = vmatpush1.bf16.msra.mxu0 0
    %596 = vmatprep.subr.bf16.mxu0 0
    %597 = vmatpush1.bf16.msra.mxu0 0
    %598 = vmatprep.subr.bf16.mxu0 0
    %599 = vmatpush1.bf16.msra.mxu0 0
    %600 = vmatprep.subr.bf16.mxu0 0
    %601 = vmatpush1.bf16.msra.mxu0 0
    %602 = vmatprep.subr.bf16.mxu0 0
    %603 = vmatpush1.bf16.msra.mxu0 0
    %604 = vmatprep.subr.bf16.mxu0 0
    %605 = vmatpush1.bf16.msra.mxu0 0
    %606 = vmatprep.subr.bf16.mxu0 0
    %607 = vmatpush1.bf16.msra.mxu0 0
    %608 = vmatprep.mubr.bf16.mxu0 0
    %609 = vmatmul.mubr.bf16.gmra.mrb[0].mxu0 %v571
    %v610 = vpop.f32.mrb[0].mxu0
    %v611 = vadd.f32 %v532, %v610
    %v612 = vpop.f32.mrb[0].mxu0
    %v613 = vpop.f32.mrb[0].mxu0
    %v614 = vadd.f32 %v535, %v613
    %v615 = vpop.f32.mrb[0].mxu0
    %616 = vmatprep.mubr.bf16.mxu0 0
    %617 = vmatmul.mubr.bf16.gmra.mrb[0].mxu0 %v574
    %v618 = vpop.f32.mrb[0].mxu0
    %v619 = vadd.f32 %v540, %v618
    %v620 = vpop.f32.mrb[0].mxu0
    %v621 = vpop.f32.mrb[0].mxu0
    %v622 = vadd.f32 %v543, %v621
    %v623 = vpop.f32.mrb[0].mxu0
    %624 = vdwg.mxu0
    %v625 = vld [vmem:[#allocation2 + $0x2] sm:$0xff]
    %v626 = vld [vmem:[#allocation2 + $0x12] sm:$0xff]
    %v627 = vld [vmem:[#allocation2 + $0x22] sm:$0xff]
    %v628 = vld [vmem:[#allocation2 + $0x32] sm:$0xff]
    %v629 = vpack.c.bf16 %v626, %v625
    %v630 = vpack.c.bf16 %v628, %v627
    %s631 = scalar_lea.vmem [#allocation7], 64
    %v632 = vld [vmem:[%s631] sm:$0xf]
    %v633 = vld [vmem:[%s631 + $0x4] sm:$0xf]
    %v634 = vld [vmem:[%s631 + $0x8] sm:$0xf]
    %v635 = vld [vmem:[%s631 + $0xc] sm:$0xf]
    %v636 = vld [vmem:[%s631 + $0x10] sm:$0xf]
    %v637 = vld [vmem:[%s631 + $0x14] sm:$0xf]
    %v638 = vld [vmem:[%s631 + $0x18] sm:$0xf]
    %v639 = vld [vmem:[%s631 + $0x1c] sm:$0xf]
    %v648 = vunpack.c.l.b16 %v632
    %v649 = vunpack.c.l.b16 %v633
    %v650 = vunpack.c.l.b16 %v634
    %v651 = vunpack.c.l.b16 %v635
    %v652 = vunpack.c.l.b16 %v636
    %v653 = vunpack.c.l.b16 %v637
    %v654 = vunpack.c.l.b16 %v638
    %v655 = vunpack.c.l.b16 %v639
    %v656 = vpack.c.b16 %v649, %v648
    %v657 = vpack.c.b16 %v651, %v650
    %v658 = vpack.c.b16 %v653, %v652
    %v659 = vpack.c.b16 %v655, %v654
    %v665 = vsel %vm375, %v629, 0
    %v668 = vsel %vm375, %v630, 0
    %670 = vmatprep.subr.bf16.mxu0 0
    %671 = vmatpush1.bf16.msra.mxu0 %v656
    %672 = vmatprep.subr.bf16.mxu0 0
    %673 = vmatpush1.bf16.msra.mxu0 %v657
    %674 = vmatprep.subr.bf16.mxu0 0
    %675 = vmatpush1.bf16.msra.mxu0 %v658
    %676 = vmatprep.subr.bf16.mxu0 0
    %677 = vmatpush1.bf16.msra.mxu0 %v659
    %678 = vmatprep.subr.bf16.mxu0 0
    %679 = vmatpush1.bf16.msra.mxu0 0
    %680 = vmatprep.subr.bf16.mxu0 0
    %681 = vmatpush1.bf16.msra.mxu0 0
    %682 = vmatprep.subr.bf16.mxu0 0
    %683 = vmatpush1.bf16.msra.mxu0 0
    %684 = vmatprep.subr.bf16.mxu0 0
    %685 = vmatpush1.bf16.msra.mxu0 0
    %686 = vmatprep.subr.bf16.mxu0 0
    %687 = vmatpush1.bf16.msra.mxu0 0
    %688 = vmatprep.subr.bf16.mxu0 0
    %689 = vmatpush1.bf16.msra.mxu0 0
    %690 = vmatprep.subr.bf16.mxu0 0
    %691 = vmatpush1.bf16.msra.mxu0 0
    %692 = vmatprep.subr.bf16.mxu0 0
    %693 = vmatpush1.bf16.msra.mxu0 0
    %694 = vmatprep.subr.bf16.mxu0 0
    %695 = vmatpush1.bf16.msra.mxu0 0
    %696 = vmatprep.subr.bf16.mxu0 0
    %697 = vmatpush1.bf16.msra.mxu0 0
    %698 = vmatprep.subr.bf16.mxu0 0
    %699 = vmatpush1.bf16.msra.mxu0 0
    %700 = vmatprep.subr.bf16.mxu0 0
    %701 = vmatpush1.bf16.msra.mxu0 0
    %702 = vmatprep.mubr.bf16.mxu0 0
    %703 = vmatmul.mubr.bf16.gmra.mrb[0].mxu0 %v665
    %v704 = vpop.f32.mrb[0].mxu0
    %v705 = vadd.f32 0.0, %v704
    %v706 = vpop.f32.mrb[0].mxu0
    %v707 = vpop.f32.mrb[0].mxu0
    %v708 = vadd.f32 0.0, %v707
    %v709 = vpop.f32.mrb[0].mxu0
    %710 = vmatprep.mubr.bf16.mxu0 0
    %711 = vmatmul.mubr.bf16.gmra.mrb[0].mxu0 %v668
    %v712 = vpop.f32.mrb[0].mxu0
    %v713 = vadd.f32 0.0, %v712
    %v714 = vpop.f32.mrb[0].mxu0
    %v715 = vpop.f32.mrb[0].mxu0
    %v716 = vadd.f32 0.0, %v715
    %v717 = vpop.f32.mrb[0].mxu0
    %718 = vdwg.mxu0
    %v719 = vadd.f32 %v611, %v705
    %v720 = vadd.f32 %v614, %v708
    %v721 = vadd.f32 %v619, %v713
    %v722 = vadd.f32 %v622, %v716
    %v723 = vld [vmem:[%s451 + $0x2] sm:$0xff]
    %v724 = vld [vmem:[%s451 + $0x12] sm:$0xff]
    %v725 = vld [vmem:[%s451 + $0x22] sm:$0xff]
    %v726 = vld [vmem:[%s451 + $0x32] sm:$0xff]
    %v727 = vpack.c.bf16 %v724, %v723
    %v728 = vpack.c.bf16 %v726, %v725
    %s729 = scalar_lea.vmem [#allocation7], 96
    %v730 = vld [vmem:[%s729] sm:$0xf]
    %v731 = vld [vmem:[%s729 + $0x4] sm:$0xf]
    %v732 = vld [vmem:[%s729 + $0x8] sm:$0xf]
    %v733 = vld [vmem:[%s729 + $0xc] sm:$0xf]
    %v734 = vld [vmem:[%s729 + $0x10] sm:$0xf]
    %v735 = vld [vmem:[%s729 + $0x14] sm:$0xf]
    %v736 = vld [vmem:[%s729 + $0x18] sm:$0xf]
    %v737 = vld [vmem:[%s729 + $0x1c] sm:$0xf]
    %v746 = vunpack.c.l.b16 %v730
    %v747 = vunpack.c.l.b16 %v731
    %v748 = vunpack.c.l.b16 %v732
    %v749 = vunpack.c.l.b16 %v733
    %v750 = vunpack.c.l.b16 %v734
    %v751 = vunpack.c.l.b16 %v735
    %v752 = vunpack.c.l.b16 %v736
    %v753 = vunpack.c.l.b16 %v737
    %v754 = vpack.c.b16 %v747, %v746
    %v755 = vpack.c.b16 %v749, %v748
    %v756 = vpack.c.b16 %v751, %v750
    %v757 = vpack.c.b16 %v753, %v752
    %v763 = vsel %vm375, %v727, 0
    %v766 = vsel %vm375, %v728, 0
    %768 = vmatprep.subr.bf16.mxu0 0
    %769 = vmatpush1.bf16.msra.mxu0 %v754
    %770 = vmatprep.subr.bf16.mxu0 0
    %771 = vmatpush1.bf16.msra.mxu0 %v755
    %772 = vmatprep.subr.bf16.mxu0 0
    %773 = vmatpush1.bf16.msra.mxu0 %v756
    %774 = vmatprep.subr.bf16.mxu0 0
    %775 = vmatpush1.bf16.msra.mxu0 %v757
    %776 = vmatprep.subr.bf16.mxu0 0
    %777 = vmatpush1.bf16.msra.mxu0 0
    %778 = vmatprep.subr.bf16.mxu0 0
    %779 = vmatpush1.bf16.msra.mxu0 0
    %780 = vmatprep.subr.bf16.mxu0 0
    %781 = vmatpush1.bf16.msra.mxu0 0
    %782 = vmatprep.subr.bf16.mxu0 0
    %783 = vmatpush1.bf16.msra.mxu0 0
    %784 = vmatprep.subr.bf16.mxu0 0
    %785 = vmatpush1.bf16.msra.mxu0 0
    %786 = vmatprep.subr.bf16.mxu0 0
    %787 = vmatpush1.bf16.msra.mxu0 0
    %788 = vmatprep.subr.bf16.mxu0 0
    %789 = vmatpush1.bf16.msra.mxu0 0
    %790 = vmatprep.subr.bf16.mxu0 0
    %791 = vmatpush1.bf16.msra.mxu0 0
    %792 = vmatprep.subr.bf16.mxu0 0
    %793 = vmatpush1.bf16.msra.mxu0 0
    %794 = vmatprep.subr.bf16.mxu0 0
    %795 = vmatpush1.bf16.msra.mxu0 0
    %796 = vmatprep.subr.bf16.mxu0 0
    %797 = vmatpush1.bf16.msra.mxu0 0
    %798 = vmatprep.subr.bf16.mxu0 0
    %799 = vmatpush1.bf16.msra.mxu0 0
    %800 = vmatprep.mubr.bf16.mxu0 0
    %801 = vmatmul.mubr.bf16.gmra.mrb[0].mxu0 %v763
    %v802 = vpop.f32.mrb[0].mxu0
    %v803 = vadd.f32 0.0, %v802
    %v804 = vpop.f32.mrb[0].mxu0
    %v805 = vpop.f32.mrb[0].mxu0
    %v806 = vadd.f32 0.0, %v805
    %v807 = vpop.f32.mrb[0].mxu0
    %808 = vmatprep.mubr.bf16.mxu0 0
    %809 = vmatmul.mubr.bf16.gmra.mrb[0].mxu0 %v766
    %v810 = vpop.f32.mrb[0].mxu0
    %v811 = vadd.f32 0.0, %v810
    %v812 = vpop.f32.mrb[0].mxu0
    %v813 = vpop.f32.mrb[0].mxu0
    %v814 = vadd.f32 0.0, %v813
    %v815 = vpop.f32.mrb[0].mxu0
    %816 = vdwg.mxu0
    %v817 = vadd.f32 %v719, %v803
    %v818 = vadd.f32 %v720, %v806
    %v819 = vadd.f32 %v721, %v811
    %v820 = vadd.f32 %v722, %v814
    %v821 = vld [vmem:[%s422] sm:$0xff]
    %v822 = vld [vmem:[%s422 + $0x10] sm:$0xff]
    %v823 = vld [vmem:[%s422 + $0x20] sm:$0xff]
    %v824 = vld [vmem:[%s422 + $0x30] sm:$0xff]
    %v825 = vpack.c.bf16 %v822, %v821
    %v826 = vpack.c.bf16 %v824, %v823
    %s827 = scalar_lea.vmem [#allocation7], 128
    %v828 = vld [vmem:[%s827] sm:$0xf]
    %v829 = vld [vmem:[%s827 + $0x4] sm:$0xf]
    %v830 = vld [vmem:[%s827 + $0x8] sm:$0xf]
    %v831 = vld [vmem:[%s827 + $0xc] sm:$0xf]
    %v832 = vld [vmem:[%s827 + $0x10] sm:$0xf]
    %v833 = vld [vmem:[%s827 + $0x14] sm:$0xf]
    %v834 = vld [vmem:[%s827 + $0x18] sm:$0xf]
    %v835 = vld [vmem:[%s827 + $0x1c] sm:$0xf]
    %v844 = vunpack.c.l.b16 %v828
    %v845 = vunpack.c.l.b16 %v829
    %v846 = vunpack.c.l.b16 %v830
    %v847 = vunpack.c.l.b16 %v831
    %v848 = vunpack.c.l.b16 %v832
    %v849 = vunpack.c.l.b16 %v833
    %v850 = vunpack.c.l.b16 %v834
    %v851 = vunpack.c.l.b16 %v835
    %v852 = vpack.c.b16 %v845, %v844
    %v853 = vpack.c.b16 %v847, %v846
    %v854 = vpack.c.b16 %v849, %v848
    %v855 = vpack.c.b16 %v851, %v850
    %v861 = vsel %vm375, %v825, 0
    %v864 = vsel %vm375, %v826, 0
    %866 = vmatprep.subr.bf16.mxu0 0
    %867 = vmatpush1.bf16.msra.mxu0 %v852
    %868 = vmatprep.subr.bf16.mxu0 0
    %869 = vmatpush1.bf16.msra.mxu0 %v853
    %870 = vmatprep.subr.bf16.mxu0 0
    %871 = vmatpush1.bf16.msra.mxu0 %v854
    %872 = vmatprep.subr.bf16.mxu0 0
    %873 = vmatpush1.bf16.msra.mxu0 %v855
    %874 = vmatprep.subr.bf16.mxu0 0
    %875 = vmatpush1.bf16.msra.mxu0 0
    %876 = vmatprep.subr.bf16.mxu0 0
    %877 = vmatpush1.bf16.msra.mxu0 0
    %878 = vmatprep.subr.bf16.mxu0 0
    %879 = vmatpush1.bf16.msra.mxu0 0
    %880 = vmatprep.subr.bf16.mxu0 0
    %881 = vmatpush1.bf16.msra.mxu0 0
    %882 = vmatprep.subr.bf16.mxu0 0
    %883 = vmatpush1.bf16.msra.mxu0 0
    %884 = vmatprep.subr.bf16.mxu0 0
    %885 = vmatpush1.bf16.msra.mxu0 0
    %886 = vmatprep.subr.bf16.mxu0 0
    %887 = vmatpush1.bf16.msra.mxu0 0
    %888 = vmatprep.subr.bf16.mxu0 0
    %889 = vmatpush1.bf16.msra.mxu0 0
    %890 = vmatprep.subr.bf16.mxu0 0
    %891 = vmatpush1.bf16.msra.mxu0 0
    %892 = vmatprep.subr.bf16.mxu0 0
    %893 = vmatpush1.bf16.msra.mxu0 0
    %894 = vmatprep.subr.bf16.mxu0 0
    %895 = vmatpush1.bf16.msra.mxu0 0
    %896 = vmatprep.subr.bf16.mxu0 0
    %897 = vmatpush1.bf16.msra.mxu0 0
    %898 = vmatprep.mubr.bf16.mxu0 0
    %899 = vmatmul.mubr.bf16.gmra.mrb[0].mxu0 %v861
    %v900 = vpop.f32.mrb[0].mxu0
    %v901 = vadd.f32 0.0, %v900
    %v902 = vpop.f32.mrb[0].mxu0
    %v903 = vpop.f32.mrb[0].mxu0
    %v904 = vadd.f32 0.0, %v903
    %v905 = vpop.f32.mrb[0].mxu0
    %906 = vmatprep.mubr.bf16.mxu0 0
    %907 = vmatmul.mubr.bf16.gmra.mrb[0].mxu0 %v864
    %v908 = vpop.f32.mrb[0].mxu0
    %v909 = vadd.f32 0.0, %v908
    %v910 = vpop.f32.mrb[0].mxu0
    %v911 = vpop.f32.mrb[0].mxu0
    %v912 = vadd.f32 0.0, %v911
    %v913 = vpop.f32.mrb[0].mxu0
    %914 = vdwg.mxu0
    %v915 = vadd.f32 %v817, %v901
    %v916 = vadd.f32 %v818, %v904
    %v917 = vadd.f32 %v819, %v909
    %v918 = vadd.f32 %v820, %v912
    %v919 = vld [vmem:[%s417] sm:$0xff]
    %v920 = vld [vmem:[%s417 + $0x10] sm:$0xff]
    %v921 = vld [vmem:[%s417 + $0x20] sm:$0xff]
    %v922 = vld [vmem:[%s417 + $0x30] sm:$0xff]
    %v923 = vpack.c.bf16 %v920, %v919
    %v924 = vpack.c.bf16 %v922, %v921
    %s925 = scalar_lea.vmem [#allocation7], 160
    %v926 = vld [vmem:[%s925] sm:$0xf]
    %v927 = vld [vmem:[%s925 + $0x4] sm:$0xf]
    %v928 = vld [vmem:[%s925 + $0x8] sm:$0xf]
    %v929 = vld [vmem:[%s925 + $0xc] sm:$0xf]
    %v930 = vld [vmem:[%s925 + $0x10] sm:$0xf]
    %v931 = vld [vmem:[%s925 + $0x14] sm:$0xf]
    %v932 = vld [vmem:[%s925 + $0x18] sm:$0xf]
    %v933 = vld [vmem:[%s925 + $0x1c] sm:$0xf]
    %v942 = vunpack.c.l.b16 %v926
    %v943 = vunpack.c.l.b16 %v927
    %v944 = vunpack.c.l.b16 %v928
    %v945 = vunpack.c.l.b16 %v929
    %v946 = vunpack.c.l.b16 %v930
    %v947 = vunpack.c.l.b16 %v931
    %v948 = vunpack.c.l.b16 %v932
    %v949 = vunpack.c.l.b16 %v933
    %v950 = vpack.c.b16 %v943, %v942
    %v951 = vpack.c.b16 %v945, %v944
    %v952 = vpack.c.b16 %v947, %v946
    %v953 = vpack.c.b16 %v949, %v948
    %v959 = vsel %vm375, %v923, 0
    %v962 = vsel %vm375, %v924, 0
    %964 = vmatprep.subr.bf16.mxu0 0
    %965 = vmatpush1.bf16.msra.mxu0 %v950
    %966 = vmatprep.subr.bf16.mxu0 0
    %967 = vmatpush1.bf16.msra.mxu0 %v951
    %968 = vmatprep.subr.bf16.mxu0 0
    %969 = vmatpush1.bf16.msra.mxu0 %v952
    %970 = vmatprep.subr.bf16.mxu0 0
    %971 = vmatpush1.bf16.msra.mxu0 %v953
    %972 = vmatprep.subr.bf16.mxu0 0
    %973 = vmatpush1.bf16.msra.mxu0 0
    %974 = vmatprep.subr.bf16.mxu0 0
    %975 = vmatpush1.bf16.msra.mxu0 0
    %976 = vmatprep.subr.bf16.mxu0 0
    %977 = vmatpush1.bf16.msra.mxu0 0
    %978 = vmatprep.subr.bf16.mxu0 0
    %979 = vmatpush1.bf16.msra.mxu0 0
    %980 = vmatprep.subr.bf16.mxu0 0
    %981 = vmatpush1.bf16.msra.mxu0 0
    %982 = vmatprep.subr.bf16.mxu0 0
    %983 = vmatpush1.bf16.msra.mxu0 0
    %984 = vmatprep.subr.bf16.mxu0 0
    %985 = vmatpush1.bf16.msra.mxu0 0
    %986 = vmatprep.subr.bf16.mxu0 0
    %987 = vmatpush1.bf16.msra.mxu0 0
    %988 = vmatprep.subr.bf16.mxu0 0
    %989 = vmatpush1.bf16.msra.mxu0 0
    %990 = vmatprep.subr.bf16.mxu0 0
    %991 = vmatpush1.bf16.msra.mxu0 0
    %992 = vmatprep.subr.bf16.mxu0 0
    %993 = vmatpush1.bf16.msra.mxu0 0
    %994 = vmatprep.subr.bf16.mxu0 0
    %995 = vmatpush1.bf16.msra.mxu0 0
    %996 = vmatprep.mubr.bf16.mxu0 0
    %997 = vmatmul.mubr.bf16.gmra.mrb[0].mxu0 %v959
    %v998 = vpop.f32.mrb[0].mxu0
    %v999 = vadd.f32 0.0, %v998
    %v1000 = vpop.f32.mrb[0].mxu0
    %v1001 = vpop.f32.mrb[0].mxu0
    %v1002 = vadd.f32 0.0, %v1001
    %v1003 = vpop.f32.mrb[0].mxu0
    %1004 = vmatprep.mubr.bf16.mxu0 0
    %1005 = vmatmul.mubr.bf16.gmra.mrb[0].mxu0 %v962
    %v1006 = vpop.f32.mrb[0].mxu0
    %v1007 = vadd.f32 0.0, %v1006
    %v1008 = vpop.f32.mrb[0].mxu0
    %v1009 = vpop.f32.mrb[0].mxu0
    %v1010 = vadd.f32 0.0, %v1009
    %v1011 = vpop.f32.mrb[0].mxu0
    %1012 = vdwg.mxu0
    %v1013 = vadd.f32 %v915, %v999
    %v1014 = vadd.f32 %v916, %v1002
    %v1015 = vadd.f32 %v917, %v1007
    %v1016 = vadd.f32 %v918, %v1010
    %v1017 = vld [vmem:[%s422 + $0x2] sm:$0xff]
    %v1018 = vld [vmem:[%s422 + $0x12] sm:$0xff]
    %v1019 = vld [vmem:[%s422 + $0x22] sm:$0xff]
    %v1020 = vld [vmem:[%s422 + $0x32] sm:$0xff]
    %v1021 = vpack.c.bf16 %v1018, %v1017
    %v1022 = vpack.c.bf16 %v1020, %v1019
    %s1023 = scalar_lea.vmem [#allocation7], 192
    %v1024 = vld [vmem:[%s1023] sm:$0xf]
    %v1025 = vld [vmem:[%s1023 + $0x4] sm:$0xf]
    %v1026 = vld [vmem:[%s1023 + $0x8] sm:$0xf]
    %v1027 = vld [vmem:[%s1023 + $0xc] sm:$0xf]
    %v1028 = vld [vmem:[%s1023 + $0x10] sm:$0xf]
    %v1029 = vld [vmem:[%s1023 + $0x14] sm:$0xf]
    %v1030 = vld [vmem:[%s1023 + $0x18] sm:$0xf]
    %v1031 = vld [vmem:[%s1023 + $0x1c] sm:$0xf]
    %v1040 = vunpack.c.l.b16 %v1024
    %v1041 = vunpack.c.l.b16 %v1025
    %v1042 = vunpack.c.l.b16 %v1026
    %v1043 = vunpack.c.l.b16 %v1027
    %v1044 = vunpack.c.l.b16 %v1028
    %v1045 = vunpack.c.l.b16 %v1029
    %v1046 = vunpack.c.l.b16 %v1030
    %v1047 = vunpack.c.l.b16 %v1031
    %v1048 = vpack.c.b16 %v1041, %v1040
    %v1049 = vpack.c.b16 %v1043, %v1042
    %v1050 = vpack.c.b16 %v1045, %v1044
    %v1051 = vpack.c.b16 %v1047, %v1046
    %v1057 = vsel %vm375, %v1021, 0
    %v1060 = vsel %vm375, %v1022, 0
    %1062 = vmatprep.subr.bf16.mxu0 0
    %1063 = vmatpush1.bf16.msra.mxu0 %v1048
    %1064 = vmatprep.subr.bf16.mxu0 0
    %1065 = vmatpush1.bf16.msra.mxu0 %v1049
    %1066 = vmatprep.subr.bf16.mxu0 0
    %1067 = vmatpush1.bf16.msra.mxu0 %v1050
    %1068 = vmatprep.subr.bf16.mxu0 0
    %1069 = vmatpush1.bf16.msra.mxu0 %v1051
    %1070 = vmatprep.subr.bf16.mxu0 0
    %1071 = vmatpush1.bf16.msra.mxu0 0
    %1072 = vmatprep.subr.bf16.mxu0 0
    %1073 = vmatpush1.bf16.msra.mxu0 0
    %1074 = vmatprep.subr.bf16.mxu0 0
    %1075 = vmatpush1.bf16.msra.mxu0 0
    %1076 = vmatprep.subr.bf16.mxu0 0
    %1077 = vmatpush1.bf16.msra.mxu0 0
    %1078 = vmatprep.subr.bf16.mxu0 0
    %1079 = vmatpush1.bf16.msra.mxu0 0
    %1080 = vmatprep.subr.bf16.mxu0 0
    %1081 = vmatpush1.bf16.msra.mxu0 0
    %1082 = vmatprep.subr.bf16.mxu0 0
    %1083 = vmatpush1.bf16.msra.mxu0 0
    %1084 = vmatprep.subr.bf16.mxu0 0
    %1085 = vmatpush1.bf16.msra.mxu0 0
    %1086 = vmatprep.subr.bf16.mxu0 0
    %1087 = vmatpush1.bf16.msra.mxu0 0
    %1088 = vmatprep.subr.bf16.mxu0 0
    %1089 = vmatpush1.bf16.msra.mxu0 0
    %1090 = vmatprep.subr.bf16.mxu0 0
    %1091 = vmatpush1.bf16.msra.mxu0 0
    %1092 = vmatprep.subr.bf16.mxu0 0
    %1093 = vmatpush1.bf16.msra.mxu0 0
    %1094 = vmatprep.mubr.bf16.mxu0 0
    %1095 = vmatmul.mubr.bf16.gmra.mrb[0].mxu0 %v1057
    %v1096 = vpop.f32.mrb[0].mxu0
    %v1097 = vadd.f32 0.0, %v1096
    %v1098 = vpop.f32.mrb[0].mxu0
    %v1099 = vpop.f32.mrb[0].mxu0
    %v1100 = vadd.f32 0.0, %v1099
    %v1101 = vpop.f32.mrb[0].mxu0
    %1102 = vmatprep.mubr.bf16.mxu0 0
    %1103 = vmatmul.mubr.bf16.gmra.mrb[0].mxu0 %v1060
    %v1104 = vpop.f32.mrb[0].mxu0
    %v1105 = vadd.f32 0.0, %v1104
    %v1106 = vpop.f32.mrb[0].mxu0
    %v1107 = vpop.f32.mrb[0].mxu0
    %v1108 = vadd.f32 0.0, %v1107
    %v1109 = vpop.f32.mrb[0].mxu0
    %1110 = vdwg.mxu0
    %v1111 = vadd.f32 %v1013, %v1097
    %v1112 = vadd.f32 %v1014, %v1100
    %v1113 = vadd.f32 %v1015, %v1105
    %v1114 = vadd.f32 %v1016, %v1108
    %v1115 = vld [vmem:[%s417 + $0x2] sm:$0xff]
    %v1116 = vld [vmem:[%s417 + $0x12] sm:$0xff]
    %v1117 = vld [vmem:[%s417 + $0x22] sm:$0xff]
    %v1118 = vld [vmem:[%s417 + $0x32] sm:$0xff]
    %v1119 = vpack.c.bf16 %v1116, %v1115
    %v1120 = vpack.c.bf16 %v1118, %v1117
    %s1121 = scalar_lea.vmem [#allocation7], 224
    %v1122 = vld [vmem:[%s1121] sm:$0xf]
    %v1123 = vld [vmem:[%s1121 + $0x4] sm:$0xf]
    %v1124 = vld [vmem:[%s1121 + $0x8] sm:$0xf]
    %v1125 = vld [vmem:[%s1121 + $0xc] sm:$0xf]
    %v1126 = vld [vmem:[%s1121 + $0x10] sm:$0xf]
    %v1127 = vld [vmem:[%s1121 + $0x14] sm:$0xf]
    %v1128 = vld [vmem:[%s1121 + $0x18] sm:$0xf]
    %v1129 = vld [vmem:[%s1121 + $0x1c] sm:$0xf]
    %v1138 = vunpack.c.l.b16 %v1122
    %v1139 = vunpack.c.l.b16 %v1123
    %v1140 = vunpack.c.l.b16 %v1124
    %v1141 = vunpack.c.l.b16 %v1125
    %v1142 = vunpack.c.l.b16 %v1126
    %v1143 = vunpack.c.l.b16 %v1127
    %v1144 = vunpack.c.l.b16 %v1128
    %v1145 = vunpack.c.l.b16 %v1129
    %v1146 = vpack.c.b16 %v1139, %v1138
    %v1147 = vpack.c.b16 %v1141, %v1140
    %v1148 = vpack.c.b16 %v1143, %v1142
    %v1149 = vpack.c.b16 %v1145, %v1144
    %v1155 = vsel %vm375, %v1119, 0
    %v1158 = vsel %vm375, %v1120, 0
    %1160 = vmatprep.subr.bf16.mxu0 0
    %1161 = vmatpush1.bf16.msra.mxu0 %v1146
    %1162 = vmatprep.subr.bf16.mxu0 0
    %1163 = vmatpush1.bf16.msra.mxu0 %v1147
    %1164 = vmatprep.subr.bf16.mxu0 0
    %1165 = vmatpush1.bf16.msra.mxu0 %v1148
    %1166 = vmatprep.subr.bf16.mxu0 0
    %1167 = vmatpush1.bf16.msra.mxu0 %v1149
    %1168 = vmatprep.subr.bf16.mxu0 0
    %1169 = vmatpush1.bf16.msra.mxu0 0
    %1170 = vmatprep.subr.bf16.mxu0 0
    %1171 = vmatpush1.bf16.msra.mxu0 0
    %1172 = vmatprep.subr.bf16.mxu0 0
    %1173 = vmatpush1.bf16.msra.mxu0 0
    %1174 = vmatprep.subr.bf16.mxu0 0
    %1175 = vmatpush1.bf16.msra.mxu0 0
    %1176 = vmatprep.subr.bf16.mxu0 0
    %1177 = vmatpush1.bf16.msra.mxu0 0
    %1178 = vmatprep.subr.bf16.mxu0 0
    %1179 = vmatpush1.bf16.msra.mxu0 0
    %1180 = vmatprep.subr.bf16.mxu0 0
    %1181 = vmatpush1.bf16.msra.mxu0 0
    %1182 = vmatprep.subr.bf16.mxu0 0
    %1183 = vmatpush1.bf16.msra.mxu0 0
    %1184 = vmatprep.subr.bf16.mxu0 0
    %1185 = vmatpush1.bf16.msra.mxu0 0
    %1186 = vmatprep.subr.bf16.mxu0 0
    %1187 = vmatpush1.bf16.msra.mxu0 0
    %1188 = vmatprep.subr.bf16.mxu0 0
    %1189 = vmatpush1.bf16.msra.mxu0 0
    %1190 = vmatprep.subr.bf16.mxu0 0
    %1191 = vmatpush1.bf16.msra.mxu0 0
    %1192 = vmatprep.mubr.bf16.mxu0 0
    %1193 = vmatmul.mubr.bf16.gmra.mrb[0].mxu0 %v1155
    %v1194 = vpop.f32.mrb[0].mxu0
    %v1195 = vadd.f32 0.0, %v1194
    %v1196 = vpop.f32.mrb[0].mxu0
    %v1197 = vpop.f32.mrb[0].mxu0
    %v1198 = vadd.f32 0.0, %v1197
    %v1199 = vpop.f32.mrb[0].mxu0
    %1200 = vmatprep.mubr.bf16.mxu0 0
    %1201 = vmatmul.mubr.bf16.gmra.mrb[0].mxu0 %v1158
    %v1202 = vpop.f32.mrb[0].mxu0
    %v1203 = vadd.f32 0.0, %v1202
    %v1204 = vpop.f32.mrb[0].mxu0
    %v1205 = vpop.f32.mrb[0].mxu0
    %v1206 = vadd.f32 0.0, %v1205
    %v1207 = vpop.f32.mrb[0].mxu0
    %1208 = vdwg.mxu0
    %v1209 = vadd.f32 %v1111, %v1195
    %v1210 = vadd.f32 %v1112, %v1198
    %v1211 = vadd.f32 %v1113, %v1203
    %v1212 = vadd.f32 %v1114, %v1206
    %v1213 = vld [vmem:[%s432] sm:$0xff]
    %v1214 = vld [vmem:[%s432 + $0x10] sm:$0xff]
    %v1215 = vld [vmem:[%s432 + $0x20] sm:$0xff]
    %v1216 = vld [vmem:[%s432 + $0x30] sm:$0xff]
    %v1217 = vpack.c.bf16 %v1214, %v1213
    %v1218 = vpack.c.bf16 %v1216, %v1215
    %s1219 = scalar_lea.vmem [#allocation7], 256
    %v1220 = vld [vmem:[%s1219] sm:$0xf]
    %v1221 = vld [vmem:[%s1219 + $0x4] sm:$0xf]
    %v1222 = vld [vmem:[%s1219 + $0x8] sm:$0xf]
    %v1223 = vld [vmem:[%s1219 + $0xc] sm:$0xf]
    %v1224 = vld [vmem:[%s1219 + $0x10] sm:$0xf]
    %v1225 = vld [vmem:[%s1219 + $0x14] sm:$0xf]
    %v1226 = vld [vmem:[%s1219 + $0x18] sm:$0xf]
    %v1227 = vld [vmem:[%s1219 + $0x1c] sm:$0xf]
    %v1236 = vunpack.c.l.b16 %v1220
    %v1237 = vunpack.c.l.b16 %v1221
    %v1238 = vunpack.c.l.b16 %v1222
    %v1239 = vunpack.c.l.b16 %v1223
    %v1240 = vunpack.c.l.b16 %v1224
    %v1241 = vunpack.c.l.b16 %v1225
    %v1242 = vunpack.c.l.b16 %v1226
    %v1243 = vunpack.c.l.b16 %v1227
    %v1244 = vpack.c.b16 %v1237, %v1236
    %v1245 = vpack.c.b16 %v1239, %v1238
    %v1246 = vpack.c.b16 %v1241, %v1240
    %v1247 = vpack.c.b16 %v1243, %v1242
    %v1253 = vsel %vm375, %v1217, 0
    %v1256 = vsel %vm375, %v1218, 0
    %1258 = vmatprep.subr.bf16.mxu0 0
    %1259 = vmatpush1.bf16.msra.mxu0 %v1244
    %1260 = vmatprep.subr.bf16.mxu0 0
    %1261 = vmatpush1.bf16.msra.mxu0 %v1245
    %1262 = vmatprep.subr.bf16.mxu0 0
    %1263 = vmatpush1.bf16.msra.mxu0 %v1246
    %1264 = vmatprep.subr.bf16.mxu0 0
    %1265 = vmatpush1.bf16.msra.mxu0 %v1247
    %1266 = vmatprep.subr.bf16.mxu0 0
    %1267 = vmatpush1.bf16.msra.mxu0 0
    %1268 = vmatprep.subr.bf16.mxu0 0
    %1269 = vmatpush1.bf16.msra.mxu0 0
    %1270 = vmatprep.subr.bf16.mxu0 0
    %1271 = vmatpush1.bf16.msra.mxu0 0
    %1272 = vmatprep.subr.bf16.mxu0 0
    %1273 = vmatpush1.bf16.msra.mxu0 0
    %1274 = vmatprep.subr.bf16.mxu0 0
    %1275 = vmatpush1.bf16.msra.mxu0 0
    %1276 = vmatprep.subr.bf16.mxu0 0
    %1277 = vmatpush1.bf16.msra.mxu0 0
    %1278 = vmatprep.subr.bf16.mxu0 0
    %1279 = vmatpush1.bf16.msra.mxu0 0
    %1280 = vmatprep.subr.bf16.mxu0 0
    %1281 = vmatpush1.bf16.msra.mxu0 0
    %1282 = vmatprep.subr.bf16.mxu0 0
    %1283 = vmatpush1.bf16.msra.mxu0 0
    %1284 = vmatprep.subr.bf16.mxu0 0
    %1285 = vmatpush1.bf16.msra.mxu0 0
    %1286 = vmatprep.subr.bf16.mxu0 0
    %1287 = vmatpush1.bf16.msra.mxu0 0
    %1288 = vmatprep.subr.bf16.mxu0 0
    %1289 = vmatpush1.bf16.msra.mxu0 0
    %1290 = vmatprep.mubr.bf16.mxu0 0
    %1291 = vmatmul.mubr.bf16.gmra.mrb[0].mxu0 %v1253
    %v1292 = vpop.f32.mrb[0].mxu0
    %v1293 = vadd.f32 0.0, %v1292
    %v1294 = vpop.f32.mrb[0].mxu0
    %v1295 = vpop.f32.mrb[0].mxu0
    %v1296 = vadd.f32 0.0, %v1295
    %v1297 = vpop.f32.mrb[0].mxu0
    %1298 = vmatprep.mubr.bf16.mxu0 0
    %1299 = vmatmul.mubr.bf16.gmra.mrb[0].mxu0 %v1256
    %v1300 = vpop.f32.mrb[0].mxu0
    %v1301 = vadd.f32 0.0, %v1300
    %v1302 = vpop.f32.mrb[0].mxu0
    %v1303 = vpop.f32.mrb[0].mxu0
    %v1304 = vadd.f32 0.0, %v1303
    %v1305 = vpop.f32.mrb[0].mxu0
    %1306 = vdwg.mxu0
    %v1307 = vadd.f32 %v1209, %v1293
    %v1308 = vadd.f32 %v1210, %v1296
    %v1309 = vadd.f32 %v1211, %v1301
    %v1310 = vadd.f32 %v1212, %v1304
    %v1311 = vld [vmem:[%s427] sm:$0xff]
    %v1312 = vld [vmem:[%s427 + $0x10] sm:$0xff]
    %v1313 = vld [vmem:[%s427 + $0x20] sm:$0xff]
    %v1314 = vld [vmem:[%s427 + $0x30] sm:$0xff]
    %v1315 = vpack.c.bf16 %v1312, %v1311
    %v1316 = vpack.c.bf16 %v1314, %v1313
    %s1317 = scalar_lea.vmem [#allocation7], 288
    %v1318 = vld [vmem:[%s1317] sm:$0xf]
    %v1319 = vld [vmem:[%s1317 + $0x4] sm:$0xf]
    %v1320 = vld [vmem:[%s1317 + $0x8] sm:$0xf]
    %v1321 = vld [vmem:[%s1317 + $0xc] sm:$0xf]
    %v1322 = vld [vmem:[%s1317 + $0x10] sm:$0xf]
    %v1323 = vld [vmem:[%s1317 + $0x14] sm:$0xf]
    %v1324 = vld [vmem:[%s1317 + $0x18] sm:$0xf]
    %v1325 = vld [vmem:[%s1317 + $0x1c] sm:$0xf]
    %v1334 = vunpack.c.l.b16 %v1318
    %v1335 = vunpack.c.l.b16 %v1319
    %v1336 = vunpack.c.l.b16 %v1320
    %v1337 = vunpack.c.l.b16 %v1321
    %v1338 = vunpack.c.l.b16 %v1322
    %v1339 = vunpack.c.l.b16 %v1323
    %v1340 = vunpack.c.l.b16 %v1324
    %v1341 = vunpack.c.l.b16 %v1325
    %v1342 = vpack.c.b16 %v1335, %v1334
    %v1343 = vpack.c.b16 %v1337, %v1336
    %v1344 = vpack.c.b16 %v1339, %v1338
    %v1345 = vpack.c.b16 %v1341, %v1340
    %v1351 = vsel %vm375, %v1315, 0
    %v1354 = vsel %vm375, %v1316, 0
    %1356 = vmatprep.subr.bf16.mxu0 0
    %1357 = vmatpush1.bf16.msra.mxu0 %v1342
    %1358 = vmatprep.subr.bf16.mxu0 0
    %1359 = vmatpush1.bf16.msra.mxu0 %v1343
    %1360 = vmatprep.subr.bf16.mxu0 0
    %1361 = vmatpush1.bf16.msra.mxu0 %v1344
    %1362 = vmatprep.subr.bf16.mxu0 0
    %1363 = vmatpush1.bf16.msra.mxu0 %v1345
    %1364 = vmatprep.subr.bf16.mxu0 0
    %1365 = vmatpush1.bf16.msra.mxu0 0
    %1366 = vmatprep.subr.bf16.mxu0 0
    %1367 = vmatpush1.bf16.msra.mxu0 0
    %1368 = vmatprep.subr.bf16.mxu0 0
    %1369 = vmatpush1.bf16.msra.mxu0 0
    %1370 = vmatprep.subr.bf16.mxu0 0
    %1371 = vmatpush1.bf16.msra.mxu0 0
    %1372 = vmatprep.subr.bf16.mxu0 0
    %1373 = vmatpush1.bf16.msra.mxu0 0
    %1374 = vmatprep.subr.bf16.mxu0 0
    %1375 = vmatpush1.bf16.msra.mxu0 0
    %1376 = vmatprep.subr.bf16.mxu0 0
    %1377 = vmatpush1.bf16.msra.mxu0 0
    %1378 = vmatprep.subr.bf16.mxu0 0
    %1379 = vmatpush1.bf16.msra.mxu0 0
    %1380 = vmatprep.subr.bf16.mxu0 0
    %1381 = vmatpush1.bf16.msra.mxu0 0
    %1382 = vmatprep.subr.bf16.mxu0 0
    %1383 = vmatpush1.bf16.msra.mxu0 0
    %1384 = vmatprep.subr.bf16.mxu0 0
    %1385 = vmatpush1.bf16.msra.mxu0 0
    %1386 = vmatprep.subr.bf16.mxu0 0
    %1387 = vmatpush1.bf16.msra.mxu0 0
    %1388 = vmatprep.mubr.bf16.mxu0 0
    %1389 = vmatmul.mubr.bf16.gmra.mrb[0].mxu0 %v1351
    %v1390 = vpop.f32.mrb[0].mxu0
    %v1391 = vadd.f32 0.0, %v1390
    %v1392 = vpop.f32.mrb[0].mxu0
    %v1393 = vpop.f32.mrb[0].mxu0
    %v1394 = vadd.f32 0.0, %v1393
    %v1395 = vpop.f32.mrb[0].mxu0
    %1396 = vmatprep.mubr.bf16.mxu0 0
    %1397 = vmatmul.mubr.bf16.gmra.mrb[0].mxu0 %v1354
    %v1398 = vpop.f32.mrb[0].mxu0
    %v1399 = vadd.f32 0.0, %v1398
    %v1400 = vpop.f32.mrb[0].mxu0
    %v1401 = vpop.f32.mrb[0].mxu0
    %v1402 = vadd.f32 0.0, %v1401
    %v1403 = vpop.f32.mrb[0].mxu0
    %1404 = vdwg.mxu0
    %v1405 = vadd.f32 %v1307, %v1391
    %v1406 = vadd.f32 %v1308, %v1394
    %v1407 = vadd.f32 %v1309, %v1399
    %v1408 = vadd.f32 %v1310, %v1402
    %v1409 = vld [vmem:[%s432 + $0x2] sm:$0xff]
    %v1410 = vld [vmem:[%s432 + $0x12] sm:$0xff]
    %v1411 = vld [vmem:[%s432 + $0x22] sm:$0xff]
    %v1412 = vld [vmem:[%s432 + $0x32] sm:$0xff]
    %v1413 = vpack.c.bf16 %v1410, %v1409
    %v1414 = vpack.c.bf16 %v1412, %v1411
    %s1415 = scalar_lea.vmem [#allocation7], 320
    %v1416 = vld [vmem:[%s1415] sm:$0xf]
    %v1417 = vld [vmem:[%s1415 + $0x4] sm:$0xf]
    %v1418 = vld [vmem:[%s1415 + $0x8] sm:$0xf]
    %v1419 = vld [vmem:[%s1415 + $0xc] sm:$0xf]
    %v1420 = vld [vmem:[%s1415 + $0x10] sm:$0xf]
    %v1421 = vld [vmem:[%s1415 + $0x14] sm:$0xf]
    %v1422 = vld [vmem:[%s1415 + $0x18] sm:$0xf]
    %v1423 = vld [vmem:[%s1415 + $0x1c] sm:$0xf]
    %v1432 = vunpack.c.l.b16 %v1416
    %v1433 = vunpack.c.l.b16 %v1417
    %v1434 = vunpack.c.l.b16 %v1418
    %v1435 = vunpack.c.l.b16 %v1419
    %v1436 = vunpack.c.l.b16 %v1420
    %v1437 = vunpack.c.l.b16 %v1421
    %v1438 = vunpack.c.l.b16 %v1422
    %v1439 = vunpack.c.l.b16 %v1423
    %v1440 = vpack.c.b16 %v1433, %v1432
    %v1441 = vpack.c.b16 %v1435, %v1434
    %v1442 = vpack.c.b16 %v1437, %v1436
    %v1443 = vpack.c.b16 %v1439, %v1438
    %v1449 = vsel %vm375, %v1413, 0
    %v1452 = vsel %vm375, %v1414, 0
    %1454 = vmatprep.subr.bf16.mxu0 0
    %1455 = vmatpush1.bf16.msra.mxu0 %v1440
    %1456 = vmatprep.subr.bf16.mxu0 0
    %1457 = vmatpush1.bf16.msra.mxu0 %v1441
    %1458 = vmatprep.subr.bf16.mxu0 0
    %1459 = vmatpush1.bf16.msra.mxu0 %v1442
    %1460 = vmatprep.subr.bf16.mxu0 0
    %1461 = vmatpush1.bf16.msra.mxu0 %v1443
    %1462 = vmatprep.subr.bf16.mxu0 0
    %1463 = vmatpush1.bf16.msra.mxu0 0
    %1464 = vmatprep.subr.bf16.mxu0 0
    %1465 = vmatpush1.bf16.msra.mxu0 0
    %1466 = vmatprep.subr.bf16.mxu0 0
    %1467 = vmatpush1.bf16.msra.mxu0 0
    %1468 = vmatprep.subr.bf16.mxu0 0
    %1469 = vmatpush1.bf16.msra.mxu0 0
    %1470 = vmatprep.subr.bf16.mxu0 0
    %1471 = vmatpush1.bf16.msra.mxu0 0
    %1472 = vmatprep.subr.bf16.mxu0 0
    %1473 = vmatpush1.bf16.msra.mxu0 0
    %1474 = vmatprep.subr.bf16.mxu0 0
    %1475 = vmatpush1.bf16.msra.mxu0 0
    %1476 = vmatprep.subr.bf16.mxu0 0
    %1477 = vmatpush1.bf16.msra.mxu0 0
    %1478 = vmatprep.subr.bf16.mxu0 0
    %1479 = vmatpush1.bf16.msra.mxu0 0
    %1480 = vmatprep.subr.bf16.mxu0 0
    %1481 = vmatpush1.bf16.msra.mxu0 0
    %1482 = vmatprep.subr.bf16.mxu0 0
    %1483 = vmatpush1.bf16.msra.mxu0 0
    %1484 = vmatprep.subr.bf16.mxu0 0
    %1485 = vmatpush1.bf16.msra.mxu0 0
    %1486 = vmatprep.mubr.bf16.mxu0 0
    %1487 = vmatmul.mubr.bf16.gmra.mrb[0].mxu0 %v1449
    %v1488 = vpop.f32.mrb[0].mxu0
    %v1489 = vadd.f32 0.0, %v1488
    %v1490 = vpop.f32.mrb[0].mxu0
    %v1491 = vpop.f32.mrb[0].mxu0
    %v1492 = vadd.f32 0.0, %v1491
    %v1493 = vpop.f32.mrb[0].mxu0
    %1494 = vmatprep.mubr.bf16.mxu0 0
    %1495 = vmatmul.mubr.bf16.gmra.mrb[0].mxu0 %v1452
    %v1496 = vpop.f32.mrb[0].mxu0
    %v1497 = vadd.f32 0.0, %v1496
    %v1498 = vpop.f32.mrb[0].mxu0
    %v1499 = vpop.f32.mrb[0].mxu0
    %v1500 = vadd.f32 0.0, %v1499
    %v1501 = vpop.f32.mrb[0].mxu0
    %1502 = vdwg.mxu0
    %v1503 = vadd.f32 %v1405, %v1489
    %v1504 = vadd.f32 %v1406, %v1492
    %v1505 = vadd.f32 %v1407, %v1497
    %v1506 = vadd.f32 %v1408, %v1500
    %v1507 = vld [vmem:[%s427 + $0x2] sm:$0xff]
    %v1508 = vld [vmem:[%s427 + $0x12] sm:$0xff]
    %v1509 = vld [vmem:[%s427 + $0x22] sm:$0xff]
    %v1510 = vld [vmem:[%s427 + $0x32] sm:$0xff]
    %v1511 = vpack.c.bf16 %v1508, %v1507
    %v1512 = vpack.c.bf16 %v1510, %v1509
    %s1513 = scalar_lea.vmem [#allocation7], 352
    %v1514 = vld [vmem:[%s1513] sm:$0xf]
    %v1515 = vld [vmem:[%s1513 + $0x4] sm:$0xf]
    %v1516 = vld [vmem:[%s1513 + $0x8] sm:$0xf]
    %v1517 = vld [vmem:[%s1513 + $0xc] sm:$0xf]
    %v1518 = vld [vmem:[%s1513 + $0x10] sm:$0xf]
    %v1519 = vld [vmem:[%s1513 + $0x14] sm:$0xf]
    %v1520 = vld [vmem:[%s1513 + $0x18] sm:$0xf]
    %v1521 = vld [vmem:[%s1513 + $0x1c] sm:$0xf]
    %v1530 = vunpack.c.l.b16 %v1514
    %v1531 = vunpack.c.l.b16 %v1515
    %v1532 = vunpack.c.l.b16 %v1516
    %v1533 = vunpack.c.l.b16 %v1517
    %v1534 = vunpack.c.l.b16 %v1518
    %v1535 = vunpack.c.l.b16 %v1519
    %v1536 = vunpack.c.l.b16 %v1520
    %v1537 = vunpack.c.l.b16 %v1521
    %v1538 = vpack.c.b16 %v1531, %v1530
    %v1539 = vpack.c.b16 %v1533, %v1532
    %v1540 = vpack.c.b16 %v1535, %v1534
    %v1541 = vpack.c.b16 %v1537, %v1536
    %v1547 = vsel %vm375, %v1511, 0
    %v1550 = vsel %vm375, %v1512, 0
    %1552 = vmatprep.subr.bf16.mxu0 0
    %1553 = vmatpush1.bf16.msra.mxu0 %v1538
    %1554 = vmatprep.subr.bf16.mxu0 0
    %1555 = vmatpush1.bf16.msra.mxu0 %v1539
    %1556 = vmatprep.subr.bf16.mxu0 0
    %1557 = vmatpush1.bf16.msra.mxu0 %v1540
    %1558 = vmatprep.subr.bf16.mxu0 0
    %1559 = vmatpush1.bf16.msra.mxu0 %v1541
    %1560 = vmatprep.subr.bf16.mxu0 0
    %1561 = vmatpush1.bf16.msra.mxu0 0
    %1562 = vmatprep.subr.bf16.mxu0 0
    %1563 = vmatpush1.bf16.msra.mxu0 0
    %1564 = vmatprep.subr.bf16.mxu0 0
    %1565 = vmatpush1.bf16.msra.mxu0 0
    %1566 = vmatprep.subr.bf16.mxu0 0
    %1567 = vmatpush1.bf16.msra.mxu0 0
    %1568 = vmatprep.subr.bf16.mxu0 0
    %1569 = vmatpush1.bf16.msra.mxu0 0
    %1570 = vmatprep.subr.bf16.mxu0 0
    %1571 = vmatpush1.bf16.msra.mxu0 0
    %1572 = vmatprep.subr.bf16.mxu0 0
    %1573 = vmatpush1.bf16.msra.mxu0 0
    %1574 = vmatprep.subr.bf16.mxu0 0
    %1575 = vmatpush1.bf16.msra.mxu0 0
    %1576 = vmatprep.subr.bf16.mxu0 0
    %1577 = vmatpush1.bf16.msra.mxu0 0
    %1578 = vmatprep.subr.bf16.mxu0 0
    %1579 = vmatpush1.bf16.msra.mxu0 0
    %1580 = vmatprep.subr.bf16.mxu0 0
    %1581 = vmatpush1.bf16.msra.mxu0 0
    %1582 = vmatprep.subr.bf16.mxu0 0
    %1583 = vmatpush1.bf16.msra.mxu0 0
    %1584 = vmatprep.mubr.bf16.mxu0 0
    %1585 = vmatmul.mubr.bf16.gmra.mrb[0].mxu0 %v1547
    %v1586 = vpop.f32.mrb[0].mxu0
    %v1587 = vadd.f32 0.0, %v1586
    %v1588 = vpop.f32.mrb[0].mxu0
    %v1589 = vpop.f32.mrb[0].mxu0
    %v1590 = vadd.f32 0.0, %v1589
    %v1591 = vpop.f32.mrb[0].mxu0
    %1592 = vmatprep.mubr.bf16.mxu0 0
    %1593 = vmatmul.mubr.bf16.gmra.mrb[0].mxu0 %v1550
    %v1594 = vpop.f32.mrb[0].mxu0
    %v1595 = vadd.f32 0.0, %v1594
    %v1596 = vpop.f32.mrb[0].mxu0
    %v1597 = vpop.f32.mrb[0].mxu0
    %v1598 = vadd.f32 0.0, %v1597
    %v1599 = vpop.f32.mrb[0].mxu0
    %1600 = vdwg.mxu0
    %v1601 = vadd.f32 %v1503, %v1587
    %v1602 = vadd.f32 %v1504, %v1590
    %v1603 = vadd.f32 %v1505, %v1595
    %v1604 = vadd.f32 %v1506, %v1598
    %s1605 = scalar_lea.vmem [#allocation2], 176
    %v1606 = vld [vmem:[%s1605] sm:$0xff]
    %v1607 = vld [vmem:[%s1605 + $0x10] sm:$0xff]
    %v1608 = vld [vmem:[%s1605 + $0x20] sm:$0xff]
    %v1609 = vld [vmem:[%s1605 + $0x30] sm:$0xff]
    %v1610 = vpack.c.bf16 %v1607, %v1606
    %v1611 = vpack.c.bf16 %v1609, %v1608
    %s1612 = scalar_lea.vmem [#allocation7], 384
    %v1613 = vld [vmem:[%s1612] sm:$0xf]
    %v1614 = vld [vmem:[%s1612 + $0x4] sm:$0xf]
    %v1615 = vld [vmem:[%s1612 + $0x8] sm:$0xf]
    %v1616 = vld [vmem:[%s1612 + $0xc] sm:$0xf]
    %v1617 = vld [vmem:[%s1612 + $0x10] sm:$0xf]
    %v1618 = vld [vmem:[%s1612 + $0x14] sm:$0xf]
    %v1619 = vld [vmem:[%s1612 + $0x18] sm:$0xf]
    %v1620 = vld [vmem:[%s1612 + $0x1c] sm:$0xf]
    %v1629 = vunpack.c.l.b16 %v1613
    %v1630 = vunpack.c.l.b16 %v1614
    %v1631 = vunpack.c.l.b16 %v1615
    %v1632 = vunpack.c.l.b16 %v1616
    %v1633 = vunpack.c.l.b16 %v1617
    %v1634 = vunpack.c.l.b16 %v1618
    %v1635 = vunpack.c.l.b16 %v1619
    %v1636 = vunpack.c.l.b16 %v1620
    %v1637 = vpack.c.b16 %v1630, %v1629
    %v1638 = vpack.c.b16 %v1632, %v1631
    %v1639 = vpack.c.b16 %v1634, %v1633
    %v1640 = vpack.c.b16 %v1636, %v1635
    %v1646 = vsel %vm375, %v1610, 0
    %v1649 = vsel %vm375, %v1611, 0
    %1651 = vmatprep.subr.bf16.mxu0 0
    %1652 = vmatpush1.bf16.msra.mxu0 %v1637
    %1653 = vmatprep.subr.bf16.mxu0 0
    %1654 = vmatpush1.bf16.msra.mxu0 %v1638
    %1655 = vmatprep.subr.bf16.mxu0 0
    %1656 = vmatpush1.bf16.msra.mxu0 %v1639
    %1657 = vmatprep.subr.bf16.mxu0 0
    %1658 = vmatpush1.bf16.msra.mxu0 %v1640
    %1659 = vmatprep.subr.bf16.mxu0 0
    %1660 = vmatpush1.bf16.msra.mxu0 0
    %1661 = vmatprep.subr.bf16.mxu0 0
    %1662 = vmatpush1.bf16.msra.mxu0 0
    %1663 = vmatprep.subr.bf16.mxu0 0
    %1664 = vmatpush1.bf16.msra.mxu0 0
    %1665 = vmatprep.subr.bf16.mxu0 0
    %1666 = vmatpush1.bf16.msra.mxu0 0
    %1667 = vmatprep.subr.bf16.mxu0 0
    %1668 = vmatpush1.bf16.msra.mxu0 0
    %1669 = vmatprep.subr.bf16.mxu0 0
    %1670 = vmatpush1.bf16.msra.mxu0 0
    %1671 = vmatprep.subr.bf16.mxu0 0
    %1672 = vmatpush1.bf16.msra.mxu0 0
    %1673 = vmatprep.subr.bf16.mxu0 0
    %1674 = vmatpush1.bf16.msra.mxu0 0
    %1675 = vmatprep.subr.bf16.mxu0 0
    %1676 = vmatpush1.bf16.msra.mxu0 0
    %1677 = vmatprep.subr.bf16.mxu0 0
    %1678 = vmatpush1.bf16.msra.mxu0 0
    %1679 = vmatprep.subr.bf16.mxu0 0
    %1680 = vmatpush1.bf16.msra.mxu0 0
    %1681 = vmatprep.subr.bf16.mxu0 0
    %1682 = vmatpush1.bf16.msra.mxu0 0
    %1683 = vmatprep.mubr.bf16.mxu0 0
    %1684 = vmatmul.mubr.bf16.gmra.mrb[0].mxu0 %v1646
    %v1685 = vpop.f32.mrb[0].mxu0
    %v1686 = vadd.f32 0.0, %v1685
    %v1687 = vpop.f32.mrb[0].mxu0
    %v1688 = vpop.f32.mrb[0].mxu0
    %v1689 = vadd.f32 0.0, %v1688
    %v1690 = vpop.f32.mrb[0].mxu0
    %1691 = vmatprep.mubr.bf16.mxu0 0
    %1692 = vmatmul.mubr.bf16.gmra.mrb[0].mxu0 %v1649
    %v1693 = vpop.f32.mrb[0].mxu0
    %v1694 = vadd.f32 0.0, %v1693
    %v1695 = vpop.f32.mrb[0].mxu0
    %v1696 = vpop.f32.mrb[0].mxu0
    %v1697 = vadd.f32 0.0, %v1696
    %v1698 = vpop.f32.mrb[0].mxu0
    %1699 = vdwg.mxu0
    %v1700 = vadd.f32 %v1601, %v1686
    %v1701 = vadd.f32 %v1602, %v1689
    %v1702 = vadd.f32 %v1603, %v1694
    %v1703 = vadd.f32 %v1604, %v1697
    %s1704 = scalar_lea.vmem [#allocation2], 256
    %v1705 = vld [vmem:[%s1704] sm:$0xff]
    %v1706 = vld [vmem:[%s1704 + $0x10] sm:$0xff]
    %v1707 = vld [vmem:[%s1704 + $0x20] sm:$0xff]
    %v1708 = vld [vmem:[%s1704 + $0x30] sm:$0xff]
    %v1709 = vpack.c.bf16 %v1706, %v1705
    %v1710 = vpack.c.bf16 %v1708, %v1707
    %s1711 = scalar_lea.vmem [#allocation7], 416
    %v1712 = vld [vmem:[%s1711] sm:$0xf]
    %v1713 = vld [vmem:[%s1711 + $0x4] sm:$0xf]
    %v1714 = vld [vmem:[%s1711 + $0x8] sm:$0xf]
    %v1715 = vld [vmem:[%s1711 + $0xc] sm:$0xf]
    %v1716 = vld [vmem:[%s1711 + $0x10] sm:$0xf]
    %v1717 = vld [vmem:[%s1711 + $0x14] sm:$0xf]
    %v1718 = vld [vmem:[%s1711 + $0x18] sm:$0xf]
    %v1719 = vld [vmem:[%s1711 + $0x1c] sm:$0xf]
    %v1728 = vunpack.c.l.b16 %v1712
    %v1729 = vunpack.c.l.b16 %v1713
    %v1730 = vunpack.c.l.b16 %v1714
    %v1731 = vunpack.c.l.b16 %v1715
    %v1732 = vunpack.c.l.b16 %v1716
    %v1733 = vunpack.c.l.b16 %v1717
    %v1734 = vunpack.c.l.b16 %v1718
    %v1735 = vunpack.c.l.b16 %v1719
    %v1736 = vpack.c.b16 %v1729, %v1728
    %v1737 = vpack.c.b16 %v1731, %v1730
    %v1738 = vpack.c.b16 %v1733, %v1732
    %v1739 = vpack.c.b16 %v1735, %v1734
    %v1745 = vsel %vm375, %v1709, 0
    %v1748 = vsel %vm375, %v1710, 0
    %1750 = vmatprep.subr.bf16.mxu0 0
    %1751 = vmatpush1.bf16.msra.mxu0 %v1736
    %1752 = vmatprep.subr.bf16.mxu0 0
    %1753 = vmatpush1.bf16.msra.mxu0 %v1737
    %1754 = vmatprep.subr.bf16.mxu0 0
    %1755 = vmatpush1.bf16.msra.mxu0 %v1738
    %1756 = vmatprep.subr.bf16.mxu0 0
    %1757 = vmatpush1.bf16.msra.mxu0 %v1739
    %1758 = vmatprep.subr.bf16.mxu0 0
    %1759 = vmatpush1.bf16.msra.mxu0 0
    %1760 = vmatprep.subr.bf16.mxu0 0
    %1761 = vmatpush1.bf16.msra.mxu0 0
    %1762 = vmatprep.subr.bf16.mxu0 0
    %1763 = vmatpush1.bf16.msra.mxu0 0
    %1764 = vmatprep.subr.bf16.mxu0 0
    %1765 = vmatpush1.bf16.msra.mxu0 0
    %1766 = vmatprep.subr.bf16.mxu0 0
    %1767 = vmatpush1.bf16.msra.mxu0 0
    %1768 = vmatprep.subr.bf16.mxu0 0
    %1769 = vmatpush1.bf16.msra.mxu0 0
    %1770 = vmatprep.subr.bf16.mxu0 0
    %1771 = vmatpush1.bf16.msra.mxu0 0
    %1772 = vmatprep.subr.bf16.mxu0 0
    %1773 = vmatpush1.bf16.msra.mxu0 0
    %1774 = vmatprep.subr.bf16.mxu0 0
    %1775 = vmatpush1.bf16.msra.mxu0 0
    %1776 = vmatprep.subr.bf16.mxu0 0
    %1777 = vmatpush1.bf16.msra.mxu0 0
    %1778 = vmatprep.subr.bf16.mxu0 0
    %1779 = vmatpush1.bf16.msra.mxu0 0
    %1780 = vmatprep.subr.bf16.mxu0 0
    %1781 = vmatpush1.bf16.msra.mxu0 0
    %1782 = vmatprep.mubr.bf16.mxu0 0
    %1783 = vmatmul.mubr.bf16.gmra.mrb[0].mxu0 %v1745
    %v1784 = vpop.f32.mrb[0].mxu0
    %v1785 = vadd.f32 0.0, %v1784
    %v1786 = vpop.f32.mrb[0].mxu0
    %v1787 = vpop.f32.mrb[0].mxu0
    %v1788 = vadd.f32 0.0, %v1787
    %v1789 = vpop.f32.mrb[0].mxu0
    %1790 = vmatprep.mubr.bf16.mxu0 0
    %1791 = vmatmul.mubr.bf16.gmra.mrb[0].mxu0 %v1748
    %v1792 = vpop.f32.mrb[0].mxu0
    %v1793 = vadd.f32 0.0, %v1792
    %v1794 = vpop.f32.mrb[0].mxu0
    %v1795 = vpop.f32.mrb[0].mxu0
    %v1796 = vadd.f32 0.0, %v1795
    %v1797 = vpop.f32.mrb[0].mxu0
    %1798 = vdwg.mxu0
    %v1799 = vadd.f32 %v1700, %v1785
    %v1800 = vadd.f32 %v1701, %v1788
    %v1801 = vadd.f32 %v1702, %v1793
    %v1802 = vadd.f32 %v1703, %v1796
    %v1803 = vld [vmem:[%s1605 + $0x2] sm:$0xff]
    %v1804 = vld [vmem:[%s1605 + $0x12] sm:$0xff]
    %v1805 = vld [vmem:[%s1605 + $0x22] sm:$0xff]
    %v1806 = vld [vmem:[%s1605 + $0x32] sm:$0xff]
    %v1807 = vpack.c.bf16 %v1804, %v1803
    %v1808 = vpack.c.bf16 %v1806, %v1805
    %s1809 = scalar_lea.vmem [#allocation7], 448
    %v1810 = vld [vmem:[%s1809] sm:$0xf]
    %v1811 = vld [vmem:[%s1809 + $0x4] sm:$0xf]
    %v1812 = vld [vmem:[%s1809 + $0x8] sm:$0xf]
    %v1813 = vld [vmem:[%s1809 + $0xc] sm:$0xf]
    %v1814 = vld [vmem:[%s1809 + $0x10] sm:$0xf]
    %v1815 = vld [vmem:[%s1809 + $0x14] sm:$0xf]
    %v1816 = vld [vmem:[%s1809 + $0x18] sm:$0xf]
    %v1817 = vld [vmem:[%s1809 + $0x1c] sm:$0xf]
    %v1826 = vunpack.c.l.b16 %v1810
    %v1827 = vunpack.c.l.b16 %v1811
    %v1828 = vunpack.c.l.b16 %v1812
    %v1829 = vunpack.c.l.b16 %v1813
    %v1830 = vunpack.c.l.b16 %v1814
    %v1831 = vunpack.c.l.b16 %v1815
    %v1832 = vunpack.c.l.b16 %v1816
    %v1833 = vunpack.c.l.b16 %v1817
    %v1834 = vpack.c.b16 %v1827, %v1826
    %v1835 = vpack.c.b16 %v1829, %v1828
    %v1836 = vpack.c.b16 %v1831, %v1830
    %v1837 = vpack.c.b16 %v1833, %v1832
    %v1843 = vsel %vm375, %v1807, 0
    %v1846 = vsel %vm375, %v1808, 0
    %1848 = vmatprep.subr.bf16.mxu0 0
    %1849 = vmatpush1.bf16.msra.mxu0 %v1834
    %1850 = vmatprep.subr.bf16.mxu0 0
    %1851 = vmatpush1.bf16.msra.mxu0 %v1835
    %1852 = vmatprep.subr.bf16.mxu0 0
    %1853 = vmatpush1.bf16.msra.mxu0 %v1836
    %1854 = vmatprep.subr.bf16.mxu0 0
    %1855 = vmatpush1.bf16.msra.mxu0 %v1837
    %1856 = vmatprep.subr.bf16.mxu0 0
    %1857 = vmatpush1.bf16.msra.mxu0 0
    %1858 = vmatprep.subr.bf16.mxu0 0
    %1859 = vmatpush1.bf16.msra.mxu0 0
    %1860 = vmatprep.subr.bf16.mxu0 0
    %1861 = vmatpush1.bf16.msra.mxu0 0
    %1862 = vmatprep.subr.bf16.mxu0 0
    %1863 = vmatpush1.bf16.msra.mxu0 0
    %1864 = vmatprep.subr.bf16.mxu0 0
    %1865 = vmatpush1.bf16.msra.mxu0 0
    %1866 = vmatprep.subr.bf16.mxu0 0
    %1867 = vmatpush1.bf16.msra.mxu0 0
    %1868 = vmatprep.subr.bf16.mxu0 0
    %1869 = vmatpush1.bf16.msra.mxu0 0
    %1870 = vmatprep.subr.bf16.mxu0 0
    %1871 = vmatpush1.bf16.msra.mxu0 0
    %1872 = vmatprep.subr.bf16.mxu0 0
    %1873 = vmatpush1.bf16.msra.mxu0 0
    %1874 = vmatprep.subr.bf16.mxu0 0
    %1875 = vmatpush1.bf16.msra.mxu0 0
    %1876 = vmatprep.subr.bf16.mxu0 0
    %1877 = vmatpush1.bf16.msra.mxu0 0
    %1878 = vmatprep.subr.bf16.mxu0 0
    %1879 = vmatpush1.bf16.msra.mxu0 0
    %1880 = vmatprep.mubr.bf16.mxu0 0
    %1881 = vmatmul.mubr.bf16.gmra.mrb[0].mxu0 %v1843
    %v1882 = vpop.f32.mrb[0].mxu0
    %v1883 = vadd.f32 0.0, %v1882
    %v1884 = vpop.f32.mrb[0].mxu0
    %v1885 = vpop.f32.mrb[0].mxu0
    %v1886 = vadd.f32 0.0, %v1885
    %v1887 = vpop.f32.mrb[0].mxu0
    %1888 = vmatprep.mubr.bf16.mxu0 0
    %1889 = vmatmul.mubr.bf16.gmra.mrb[0].mxu0 %v1846
    %v1890 = vpop.f32.mrb[0].mxu0
    %v1891 = vadd.f32 0.0, %v1890
    %v1892 = vpop.f32.mrb[0].mxu0
    %v1893 = vpop.f32.mrb[0].mxu0
    %v1894 = vadd.f32 0.0, %v1893
    %v1895 = vpop.f32.mrb[0].mxu0
    %1896 = vdwg.mxu0
    %v1897 = vadd.f32 %v1799, %v1883
    %v1898 = vadd.f32 %v1800, %v1886
    %v1899 = vadd.f32 %v1801, %v1891
    %v1900 = vadd.f32 %v1802, %v1894
    %v1901 = vld [vmem:[%s1704 + $0x2] sm:$0xff]
    %v1902 = vld [vmem:[%s1704 + $0x12] sm:$0xff]
    %v1903 = vld [vmem:[%s1704 + $0x22] sm:$0xff]
    %v1904 = vld [vmem:[%s1704 + $0x32] sm:$0xff]
    %v1905 = vpack.c.bf16 %v1902, %v1901
    %v1906 = vpack.c.bf16 %v1904, %v1903
    %s1907 = scalar_lea.vmem [#allocation7], 480
    %v1908 = vld [vmem:[%s1907] sm:$0xf]
    %v1909 = vld [vmem:[%s1907 + $0x4] sm:$0xf]
    %v1910 = vld [vmem:[%s1907 + $0x8] sm:$0xf]
    %v1911 = vld [vmem:[%s1907 + $0xc] sm:$0xf]
    %v1912 = vld [vmem:[%s1907 + $0x10] sm:$0xf]
    %v1913 = vld [vmem:[%s1907 + $0x14] sm:$0xf]
    %v1914 = vld [vmem:[%s1907 + $0x18] sm:$0xf]
    %v1915 = vld [vmem:[%s1907 + $0x1c] sm:$0xf]
    %v1924 = vunpack.c.l.b16 %v1908
    %v1925 = vunpack.c.l.b16 %v1909
    %v1926 = vunpack.c.l.b16 %v1910
    %v1927 = vunpack.c.l.b16 %v1911
    %v1928 = vunpack.c.l.b16 %v1912
    %v1929 = vunpack.c.l.b16 %v1913
    %v1930 = vunpack.c.l.b16 %v1914
    %v1931 = vunpack.c.l.b16 %v1915
    %v1932 = vpack.c.b16 %v1925, %v1924
    %v1933 = vpack.c.b16 %v1927, %v1926
    %v1934 = vpack.c.b16 %v1929, %v1928
    %v1935 = vpack.c.b16 %v1931, %v1930
    %v1941 = vsel %vm375, %v1905, 0
    %v1944 = vsel %vm375, %v1906, 0
    %1946 = vmatprep.subr.bf16.mxu0 0
    %1947 = vmatpush1.bf16.msra.mxu0 %v1932
    %1948 = vmatprep.subr.bf16.mxu0 0
    %1949 = vmatpush1.bf16.msra.mxu0 %v1933
    %1950 = vmatprep.subr.bf16.mxu0 0
    %1951 = vmatpush1.bf16.msra.mxu0 %v1934
    %1952 = vmatprep.subr.bf16.mxu0 0
    %1953 = vmatpush1.bf16.msra.mxu0 %v1935
    %1954 = vmatprep.subr.bf16.mxu0 0
    %1955 = vmatpush1.bf16.msra.mxu0 0
    %1956 = vmatprep.subr.bf16.mxu0 0
    %1957 = vmatpush1.bf16.msra.mxu0 0
    %1958 = vmatprep.subr.bf16.mxu0 0
    %1959 = vmatpush1.bf16.msra.mxu0 0
    %1960 = vmatprep.subr.bf16.mxu0 0
    %1961 = vmatpush1.bf16.msra.mxu0 0
    %1962 = vmatprep.subr.bf16.mxu0 0
    %1963 = vmatpush1.bf16.msra.mxu0 0
    %1964 = vmatprep.subr.bf16.mxu0 0
    %1965 = vmatpush1.bf16.msra.mxu0 0
    %1966 = vmatprep.subr.bf16.mxu0 0
    %1967 = vmatpush1.bf16.msra.mxu0 0
    %1968 = vmatprep.subr.bf16.mxu0 0
    %1969 = vmatpush1.bf16.msra.mxu0 0
    %1970 = vmatprep.subr.bf16.mxu0 0
    %1971 = vmatpush1.bf16.msra.mxu0 0
    %1972 = vmatprep.subr.bf16.mxu0 0
    %1973 = vmatpush1.bf16.msra.mxu0 0
    %1974 = vmatprep.subr.bf16.mxu0 0
    %1975 = vmatpush1.bf16.msra.mxu0 0
    %1976 = vmatprep.subr.bf16.mxu0 0
    %1977 = vmatpush1.bf16.msra.mxu0 0
    %1978 = vmatprep.mubr.bf16.mxu0 0
    %1979 = vmatmul.mubr.bf16.gmra.mrb[0].mxu0 %v1941
    %v1980 = vpop.f32.mrb[0].mxu0
    %v1981 = vadd.f32 0.0, %v1980
    %v1982 = vpop.f32.mrb[0].mxu0
    %v1983 = vpop.f32.mrb[0].mxu0
    %v1984 = vadd.f32 0.0, %v1983
    %v1985 = vpop.f32.mrb[0].mxu0
    %1986 = vmatprep.mubr.bf16.mxu0 0
    %1987 = vmatmul.mubr.bf16.gmra.mrb[0].mxu0 %v1944
    %v1988 = vpop.f32.mrb[0].mxu0
    %v1989 = vadd.f32 0.0, %v1988
    %v1990 = vpop.f32.mrb[0].mxu0
    %v1991 = vpop.f32.mrb[0].mxu0
    %v1992 = vadd.f32 0.0, %v1991
    %v1993 = vpop.f32.mrb[0].mxu0
    %1994 = vdwg.mxu0
    %v1995 = vadd.f32 %v1897, %v1981
    %v1996 = vadd.f32 %v1898, %v1984
    %v1997 = vadd.f32 %v1899, %v1989
    %v1998 = vadd.f32 %v1900, %v1992
    %v1999 = vld [vmem:[#allocation8] sm:$0x1]
    %v2001 = vlaneseq
    %v2002 = vshrl.u32 %v2001, 7
    %v2003 = vsub.s32 0, %v2002
    %v2004 = vrot.slane %v1999, %v2003
    %v2006 = vadd.f32 %v1995, %v2004
    %v2007 = vadd.f32 %v1996, %v2004
    %v2008 = vadd.f32 %v1997, %v2004
    %v2009 = vadd.f32 %v1998, %v2004
    %v2010 = vadd.f32 %v2006, %v2007
    %v2011 = vadd.f32 %v2010, %v2008
    %v2012 = vadd.f32 %v2011, %v2009
    %v2013 = vrot.slane %v2012, 4
    %v2014 = vadd.f32 %v2012, %v2013
    %v2015 = vrot.slane %v2014, 2
    %v2016 = vadd.f32 %v2014, %v2015
    %v2017 = vrot.slane %v2016, 1
    %v2018 = vadd.f32 %v2016, %v2017
    %v2019 = vrcp.pop 32.0
    %v2020 = vmul.f32 %v2018, %v2019
    %v2021 = vsub.f32 %v2006, %v2020
    %v2022 = vsub.f32 %v2007, %v2020
    %v2023 = vsub.f32 %v2008, %v2020
    %v2024 = vsub.f32 %v2009, %v2020
    %v2025 = vmul.f32 %v2021, %v2021
    %v2026 = vmul.f32 %v2022, %v2022
    %v2027 = vmul.f32 %v2023, %v2023
    %v2028 = vmul.f32 %v2024, %v2024
    %v2029 = vadd.f32 %v2025, %v2026
    %v2030 = vadd.f32 %v2029, %v2027
    %v2031 = vadd.f32 %v2030, %v2028
    %v2032 = vrot.slane %v2031, 4
    %v2033 = vadd.f32 %v2031, %v2032
    %v2034 = vrot.slane %v2033, 2
    %v2035 = vadd.f32 %v2033, %v2034
    %v2036 = vrot.slane %v2035, 1
    %v2037 = vadd.f32 %v2035, %v2036
    %v2038 = vmul.f32 %v2037, %v2019
    %v2039 = vadd.f32 %v2038, 1e-05
    %v2040 = vrsqrt.pop %v2039
    %v2041 = vmul.f32 %v2021, %v2040
    %v2042 = vmul.f32 %v2022, %v2040
    %v2043 = vmul.f32 %v2023, %v2040
    %v2044 = vmul.f32 %v2024, %v2040
    %vm2045 = vcmp.ge.f32.partialorder %v2041, 0.0
    %vm2046 = vcmp.ge.f32.partialorder %v2042, 0.0
    %vm2047 = vcmp.ge.f32.partialorder %v2043, 0.0
    %vm2048 = vcmp.ge.f32.partialorder %v2044, 0.0
    %v2049 = vmul.f32 %v2041, 0.2
    %v2050 = vmul.f32 %v2042, 0.2
    %v2051 = vmul.f32 %v2043, 0.2
    %v2052 = vmul.f32 %v2044, 0.2
    %v2053 = vsel %vm2045, %v2041, %v2049
    %v2054 = vsel %vm2046, %v2042, %v2050
    %v2055 = vsel %vm2047, %v2043, %v2051
    %v2056 = vsel %vm2048, %v2044, %v2052
    %v2057 = vpack.c.bf16 %v2054, %v2053
    %v2058 = vpack.c.bf16 %v2056, %v2055
    %v2059 = vld [vmem:[#allocation10] sm:$0xff]
    %v2060 = vld [vmem:[#allocation10 + $0x8] sm:$0xff]
    %v2061 = vld [vmem:[#allocation10 + $0x10] sm:$0xff]
    %v2062 = vld [vmem:[#allocation10 + $0x18] sm:$0xff]
    %v2063 = vld [vmem:[#allocation10 + $0x20] sm:$0xff]
    %v2064 = vld [vmem:[#allocation10 + $0x28] sm:$0xff]
    %v2065 = vld [vmem:[#allocation10 + $0x30] sm:$0xff]
    %v2066 = vld [vmem:[#allocation10 + $0x38] sm:$0xff]
    %v2067 = vld [vmem:[#allocation10 + $0x40] sm:$0xff]
    %v2068 = vld [vmem:[#allocation10 + $0x48] sm:$0xff]
    %v2069 = vld [vmem:[#allocation10 + $0x50] sm:$0xff]
    %v2070 = vld [vmem:[#allocation10 + $0x58] sm:$0xff]
    %v2071 = vld [vmem:[#allocation10 + $0x60] sm:$0xff]
    %v2072 = vld [vmem:[#allocation10 + $0x68] sm:$0xff]
    %v2073 = vld [vmem:[#allocation10 + $0x70] sm:$0xff]
    %v2074 = vld [vmem:[#allocation10 + $0x78] sm:$0xff]
    %v2075 = vld [vmem:[#allocation10 + $0x80] sm:$0xff]
    %v2076 = vld [vmem:[#allocation10 + $0x88] sm:$0xff]
    %v2077 = vld [vmem:[#allocation10 + $0x90] sm:$0xff]
    %v2078 = vld [vmem:[#allocation10 + $0x98] sm:$0xff]
    %v2079 = vld [vmem:[#allocation10 + $0xa0] sm:$0xff]
    %v2080 = vld [vmem:[#allocation10 + $0xa8] sm:$0xff]
    %v2081 = vld [vmem:[#allocation10 + $0xb0] sm:$0xff]
    %v2082 = vld [vmem:[#allocation10 + $0xb8] sm:$0xff]
    %v2083 = vld [vmem:[#allocation10 + $0xc0] sm:$0xff]
    %v2084 = vld [vmem:[#allocation10 + $0xc8] sm:$0xff]
    %v2085 = vld [vmem:[#allocation10 + $0xd0] sm:$0xff]
    %v2086 = vld [vmem:[#allocation10 + $0xd8] sm:$0xff]
    %v2087 = vld [vmem:[#allocation10 + $0xe0] sm:$0xff]
    %v2088 = vld [vmem:[#allocation10 + $0xe8] sm:$0xff]
    %v2089 = vld [vmem:[#allocation10 + $0xf0] sm:$0xff]
    %v2090 = vld [vmem:[#allocation10 + $0xf8] sm:$0xff]
    %v2091 = vld [vmem:[#allocation10 + $0x100] sm:$0xff]
    %v2092 = vld [vmem:[#allocation10 + $0x108] sm:$0xff]
    %v2093 = vld [vmem:[#allocation10 + $0x110] sm:$0xff]
    %v2094 = vld [vmem:[#allocation10 + $0x118] sm:$0xff]
    %v2095 = vld [vmem:[#allocation10 + $0x120] sm:$0xff]
    %v2096 = vld [vmem:[#allocation10 + $0x128] sm:$0xff]
    %v2097 = vld [vmem:[#allocation10 + $0x130] sm:$0xff]
    %v2098 = vld [vmem:[#allocation10 + $0x138] sm:$0xff]
    %v2099 = vld [vmem:[#allocation10 + $0x140] sm:$0xff]
    %v2100 = vld [vmem:[#allocation10 + $0x148] sm:$0xff]
    %v2101 = vld [vmem:[#allocation10 + $0x150] sm:$0xff]
    %v2102 = vld [vmem:[#allocation10 + $0x158] sm:$0xff]
    %v2103 = vld [vmem:[#allocation10 + $0x160] sm:$0xff]
    %v2104 = vld [vmem:[#allocation10 + $0x168] sm:$0xff]
    %v2105 = vld [vmem:[#allocation10 + $0x170] sm:$0xff]
    %v2106 = vld [vmem:[#allocation10 + $0x178] sm:$0xff]
    %v2107 = vld [vmem:[#allocation10 + $0x180] sm:$0xff]
    %v2108 = vld [vmem:[#allocation10 + $0x188] sm:$0xff]
    %v2109 = vld [vmem:[#allocation10 + $0x190] sm:$0xff]
    %v2110 = vld [vmem:[#allocation10 + $0x198] sm:$0xff]
    %v2111 = vld [vmem:[#allocation10 + $0x1a0] sm:$0xff]
    %v2112 = vld [vmem:[#allocation10 + $0x1a8] sm:$0xff]
    %v2113 = vld [vmem:[#allocation10 + $0x1b0] sm:$0xff]
    %v2114 = vld [vmem:[#allocation10 + $0x1b8] sm:$0xff]
    %v2115 = vld [vmem:[#allocation10 + $0x1c0] sm:$0xff]
    %v2116 = vld [vmem:[#allocation10 + $0x1c8] sm:$0xff]
    %v2117 = vld [vmem:[#allocation10 + $0x1d0] sm:$0xff]
    %v2118 = vld [vmem:[#allocation10 + $0x1d8] sm:$0xff]
    %v2119 = vld [vmem:[#allocation10 + $0x1e0] sm:$0xff]
    %v2120 = vld [vmem:[#allocation10 + $0x1e8] sm:$0xff]
    %v2121 = vld [vmem:[#allocation10 + $0x1f0] sm:$0xff]
    %v2122 = vld [vmem:[#allocation10 + $0x1f8] sm:$0xff]
    %s2123 = scalar_lea.vmem [#allocation10], 512
    %v2124 = vld [vmem:[%s2123] sm:$0xff]
    %v2125 = vld [vmem:[%s2123 + $0x8] sm:$0xff]
    %v2126 = vld [vmem:[%s2123 + $0x10] sm:$0xff]
    %v2127 = vld [vmem:[%s2123 + $0x18] sm:$0xff]
    %v2128 = vld [vmem:[%s2123 + $0x20] sm:$0xff]
    %v2129 = vld [vmem:[%s2123 + $0x28] sm:$0xff]
    %v2130 = vld [vmem:[%s2123 + $0x30] sm:$0xff]
    %v2131 = vld [vmem:[%s2123 + $0x38] sm:$0xff]
    %v2132 = vld [vmem:[%s2123 + $0x40] sm:$0xff]
    %v2133 = vld [vmem:[%s2123 + $0x48] sm:$0xff]
    %v2134 = vld [vmem:[%s2123 + $0x50] sm:$0xff]
    %v2135 = vld [vmem:[%s2123 + $0x58] sm:$0xff]
    %v2136 = vld [vmem:[%s2123 + $0x60] sm:$0xff]
    %v2137 = vld [vmem:[%s2123 + $0x68] sm:$0xff]
    %v2138 = vld [vmem:[%s2123 + $0x70] sm:$0xff]
    %v2139 = vld [vmem:[%s2123 + $0x78] sm:$0xff]
    %v2140 = vld [vmem:[%s2123 + $0x80] sm:$0xff]
    %v2141 = vld [vmem:[%s2123 + $0x88] sm:$0xff]
    %v2142 = vld [vmem:[%s2123 + $0x90] sm:$0xff]
    %v2143 = vld [vmem:[%s2123 + $0x98] sm:$0xff]
    %v2144 = vld [vmem:[%s2123 + $0xa0] sm:$0xff]
    %v2145 = vld [vmem:[%s2123 + $0xa8] sm:$0xff]
    %v2146 = vld [vmem:[%s2123 + $0xb0] sm:$0xff]
    %v2147 = vld [vmem:[%s2123 + $0xb8] sm:$0xff]
    %v2148 = vld [vmem:[%s2123 + $0xc0] sm:$0xff]
    %v2149 = vld [vmem:[%s2123 + $0xc8] sm:$0xff]
    %v2150 = vld [vmem:[%s2123 + $0xd0] sm:$0xff]
    %v2151 = vld [vmem:[%s2123 + $0xd8] sm:$0xff]
    %v2152 = vld [vmem:[%s2123 + $0xe0] sm:$0xff]
    %v2153 = vld [vmem:[%s2123 + $0xe8] sm:$0xff]
    %v2154 = vld [vmem:[%s2123 + $0xf0] sm:$0xff]
    %v2155 = vld [vmem:[%s2123 + $0xf8] sm:$0xff]
    %v2156 = vld [vmem:[%s2123 + $0x100] sm:$0xff]
    %v2157 = vld [vmem:[%s2123 + $0x108] sm:$0xff]
    %v2158 = vld [vmem:[%s2123 + $0x110] sm:$0xff]
    %v2159 = vld [vmem:[%s2123 + $0x118] sm:$0xff]
    %v2160 = vld [vmem:[%s2123 + $0x120] sm:$0xff]
    %v2161 = vld [vmem:[%s2123 + $0x128] sm:$0xff]
    %v2162 = vld [vmem:[%s2123 + $0x130] sm:$0xff]
    %v2163 = vld [vmem:[%s2123 + $0x138] sm:$0xff]
    %v2164 = vld [vmem:[%s2123 + $0x140] sm:$0xff]
    %v2165 = vld [vmem:[%s2123 + $0x148] sm:$0xff]
    %v2166 = vld [vmem:[%s2123 + $0x150] sm:$0xff]
    %v2167 = vld [vmem:[%s2123 + $0x158] sm:$0xff]
    %v2168 = vld [vmem:[%s2123 + $0x160] sm:$0xff]
    %v2169 = vld [vmem:[%s2123 + $0x168] sm:$0xff]
    %v2170 = vld [vmem:[%s2123 + $0x170] sm:$0xff]
    %v2171 = vld [vmem:[%s2123 + $0x178] sm:$0xff]
    %v2172 = vld [vmem:[%s2123 + $0x180] sm:$0xff]
    %v2173 = vld [vmem:[%s2123 + $0x188] sm:$0xff]
    %v2174 = vld [vmem:[%s2123 + $0x190] sm:$0xff]
    %v2175 = vld [vmem:[%s2123 + $0x198] sm:$0xff]
    %v2176 = vld [vmem:[%s2123 + $0x1a0] sm:$0xff]
    %v2177 = vld [vmem:[%s2123 + $0x1a8] sm:$0xff]
    %v2178 = vld [vmem:[%s2123 + $0x1b0] sm:$0xff]
    %v2179 = vld [vmem:[%s2123 + $0x1b8] sm:$0xff]
    %v2180 = vld [vmem:[%s2123 + $0x1c0] sm:$0xff]
    %v2181 = vld [vmem:[%s2123 + $0x1c8] sm:$0xff]
    %v2182 = vld [vmem:[%s2123 + $0x1d0] sm:$0xff]
    %v2183 = vld [vmem:[%s2123 + $0x1d8] sm:$0xff]
    %v2184 = vld [vmem:[%s2123 + $0x1e0] sm:$0xff]
    %v2185 = vld [vmem:[%s2123 + $0x1e8] sm:$0xff]
    %v2186 = vld [vmem:[%s2123 + $0x1f0] sm:$0xff]
    %v2187 = vld [vmem:[%s2123 + $0x1f8] sm:$0xff]
    %v2189 = vrot.slane %v2057, 1
    %v2255 = vunpack.c.l.b16 %v2124
    %v2256 = vunpack.c.h.b16 %v2124
    %v2257 = vunpack.c.l.b16 %v2125
    %v2258 = vunpack.c.h.b16 %v2125
    %v2259 = vunpack.c.l.b16 %v2126
    %v2260 = vunpack.c.h.b16 %v2126
    %v2261 = vunpack.c.l.b16 %v2127
    %v2262 = vunpack.c.h.b16 %v2127
    %v2263 = vunpack.c.l.b16 %v2128
    %v2264 = vunpack.c.h.b16 %v2128
    %v2265 = vunpack.c.l.b16 %v2129
    %v2266 = vunpack.c.h.b16 %v2129
    %v2267 = vunpack.c.l.b16 %v2130
    %v2268 = vunpack.c.h.b16 %v2130
    %v2269 = vunpack.c.l.b16 %v2131
    %v2270 = vunpack.c.h.b16 %v2131
    %v2271 = vunpack.c.l.b16 %v2132
    %v2272 = vunpack.c.h.b16 %v2132
    %v2273 = vunpack.c.l.b16 %v2133
    %v2274 = vunpack.c.h.b16 %v2133
    %v2275 = vunpack.c.l.b16 %v2134
    %v2276 = vunpack.c.h.b16 %v2134
    %v2277 = vunpack.c.l.b16 %v2135
    %v2278 = vunpack.c.h.b16 %v2135
    %v2279 = vunpack.c.l.b16 %v2136
    %v2280 = vunpack.c.h.b16 %v2136
    %v2281 = vunpack.c.l.b16 %v2137
    %v2282 = vunpack.c.h.b16 %v2137
    %v2283 = vunpack.c.l.b16 %v2138
    %v2284 = vunpack.c.h.b16 %v2138
    %v2285 = vunpack.c.l.b16 %v2139
    %v2286 = vunpack.c.h.b16 %v2139
    %v2287 = vunpack.c.l.b16 %v2140
    %v2288 = vunpack.c.h.b16 %v2140
    %v2289 = vunpack.c.l.b16 %v2141
    %v2290 = vunpack.c.h.b16 %v2141
    %v2291 = vunpack.c.l.b16 %v2142
    %v2292 = vunpack.c.h.b16 %v2142
    %v2293 = vunpack.c.l.b16 %v2143
    %v2294 = vunpack.c.h.b16 %v2143
    %v2295 = vunpack.c.l.b16 %v2144
    %v2296 = vunpack.c.h.b16 %v2144
    %v2297 = vunpack.c.l.b16 %v2145
    %v2298 = vunpack.c.h.b16 %v2145
    %v2299 = vunpack.c.l.b16 %v2146
    %v2300 = vunpack.c.h.b16 %v2146
    %v2301 = vunpack.c.l.b16 %v2147
    %v2302 = vunpack.c.h.b16 %v2147
    %v2303 = vunpack.c.l.b16 %v2148
    %v2304 = vunpack.c.h.b16 %v2148
    %v2305 = vunpack.c.l.b16 %v2149
    %v2306 = vunpack.c.h.b16 %v2149
    %v2307 = vunpack.c.l.b16 %v2150
    %v2308 = vunpack.c.h.b16 %v2150
    %v2309 = vunpack.c.l.b16 %v2151
    %v2310 = vunpack.c.h.b16 %v2151
    %v2311 = vunpack.c.l.b16 %v2152
    %v2312 = vunpack.c.h.b16 %v2152
    %v2313 = vunpack.c.l.b16 %v2153
    %v2314 = vunpack.c.h.b16 %v2153
    %v2315 = vunpack.c.l.b16 %v2154
    %v2316 = vunpack.c.h.b16 %v2154
    %v2317 = vunpack.c.l.b16 %v2155
    %v2318 = vunpack.c.h.b16 %v2155
    %v2319 = vunpack.c.l.b16 %v2156
    %v2320 = vunpack.c.h.b16 %v2156
    %v2321 = vunpack.c.l.b16 %v2157
    %v2322 = vunpack.c.h.b16 %v2157
    %v2323 = vunpack.c.l.b16 %v2158
    %v2324 = vunpack.c.h.b16 %v2158
    %v2325 = vunpack.c.l.b16 %v2159
    %v2326 = vunpack.c.h.b16 %v2159
    %v2327 = vunpack.c.l.b16 %v2160
    %v2328 = vunpack.c.h.b16 %v2160
    %v2329 = vunpack.c.l.b16 %v2161
    %v2330 = vunpack.c.h.b16 %v2161
    %v2331 = vunpack.c.l.b16 %v2162
    %v2332 = vunpack.c.h.b16 %v2162
    %v2333 = vunpack.c.l.b16 %v2163
    %v2334 = vunpack.c.h.b16 %v2163
    %v2335 = vunpack.c.l.b16 %v2164
    %v2336 = vunpack.c.h.b16 %v2164
    %v2337 = vunpack.c.l.b16 %v2165
    %v2338 = vunpack.c.h.b16 %v2165
    %v2339 = vunpack.c.l.b16 %v2166
    %v2340 = vunpack.c.h.b16 %v2166
    %v2341 = vunpack.c.l.b16 %v2167
    %v2342 = vunpack.c.h.b16 %v2167
    %v2343 = vunpack.c.l.b16 %v2168
    %v2344 = vunpack.c.h.b16 %v2168
    %v2345 = vunpack.c.l.b16 %v2169
    %v2346 = vunpack.c.h.b16 %v2169
    %v2347 = vunpack.c.l.b16 %v2170
    %v2348 = vunpack.c.h.b16 %v2170
    %v2349 = vunpack.c.l.b16 %v2171
    %v2350 = vunpack.c.h.b16 %v2171
    %v2351 = vunpack.c.l.b16 %v2172
    %v2352 = vunpack.c.h.b16 %v2172
    %v2353 = vunpack.c.l.b16 %v2173
    %v2354 = vunpack.c.h.b16 %v2173
    %v2355 = vunpack.c.l.b16 %v2174
    %v2356 = vunpack.c.h.b16 %v2174
    %v2357 = vunpack.c.l.b16 %v2175
    %v2358 = vunpack.c.h.b16 %v2175
    %v2359 = vunpack.c.l.b16 %v2176
    %v2360 = vunpack.c.h.b16 %v2176
    %v2361 = vunpack.c.l.b16 %v2177
    %v2362 = vunpack.c.h.b16 %v2177
    %v2363 = vunpack.c.l.b16 %v2178
    %v2364 = vunpack.c.h.b16 %v2178
    %v2365 = vunpack.c.l.b16 %v2179
    %v2366 = vunpack.c.h.b16 %v2179
    %v2367 = vunpack.c.l.b16 %v2180
    %v2368 = vunpack.c.h.b16 %v2180
    %v2369 = vunpack.c.l.b16 %v2181
    %v2370 = vunpack.c.h.b16 %v2181
    %v2371 = vunpack.c.l.b16 %v2182
    %v2372 = vunpack.c.h.b16 %v2182
    %v2373 = vunpack.c.l.b16 %v2183
    %v2374 = vunpack.c.h.b16 %v2183
    %v2375 = vunpack.c.l.b16 %v2184
    %v2376 = vunpack.c.h.b16 %v2184
    %v2377 = vunpack.c.l.b16 %v2185
    %v2378 = vunpack.c.h.b16 %v2185
    %v2379 = vunpack.c.l.b16 %v2186
    %v2380 = vunpack.c.h.b16 %v2186
    %v2381 = vunpack.c.l.b16 %v2187
    %v2382 = vunpack.c.h.b16 %v2187
    %v2383 = vpack.c.b16 %v2263, %v2255
    %v2384 = vpack.c.b16 %v2264, %v2256
    %v2385 = vpack.c.b16 %v2265, %v2257
    %v2386 = vpack.c.b16 %v2266, %v2258
    %v2387 = vpack.c.b16 %v2267, %v2259
    %v2388 = vpack.c.b16 %v2268, %v2260
    %v2389 = vpack.c.b16 %v2269, %v2261
    %v2390 = vpack.c.b16 %v2270, %v2262
    %v2391 = vpack.c.b16 %v2279, %v2271
    %v2392 = vpack.c.b16 %v2280, %v2272
    %v2393 = vpack.c.b16 %v2281, %v2273
    %v2394 = vpack.c.b16 %v2282, %v2274
    %v2395 = vpack.c.b16 %v2283, %v2275
    %v2396 = vpack.c.b16 %v2284, %v2276
    %v2397 = vpack.c.b16 %v2285, %v2277
    %v2398 = vpack.c.b16 %v2286, %v2278
    %v2399 = vpack.c.b16 %v2295, %v2287
    %v2400 = vpack.c.b16 %v2296, %v2288
    %v2401 = vpack.c.b16 %v2297, %v2289
    %v2402 = vpack.c.b16 %v2298, %v2290
    %v2403 = vpack.c.b16 %v2299, %v2291
    %v2404 = vpack.c.b16 %v2300, %v2292
    %v2405 = vpack.c.b16 %v2301, %v2293
    %v2406 = vpack.c.b16 %v2302, %v2294
    %v2407 = vpack.c.b16 %v2311, %v2303
    %v2408 = vpack.c.b16 %v2312, %v2304
    %v2409 = vpack.c.b16 %v2313, %v2305
    %v2410 = vpack.c.b16 %v2314, %v2306
    %v2411 = vpack.c.b16 %v2315, %v2307
    %v2412 = vpack.c.b16 %v2316, %v2308
    %v2413 = vpack.c.b16 %v2317, %v2309
    %v2414 = vpack.c.b16 %v2318, %v2310
    %v2415 = vpack.c.b16 %v2327, %v2319
    %v2416 = vpack.c.b16 %v2328, %v2320
    %v2417 = vpack.c.b16 %v2329, %v2321
    %v2418 = vpack.c.b16 %v2330, %v2322
    %v2419 = vpack.c.b16 %v2331, %v2323
    %v2420 = vpack.c.b16 %v2332, %v2324
    %v2421 = vpack.c.b16 %v2333, %v2325
    %v2422 = vpack.c.b16 %v2334, %v2326
    %v2423 = vpack.c.b16 %v2343, %v2335
    %v2424 = vpack.c.b16 %v2344, %v2336
    %v2425 = vpack.c.b16 %v2345, %v2337
    %v2426 = vpack.c.b16 %v2346, %v2338
    %v2427 = vpack.c.b16 %v2347, %v2339
    %v2428 = vpack.c.b16 %v2348, %v2340
    %v2429 = vpack.c.b16 %v2349, %v2341
    %v2430 = vpack.c.b16 %v2350, %v2342
    %v2431 = vpack.c.b16 %v2359, %v2351
    %v2432 = vpack.c.b16 %v2360, %v2352
    %v2433 = vpack.c.b16 %v2361, %v2353
    %v2434 = vpack.c.b16 %v2362, %v2354
    %v2435 = vpack.c.b16 %v2363, %v2355
    %v2436 = vpack.c.b16 %v2364, %v2356
    %v2437 = vpack.c.b16 %v2365, %v2357
    %v2438 = vpack.c.b16 %v2366, %v2358
    %v2439 = vpack.c.b16 %v2375, %v2367
    %v2440 = vpack.c.b16 %v2376, %v2368
    %v2441 = vpack.c.b16 %v2377, %v2369
    %v2442 = vpack.c.b16 %v2378, %v2370
    %v2443 = vpack.c.b16 %v2379, %v2371
    %v2444 = vpack.c.b16 %v2380, %v2372
    %v2445 = vpack.c.b16 %v2381, %v2373
    %v2446 = vpack.c.b16 %v2382, %v2374
    %2511 = vmatprep.subr.bf16.mxu0 %v2384
    %2512 = vmatpush1.bf16.msra.mxu0 %v2383
    %2513 = vmatprep.subr.bf16.mxu0 %v2392
    %2514 = vmatpush1.bf16.msra.mxu0 %v2391
    %2515 = vmatprep.subr.bf16.mxu0 %v2400
    %2516 = vmatpush1.bf16.msra.mxu0 %v2399
    %2517 = vmatprep.subr.bf16.mxu0 %v2408
    %2518 = vmatpush1.bf16.msra.mxu0 %v2407
    %2519 = vmatprep.subr.bf16.mxu0 %v2416
    %2520 = vmatpush1.bf16.msra.mxu0 %v2415
    %2521 = vmatprep.subr.bf16.mxu0 %v2424
    %2522 = vmatpush1.bf16.msra.mxu0 %v2423
    %2523 = vmatprep.subr.bf16.mxu0 %v2432
    %2524 = vmatpush1.bf16.msra.mxu0 %v2431
    %2525 = vmatprep.subr.bf16.mxu0 %v2440
    %2526 = vmatpush1.bf16.msra.mxu0 %v2439
    %2527 = vmatprep.subr.bf16.mxu0 0
    %2528 = vmatpush1.bf16.msra.mxu0 0
    %2529 = vmatprep.subr.bf16.mxu0 0
    %2530 = vmatpush1.bf16.msra.mxu0 0
    %2531 = vmatprep.subr.bf16.mxu0 0
    %2532 = vmatpush1.bf16.msra.mxu0 0
    %2533 = vmatprep.subr.bf16.mxu0 0
    %2534 = vmatpush1.bf16.msra.mxu0 0
    %2535 = vmatprep.subr.bf16.mxu0 0
    %2536 = vmatpush1.bf16.msra.mxu0 0
    %2537 = vmatprep.subr.bf16.mxu0 0
    %2538 = vmatpush1.bf16.msra.mxu0 0
    %2539 = vmatprep.subr.bf16.mxu0 0
    %2540 = vmatpush1.bf16.msra.mxu0 0
    %2541 = vmatprep.subr.bf16.mxu0 0
    %2542 = vmatpush1.bf16.msra.mxu0 0
    %2543 = vmatprep.mubr.bf16.mxu0 0
    %2544 = vmatmul.mubr.bf16.gmra.mrb[0].mxu0 %v2189
    %v2545 = vpop.f32.mrb[0].mxu0
    %v2546 = vadd.f32 0.0, %v2545
    %v2547 = vpop.f32.mrb[0].mxu0
    %v2548 = vadd.f32 0.0, %v2547
    %v2549 = vpop.f32.mrb[0].mxu0
    %v2550 = vpop.f32.mrb[0].mxu0
    %2551 = vdwg.mxu0
    %2552 = vmatprep.subr.bf16.mxu0 %v2386
    %2553 = vmatpush1.bf16.msra.mxu0 %v2385
    %2554 = vmatprep.subr.bf16.mxu0 %v2394
    %2555 = vmatpush1.bf16.msra.mxu0 %v2393
    %2556 = vmatprep.subr.bf16.mxu0 %v2402
    %2557 = vmatpush1.bf16.msra.mxu0 %v2401
    %2558 = vmatprep.subr.bf16.mxu0 %v2410
    %2559 = vmatpush1.bf16.msra.mxu0 %v2409
    %2560 = vmatprep.subr.bf16.mxu0 %v2418
    %2561 = vmatpush1.bf16.msra.mxu0 %v2417
    %2562 = vmatprep.subr.bf16.mxu0 %v2426
    %2563 = vmatpush1.bf16.msra.mxu0 %v2425
    %2564 = vmatprep.subr.bf16.mxu0 %v2434
    %2565 = vmatpush1.bf16.msra.mxu0 %v2433
    %2566 = vmatprep.subr.bf16.mxu0 %v2442
    %2567 = vmatpush1.bf16.msra.mxu0 %v2441
    %2568 = vmatprep.subr.bf16.mxu0 0
    %2569 = vmatpush1.bf16.msra.mxu0 0
    %2570 = vmatprep.subr.bf16.mxu0 0
    %2571 = vmatpush1.bf16.msra.mxu0 0
    %2572 = vmatprep.subr.bf16.mxu0 0
    %2573 = vmatpush1.bf16.msra.mxu0 0
    %2574 = vmatprep.subr.bf16.mxu0 0
    %2575 = vmatpush1.bf16.msra.mxu0 0
    %2576 = vmatprep.subr.bf16.mxu0 0
    %2577 = vmatpush1.bf16.msra.mxu0 0
    %2578 = vmatprep.subr.bf16.mxu0 0
    %2579 = vmatpush1.bf16.msra.mxu0 0
    %2580 = vmatprep.subr.bf16.mxu0 0
    %2581 = vmatpush1.bf16.msra.mxu0 0
    %2582 = vmatprep.subr.bf16.mxu0 0
    %2583 = vmatpush1.bf16.msra.mxu0 0
    %2584 = vmatprep.mubr.bf16.mxu0 0
    %2585 = vmatmul.mubr.bf16.gmra.mrb[0].mxu0 %v2189
    %v2586 = vpop.f32.mrb[0].mxu0
    %v2587 = vadd.f32 0.0, %v2586
    %v2588 = vpop.f32.mrb[0].mxu0
    %v2589 = vadd.f32 0.0, %v2588
    %v2590 = vpop.f32.mrb[0].mxu0
    %v2591 = vpop.f32.mrb[0].mxu0
    %2592 = vdwg.mxu0
    %2593 = vmatprep.subr.bf16.mxu0 %v2388
    %2594 = vmatpush1.bf16.msra.mxu0 %v2387
    %2595 = vmatprep.subr.bf16.mxu0 %v2396
    %2596 = vmatpush1.bf16.msra.mxu0 %v2395
    %2597 = vmatprep.subr.bf16.mxu0 %v2404
    %2598 = vmatpush1.bf16.msra.mxu0 %v2403
    %2599 = vmatprep.subr.bf16.mxu0 %v2412
    %2600 = vmatpush1.bf16.msra.mxu0 %v2411
    %2601 = vmatprep.subr.bf16.mxu0 %v2420
    %2602 = vmatpush1.bf16.msra.mxu0 %v2419
    %2603 = vmatprep.subr.bf16.mxu0 %v2428
    %2604 = vmatpush1.bf16.msra.mxu0 %v2427
    %2605 = vmatprep.subr.bf16.mxu0 %v2436
    %2606 = vmatpush1.bf16.msra.mxu0 %v2435
    %2607 = vmatprep.subr.bf16.mxu0 %v2444
    %2608 = vmatpush1.bf16.msra.mxu0 %v2443
    %2609 = vmatprep.subr.bf16.mxu0 0
    %2610 = vmatpush1.bf16.msra.mxu0 0
    %2611 = vmatprep.subr.bf16.mxu0 0
    %2612 = vmatpush1.bf16.msra.mxu0 0
    %2613 = vmatprep.subr.bf16.mxu0 0
    %2614 = vmatpush1.bf16.msra.mxu0 0
    %2615 = vmatprep.subr.bf16.mxu0 0
    %2616 = vmatpush1.bf16.msra.mxu0 0
    %2617 = vmatprep.subr.bf16.mxu0 0
    %2618 = vmatpush1.bf16.msra.mxu0 0
    %2619 = vmatprep.subr.bf16.mxu0 0
    %2620 = vmatpush1.bf16.msra.mxu0 0
    %2621 = vmatprep.subr.bf16.mxu0 0
    %2622 = vmatpush1.bf16.msra.mxu0 0
    %2623 = vmatprep.subr.bf16.mxu0 0
    %2624 = vmatpush1.bf16.msra.mxu0 0
    %2625 = vmatprep.mubr.bf16.mxu0 0
    %2626 = vmatmul.mubr.bf16.gmra.mrb[0].mxu0 %v2189
    %v2627 = vpop.f32.mrb[0].mxu0
    %v2628 = vadd.f32 0.0, %v2627
    %v2629 = vpop.f32.mrb[0].mxu0
    %v2630 = vadd.f32 0.0, %v2629
    %v2631 = vpop.f32.mrb[0].mxu0
    %v2632 = vpop.f32.mrb[0].mxu0
    %2633 = vdwg.mxu0
    %2634 = vmatprep.subr.bf16.mxu0 %v2390
    %2635 = vmatpush1.bf16.msra.mxu0 %v2389
    %2636 = vmatprep.subr.bf16.mxu0 %v2398
    %2637 = vmatpush1.bf16.msra.mxu0 %v2397
    %2638 = vmatprep.subr.bf16.mxu0 %v2406
    %2639 = vmatpush1.bf16.msra.mxu0 %v2405
    %2640 = vmatprep.subr.bf16.mxu0 %v2414
    %2641 = vmatpush1.bf16.msra.mxu0 %v2413
    %2642 = vmatprep.subr.bf16.mxu0 %v2422
    %2643 = vmatpush1.bf16.msra.mxu0 %v2421
    %2644 = vmatprep.subr.bf16.mxu0 %v2430
    %2645 = vmatpush1.bf16.msra.mxu0 %v2429
    %2646 = vmatprep.subr.bf16.mxu0 %v2438
    %2647 = vmatpush1.bf16.msra.mxu0 %v2437
    %2648 = vmatprep.subr.bf16.mxu0 %v2446
    %2649 = vmatpush1.bf16.msra.mxu0 %v2445
    %2650 = vmatprep.subr.bf16.mxu0 0
    %2651 = vmatpush1.bf16.msra.mxu0 0
    %2652 = vmatprep.subr.bf16.mxu0 0
    %2653 = vmatpush1.bf16.msra.mxu0 0
    %2654 = vmatprep.subr.bf16.mxu0 0
    %2655 = vmatpush1.bf16.msra.mxu0 0
    %2656 = vmatprep.subr.bf16.mxu0 0
    %2657 = vmatpush1.bf16.msra.mxu0 0
    %2658 = vmatprep.subr.bf16.mxu0 0
    %2659 = vmatpush1.bf16.msra.mxu0 0
    %2660 = vmatprep.subr.bf16.mxu0 0
    %2661 = vmatpush1.bf16.msra.mxu0 0
    %2662 = vmatprep.subr.bf16.mxu0 0
    %2663 = vmatpush1.bf16.msra.mxu0 0
    %2664 = vmatprep.subr.bf16.mxu0 0
    %2665 = vmatpush1.bf16.msra.mxu0 0
    %2666 = vmatprep.mubr.bf16.mxu0 0
    %2667 = vmatmul.mubr.bf16.gmra.mrb[0].mxu0 %v2189
    %v2668 = vpop.f32.mrb[0].mxu0
    %v2669 = vadd.f32 0.0, %v2668
    %v2670 = vpop.f32.mrb[0].mxu0
    %v2671 = vadd.f32 0.0, %v2670
    %v2672 = vpop.f32.mrb[0].mxu0
    %v2673 = vpop.f32.mrb[0].mxu0
    %2674 = vdwg.mxu0
    %v2739 = vunpack.c.l.b16 %v2059
    %v2740 = vunpack.c.h.b16 %v2059
    %v2741 = vunpack.c.l.b16 %v2060
    %v2742 = vunpack.c.h.b16 %v2060
    %v2743 = vunpack.c.l.b16 %v2061
    %v2744 = vunpack.c.h.b16 %v2061
    %v2745 = vunpack.c.l.b16 %v2062
    %v2746 = vunpack.c.h.b16 %v2062
    %v2747 = vunpack.c.l.b16 %v2063
    %v2748 = vunpack.c.h.b16 %v2063
    %v2749 = vunpack.c.l.b16 %v2064
    %v2750 = vunpack.c.h.b16 %v2064
    %v2751 = vunpack.c.l.b16 %v2065
    %v2752 = vunpack.c.h.b16 %v2065
    %v2753 = vunpack.c.l.b16 %v2066
    %v2754 = vunpack.c.h.b16 %v2066
    %v2755 = vunpack.c.l.b16 %v2067
    %v2756 = vunpack.c.h.b16 %v2067
    %v2757 = vunpack.c.l.b16 %v2068
    %v2758 = vunpack.c.h.b16 %v2068
    %v2759 = vunpack.c.l.b16 %v2069
    %v2760 = vunpack.c.h.b16 %v2069
    %v2761 = vunpack.c.l.b16 %v2070
    %v2762 = vunpack.c.h.b16 %v2070
    %v2763 = vunpack.c.l.b16 %v2071
    %v2764 = vunpack.c.h.b16 %v2071
    %v2765 = vunpack.c.l.b16 %v2072
    %v2766 = vunpack.c.h.b16 %v2072
    %v2767 = vunpack.c.l.b16 %v2073
    %v2768 = vunpack.c.h.b16 %v2073
    %v2769 = vunpack.c.l.b16 %v2074
    %v2770 = vunpack.c.h.b16 %v2074
    %v2771 = vunpack.c.l.b16 %v2075
    %v2772 = vunpack.c.h.b16 %v2075
    %v2773 = vunpack.c.l.b16 %v2076
    %v2774 = vunpack.c.h.b16 %v2076
    %v2775 = vunpack.c.l.b16 %v2077
    %v2776 = vunpack.c.h.b16 %v2077
    %v2777 = vunpack.c.l.b16 %v2078
    %v2778 = vunpack.c.h.b16 %v2078
    %v2779 = vunpack.c.l.b16 %v2079
    %v2780 = vunpack.c.h.b16 %v2079
    %v2781 = vunpack.c.l.b16 %v2080
    %v2782 = vunpack.c.h.b16 %v2080
    %v2783 = vunpack.c.l.b16 %v2081
    %v2784 = vunpack.c.h.b16 %v2081
    %v2785 = vunpack.c.l.b16 %v2082
    %v2786 = vunpack.c.h.b16 %v2082
    %v2787 = vunpack.c.l.b16 %v2083
    %v2788 = vunpack.c.h.b16 %v2083
    %v2789 = vunpack.c.l.b16 %v2084
    %v2790 = vunpack.c.h.b16 %v2084
    %v2791 = vunpack.c.l.b16 %v2085
    %v2792 = vunpack.c.h.b16 %v2085
    %v2793 = vunpack.c.l.b16 %v2086
    %v2794 = vunpack.c.h.b16 %v2086
    %v2795 = vunpack.c.l.b16 %v2087
    %v2796 = vunpack.c.h.b16 %v2087
    %v2797 = vunpack.c.l.b16 %v2088
    %v2798 = vunpack.c.h.b16 %v2088
    %v2799 = vunpack.c.l.b16 %v2089
    %v2800 = vunpack.c.h.b16 %v2089
    %v2801 = vunpack.c.l.b16 %v2090
    %v2802 = vunpack.c.h.b16 %v2090
    %v2803 = vunpack.c.l.b16 %v2091
    %v2804 = vunpack.c.h.b16 %v2091
    %v2805 = vunpack.c.l.b16 %v2092
    %v2806 = vunpack.c.h.b16 %v2092
    %v2807 = vunpack.c.l.b16 %v2093
    %v2808 = vunpack.c.h.b16 %v2093
    %v2809 = vunpack.c.l.b16 %v2094
    %v2810 = vunpack.c.h.b16 %v2094
    %v2811 = vunpack.c.l.b16 %v2095
    %v2812 = vunpack.c.h.b16 %v2095
    %v2813 = vunpack.c.l.b16 %v2096
    %v2814 = vunpack.c.h.b16 %v2096
    %v2815 = vunpack.c.l.b16 %v2097
    %v2816 = vunpack.c.h.b16 %v2097
    %v2817 = vunpack.c.l.b16 %v2098
    %v2818 = vunpack.c.h.b16 %v2098
    %v2819 = vunpack.c.l.b16 %v2099
    %v2820 = vunpack.c.h.b16 %v2099
    %v2821 = vunpack.c.l.b16 %v2100
    %v2822 = vunpack.c.h.b16 %v2100
    %v2823 = vunpack.c.l.b16 %v2101
    %v2824 = vunpack.c.h.b16 %v2101
    %v2825 = vunpack.c.l.b16 %v2102
    %v2826 = vunpack.c.h.b16 %v2102
    %v2827 = vunpack.c.l.b16 %v2103
    %v2828 = vunpack.c.h.b16 %v2103
    %v2829 = vunpack.c.l.b16 %v2104
    %v2830 = vunpack.c.h.b16 %v2104
    %v2831 = vunpack.c.l.b16 %v2105
    %v2832 = vunpack.c.h.b16 %v2105
    %v2833 = vunpack.c.l.b16 %v2106
    %v2834 = vunpack.c.h.b16 %v2106
    %v2835 = vunpack.c.l.b16 %v2107
    %v2836 = vunpack.c.h.b16 %v2107
    %v2837 = vunpack.c.l.b16 %v2108
    %v2838 = vunpack.c.h.b16 %v2108
    %v2839 = vunpack.c.l.b16 %v2109
    %v2840 = vunpack.c.h.b16 %v2109
    %v2841 = vunpack.c.l.b16 %v2110
    %v2842 = vunpack.c.h.b16 %v2110
    %v2843 = vunpack.c.l.b16 %v2111
    %v2844 = vunpack.c.h.b16 %v2111
    %v2845 = vunpack.c.l.b16 %v2112
    %v2846 = vunpack.c.h.b16 %v2112
    %v2847 = vunpack.c.l.b16 %v2113
    %v2848 = vunpack.c.h.b16 %v2113
    %v2849 = vunpack.c.l.b16 %v2114
    %v2850 = vunpack.c.h.b16 %v2114
    %v2851 = vunpack.c.l.b16 %v2115
    %v2852 = vunpack.c.h.b16 %v2115
    %v2853 = vunpack.c.l.b16 %v2116
    %v2854 = vunpack.c.h.b16 %v2116
    %v2855 = vunpack.c.l.b16 %v2117
    %v2856 = vunpack.c.h.b16 %v2117
    %v2857 = vunpack.c.l.b16 %v2118
    %v2858 = vunpack.c.h.b16 %v2118
    %v2859 = vunpack.c.l.b16 %v2119
    %v2860 = vunpack.c.h.b16 %v2119
    %v2861 = vunpack.c.l.b16 %v2120
    %v2862 = vunpack.c.h.b16 %v2120
    %v2863 = vunpack.c.l.b16 %v2121
    %v2864 = vunpack.c.h.b16 %v2121
    %v2865 = vunpack.c.l.b16 %v2122
    %v2866 = vunpack.c.h.b16 %v2122
    %v2867 = vpack.c.b16 %v2747, %v2739
    %v2868 = vpack.c.b16 %v2748, %v2740
    %v2869 = vpack.c.b16 %v2749, %v2741
    %v2870 = vpack.c.b16 %v2750, %v2742
    %v2871 = vpack.c.b16 %v2751, %v2743
    %v2872 = vpack.c.b16 %v2752, %v2744
    %v2873 = vpack.c.b16 %v2753, %v2745
    %v2874 = vpack.c.b16 %v2754, %v2746
    %v2875 = vpack.c.b16 %v2763, %v2755
    %v2876 = vpack.c.b16 %v2764, %v2756
    %v2877 = vpack.c.b16 %v2765, %v2757
    %v2878 = vpack.c.b16 %v2766, %v2758
    %v2879 = vpack.c.b16 %v2767, %v2759
    %v2880 = vpack.c.b16 %v2768, %v2760
    %v2881 = vpack.c.b16 %v2769, %v2761
    %v2882 = vpack.c.b16 %v2770, %v2762
    %v2883 = vpack.c.b16 %v2779, %v2771
    %v2884 = vpack.c.b16 %v2780, %v2772
    %v2885 = vpack.c.b16 %v2781, %v2773
    %v2886 = vpack.c.b16 %v2782, %v2774
    %v2887 = vpack.c.b16 %v2783, %v2775
    %v2888 = vpack.c.b16 %v2784, %v2776
    %v2889 = vpack.c.b16 %v2785, %v2777
    %v2890 = vpack.c.b16 %v2786, %v2778
    %v2891 = vpack.c.b16 %v2795, %v2787
    %v2892 = vpack.c.b16 %v2796, %v2788
    %v2893 = vpack.c.b16 %v2797, %v2789
    %v2894 = vpack.c.b16 %v2798, %v2790
    %v2895 = vpack.c.b16 %v2799, %v2791
    %v2896 = vpack.c.b16 %v2800, %v2792
    %v2897 = vpack.c.b16 %v2801, %v2793
    %v2898 = vpack.c.b16 %v2802, %v2794
    %v2899 = vpack.c.b16 %v2811, %v2803
    %v2900 = vpack.c.b16 %v2812, %v2804
    %v2901 = vpack.c.b16 %v2813, %v2805
    %v2902 = vpack.c.b16 %v2814, %v2806
    %v2903 = vpack.c.b16 %v2815, %v2807
    %v2904 = vpack.c.b16 %v2816, %v2808
    %v2905 = vpack.c.b16 %v2817, %v2809
    %v2906 = vpack.c.b16 %v2818, %v2810
    %v2907 = vpack.c.b16 %v2827, %v2819
    %v2908 = vpack.c.b16 %v2828, %v2820
    %v2909 = vpack.c.b16 %v2829, %v2821
    %v2910 = vpack.c.b16 %v2830, %v2822
    %v2911 = vpack.c.b16 %v2831, %v2823
    %v2912 = vpack.c.b16 %v2832, %v2824
    %v2913 = vpack.c.b16 %v2833, %v2825
    %v2914 = vpack.c.b16 %v2834, %v2826
    %v2915 = vpack.c.b16 %v2843, %v2835
    %v2916 = vpack.c.b16 %v2844, %v2836
    %v2917 = vpack.c.b16 %v2845, %v2837
    %v2918 = vpack.c.b16 %v2846, %v2838
    %v2919 = vpack.c.b16 %v2847, %v2839
    %v2920 = vpack.c.b16 %v2848, %v2840
    %v2921 = vpack.c.b16 %v2849, %v2841
    %v2922 = vpack.c.b16 %v2850, %v2842
    %v2923 = vpack.c.b16 %v2859, %v2851
    %v2924 = vpack.c.b16 %v2860, %v2852
    %v2925 = vpack.c.b16 %v2861, %v2853
    %v2926 = vpack.c.b16 %v2862, %v2854
    %v2927 = vpack.c.b16 %v2863, %v2855
    %v2928 = vpack.c.b16 %v2864, %v2856
    %v2929 = vpack.c.b16 %v2865, %v2857
    %v2930 = vpack.c.b16 %v2866, %v2858
    %2995 = vmatprep.subr.bf16.mxu0 %v2868
    %2996 = vmatpush1.bf16.msra.mxu0 %v2867
    %2997 = vmatprep.subr.bf16.mxu0 %v2876
    %2998 = vmatpush1.bf16.msra.mxu0 %v2875
    %2999 = vmatprep.subr.bf16.mxu0 %v2884
    %3000 = vmatpush1.bf16.msra.mxu0 %v2883
    %3001 = vmatprep.subr.bf16.mxu0 %v2892
    %3002 = vmatpush1.bf16.msra.mxu0 %v2891
    %3003 = vmatprep.subr.bf16.mxu0 %v2900
    %3004 = vmatpush1.bf16.msra.mxu0 %v2899
    %3005 = vmatprep.subr.bf16.mxu0 %v2908
    %3006 = vmatpush1.bf16.msra.mxu0 %v2907
    %3007 = vmatprep.subr.bf16.mxu0 %v2916
    %3008 = vmatpush1.bf16.msra.mxu0 %v2915
    %3009 = vmatprep.subr.bf16.mxu0 %v2924
    %3010 = vmatpush1.bf16.msra.mxu0 %v2923
    %3011 = vmatprep.subr.bf16.mxu0 0
    %3012 = vmatpush1.bf16.msra.mxu0 0
    %3013 = vmatprep.subr.bf16.mxu0 0
    %3014 = vmatpush1.bf16.msra.mxu0 0
    %3015 = vmatprep.subr.bf16.mxu0 0
    %3016 = vmatpush1.bf16.msra.mxu0 0
    %3017 = vmatprep.subr.bf16.mxu0 0
    %3018 = vmatpush1.bf16.msra.mxu0 0
    %3019 = vmatprep.subr.bf16.mxu0 0
    %3020 = vmatpush1.bf16.msra.mxu0 0
    %3021 = vmatprep.subr.bf16.mxu0 0
    %3022 = vmatpush1.bf16.msra.mxu0 0
    %3023 = vmatprep.subr.bf16.mxu0 0
    %3024 = vmatpush1.bf16.msra.mxu0 0
    %3025 = vmatprep.subr.bf16.mxu0 0
    %3026 = vmatpush1.bf16.msra.mxu0 0
    %3027 = vmatprep.mubr.bf16.mxu0 0
    %3028 = vmatmul.mubr.bf16.gmra.mrb[0].mxu0 %v2057
    %v3029 = vpop.f32.mrb[0].mxu0
    %v3030 = vadd.f32 %v2546, %v3029
    %v3031 = vpop.f32.mrb[0].mxu0
    %v3032 = vadd.f32 %v2548, %v3031
    %v3033 = vpop.f32.mrb[0].mxu0
    %v3034 = vpop.f32.mrb[0].mxu0
    %3035 = vdwg.mxu0
    %3036 = vmatprep.subr.bf16.mxu0 %v2870
    %3037 = vmatpush1.bf16.msra.mxu0 %v2869
    %3038 = vmatprep.subr.bf16.mxu0 %v2878
    %3039 = vmatpush1.bf16.msra.mxu0 %v2877
    %3040 = vmatprep.subr.bf16.mxu0 %v2886
    %3041 = vmatpush1.bf16.msra.mxu0 %v2885
    %3042 = vmatprep.subr.bf16.mxu0 %v2894
    %3043 = vmatpush1.bf16.msra.mxu0 %v2893
    %3044 = vmatprep.subr.bf16.mxu0 %v2902
    %3045 = vmatpush1.bf16.msra.mxu0 %v2901
    %3046 = vmatprep.subr.bf16.mxu0 %v2910
    %3047 = vmatpush1.bf16.msra.mxu0 %v2909
    %3048 = vmatprep.subr.bf16.mxu0 %v2918
    %3049 = vmatpush1.bf16.msra.mxu0 %v2917
    %3050 = vmatprep.subr.bf16.mxu0 %v2926
    %3051 = vmatpush1.bf16.msra.mxu0 %v2925
    %3052 = vmatprep.subr.bf16.mxu0 0
    %3053 = vmatpush1.bf16.msra.mxu0 0
    %3054 = vmatprep.subr.bf16.mxu0 0
    %3055 = vmatpush1.bf16.msra.mxu0 0
    %3056 = vmatprep.subr.bf16.mxu0 0
    %3057 = vmatpush1.bf16.msra.mxu0 0
    %3058 = vmatprep.subr.bf16.mxu0 0
    %3059 = vmatpush1.bf16.msra.mxu0 0
    %3060 = vmatprep.subr.bf16.mxu0 0
    %3061 = vmatpush1.bf16.msra.mxu0 0
    %3062 = vmatprep.subr.bf16.mxu0 0
    %3063 = vmatpush1.bf16.msra.mxu0 0
    %3064 = vmatprep.subr.bf16.mxu0 0
    %3065 = vmatpush1.bf16.msra.mxu0 0
    %3066 = vmatprep.subr.bf16.mxu0 0
    %3067 = vmatpush1.bf16.msra.mxu0 0
    %3068 = vmatprep.mubr.bf16.mxu0 0
    %3069 = vmatmul.mubr.bf16.gmra.mrb[0].mxu0 %v2057
    %v3070 = vpop.f32.mrb[0].mxu0
    %v3071 = vadd.f32 %v2587, %v3070
    %v3072 = vpop.f32.mrb[0].mxu0
    %v3073 = vadd.f32 %v2589, %v3072
    %v3074 = vpop.f32.mrb[0].mxu0
    %v3075 = vpop.f32.mrb[0].mxu0
    %3076 = vdwg.mxu0
    %3077 = vmatprep.subr.bf16.mxu0 %v2872
    %3078 = vmatpush1.bf16.msra.mxu0 %v2871
    %3079 = vmatprep.subr.bf16.mxu0 %v2880
    %3080 = vmatpush1.bf16.msra.mxu0 %v2879
    %3081 = vmatprep.subr.bf16.mxu0 %v2888
    %3082 = vmatpush1.bf16.msra.mxu0 %v2887
    %3083 = vmatprep.subr.bf16.mxu0 %v2896
    %3084 = vmatpush1.bf16.msra.mxu0 %v2895
    %3085 = vmatprep.subr.bf16.mxu0 %v2904
    %3086 = vmatpush1.bf16.msra.mxu0 %v2903
    %3087 = vmatprep.subr.bf16.mxu0 %v2912
    %3088 = vmatpush1.bf16.msra.mxu0 %v2911
    %3089 = vmatprep.subr.bf16.mxu0 %v2920
    %3090 = vmatpush1.bf16.msra.mxu0 %v2919
    %3091 = vmatprep.subr.bf16.mxu0 %v2928
    %3092 = vmatpush1.bf16.msra.mxu0 %v2927
    %3093 = vmatprep.subr.bf16.mxu0 0
    %3094 = vmatpush1.bf16.msra.mxu0 0
    %3095 = vmatprep.subr.bf16.mxu0 0
    %3096 = vmatpush1.bf16.msra.mxu0 0
    %3097 = vmatprep.subr.bf16.mxu0 0
    %3098 = vmatpush1.bf16.msra.mxu0 0
    %3099 = vmatprep.subr.bf16.mxu0 0
    %3100 = vmatpush1.bf16.msra.mxu0 0
    %3101 = vmatprep.subr.bf16.mxu0 0
    %3102 = vmatpush1.bf16.msra.mxu0 0
    %3103 = vmatprep.subr.bf16.mxu0 0
    %3104 = vmatpush1.bf16.msra.mxu0 0
    %3105 = vmatprep.subr.bf16.mxu0 0
    %3106 = vmatpush1.bf16.msra.mxu0 0
    %3107 = vmatprep.subr.bf16.mxu0 0
    %3108 = vmatpush1.bf16.msra.mxu0 0
    %3109 = vmatprep.mubr.bf16.mxu0 0
    %3110 = vmatmul.mubr.bf16.gmra.mrb[0].mxu0 %v2057
    %v3111 = vpop.f32.mrb[0].mxu0
    %v3112 = vadd.f32 %v2628, %v3111
    %v3113 = vpop.f32.mrb[0].mxu0
    %v3114 = vadd.f32 %v2630, %v3113
    %v3115 = vpop.f32.mrb[0].mxu0
    %v3116 = vpop.f32.mrb[0].mxu0
    %3117 = vdwg.mxu0
    %3118 = vmatprep.subr.bf16.mxu0 %v2874
    %3119 = vmatpush1.bf16.msra.mxu0 %v2873
    %3120 = vmatprep.subr.bf16.mxu0 %v2882
    %3121 = vmatpush1.bf16.msra.mxu0 %v2881
    %3122 = vmatprep.subr.bf16.mxu0 %v2890
    %3123 = vmatpush1.bf16.msra.mxu0 %v2889
    %3124 = vmatprep.subr.bf16.mxu0 %v2898
    %3125 = vmatpush1.bf16.msra.mxu0 %v2897
    %3126 = vmatprep.subr.bf16.mxu0 %v2906
    %3127 = vmatpush1.bf16.msra.mxu0 %v2905
    %3128 = vmatprep.subr.bf16.mxu0 %v2914
    %3129 = vmatpush1.bf16.msra.mxu0 %v2913
    %3130 = vmatprep.subr.bf16.mxu0 %v2922
    %3131 = vmatpush1.bf16.msra.mxu0 %v2921
    %3132 = vmatprep.subr.bf16.mxu0 %v2930
    %3133 = vmatpush1.bf16.msra.mxu0 %v2929
    %3134 = vmatprep.subr.bf16.mxu0 0
    %3135 = vmatpush1.bf16.msra.mxu0 0
    %3136 = vmatprep.subr.bf16.mxu0 0
    %3137 = vmatpush1.bf16.msra.mxu0 0
    %3138 = vmatprep.subr.bf16.mxu0 0
    %3139 = vmatpush1.bf16.msra.mxu0 0
    %3140 = vmatprep.subr.bf16.mxu0 0
    %3141 = vmatpush1.bf16.msra.mxu0 0
    %3142 = vmatprep.subr.bf16.mxu0 0
    %3143 = vmatpush1.bf16.msra.mxu0 0
    %3144 = vmatprep.subr.bf16.mxu0 0
    %3145 = vmatpush1.bf16.msra.mxu0 0
    %3146 = vmatprep.subr.bf16.mxu0 0
    %3147 = vmatpush1.bf16.msra.mxu0 0
    %3148 = vmatprep.subr.bf16.mxu0 0
    %3149 = vmatpush1.bf16.msra.mxu0 0
    %3150 = vmatprep.mubr.bf16.mxu0 0
    %3151 = vmatmul.mubr.bf16.gmra.mrb[0].mxu0 %v2057
    %v3152 = vpop.f32.mrb[0].mxu0
    %v3153 = vadd.f32 %v2669, %v3152
    %v3154 = vpop.f32.mrb[0].mxu0
    %v3155 = vadd.f32 %v2671, %v3154
    %v3156 = vpop.f32.mrb[0].mxu0
    %v3157 = vpop.f32.mrb[0].mxu0
    %3158 = vdwg.mxu0
    %s3159 = scalar_lea.vmem [#allocation10], 1024
    %v3160 = vld [vmem:[%s3159] sm:$0xff]
    %v3161 = vld [vmem:[%s3159 + $0x8] sm:$0xff]
    %v3162 = vld [vmem:[%s3159 + $0x10] sm:$0xff]
    %v3163 = vld [vmem:[%s3159 + $0x18] sm:$0xff]
    %v3164 = vld [vmem:[%s3159 + $0x20] sm:$0xff]
    %v3165 = vld [vmem:[%s3159 + $0x28] sm:$0xff]
    %v3166 = vld [vmem:[%s3159 + $0x30] sm:$0xff]
    %v3167 = vld [vmem:[%s3159 + $0x38] sm:$0xff]
    %v3168 = vld [vmem:[%s3159 + $0x40] sm:$0xff]
    %v3169 = vld [vmem:[%s3159 + $0x48] sm:$0xff]
    %v3170 = vld [vmem:[%s3159 + $0x50] sm:$0xff]
    %v3171 = vld [vmem:[%s3159 + $0x58] sm:$0xff]
    %v3172 = vld [vmem:[%s3159 + $0x60] sm:$0xff]
    %v3173 = vld [vmem:[%s3159 + $0x68] sm:$0xff]
    %v3174 = vld [vmem:[%s3159 + $0x70] sm:$0xff]
    %v3175 = vld [vmem:[%s3159 + $0x78] sm:$0xff]
    %v3176 = vld [vmem:[%s3159 + $0x80] sm:$0xff]
    %v3177 = vld [vmem:[%s3159 + $0x88] sm:$0xff]
    %v3178 = vld [vmem:[%s3159 + $0x90] sm:$0xff]
    %v3179 = vld [vmem:[%s3159 + $0x98] sm:$0xff]
    %v3180 = vld [vmem:[%s3159 + $0xa0] sm:$0xff]
    %v3181 = vld [vmem:[%s3159 + $0xa8] sm:$0xff]
    %v3182 = vld [vmem:[%s3159 + $0xb0] sm:$0xff]
    %v3183 = vld [vmem:[%s3159 + $0xb8] sm:$0xff]
    %v3184 = vld [vmem:[%s3159 + $0xc0] sm:$0xff]
    %v3185 = vld [vmem:[%s3159 + $0xc8] sm:$0xff]
    %v3186 = vld [vmem:[%s3159 + $0xd0] sm:$0xff]
    %v3187 = vld [vmem:[%s3159 + $0xd8] sm:$0xff]
    %v3188 = vld [vmem:[%s3159 + $0xe0] sm:$0xff]
    %v3189 = vld [vmem:[%s3159 + $0xe8] sm:$0xff]
    %v3190 = vld [vmem:[%s3159 + $0xf0] sm:$0xff]
    %v3191 = vld [vmem:[%s3159 + $0xf8] sm:$0xff]
    %v3192 = vld [vmem:[%s3159 + $0x100] sm:$0xff]
    %v3193 = vld [vmem:[%s3159 + $0x108] sm:$0xff]
    %v3194 = vld [vmem:[%s3159 + $0x110] sm:$0xff]
    %v3195 = vld [vmem:[%s3159 + $0x118] sm:$0xff]
    %v3196 = vld [vmem:[%s3159 + $0x120] sm:$0xff]
    %v3197 = vld [vmem:[%s3159 + $0x128] sm:$0xff]
    %v3198 = vld [vmem:[%s3159 + $0x130] sm:$0xff]
    %v3199 = vld [vmem:[%s3159 + $0x138] sm:$0xff]
    %v3200 = vld [vmem:[%s3159 + $0x140] sm:$0xff]
    %v3201 = vld [vmem:[%s3159 + $0x148] sm:$0xff]
    %v3202 = vld [vmem:[%s3159 + $0x150] sm:$0xff]
    %v3203 = vld [vmem:[%s3159 + $0x158] sm:$0xff]
    %v3204 = vld [vmem:[%s3159 + $0x160] sm:$0xff]
    %v3205 = vld [vmem:[%s3159 + $0x168] sm:$0xff]
    %v3206 = vld [vmem:[%s3159 + $0x170] sm:$0xff]
    %v3207 = vld [vmem:[%s3159 + $0x178] sm:$0xff]
    %v3208 = vld [vmem:[%s3159 + $0x180] sm:$0xff]
    %v3209 = vld [vmem:[%s3159 + $0x188] sm:$0xff]
    %v3210 = vld [vmem:[%s3159 + $0x190] sm:$0xff]
    %v3211 = vld [vmem:[%s3159 + $0x198] sm:$0xff]
    %v3212 = vld [vmem:[%s3159 + $0x1a0] sm:$0xff]
    %v3213 = vld [vmem:[%s3159 + $0x1a8] sm:$0xff]
    %v3214 = vld [vmem:[%s3159 + $0x1b0] sm:$0xff]
    %v3215 = vld [vmem:[%s3159 + $0x1b8] sm:$0xff]
    %v3216 = vld [vmem:[%s3159 + $0x1c0] sm:$0xff]
    %v3217 = vld [vmem:[%s3159 + $0x1c8] sm:$0xff]
    %v3218 = vld [vmem:[%s3159 + $0x1d0] sm:$0xff]
    %v3219 = vld [vmem:[%s3159 + $0x1d8] sm:$0xff]
    %v3220 = vld [vmem:[%s3159 + $0x1e0] sm:$0xff]
    %v3221 = vld [vmem:[%s3159 + $0x1e8] sm:$0xff]
    %v3222 = vld [vmem:[%s3159 + $0x1f0] sm:$0xff]
    %v3223 = vld [vmem:[%s3159 + $0x1f8] sm:$0xff]
    %v3224 = vrot.slane %v2057, 2
    %v3290 = vunpack.c.l.b16 %v3160
    %v3291 = vunpack.c.h.b16 %v3160
    %v3292 = vunpack.c.l.b16 %v3161
    %v3293 = vunpack.c.h.b16 %v3161
    %v3294 = vunpack.c.l.b16 %v3162
    %v3295 = vunpack.c.h.b16 %v3162
    %v3296 = vunpack.c.l.b16 %v3163
    %v3297 = vunpack.c.h.b16 %v3163
    %v3298 = vunpack.c.l.b16 %v3164
    %v3299 = vunpack.c.h.b16 %v3164
    %v3300 = vunpack.c.l.b16 %v3165
    %v3301 = vunpack.c.h.b16 %v3165
    %v3302 = vunpack.c.l.b16 %v3166
    %v3303 = vunpack.c.h.b16 %v3166
    %v3304 = vunpack.c.l.b16 %v3167
    %v3305 = vunpack.c.h.b16 %v3167
    %v3306 = vunpack.c.l.b16 %v3168
    %v3307 = vunpack.c.h.b16 %v3168
    %v3308 = vunpack.c.l.b16 %v3169
    %v3309 = vunpack.c.h.b16 %v3169
    %v3310 = vunpack.c.l.b16 %v3170
    %v3311 = vunpack.c.h.b16 %v3170
    %v3312 = vunpack.c.l.b16 %v3171
    %v3313 = vunpack.c.h.b16 %v3171
    %v3314 = vunpack.c.l.b16 %v3172
    %v3315 = vunpack.c.h.b16 %v3172
    %v3316 = vunpack.c.l.b16 %v3173
    %v3317 = vunpack.c.h.b16 %v3173
    %v3318 = vunpack.c.l.b16 %v3174
    %v3319 = vunpack.c.h.b16 %v3174
    %v3320 = vunpack.c.l.b16 %v3175
    %v3321 = vunpack.c.h.b16 %v3175
    %v3322 = vunpack.c.l.b16 %v3176
    %v3323 = vunpack.c.h.b16 %v3176
    %v3324 = vunpack.c.l.b16 %v3177
    %v3325 = vunpack.c.h.b16 %v3177
    %v3326 = vunpack.c.l.b16 %v3178
    %v3327 = vunpack.c.h.b16 %v3178
    %v3328 = vunpack.c.l.b16 %v3179
    %v3329 = vunpack.c.h.b16 %v3179
    %v3330 = vunpack.c.l.b16 %v3180
    %v3331 = vunpack.c.h.b16 %v3180
    %v3332 = vunpack.c.l.b16 %v3181
    %v3333 = vunpack.c.h.b16 %v3181
    %v3334 = vunpack.c.l.b16 %v3182
    %v3335 = vunpack.c.h.b16 %v3182
    %v3336 = vunpack.c.l.b16 %v3183
    %v3337 = vunpack.c.h.b16 %v3183
    %v3338 = vunpack.c.l.b16 %v3184
    %v3339 = vunpack.c.h.b16 %v3184
    %v3340 = vunpack.c.l.b16 %v3185
    %v3341 = vunpack.c.h.b16 %v3185
    %v3342 = vunpack.c.l.b16 %v3186
    %v3343 = vunpack.c.h.b16 %v3186
    %v3344 = vunpack.c.l.b16 %v3187
    %v3345 = vunpack.c.h.b16 %v3187
    %v3346 = vunpack.c.l.b16 %v3188
    %v3347 = vunpack.c.h.b16 %v3188
    %v3348 = vunpack.c.l.b16 %v3189
    %v3349 = vunpack.c.h.b16 %v3189
    %v3350 = vunpack.c.l.b16 %v3190
    %v3351 = vunpack.c.h.b16 %v3190
    %v3352 = vunpack.c.l.b16 %v3191
    %v3353 = vunpack.c.h.b16 %v3191
    %v3354 = vunpack.c.l.b16 %v3192
    %v3355 = vunpack.c.h.b16 %v3192
    %v3356 = vunpack.c.l.b16 %v3193
    %v3357 = vunpack.c.h.b16 %v3193
    %v3358 = vunpack.c.l.b16 %v3194
    %v3359 = vunpack.c.h.b16 %v3194
    %v3360 = vunpack.c.l.b16 %v3195
    %v3361 = vunpack.c.h.b16 %v3195
    %v3362 = vunpack.c.l.b16 %v3196
    %v3363 = vunpack.c.h.b16 %v3196
    %v3364 = vunpack.c.l.b16 %v3197
    %v3365 = vunpack.c.h.b16 %v3197
    %v3366 = vunpack.c.l.b16 %v3198
    %v3367 = vunpack.c.h.b16 %v3198
    %v3368 = vunpack.c.l.b16 %v3199
    %v3369 = vunpack.c.h.b16 %v3199
    %v3370 = vunpack.c.l.b16 %v3200
    %v3371 = vunpack.c.h.b16 %v3200
    %v3372 = vunpack.c.l.b16 %v3201
    %v3373 = vunpack.c.h.b16 %v3201
    %v3374 = vunpack.c.l.b16 %v3202
    %v3375 = vunpack.c.h.b16 %v3202
    %v3376 = vunpack.c.l.b16 %v3203
    %v3377 = vunpack.c.h.b16 %v3203
    %v3378 = vunpack.c.l.b16 %v3204
    %v3379 = vunpack.c.h.b16 %v3204
    %v3380 = vunpack.c.l.b16 %v3205
    %v3381 = vunpack.c.h.b16 %v3205
    %v3382 = vunpack.c.l.b16 %v3206
    %v3383 = vunpack.c.h.b16 %v3206
    %v3384 = vunpack.c.l.b16 %v3207
    %v3385 = vunpack.c.h.b16 %v3207
    %v3386 = vunpack.c.l.b16 %v3208
    %v3387 = vunpack.c.h.b16 %v3208
    %v3388 = vunpack.c.l.b16 %v3209
    %v3389 = vunpack.c.h.b16 %v3209
    %v3390 = vunpack.c.l.b16 %v3210
    %v3391 = vunpack.c.h.b16 %v3210
    %v3392 = vunpack.c.l.b16 %v3211
    %v3393 = vunpack.c.h.b16 %v3211
    %v3394 = vunpack.c.l.b16 %v3212
    %v3395 = vunpack.c.h.b16 %v3212
    %v3396 = vunpack.c.l.b16 %v3213
    %v3397 = vunpack.c.h.b16 %v3213
    %v3398 = vunpack.c.l.b16 %v3214
    %v3399 = vunpack.c.h.b16 %v3214
    %v3400 = vunpack.c.l.b16 %v3215
    %v3401 = vunpack.c.h.b16 %v3215
    %v3402 = vunpack.c.l.b16 %v3216
    %v3403 = vunpack.c.h.b16 %v3216
    %v3404 = vunpack.c.l.b16 %v3217
    %v3405 = vunpack.c.h.b16 %v3217
    %v3406 = vunpack.c.l.b16 %v3218
    %v3407 = vunpack.c.h.b16 %v3218
    %v3408 = vunpack.c.l.b16 %v3219
    %v3409 = vunpack.c.h.b16 %v3219
    %v3410 = vunpack.c.l.b16 %v3220
    %v3411 = vunpack.c.h.b16 %v3220
    %v3412 = vunpack.c.l.b16 %v3221
    %v3413 = vunpack.c.h.b16 %v3221
    %v3414 = vunpack.c.l.b16 %v3222
    %v3415 = vunpack.c.h.b16 %v3222
    %v3416 = vunpack.c.l.b16 %v3223
    %v3417 = vunpack.c.h.b16 %v3223
    %v3418 = vpack.c.b16 %v3298, %v3290
    %v3419 = vpack.c.b16 %v3299, %v3291
    %v3420 = vpack.c.b16 %v3300, %v3292
    %v3421 = vpack.c.b16 %v3301, %v3293
    %v3422 = vpack.c.b16 %v3302, %v3294
    %v3423 = vpack.c.b16 %v3303, %v3295
    %v3424 = vpack.c.b16 %v3304, %v3296
    %v3425 = vpack.c.b16 %v3305, %v3297
    %v3426 = vpack.c.b16 %v3314, %v3306
    %v3427 = vpack.c.b16 %v3315, %v3307
    %v3428 = vpack.c.b16 %v3316, %v3308
    %v3429 = vpack.c.b16 %v3317, %v3309
    %v3430 = vpack.c.b16 %v3318, %v3310
    %v3431 = vpack.c.b16 %v3319, %v3311
    %v3432 = vpack.c.b16 %v3320, %v3312
    %v3433 = vpack.c.b16 %v3321, %v3313
    %v3434 = vpack.c.b16 %v3330, %v3322
    %v3435 = vpack.c.b16 %v3331, %v3323
    %v3436 = vpack.c.b16 %v3332, %v3324
    %v3437 = vpack.c.b16 %v3333, %v3325
    %v3438 = vpack.c.b16 %v3334, %v3326
    %v3439 = vpack.c.b16 %v3335, %v3327
    %v3440 = vpack.c.b16 %v3336, %v3328
    %v3441 = vpack.c.b16 %v3337, %v3329
    %v3442 = vpack.c.b16 %v3346, %v3338
    %v3443 = vpack.c.b16 %v3347, %v3339
    %v3444 = vpack.c.b16 %v3348, %v3340
    %v3445 = vpack.c.b16 %v3349, %v3341
    %v3446 = vpack.c.b16 %v3350, %v3342
    %v3447 = vpack.c.b16 %v3351, %v3343
    %v3448 = vpack.c.b16 %v3352, %v3344
    %v3449 = vpack.c.b16 %v3353, %v3345
    %v3450 = vpack.c.b16 %v3362, %v3354
    %v3451 = vpack.c.b16 %v3363, %v3355
    %v3452 = vpack.c.b16 %v3364, %v3356
    %v3453 = vpack.c.b16 %v3365, %v3357
    %v3454 = vpack.c.b16 %v3366, %v3358
    %v3455 = vpack.c.b16 %v3367, %v3359
    %v3456 = vpack.c.b16 %v3368, %v3360
    %v3457 = vpack.c.b16 %v3369, %v3361
    %v3458 = vpack.c.b16 %v3378, %v3370
    %v3459 = vpack.c.b16 %v3379, %v3371
    %v3460 = vpack.c.b16 %v3380, %v3372
    %v3461 = vpack.c.b16 %v3381, %v3373
    %v3462 = vpack.c.b16 %v3382, %v3374
    %v3463 = vpack.c.b16 %v3383, %v3375
    %v3464 = vpack.c.b16 %v3384, %v3376
    %v3465 = vpack.c.b16 %v3385, %v3377
    %v3466 = vpack.c.b16 %v3394, %v3386
    %v3467 = vpack.c.b16 %v3395, %v3387
    %v3468 = vpack.c.b16 %v3396, %v3388
    %v3469 = vpack.c.b16 %v3397, %v3389
    %v3470 = vpack.c.b16 %v3398, %v3390
    %v3471 = vpack.c.b16 %v3399, %v3391
    %v3472 = vpack.c.b16 %v3400, %v3392
    %v3473 = vpack.c.b16 %v3401, %v3393
    %v3474 = vpack.c.b16 %v3410, %v3402
    %v3475 = vpack.c.b16 %v3411, %v3403
    %v3476 = vpack.c.b16 %v3412, %v3404
    %v3477 = vpack.c.b16 %v3413, %v3405
    %v3478 = vpack.c.b16 %v3414, %v3406
    %v3479 = vpack.c.b16 %v3415, %v3407
    %v3480 = vpack.c.b16 %v3416, %v3408
    %v3481 = vpack.c.b16 %v3417, %v3409
    %3546 = vmatprep.subr.bf16.mxu0 %v3419
    %3547 = vmatpush1.bf16.msra.mxu0 %v3418
    %3548 = vmatprep.subr.bf16.mxu0 %v3427
    %3549 = vmatpush1.bf16.msra.mxu0 %v3426
    %3550 = vmatprep.subr.bf16.mxu0 %v3435
    %3551 = vmatpush1.bf16.msra.mxu0 %v3434
    %3552 = vmatprep.subr.bf16.mxu0 %v3443
    %3553 = vmatpush1.bf16.msra.mxu0 %v3442
    %3554 = vmatprep.subr.bf16.mxu0 %v3451
    %3555 = vmatpush1.bf16.msra.mxu0 %v3450
    %3556 = vmatprep.subr.bf16.mxu0 %v3459
    %3557 = vmatpush1.bf16.msra.mxu0 %v3458
    %3558 = vmatprep.subr.bf16.mxu0 %v3467
    %3559 = vmatpush1.bf16.msra.mxu0 %v3466
    %3560 = vmatprep.subr.bf16.mxu0 %v3475
    %3561 = vmatpush1.bf16.msra.mxu0 %v3474
    %3562 = vmatprep.subr.bf16.mxu0 0
    %3563 = vmatpush1.bf16.msra.mxu0 0
    %3564 = vmatprep.subr.bf16.mxu0 0
    %3565 = vmatpush1.bf16.msra.mxu0 0
    %3566 = vmatprep.subr.bf16.mxu0 0
    %3567 = vmatpush1.bf16.msra.mxu0 0
    %3568 = vmatprep.subr.bf16.mxu0 0
    %3569 = vmatpush1.bf16.msra.mxu0 0
    %3570 = vmatprep.subr.bf16.mxu0 0
    %3571 = vmatpush1.bf16.msra.mxu0 0
    %3572 = vmatprep.subr.bf16.mxu0 0
    %3573 = vmatpush1.bf16.msra.mxu0 0
    %3574 = vmatprep.subr.bf16.mxu0 0
    %3575 = vmatpush1.bf16.msra.mxu0 0
    %3576 = vmatprep.subr.bf16.mxu0 0
    %3577 = vmatpush1.bf16.msra.mxu0 0
    %3578 = vmatprep.mubr.bf16.mxu0 0
    %3579 = vmatmul.mubr.bf16.gmra.mrb[0].mxu0 %v3224
    %v3580 = vpop.f32.mrb[0].mxu0
    %v3581 = vadd.f32 0.0, %v3580
    %v3582 = vpop.f32.mrb[0].mxu0
    %v3583 = vadd.f32 0.0, %v3582
    %v3584 = vpop.f32.mrb[0].mxu0
    %v3585 = vpop.f32.mrb[0].mxu0
    %3586 = vdwg.mxu0
    %3587 = vmatprep.subr.bf16.mxu0 %v3421
    %3588 = vmatpush1.bf16.msra.mxu0 %v3420
    %3589 = vmatprep.subr.bf16.mxu0 %v3429
    %3590 = vmatpush1.bf16.msra.mxu0 %v3428
    %3591 = vmatprep.subr.bf16.mxu0 %v3437
    %3592 = vmatpush1.bf16.msra.mxu0 %v3436
    %3593 = vmatprep.subr.bf16.mxu0 %v3445
    %3594 = vmatpush1.bf16.msra.mxu0 %v3444
    %3595 = vmatprep.subr.bf16.mxu0 %v3453
    %3596 = vmatpush1.bf16.msra.mxu0 %v3452
    %3597 = vmatprep.subr.bf16.mxu0 %v3461
    %3598 = vmatpush1.bf16.msra.mxu0 %v3460
    %3599 = vmatprep.subr.bf16.mxu0 %v3469
    %3600 = vmatpush1.bf16.msra.mxu0 %v3468
    %3601 = vmatprep.subr.bf16.mxu0 %v3477
    %3602 = vmatpush1.bf16.msra.mxu0 %v3476
    %3603 = vmatprep.subr.bf16.mxu0 0
    %3604 = vmatpush1.bf16.msra.mxu0 0
    %3605 = vmatprep.subr.bf16.mxu0 0
    %3606 = vmatpush1.bf16.msra.mxu0 0
    %3607 = vmatprep.subr.bf16.mxu0 0
    %3608 = vmatpush1.bf16.msra.mxu0 0
    %3609 = vmatprep.subr.bf16.mxu0 0
    %3610 = vmatpush1.bf16.msra.mxu0 0
    %3611 = vmatprep.subr.bf16.mxu0 0
    %3612 = vmatpush1.bf16.msra.mxu0 0
    %3613 = vmatprep.subr.bf16.mxu0 0
    %3614 = vmatpush1.bf16.msra.mxu0 0
    %3615 = vmatprep.subr.bf16.mxu0 0
    %3616 = vmatpush1.bf16.msra.mxu0 0
    %3617 = vmatprep.subr.bf16.mxu0 0
    %3618 = vmatpush1.bf16.msra.mxu0 0
    %3619 = vmatprep.mubr.bf16.mxu0 0
    %3620 = vmatmul.mubr.bf16.gmra.mrb[0].mxu0 %v3224
    %v3621 = vpop.f32.mrb[0].mxu0
    %v3622 = vadd.f32 0.0, %v3621
    %v3623 = vpop.f32.mrb[0].mxu0
    %v3624 = vadd.f32 0.0, %v3623
    %v3625 = vpop.f32.mrb[0].mxu0
    %v3626 = vpop.f32.mrb[0].mxu0
    %3627 = vdwg.mxu0
    %3628 = vmatprep.subr.bf16.mxu0 %v3423
    %3629 = vmatpush1.bf16.msra.mxu0 %v3422
    %3630 = vmatprep.subr.bf16.mxu0 %v3431
    %3631 = vmatpush1.bf16.msra.mxu0 %v3430
    %3632 = vmatprep.subr.bf16.mxu0 %v3439
    %3633 = vmatpush1.bf16.msra.mxu0 %v3438
    %3634 = vmatprep.subr.bf16.mxu0 %v3447
    %3635 = vmatpush1.bf16.msra.mxu0 %v3446
    %3636 = vmatprep.subr.bf16.mxu0 %v3455
    %3637 = vmatpush1.bf16.msra.mxu0 %v3454
    %3638 = vmatprep.subr.bf16.mxu0 %v3463
    %3639 = vmatpush1.bf16.msra.mxu0 %v3462
    %3640 = vmatprep.subr.bf16.mxu0 %v3471
    %3641 = vmatpush1.bf16.msra.mxu0 %v3470
    %3642 = vmatprep.subr.bf16.mxu0 %v3479
    %3643 = vmatpush1.bf16.msra.mxu0 %v3478
    %3644 = vmatprep.subr.bf16.mxu0 0
    %3645 = vmatpush1.bf16.msra.mxu0 0
    %3646 = vmatprep.subr.bf16.mxu0 0
    %3647 = vmatpush1.bf16.msra.mxu0 0
    %3648 = vmatprep.subr.bf16.mxu0 0
    %3649 = vmatpush1.bf16.msra.mxu0 0
    %3650 = vmatprep.subr.bf16.mxu0 0
    %3651 = vmatpush1.bf16.msra.mxu0 0
    %3652 = vmatprep.subr.bf16.mxu0 0
    %3653 = vmatpush1.bf16.msra.mxu0 0
    %3654 = vmatprep.subr.bf16.mxu0 0
    %3655 = vmatpush1.bf16.msra.mxu0 0
    %3656 = vmatprep.subr.bf16.mxu0 0
    %3657 = vmatpush1.bf16.msra.mxu0 0
    %3658 = vmatprep.subr.bf16.mxu0 0
    %3659 = vmatpush1.bf16.msra.mxu0 0
    %3660 = vmatprep.mubr.bf16.mxu0 0
    %3661 = vmatmul.mubr.bf16.gmra.mrb[0].mxu0 %v3224
    %v3662 = vpop.f32.mrb[0].mxu0
    %v3663 = vadd.f32 0.0, %v3662
    %v3664 = vpop.f32.mrb[0].mxu0
    %v3665 = vadd.f32 0.0, %v3664
    %v3666 = vpop.f32.mrb[0].mxu0
    %v3667 = vpop.f32.mrb[0].mxu0
    %3668 = vdwg.mxu0
    %3669 = vmatprep.subr.bf16.mxu0 %v3425
    %3670 = vmatpush1.bf16.msra.mxu0 %v3424
    %3671 = vmatprep.subr.bf16.mxu0 %v3433
    %3672 = vmatpush1.bf16.msra.mxu0 %v3432
    %3673 = vmatprep.subr.bf16.mxu0 %v3441
    %3674 = vmatpush1.bf16.msra.mxu0 %v3440
    %3675 = vmatprep.subr.bf16.mxu0 %v3449
    %3676 = vmatpush1.bf16.msra.mxu0 %v3448
    %3677 = vmatprep.subr.bf16.mxu0 %v3457
    %3678 = vmatpush1.bf16.msra.mxu0 %v3456
    %3679 = vmatprep.subr.bf16.mxu0 %v3465
    %3680 = vmatpush1.bf16.msra.mxu0 %v3464
    %3681 = vmatprep.subr.bf16.mxu0 %v3473
    %3682 = vmatpush1.bf16.msra.mxu0 %v3472
    %3683 = vmatprep.subr.bf16.mxu0 %v3481
    %3684 = vmatpush1.bf16.msra.mxu0 %v3480
    %3685 = vmatprep.subr.bf16.mxu0 0
    %3686 = vmatpush1.bf16.msra.mxu0 0
    %3687 = vmatprep.subr.bf16.mxu0 0
    %3688 = vmatpush1.bf16.msra.mxu0 0
    %3689 = vmatprep.subr.bf16.mxu0 0
    %3690 = vmatpush1.bf16.msra.mxu0 0
    %3691 = vmatprep.subr.bf16.mxu0 0
    %3692 = vmatpush1.bf16.msra.mxu0 0
    %3693 = vmatprep.subr.bf16.mxu0 0
    %3694 = vmatpush1.bf16.msra.mxu0 0
    %3695 = vmatprep.subr.bf16.mxu0 0
    %3696 = vmatpush1.bf16.msra.mxu0 0
    %3697 = vmatprep.subr.bf16.mxu0 0
    %3698 = vmatpush1.bf16.msra.mxu0 0
    %3699 = vmatprep.subr.bf16.mxu0 0
    %3700 = vmatpush1.bf16.msra.mxu0 0
    %3701 = vmatprep.mubr.bf16.mxu0 0
    %3702 = vmatmul.mubr.bf16.gmra.mrb[0].mxu0 %v3224
    %v3703 = vpop.f32.mrb[0].mxu0
    %v3704 = vadd.f32 0.0, %v3703
    %v3705 = vpop.f32.mrb[0].mxu0
    %v3706 = vadd.f32 0.0, %v3705
    %v3707 = vpop.f32.mrb[0].mxu0
    %v3708 = vpop.f32.mrb[0].mxu0
    %3709 = vdwg.mxu0
    %v3710 = vadd.f32 %v3030, %v3581
    %v3711 = vadd.f32 %v3032, %v3583
    %v3712 = vadd.f32 %v3071, %v3622
    %v3713 = vadd.f32 %v3073, %v3624
    %v3714 = vadd.f32 %v3112, %v3663
    %v3715 = vadd.f32 %v3114, %v3665
    %v3716 = vadd.f32 %v3153, %v3704
    %v3717 = vadd.f32 %v3155, %v3706
    %s3718 = scalar_lea.vmem [#allocation10], 1536
    %v3719 = vld [vmem:[%s3718] sm:$0xff]
    %v3720 = vld [vmem:[%s3718 + $0x8] sm:$0xff]
    %v3721 = vld [vmem:[%s3718 + $0x10] sm:$0xff]
    %v3722 = vld [vmem:[%s3718 + $0x18] sm:$0xff]
    %v3723 = vld [vmem:[%s3718 + $0x20] sm:$0xff]
    %v3724 = vld [vmem:[%s3718 + $0x28] sm:$0xff]
    %v3725 = vld [vmem:[%s3718 + $0x30] sm:$0xff]
    %v3726 = vld [vmem:[%s3718 + $0x38] sm:$0xff]
    %v3727 = vld [vmem:[%s3718 + $0x40] sm:$0xff]
    %v3728 = vld [vmem:[%s3718 + $0x48] sm:$0xff]
    %v3729 = vld [vmem:[%s3718 + $0x50] sm:$0xff]
    %v3730 = vld [vmem:[%s3718 + $0x58] sm:$0xff]
    %v3731 = vld [vmem:[%s3718 + $0x60] sm:$0xff]
    %v3732 = vld [vmem:[%s3718 + $0x68] sm:$0xff]
    %v3733 = vld [vmem:[%s3718 + $0x70] sm:$0xff]
    %v3734 = vld [vmem:[%s3718 + $0x78] sm:$0xff]
    %v3735 = vld [vmem:[%s3718 + $0x80] sm:$0xff]
    %v3736 = vld [vmem:[%s3718 + $0x88] sm:$0xff]
    %v3737 = vld [vmem:[%s3718 + $0x90] sm:$0xff]
    %v3738 = vld [vmem:[%s3718 + $0x98] sm:$0xff]
    %v3739 = vld [vmem:[%s3718 + $0xa0] sm:$0xff]
    %v3740 = vld [vmem:[%s3718 + $0xa8] sm:$0xff]
    %v3741 = vld [vmem:[%s3718 + $0xb0] sm:$0xff]
    %v3742 = vld [vmem:[%s3718 + $0xb8] sm:$0xff]
    %v3743 = vld [vmem:[%s3718 + $0xc0] sm:$0xff]
    %v3744 = vld [vmem:[%s3718 + $0xc8] sm:$0xff]
    %v3745 = vld [vmem:[%s3718 + $0xd0] sm:$0xff]
    %v3746 = vld [vmem:[%s3718 + $0xd8] sm:$0xff]
    %v3747 = vld [vmem:[%s3718 + $0xe0] sm:$0xff]
    %v3748 = vld [vmem:[%s3718 + $0xe8] sm:$0xff]
    %v3749 = vld [vmem:[%s3718 + $0xf0] sm:$0xff]
    %v3750 = vld [vmem:[%s3718 + $0xf8] sm:$0xff]
    %v3751 = vld [vmem:[%s3718 + $0x100] sm:$0xff]
    %v3752 = vld [vmem:[%s3718 + $0x108] sm:$0xff]
    %v3753 = vld [vmem:[%s3718 + $0x110] sm:$0xff]
    %v3754 = vld [vmem:[%s3718 + $0x118] sm:$0xff]
    %v3755 = vld [vmem:[%s3718 + $0x120] sm:$0xff]
    %v3756 = vld [vmem:[%s3718 + $0x128] sm:$0xff]
    %v3757 = vld [vmem:[%s3718 + $0x130] sm:$0xff]
    %v3758 = vld [vmem:[%s3718 + $0x138] sm:$0xff]
    %v3759 = vld [vmem:[%s3718 + $0x140] sm:$0xff]
    %v3760 = vld [vmem:[%s3718 + $0x148] sm:$0xff]
    %v3761 = vld [vmem:[%s3718 + $0x150] sm:$0xff]
    %v3762 = vld [vmem:[%s3718 + $0x158] sm:$0xff]
    %v3763 = vld [vmem:[%s3718 + $0x160] sm:$0xff]
    %v3764 = vld [vmem:[%s3718 + $0x168] sm:$0xff]
    %v3765 = vld [vmem:[%s3718 + $0x170] sm:$0xff]
    %v3766 = vld [vmem:[%s3718 + $0x178] sm:$0xff]
    %v3767 = vld [vmem:[%s3718 + $0x180] sm:$0xff]
    %v3768 = vld [vmem:[%s3718 + $0x188] sm:$0xff]
    %v3769 = vld [vmem:[%s3718 + $0x190] sm:$0xff]
    %v3770 = vld [vmem:[%s3718 + $0x198] sm:$0xff]
    %v3771 = vld [vmem:[%s3718 + $0x1a0] sm:$0xff]
    %v3772 = vld [vmem:[%s3718 + $0x1a8] sm:$0xff]
    %v3773 = vld [vmem:[%s3718 + $0x1b0] sm:$0xff]
    %v3774 = vld [vmem:[%s3718 + $0x1b8] sm:$0xff]
    %v3775 = vld [vmem:[%s3718 + $0x1c0] sm:$0xff]
    %v3776 = vld [vmem:[%s3718 + $0x1c8] sm:$0xff]
    %v3777 = vld [vmem:[%s3718 + $0x1d0] sm:$0xff]
    %v3778 = vld [vmem:[%s3718 + $0x1d8] sm:$0xff]
    %v3779 = vld [vmem:[%s3718 + $0x1e0] sm:$0xff]
    %v3780 = vld [vmem:[%s3718 + $0x1e8] sm:$0xff]
    %v3781 = vld [vmem:[%s3718 + $0x1f0] sm:$0xff]
    %v3782 = vld [vmem:[%s3718 + $0x1f8] sm:$0xff]
    %v3783 = vrot.slane %v2057, 3
    %v3849 = vunpack.c.l.b16 %v3719
    %v3850 = vunpack.c.h.b16 %v3719
    %v3851 = vunpack.c.l.b16 %v3720
    %v3852 = vunpack.c.h.b16 %v3720
    %v3853 = vunpack.c.l.b16 %v3721
    %v3854 = vunpack.c.h.b16 %v3721
    %v3855 = vunpack.c.l.b16 %v3722
    %v3856 = vunpack.c.h.b16 %v3722
    %v3857 = vunpack.c.l.b16 %v3723
    %v3858 = vunpack.c.h.b16 %v3723
    %v3859 = vunpack.c.l.b16 %v3724
    %v3860 = vunpack.c.h.b16 %v3724
    %v3861 = vunpack.c.l.b16 %v3725
    %v3862 = vunpack.c.h.b16 %v3725
    %v3863 = vunpack.c.l.b16 %v3726
    %v3864 = vunpack.c.h.b16 %v3726
    %v3865 = vunpack.c.l.b16 %v3727
    %v3866 = vunpack.c.h.b16 %v3727
    %v3867 = vunpack.c.l.b16 %v3728
    %v3868 = vunpack.c.h.b16 %v3728
    %v3869 = vunpack.c.l.b16 %v3729
    %v3870 = vunpack.c.h.b16 %v3729
    %v3871 = vunpack.c.l.b16 %v3730
    %v3872 = vunpack.c.h.b16 %v3730
    %v3873 = vunpack.c.l.b16 %v3731
    %v3874 = vunpack.c.h.b16 %v3731
    %v3875 = vunpack.c.l.b16 %v3732
    %v3876 = vunpack.c.h.b16 %v3732
    %v3877 = vunpack.c.l.b16 %v3733
    %v3878 = vunpack.c.h.b16 %v3733
    %v3879 = vunpack.c.l.b16 %v3734
    %v3880 = vunpack.c.h.b16 %v3734
    %v3881 = vunpack.c.l.b16 %v3735
    %v3882 = vunpack.c.h.b16 %v3735
    %v3883 = vunpack.c.l.b16 %v3736
    %v3884 = vunpack.c.h.b16 %v3736
    %v3885 = vunpack.c.l.b16 %v3737
    %v3886 = vunpack.c.h.b16 %v3737
    %v3887 = vunpack.c.l.b16 %v3738
    %v3888 = vunpack.c.h.b16 %v3738
    %v3889 = vunpack.c.l.b16 %v3739
    %v3890 = vunpack.c.h.b16 %v3739
    %v3891 = vunpack.c.l.b16 %v3740
    %v3892 = vunpack.c.h.b16 %v3740
    %v3893 = vunpack.c.l.b16 %v3741
    %v3894 = vunpack.c.h.b16 %v3741
    %v3895 = vunpack.c.l.b16 %v3742
    %v3896 = vunpack.c.h.b16 %v3742
    %v3897 = vunpack.c.l.b16 %v3743
    %v3898 = vunpack.c.h.b16 %v3743
    %v3899 = vunpack.c.l.b16 %v3744
    %v3900 = vunpack.c.h.b16 %v3744
    %v3901 = vunpack.c.l.b16 %v3745
    %v3902 = vunpack.c.h.b16 %v3745
    %v3903 = vunpack.c.l.b16 %v3746
    %v3904 = vunpack.c.h.b16 %v3746
    %v3905 = vunpack.c.l.b16 %v3747
    %v3906 = vunpack.c.h.b16 %v3747
    %v3907 = vunpack.c.l.b16 %v3748
    %v3908 = vunpack.c.h.b16 %v3748
    %v3909 = vunpack.c.l.b16 %v3749
    %v3910 = vunpack.c.h.b16 %v3749
    %v3911 = vunpack.c.l.b16 %v3750
    %v3912 = vunpack.c.h.b16 %v3750
    %v3913 = vunpack.c.l.b16 %v3751
    %v3914 = vunpack.c.h.b16 %v3751
    %v3915 = vunpack.c.l.b16 %v3752
    %v3916 = vunpack.c.h.b16 %v3752
    %v3917 = vunpack.c.l.b16 %v3753
    %v3918 = vunpack.c.h.b16 %v3753
    %v3919 = vunpack.c.l.b16 %v3754
    %v3920 = vunpack.c.h.b16 %v3754
    %v3921 = vunpack.c.l.b16 %v3755
    %v3922 = vunpack.c.h.b16 %v3755
    %v3923 = vunpack.c.l.b16 %v3756
    %v3924 = vunpack.c.h.b16 %v3756
    %v3925 = vunpack.c.l.b16 %v3757
    %v3926 = vunpack.c.h.b16 %v3757
    %v3927 = vunpack.c.l.b16 %v3758
    %v3928 = vunpack.c.h.b16 %v3758
    %v3929 = vunpack.c.l.b16 %v3759
    %v3930 = vunpack.c.h.b16 %v3759
    %v3931 = vunpack.c.l.b16 %v3760
    %v3932 = vunpack.c.h.b16 %v3760
    %v3933 = vunpack.c.l.b16 %v3761
    %v3934 = vunpack.c.h.b16 %v3761
    %v3935 = vunpack.c.l.b16 %v3762
    %v3936 = vunpack.c.h.b16 %v3762
    %v3937 = vunpack.c.l.b16 %v3763
    %v3938 = vunpack.c.h.b16 %v3763
    %v3939 = vunpack.c.l.b16 %v3764
    %v3940 = vunpack.c.h.b16 %v3764
    %v3941 = vunpack.c.l.b16 %v3765
    %v3942 = vunpack.c.h.b16 %v3765
    %v3943 = vunpack.c.l.b16 %v3766
    %v3944 = vunpack.c.h.b16 %v3766
    %v3945 = vunpack.c.l.b16 %v3767
    %v3946 = vunpack.c.h.b16 %v3767
    %v3947 = vunpack.c.l.b16 %v3768
    %v3948 = vunpack.c.h.b16 %v3768
    %v3949 = vunpack.c.l.b16 %v3769
    %v3950 = vunpack.c.h.b16 %v3769
    %v3951 = vunpack.c.l.b16 %v3770
    %v3952 = vunpack.c.h.b16 %v3770
    %v3953 = vunpack.c.l.b16 %v3771
    %v3954 = vunpack.c.h.b16 %v3771
    %v3955 = vunpack.c.l.b16 %v3772
    %v3956 = vunpack.c.h.b16 %v3772
    %v3957 = vunpack.c.l.b16 %v3773
    %v3958 = vunpack.c.h.b16 %v3773
    %v3959 = vunpack.c.l.b16 %v3774
    %v3960 = vunpack.c.h.b16 %v3774
    %v3961 = vunpack.c.l.b16 %v3775
    %v3962 = vunpack.c.h.b16 %v3775
    %v3963 = vunpack.c.l.b16 %v3776
    %v3964 = vunpack.c.h.b16 %v3776
    %v3965 = vunpack.c.l.b16 %v3777
    %v3966 = vunpack.c.h.b16 %v3777
    %v3967 = vunpack.c.l.b16 %v3778
    %v3968 = vunpack.c.h.b16 %v3778
    %v3969 = vunpack.c.l.b16 %v3779
    %v3970 = vunpack.c.h.b16 %v3779
    %v3971 = vunpack.c.l.b16 %v3780
    %v3972 = vunpack.c.h.b16 %v3780
    %v3973 = vunpack.c.l.b16 %v3781
    %v3974 = vunpack.c.h.b16 %v3781
    %v3975 = vunpack.c.l.b16 %v3782
    %v3976 = vunpack.c.h.b16 %v3782
    %v3977 = vpack.c.b16 %v3857, %v3849
    %v3978 = vpack.c.b16 %v3858, %v3850
    %v3979 = vpack.c.b16 %v3859, %v3851
    %v3980 = vpack.c.b16 %v3860, %v3852
    %v3981 = vpack.c.b16 %v3861, %v3853
    %v3982 = vpack.c.b16 %v3862, %v3854
    %v3983 = vpack.c.b16 %v3863, %v3855
    %v3984 = vpack.c.b16 %v3864, %v3856
    %v3985 = vpack.c.b16 %v3873, %v3865
    %v3986 = vpack.c.b16 %v3874, %v3866
    %v3987 = vpack.c.b16 %v3875, %v3867
    %v3988 = vpack.c.b16 %v3876, %v3868
    %v3989 = vpack.c.b16 %v3877, %v3869
    %v3990 = vpack.c.b16 %v3878, %v3870
    %v3991 = vpack.c.b16 %v3879, %v3871
    %v3992 = vpack.c.b16 %v3880, %v3872
    %v3993 = vpack.c.b16 %v3889, %v3881
    %v3994 = vpack.c.b16 %v3890, %v3882
    %v3995 = vpack.c.b16 %v3891, %v3883
    %v3996 = vpack.c.b16 %v3892, %v3884
    %v3997 = vpack.c.b16 %v3893, %v3885
    %v3998 = vpack.c.b16 %v3894, %v3886
    %v3999 = vpack.c.b16 %v3895, %v3887
    %v4000 = vpack.c.b16 %v3896, %v3888
    %v4001 = vpack.c.b16 %v3905, %v3897
    %v4002 = vpack.c.b16 %v3906, %v3898
    %v4003 = vpack.c.b16 %v3907, %v3899
    %v4004 = vpack.c.b16 %v3908, %v3900
    %v4005 = vpack.c.b16 %v3909, %v3901
    %v4006 = vpack.c.b16 %v3910, %v3902
    %v4007 = vpack.c.b16 %v3911, %v3903
    %v4008 = vpack.c.b16 %v3912, %v3904
    %v4009 = vpack.c.b16 %v3921, %v3913
    %v4010 = vpack.c.b16 %v3922, %v3914
    %v4011 = vpack.c.b16 %v3923, %v3915
    %v4012 = vpack.c.b16 %v3924, %v3916
    %v4013 = vpack.c.b16 %v3925, %v3917
    %v4014 = vpack.c.b16 %v3926, %v3918
    %v4015 = vpack.c.b16 %v3927, %v3919
    %v4016 = vpack.c.b16 %v3928, %v3920
    %v4017 = vpack.c.b16 %v3937, %v3929
    %v4018 = vpack.c.b16 %v3938, %v3930
    %v4019 = vpack.c.b16 %v3939, %v3931
    %v4020 = vpack.c.b16 %v3940, %v3932
    %v4021 = vpack.c.b16 %v3941, %v3933
    %v4022 = vpack.c.b16 %v3942, %v3934
    %v4023 = vpack.c.b16 %v3943, %v3935
    %v4024 = vpack.c.b16 %v3944, %v3936
    %v4025 = vpack.c.b16 %v3953, %v3945
    %v4026 = vpack.c.b16 %v3954, %v3946
    %v4027 = vpack.c.b16 %v3955, %v3947
    %v4028 = vpack.c.b16 %v3956, %v3948
    %v4029 = vpack.c.b16 %v3957, %v3949
    %v4030 = vpack.c.b16 %v3958, %v3950
    %v4031 = vpack.c.b16 %v3959, %v3951
    %v4032 = vpack.c.b16 %v3960, %v3952
    %v4033 = vpack.c.b16 %v3969, %v3961
    %v4034 = vpack.c.b16 %v3970, %v3962
    %v4035 = vpack.c.b16 %v3971, %v3963
    %v4036 = vpack.c.b16 %v3972, %v3964
    %v4037 = vpack.c.b16 %v3973, %v3965
    %v4038 = vpack.c.b16 %v3974, %v3966
    %v4039 = vpack.c.b16 %v3975, %v3967
    %v4040 = vpack.c.b16 %v3976, %v3968
    %4105 = vmatprep.subr.bf16.mxu0 %v3978
    %4106 = vmatpush1.bf16.msra.mxu0 %v3977
    %4107 = vmatprep.subr.bf16.mxu0 %v3986
    %4108 = vmatpush1.bf16.msra.mxu0 %v3985
    %4109 = vmatprep.subr.bf16.mxu0 %v3994
    %4110 = vmatpush1.bf16.msra.mxu0 %v3993
    %4111 = vmatprep.subr.bf16.mxu0 %v4002
    %4112 = vmatpush1.bf16.msra.mxu0 %v4001
    %4113 = vmatprep.subr.bf16.mxu0 %v4010
    %4114 = vmatpush1.bf16.msra.mxu0 %v4009
    %4115 = vmatprep.subr.bf16.mxu0 %v4018
    %4116 = vmatpush1.bf16.msra.mxu0 %v4017
    %4117 = vmatprep.subr.bf16.mxu0 %v4026
    %4118 = vmatpush1.bf16.msra.mxu0 %v4025
    %4119 = vmatprep.subr.bf16.mxu0 %v4034
    %4120 = vmatpush1.bf16.msra.mxu0 %v4033
    %4121 = vmatprep.subr.bf16.mxu0 0
    %4122 = vmatpush1.bf16.msra.mxu0 0
    %4123 = vmatprep.subr.bf16.mxu0 0
    %4124 = vmatpush1.bf16.msra.mxu0 0
    %4125 = vmatprep.subr.bf16.mxu0 0
    %4126 = vmatpush1.bf16.msra.mxu0 0
    %4127 = vmatprep.subr.bf16.mxu0 0
    %4128 = vmatpush1.bf16.msra.mxu0 0
    %4129 = vmatprep.subr.bf16.mxu0 0
    %4130 = vmatpush1.bf16.msra.mxu0 0
    %4131 = vmatprep.subr.bf16.mxu0 0
    %4132 = vmatpush1.bf16.msra.mxu0 0
    %4133 = vmatprep.subr.bf16.mxu0 0
    %4134 = vmatpush1.bf16.msra.mxu0 0
    %4135 = vmatprep.subr.bf16.mxu0 0
    %4136 = vmatpush1.bf16.msra.mxu0 0
    %4137 = vmatprep.mubr.bf16.mxu0 0
    %4138 = vmatmul.mubr.bf16.gmra.mrb[0].mxu0 %v3783
    %v4139 = vpop.f32.mrb[0].mxu0
    %v4140 = vadd.f32 0.0, %v4139
    %v4141 = vpop.f32.mrb[0].mxu0
    %v4142 = vadd.f32 0.0, %v4141
    %v4143 = vpop.f32.mrb[0].mxu0
    %v4144 = vpop.f32.mrb[0].mxu0
    %4145 = vdwg.mxu0
    %4146 = vmatprep.subr.bf16.mxu0 %v3980
    %4147 = vmatpush1.bf16.msra.mxu0 %v3979
    %4148 = vmatprep.subr.bf16.mxu0 %v3988
    %4149 = vmatpush1.bf16.msra.mxu0 %v3987
    %4150 = vmatprep.subr.bf16.mxu0 %v3996
    %4151 = vmatpush1.bf16.msra.mxu0 %v3995
    %4152 = vmatprep.subr.bf16.mxu0 %v4004
    %4153 = vmatpush1.bf16.msra.mxu0 %v4003
    %4154 = vmatprep.subr.bf16.mxu0 %v4012
    %4155 = vmatpush1.bf16.msra.mxu0 %v4011
    %4156 = vmatprep.subr.bf16.mxu0 %v4020
    %4157 = vmatpush1.bf16.msra.mxu0 %v4019
    %4158 = vmatprep.subr.bf16.mxu0 %v4028
    %4159 = vmatpush1.bf16.msra.mxu0 %v4027
    %4160 = vmatprep.subr.bf16.mxu0 %v4036
    %4161 = vmatpush1.bf16.msra.mxu0 %v4035
    %4162 = vmatprep.subr.bf16.mxu0 0
    %4163 = vmatpush1.bf16.msra.mxu0 0
    %4164 = vmatprep.subr.bf16.mxu0 0
    %4165 = vmatpush1.bf16.msra.mxu0 0
    %4166 = vmatprep.subr.bf16.mxu0 0
    %4167 = vmatpush1.bf16.msra.mxu0 0
    %4168 = vmatprep.subr.bf16.mxu0 0
    %4169 = vmatpush1.bf16.msra.mxu0 0
    %4170 = vmatprep.subr.bf16.mxu0 0
    %4171 = vmatpush1.bf16.msra.mxu0 0
    %4172 = vmatprep.subr.bf16.mxu0 0
    %4173 = vmatpush1.bf16.msra.mxu0 0
    %4174 = vmatprep.subr.bf16.mxu0 0
    %4175 = vmatpush1.bf16.msra.mxu0 0
    %4176 = vmatprep.subr.bf16.mxu0 0
    %4177 = vmatpush1.bf16.msra.mxu0 0
    %4178 = vmatprep.mubr.bf16.mxu0 0
    %4179 = vmatmul.mubr.bf16.gmra.mrb[0].mxu0 %v3783
    %v4180 = vpop.f32.mrb[0].mxu0
    %v4181 = vadd.f32 0.0, %v4180
    %v4182 = vpop.f32.mrb[0].mxu0
    %v4183 = vadd.f32 0.0, %v4182
    %v4184 = vpop.f32.mrb[0].mxu0
    %v4185 = vpop.f32.mrb[0].mxu0
    %4186 = vdwg.mxu0
    %4187 = vmatprep.subr.bf16.mxu0 %v3982
    %4188 = vmatpush1.bf16.msra.mxu0 %v3981
    %4189 = vmatprep.subr.bf16.mxu0 %v3990
    %4190 = vmatpush1.bf16.msra.mxu0 %v3989
    %4191 = vmatprep.subr.bf16.mxu0 %v3998
    %4192 = vmatpush1.bf16.msra.mxu0 %v3997
    %4193 = vmatprep.subr.bf16.mxu0 %v4006
    %4194 = vmatpush1.bf16.msra.mxu0 %v4005
    %4195 = vmatprep.subr.bf16.mxu0 %v4014
    %4196 = vmatpush1.bf16.msra.mxu0 %v4013
    %4197 = vmatprep.subr.bf16.mxu0 %v4022
    %4198 = vmatpush1.bf16.msra.mxu0 %v4021
    %4199 = vmatprep.subr.bf16.mxu0 %v4030
    %4200 = vmatpush1.bf16.msra.mxu0 %v4029
    %4201 = vmatprep.subr.bf16.mxu0 %v4038
    %4202 = vmatpush1.bf16.msra.mxu0 %v4037
    %4203 = vmatprep.subr.bf16.mxu0 0
    %4204 = vmatpush1.bf16.msra.mxu0 0
    %4205 = vmatprep.subr.bf16.mxu0 0
    %4206 = vmatpush1.bf16.msra.mxu0 0
    %4207 = vmatprep.subr.bf16.mxu0 0
    %4208 = vmatpush1.bf16.msra.mxu0 0
    %4209 = vmatprep.subr.bf16.mxu0 0
    %4210 = vmatpush1.bf16.msra.mxu0 0
    %4211 = vmatprep.subr.bf16.mxu0 0
    %4212 = vmatpush1.bf16.msra.mxu0 0
    %4213 = vmatprep.subr.bf16.mxu0 0
    %4214 = vmatpush1.bf16.msra.mxu0 0
    %4215 = vmatprep.subr.bf16.mxu0 0
    %4216 = vmatpush1.bf16.msra.mxu0 0
    %4217 = vmatprep.subr.bf16.mxu0 0
    %4218 = vmatpush1.bf16.msra.mxu0 0
    %4219 = vmatprep.mubr.bf16.mxu0 0
    %4220 = vmatmul.mubr.bf16.gmra.mrb[0].mxu0 %v3783
    %v4221 = vpop.f32.mrb[0].mxu0
    %v4222 = vadd.f32 0.0, %v4221
    %v4223 = vpop.f32.mrb[0].mxu0
    %v4224 = vadd.f32 0.0, %v4223
    %v4225 = vpop.f32.mrb[0].mxu0
    %v4226 = vpop.f32.mrb[0].mxu0
    %4227 = vdwg.mxu0
    %4228 = vmatprep.subr.bf16.mxu0 %v3984
    %4229 = vmatpush1.bf16.msra.mxu0 %v3983
    %4230 = vmatprep.subr.bf16.mxu0 %v3992
    %4231 = vmatpush1.bf16.msra.mxu0 %v3991
    %4232 = vmatprep.subr.bf16.mxu0 %v4000
    %4233 = vmatpush1.bf16.msra.mxu0 %v3999
    %4234 = vmatprep.subr.bf16.mxu0 %v4008
    %4235 = vmatpush1.bf16.msra.mxu0 %v4007
    %4236 = vmatprep.subr.bf16.mxu0 %v4016
    %4237 = vmatpush1.bf16.msra.mxu0 %v4015
    %4238 = vmatprep.subr.bf16.mxu0 %v4024
    %4239 = vmatpush1.bf16.msra.mxu0 %v4023
    %4240 = vmatprep.subr.bf16.mxu0 %v4032
    %4241 = vmatpush1.bf16.msra.mxu0 %v4031
    %4242 = vmatprep.subr.bf16.mxu0 %v4040
    %4243 = vmatpush1.bf16.msra.mxu0 %v4039
    %4244 = vmatprep.subr.bf16.mxu0 0
    %4245 = vmatpush1.bf16.msra.mxu0 0
    %4246 = vmatprep.subr.bf16.mxu0 0
    %4247 = vmatpush1.bf16.msra.mxu0 0
    %4248 = vmatprep.subr.bf16.mxu0 0
    %4249 = vmatpush1.bf16.msra.mxu0 0
    %4250 = vmatprep.subr.bf16.mxu0 0
    %4251 = vmatpush1.bf16.msra.mxu0 0
    %4252 = vmatprep.subr.bf16.mxu0 0
    %4253 = vmatpush1.bf16.msra.mxu0 0
    %4254 = vmatprep.subr.bf16.mxu0 0
    %4255 = vmatpush1.bf16.msra.mxu0 0
    %4256 = vmatprep.subr.bf16.mxu0 0
    %4257 = vmatpush1.bf16.msra.mxu0 0
    %4258 = vmatprep.subr.bf16.mxu0 0
    %4259 = vmatpush1.bf16.msra.mxu0 0
    %4260 = vmatprep.mubr.bf16.mxu0 0
    %4261 = vmatmul.mubr.bf16.gmra.mrb[0].mxu0 %v3783
    %v4262 = vpop.f32.mrb[0].mxu0
    %v4263 = vadd.f32 0.0, %v4262
    %v4264 = vpop.f32.mrb[0].mxu0
    %v4265 = vadd.f32 0.0, %v4264
    %v4266 = vpop.f32.mrb[0].mxu0
    %v4267 = vpop.f32.mrb[0].mxu0
    %4268 = vdwg.mxu0
    %v4269 = vadd.f32 %v3710, %v4140
    %v4270 = vadd.f32 %v3711, %v4142
    %v4271 = vadd.f32 %v3712, %v4181
    %v4272 = vadd.f32 %v3713, %v4183
    %v4273 = vadd.f32 %v3714, %v4222
    %v4274 = vadd.f32 %v3715, %v4224
    %v4275 = vadd.f32 %v3716, %v4263
    %v4276 = vadd.f32 %v3717, %v4265
    %s4277 = scalar_lea.vmem [#allocation10], 2048
    %v4278 = vld [vmem:[%s4277] sm:$0xff]
    %v4279 = vld [vmem:[%s4277 + $0x8] sm:$0xff]
    %v4280 = vld [vmem:[%s4277 + $0x10] sm:$0xff]
    %v4281 = vld [vmem:[%s4277 + $0x18] sm:$0xff]
    %v4282 = vld [vmem:[%s4277 + $0x20] sm:$0xff]
    %v4283 = vld [vmem:[%s4277 + $0x28] sm:$0xff]
    %v4284 = vld [vmem:[%s4277 + $0x30] sm:$0xff]
    %v4285 = vld [vmem:[%s4277 + $0x38] sm:$0xff]
    %v4286 = vld [vmem:[%s4277 + $0x40] sm:$0xff]
    %v4287 = vld [vmem:[%s4277 + $0x48] sm:$0xff]
    %v4288 = vld [vmem:[%s4277 + $0x50] sm:$0xff]
    %v4289 = vld [vmem:[%s4277 + $0x58] sm:$0xff]
    %v4290 = vld [vmem:[%s4277 + $0x60] sm:$0xff]
    %v4291 = vld [vmem:[%s4277 + $0x68] sm:$0xff]
    %v4292 = vld [vmem:[%s4277 + $0x70] sm:$0xff]
    %v4293 = vld [vmem:[%s4277 + $0x78] sm:$0xff]
    %v4294 = vld [vmem:[%s4277 + $0x80] sm:$0xff]
    %v4295 = vld [vmem:[%s4277 + $0x88] sm:$0xff]
    %v4296 = vld [vmem:[%s4277 + $0x90] sm:$0xff]
    %v4297 = vld [vmem:[%s4277 + $0x98] sm:$0xff]
    %v4298 = vld [vmem:[%s4277 + $0xa0] sm:$0xff]
    %v4299 = vld [vmem:[%s4277 + $0xa8] sm:$0xff]
    %v4300 = vld [vmem:[%s4277 + $0xb0] sm:$0xff]
    %v4301 = vld [vmem:[%s4277 + $0xb8] sm:$0xff]
    %v4302 = vld [vmem:[%s4277 + $0xc0] sm:$0xff]
    %v4303 = vld [vmem:[%s4277 + $0xc8] sm:$0xff]
    %v4304 = vld [vmem:[%s4277 + $0xd0] sm:$0xff]
    %v4305 = vld [vmem:[%s4277 + $0xd8] sm:$0xff]
    %v4306 = vld [vmem:[%s4277 + $0xe0] sm:$0xff]
    %v4307 = vld [vmem:[%s4277 + $0xe8] sm:$0xff]
    %v4308 = vld [vmem:[%s4277 + $0xf0] sm:$0xff]
    %v4309 = vld [vmem:[%s4277 + $0xf8] sm:$0xff]
    %v4310 = vld [vmem:[%s4277 + $0x100] sm:$0xff]
    %v4311 = vld [vmem:[%s4277 + $0x108] sm:$0xff]
    %v4312 = vld [vmem:[%s4277 + $0x110] sm:$0xff]
    %v4313 = vld [vmem:[%s4277 + $0x118] sm:$0xff]
    %v4314 = vld [vmem:[%s4277 + $0x120] sm:$0xff]
    %v4315 = vld [vmem:[%s4277 + $0x128] sm:$0xff]
    %v4316 = vld [vmem:[%s4277 + $0x130] sm:$0xff]
    %v4317 = vld [vmem:[%s4277 + $0x138] sm:$0xff]
    %v4318 = vld [vmem:[%s4277 + $0x140] sm:$0xff]
    %v4319 = vld [vmem:[%s4277 + $0x148] sm:$0xff]
    %v4320 = vld [vmem:[%s4277 + $0x150] sm:$0xff]
    %v4321 = vld [vmem:[%s4277 + $0x158] sm:$0xff]
    %v4322 = vld [vmem:[%s4277 + $0x160] sm:$0xff]
    %v4323 = vld [vmem:[%s4277 + $0x168] sm:$0xff]
    %v4324 = vld [vmem:[%s4277 + $0x170] sm:$0xff]
    %v4325 = vld [vmem:[%s4277 + $0x178] sm:$0xff]
    %v4326 = vld [vmem:[%s4277 + $0x180] sm:$0xff]
    %v4327 = vld [vmem:[%s4277 + $0x188] sm:$0xff]
    %v4328 = vld [vmem:[%s4277 + $0x190] sm:$0xff]
    %v4329 = vld [vmem:[%s4277 + $0x198] sm:$0xff]
    %v4330 = vld [vmem:[%s4277 + $0x1a0] sm:$0xff]
    %v4331 = vld [vmem:[%s4277 + $0x1a8] sm:$0xff]
    %v4332 = vld [vmem:[%s4277 + $0x1b0] sm:$0xff]
    %v4333 = vld [vmem:[%s4277 + $0x1b8] sm:$0xff]
    %v4334 = vld [vmem:[%s4277 + $0x1c0] sm:$0xff]
    %v4335 = vld [vmem:[%s4277 + $0x1c8] sm:$0xff]
    %v4336 = vld [vmem:[%s4277 + $0x1d0] sm:$0xff]
    %v4337 = vld [vmem:[%s4277 + $0x1d8] sm:$0xff]
    %v4338 = vld [vmem:[%s4277 + $0x1e0] sm:$0xff]
    %v4339 = vld [vmem:[%s4277 + $0x1e8] sm:$0xff]
    %v4340 = vld [vmem:[%s4277 + $0x1f0] sm:$0xff]
    %v4341 = vld [vmem:[%s4277 + $0x1f8] sm:$0xff]
    %v4342 = vrot.slane %v2057, 4
    %v4408 = vunpack.c.l.b16 %v4278
    %v4409 = vunpack.c.h.b16 %v4278
    %v4410 = vunpack.c.l.b16 %v4279
    %v4411 = vunpack.c.h.b16 %v4279
    %v4412 = vunpack.c.l.b16 %v4280
    %v4413 = vunpack.c.h.b16 %v4280
    %v4414 = vunpack.c.l.b16 %v4281
    %v4415 = vunpack.c.h.b16 %v4281
    %v4416 = vunpack.c.l.b16 %v4282
    %v4417 = vunpack.c.h.b16 %v4282
    %v4418 = vunpack.c.l.b16 %v4283
    %v4419 = vunpack.c.h.b16 %v4283
    %v4420 = vunpack.c.l.b16 %v4284
    %v4421 = vunpack.c.h.b16 %v4284
    %v4422 = vunpack.c.l.b16 %v4285
    %v4423 = vunpack.c.h.b16 %v4285
    %v4424 = vunpack.c.l.b16 %v4286
    %v4425 = vunpack.c.h.b16 %v4286
    %v4426 = vunpack.c.l.b16 %v4287
    %v4427 = vunpack.c.h.b16 %v4287
    %v4428 = vunpack.c.l.b16 %v4288
    %v4429 = vunpack.c.h.b16 %v4288
    %v4430 = vunpack.c.l.b16 %v4289
    %v4431 = vunpack.c.h.b16 %v4289
    %v4432 = vunpack.c.l.b16 %v4290
    %v4433 = vunpack.c.h.b16 %v4290
    %v4434 = vunpack.c.l.b16 %v4291
    %v4435 = vunpack.c.h.b16 %v4291
    %v4436 = vunpack.c.l.b16 %v4292
    %v4437 = vunpack.c.h.b16 %v4292
    %v4438 = vunpack.c.l.b16 %v4293
    %v4439 = vunpack.c.h.b16 %v4293
    %v4440 = vunpack.c.l.b16 %v4294
    %v4441 = vunpack.c.h.b16 %v4294
    %v4442 = vunpack.c.l.b16 %v4295
    %v4443 = vunpack.c.h.b16 %v4295
    %v4444 = vunpack.c.l.b16 %v4296
    %v4445 = vunpack.c.h.b16 %v4296
    %v4446 = vunpack.c.l.b16 %v4297
    %v4447 = vunpack.c.h.b16 %v4297
    %v4448 = vunpack.c.l.b16 %v4298
    %v4449 = vunpack.c.h.b16 %v4298
    %v4450 = vunpack.c.l.b16 %v4299
    %v4451 = vunpack.c.h.b16 %v4299
    %v4452 = vunpack.c.l.b16 %v4300
    %v4453 = vunpack.c.h.b16 %v4300
    %v4454 = vunpack.c.l.b16 %v4301
    %v4455 = vunpack.c.h.b16 %v4301
    %v4456 = vunpack.c.l.b16 %v4302
    %v4457 = vunpack.c.h.b16 %v4302
    %v4458 = vunpack.c.l.b16 %v4303
    %v4459 = vunpack.c.h.b16 %v4303
    %v4460 = vunpack.c.l.b16 %v4304
    %v4461 = vunpack.c.h.b16 %v4304
    %v4462 = vunpack.c.l.b16 %v4305
    %v4463 = vunpack.c.h.b16 %v4305
    %v4464 = vunpack.c.l.b16 %v4306
    %v4465 = vunpack.c.h.b16 %v4306
    %v4466 = vunpack.c.l.b16 %v4307
    %v4467 = vunpack.c.h.b16 %v4307
    %v4468 = vunpack.c.l.b16 %v4308
    %v4469 = vunpack.c.h.b16 %v4308
    %v4470 = vunpack.c.l.b16 %v4309
    %v4471 = vunpack.c.h.b16 %v4309
    %v4472 = vunpack.c.l.b16 %v4310
    %v4473 = vunpack.c.h.b16 %v4310
    %v4474 = vunpack.c.l.b16 %v4311
    %v4475 = vunpack.c.h.b16 %v4311
    %v4476 = vunpack.c.l.b16 %v4312
    %v4477 = vunpack.c.h.b16 %v4312
    %v4478 = vunpack.c.l.b16 %v4313
    %v4479 = vunpack.c.h.b16 %v4313
    %v4480 = vunpack.c.l.b16 %v4314
    %v4481 = vunpack.c.h.b16 %v4314
    %v4482 = vunpack.c.l.b16 %v4315
    %v4483 = vunpack.c.h.b16 %v4315
    %v4484 = vunpack.c.l.b16 %v4316
    %v4485 = vunpack.c.h.b16 %v4316
    %v4486 = vunpack.c.l.b16 %v4317
    %v4487 = vunpack.c.h.b16 %v4317
    %v4488 = vunpack.c.l.b16 %v4318
    %v4489 = vunpack.c.h.b16 %v4318
    %v4490 = vunpack.c.l.b16 %v4319
    %v4491 = vunpack.c.h.b16 %v4319
    %v4492 = vunpack.c.l.b16 %v4320
    %v4493 = vunpack.c.h.b16 %v4320
    %v4494 = vunpack.c.l.b16 %v4321
    %v4495 = vunpack.c.h.b16 %v4321
    %v4496 = vunpack.c.l.b16 %v4322
    %v4497 = vunpack.c.h.b16 %v4322
    %v4498 = vunpack.c.l.b16 %v4323
    %v4499 = vunpack.c.h.b16 %v4323
    %v4500 = vunpack.c.l.b16 %v4324
    %v4501 = vunpack.c.h.b16 %v4324
    %v4502 = vunpack.c.l.b16 %v4325
    %v4503 = vunpack.c.h.b16 %v4325
    %v4504 = vunpack.c.l.b16 %v4326
    %v4505 = vunpack.c.h.b16 %v4326
    %v4506 = vunpack.c.l.b16 %v4327
    %v4507 = vunpack.c.h.b16 %v4327
    %v4508 = vunpack.c.l.b16 %v4328
    %v4509 = vunpack.c.h.b16 %v4328
    %v4510 = vunpack.c.l.b16 %v4329
    %v4511 = vunpack.c.h.b16 %v4329
    %v4512 = vunpack.c.l.b16 %v4330
    %v4513 = vunpack.c.h.b16 %v4330
    %v4514 = vunpack.c.l.b16 %v4331
    %v4515 = vunpack.c.h.b16 %v4331
    %v4516 = vunpack.c.l.b16 %v4332
    %v4517 = vunpack.c.h.b16 %v4332
    %v4518 = vunpack.c.l.b16 %v4333
    %v4519 = vunpack.c.h.b16 %v4333
    %v4520 = vunpack.c.l.b16 %v4334
    %v4521 = vunpack.c.h.b16 %v4334
    %v4522 = vunpack.c.l.b16 %v4335
    %v4523 = vunpack.c.h.b16 %v4335
    %v4524 = vunpack.c.l.b16 %v4336
    %v4525 = vunpack.c.h.b16 %v4336
    %v4526 = vunpack.c.l.b16 %v4337
    %v4527 = vunpack.c.h.b16 %v4337
    %v4528 = vunpack.c.l.b16 %v4338
    %v4529 = vunpack.c.h.b16 %v4338
    %v4530 = vunpack.c.l.b16 %v4339
    %v4531 = vunpack.c.h.b16 %v4339
    %v4532 = vunpack.c.l.b16 %v4340
    %v4533 = vunpack.c.h.b16 %v4340
    %v4534 = vunpack.c.l.b16 %v4341
    %v4535 = vunpack.c.h.b16 %v4341
    %v4536 = vpack.c.b16 %v4416, %v4408
    %v4537 = vpack.c.b16 %v4417, %v4409
    %v4538 = vpack.c.b16 %v4418, %v4410
    %v4539 = vpack.c.b16 %v4419, %v4411
    %v4540 = vpack.c.b16 %v4420, %v4412
    %v4541 = vpack.c.b16 %v4421, %v4413
    %v4542 = vpack.c.b16 %v4422, %v4414
    %v4543 = vpack.c.b16 %v4423, %v4415
    %v4544 = vpack.c.b16 %v4432, %v4424
    %v4545 = vpack.c.b16 %v4433, %v4425
    %v4546 = vpack.c.b16 %v4434, %v4426
    %v4547 = vpack.c.b16 %v4435, %v4427
    %v4548 = vpack.c.b16 %v4436, %v4428
    %v4549 = vpack.c.b16 %v4437, %v4429
    %v4550 = vpack.c.b16 %v4438, %v4430
    %v4551 = vpack.c.b16 %v4439, %v4431
    %v4552 = vpack.c.b16 %v4448, %v4440
    %v4553 = vpack.c.b16 %v4449, %v4441
    %v4554 = vpack.c.b16 %v4450, %v4442
    %v4555 = vpack.c.b16 %v4451, %v4443
    %v4556 = vpack.c.b16 %v4452, %v4444
    %v4557 = vpack.c.b16 %v4453, %v4445
    %v4558 = vpack.c.b16 %v4454, %v4446
    %v4559 = vpack.c.b16 %v4455, %v4447
    %v4560 = vpack.c.b16 %v4464, %v4456
    %v4561 = vpack.c.b16 %v4465, %v4457
    %v4562 = vpack.c.b16 %v4466, %v4458
    %v4563 = vpack.c.b16 %v4467, %v4459
    %v4564 = vpack.c.b16 %v4468, %v4460
    %v4565 = vpack.c.b16 %v4469, %v4461
    %v4566 = vpack.c.b16 %v4470, %v4462
    %v4567 = vpack.c.b16 %v4471, %v4463
    %v4568 = vpack.c.b16 %v4480, %v4472
    %v4569 = vpack.c.b16 %v4481, %v4473
    %v4570 = vpack.c.b16 %v4482, %v4474
    %v4571 = vpack.c.b16 %v4483, %v4475
    %v4572 = vpack.c.b16 %v4484, %v4476
    %v4573 = vpack.c.b16 %v4485, %v4477
    %v4574 = vpack.c.b16 %v4486, %v4478
    %v4575 = vpack.c.b16 %v4487, %v4479
    %v4576 = vpack.c.b16 %v4496, %v4488
    %v4577 = vpack.c.b16 %v4497, %v4489
    %v4578 = vpack.c.b16 %v4498, %v4490
    %v4579 = vpack.c.b16 %v4499, %v4491
    %v4580 = vpack.c.b16 %v4500, %v4492
    %v4581 = vpack.c.b16 %v4501, %v4493
    %v4582 = vpack.c.b16 %v4502, %v4494
    %v4583 = vpack.c.b16 %v4503, %v4495
    %v4584 = vpack.c.b16 %v4512, %v4504
    %v4585 = vpack.c.b16 %v4513, %v4505
    %v4586 = vpack.c.b16 %v4514, %v4506
    %v4587 = vpack.c.b16 %v4515, %v4507
    %v4588 = vpack.c.b16 %v4516, %v4508
    %v4589 = vpack.c.b16 %v4517, %v4509
    %v4590 = vpack.c.b16 %v4518, %v4510
    %v4591 = vpack.c.b16 %v4519, %v4511
    %v4592 = vpack.c.b16 %v4528, %v4520
    %v4593 = vpack.c.b16 %v4529, %v4521
    %v4594 = vpack.c.b16 %v4530, %v4522
    %v4595 = vpack.c.b16 %v4531, %v4523
    %v4596 = vpack.c.b16 %v4532, %v4524
    %v4597 = vpack.c.b16 %v4533, %v4525
    %v4598 = vpack.c.b16 %v4534, %v4526
    %v4599 = vpack.c.b16 %v4535, %v4527
    %4664 = vmatprep.subr.bf16.mxu0 %v4537
    %4665 = vmatpush1.bf16.msra.mxu0 %v4536
    %4666 = vmatprep.subr.bf16.mxu0 %v4545
    %4667 = vmatpush1.bf16.msra.mxu0 %v4544
    %4668 = vmatprep.subr.bf16.mxu0 %v4553
    %4669 = vmatpush1.bf16.msra.mxu0 %v4552
    %4670 = vmatprep.subr.bf16.mxu0 %v4561
    %4671 = vmatpush1.bf16.msra.mxu0 %v4560
    %4672 = vmatprep.subr.bf16.mxu0 %v4569
    %4673 = vmatpush1.bf16.msra.mxu0 %v4568
    %4674 = vmatprep.subr.bf16.mxu0 %v4577
    %4675 = vmatpush1.bf16.msra.mxu0 %v4576
    %4676 = vmatprep.subr.bf16.mxu0 %v4585
    %4677 = vmatpush1.bf16.msra.mxu0 %v4584
    %4678 = vmatprep.subr.bf16.mxu0 %v4593
    %4679 = vmatpush1.bf16.msra.mxu0 %v4592
    %4680 = vmatprep.subr.bf16.mxu0 0
    %4681 = vmatpush1.bf16.msra.mxu0 0
    %4682 = vmatprep.subr.bf16.mxu0 0
    %4683 = vmatpush1.bf16.msra.mxu0 0
    %4684 = vmatprep.subr.bf16.mxu0 0
    %4685 = vmatpush1.bf16.msra.mxu0 0
    %4686 = vmatprep.subr.bf16.mxu0 0
    %4687 = vmatpush1.bf16.msra.mxu0 0
    %4688 = vmatprep.subr.bf16.mxu0 0
    %4689 = vmatpush1.bf16.msra.mxu0 0
    %4690 = vmatprep.subr.bf16.mxu0 0
    %4691 = vmatpush1.bf16.msra.mxu0 0
    %4692 = vmatprep.subr.bf16.mxu0 0
    %4693 = vmatpush1.bf16.msra.mxu0 0
    %4694 = vmatprep.subr.bf16.mxu0 0
    %4695 = vmatpush1.bf16.msra.mxu0 0
    %4696 = vmatprep.mubr.bf16.mxu0 0
    %4697 = vmatmul.mubr.bf16.gmra.mrb[0].mxu0 %v4342
    %v4698 = vpop.f32.mrb[0].mxu0
    %v4699 = vadd.f32 0.0, %v4698
    %v4700 = vpop.f32.mrb[0].mxu0
    %v4701 = vadd.f32 0.0, %v4700
    %v4702 = vpop.f32.mrb[0].mxu0
    %v4703 = vpop.f32.mrb[0].mxu0
    %4704 = vdwg.mxu0
    %4705 = vmatprep.subr.bf16.mxu0 %v4539
    %4706 = vmatpush1.bf16.msra.mxu0 %v4538
    %4707 = vmatprep.subr.bf16.mxu0 %v4547
    %4708 = vmatpush1.bf16.msra.mxu0 %v4546
    %4709 = vmatprep.subr.bf16.mxu0 %v4555
    %4710 = vmatpush1.bf16.msra.mxu0 %v4554
    %4711 = vmatprep.subr.bf16.mxu0 %v4563
    %4712 = vmatpush1.bf16.msra.mxu0 %v4562
    %4713 = vmatprep.subr.bf16.mxu0 %v4571
    %4714 = vmatpush1.bf16.msra.mxu0 %v4570
    %4715 = vmatprep.subr.bf16.mxu0 %v4579
    %4716 = vmatpush1.bf16.msra.mxu0 %v4578
    %4717 = vmatprep.subr.bf16.mxu0 %v4587
    %4718 = vmatpush1.bf16.msra.mxu0 %v4586
    %4719 = vmatprep.subr.bf16.mxu0 %v4595
    %4720 = vmatpush1.bf16.msra.mxu0 %v4594
    %4721 = vmatprep.subr.bf16.mxu0 0
    %4722 = vmatpush1.bf16.msra.mxu0 0
    %4723 = vmatprep.subr.bf16.mxu0 0
    %4724 = vmatpush1.bf16.msra.mxu0 0
    %4725 = vmatprep.subr.bf16.mxu0 0
    %4726 = vmatpush1.bf16.msra.mxu0 0
    %4727 = vmatprep.subr.bf16.mxu0 0
    %4728 = vmatpush1.bf16.msra.mxu0 0
    %4729 = vmatprep.subr.bf16.mxu0 0
    %4730 = vmatpush1.bf16.msra.mxu0 0
    %4731 = vmatprep.subr.bf16.mxu0 0
    %4732 = vmatpush1.bf16.msra.mxu0 0
    %4733 = vmatprep.subr.bf16.mxu0 0
    %4734 = vmatpush1.bf16.msra.mxu0 0
    %4735 = vmatprep.subr.bf16.mxu0 0
    %4736 = vmatpush1.bf16.msra.mxu0 0
    %4737 = vmatprep.mubr.bf16.mxu0 0
    %4738 = vmatmul.mubr.bf16.gmra.mrb[0].mxu0 %v4342
    %v4739 = vpop.f32.mrb[0].mxu0
    %v4740 = vadd.f32 0.0, %v4739
    %v4741 = vpop.f32.mrb[0].mxu0
    %v4742 = vadd.f32 0.0, %v4741
    %v4743 = vpop.f32.mrb[0].mxu0
    %v4744 = vpop.f32.mrb[0].mxu0
    %4745 = vdwg.mxu0
    %4746 = vmatprep.subr.bf16.mxu0 %v4541
    %4747 = vmatpush1.bf16.msra.mxu0 %v4540
    %4748 = vmatprep.subr.bf16.mxu0 %v4549
    %4749 = vmatpush1.bf16.msra.mxu0 %v4548
    %4750 = vmatprep.subr.bf16.mxu0 %v4557
    %4751 = vmatpush1.bf16.msra.mxu0 %v4556
    %4752 = vmatprep.subr.bf16.mxu0 %v4565
    %4753 = vmatpush1.bf16.msra.mxu0 %v4564
    %4754 = vmatprep.subr.bf16.mxu0 %v4573
    %4755 = vmatpush1.bf16.msra.mxu0 %v4572
    %4756 = vmatprep.subr.bf16.mxu0 %v4581
    %4757 = vmatpush1.bf16.msra.mxu0 %v4580
    %4758 = vmatprep.subr.bf16.mxu0 %v4589
    %4759 = vmatpush1.bf16.msra.mxu0 %v4588
    %4760 = vmatprep.subr.bf16.mxu0 %v4597
    %4761 = vmatpush1.bf16.msra.mxu0 %v4596
    %4762 = vmatprep.subr.bf16.mxu0 0
    %4763 = vmatpush1.bf16.msra.mxu0 0
    %4764 = vmatprep.subr.bf16.mxu0 0
    %4765 = vmatpush1.bf16.msra.mxu0 0
    %4766 = vmatprep.subr.bf16.mxu0 0
    %4767 = vmatpush1.bf16.msra.mxu0 0
    %4768 = vmatprep.subr.bf16.mxu0 0
    %4769 = vmatpush1.bf16.msra.mxu0 0
    %4770 = vmatprep.subr.bf16.mxu0 0
    %4771 = vmatpush1.bf16.msra.mxu0 0
    %4772 = vmatprep.subr.bf16.mxu0 0
    %4773 = vmatpush1.bf16.msra.mxu0 0
    %4774 = vmatprep.subr.bf16.mxu0 0
    %4775 = vmatpush1.bf16.msra.mxu0 0
    %4776 = vmatprep.subr.bf16.mxu0 0
    %4777 = vmatpush1.bf16.msra.mxu0 0
    %4778 = vmatprep.mubr.bf16.mxu0 0
    %4779 = vmatmul.mubr.bf16.gmra.mrb[0].mxu0 %v4342
    %v4780 = vpop.f32.mrb[0].mxu0
    %v4781 = vadd.f32 0.0, %v4780
    %v4782 = vpop.f32.mrb[0].mxu0
    %v4783 = vadd.f32 0.0, %v4782
    %v4784 = vpop.f32.mrb[0].mxu0
    %v4785 = vpop.f32.mrb[0].mxu0
    %4786 = vdwg.mxu0
    %4787 = vmatprep.subr.bf16.mxu0 %v4543
    %4788 = vmatpush1.bf16.msra.mxu0 %v4542
    %4789 = vmatprep.subr.bf16.mxu0 %v4551
    %4790 = vmatpush1.bf16.msra.mxu0 %v4550
    %4791 = vmatprep.subr.bf16.mxu0 %v4559
    %4792 = vmatpush1.bf16.msra.mxu0 %v4558
    %4793 = vmatprep.subr.bf16.mxu0 %v4567
    %4794 = vmatpush1.bf16.msra.mxu0 %v4566
    %4795 = vmatprep.subr.bf16.mxu0 %v4575
    %4796 = vmatpush1.bf16.msra.mxu0 %v4574
    %4797 = vmatprep.subr.bf16.mxu0 %v4583
    %4798 = vmatpush1.bf16.msra.mxu0 %v4582
    %4799 = vmatprep.subr.bf16.mxu0 %v4591
    %4800 = vmatpush1.bf16.msra.mxu0 %v4590
    %4801 = vmatprep.subr.bf16.mxu0 %v4599
    %4802 = vmatpush1.bf16.msra.mxu0 %v4598
    %4803 = vmatprep.subr.bf16.mxu0 0
    %4804 = vmatpush1.bf16.msra.mxu0 0
    %4805 = vmatprep.subr.bf16.mxu0 0
    %4806 = vmatpush1.bf16.msra.mxu0 0
    %4807 = vmatprep.subr.bf16.mxu0 0
    %4808 = vmatpush1.bf16.msra.mxu0 0
    %4809 = vmatprep.subr.bf16.mxu0 0
    %4810 = vmatpush1.bf16.msra.mxu0 0
    %4811 = vmatprep.subr.bf16.mxu0 0
    %4812 = vmatpush1.bf16.msra.mxu0 0
    %4813 = vmatprep.subr.bf16.mxu0 0
    %4814 = vmatpush1.bf16.msra.mxu0 0
    %4815 = vmatprep.subr.bf16.mxu0 0
    %4816 = vmatpush1.bf16.msra.mxu0 0
    %4817 = vmatprep.subr.bf16.mxu0 0
    %4818 = vmatpush1.bf16.msra.mxu0 0
    %4819 = vmatprep.mubr.bf16.mxu0 0
    %4820 = vmatmul.mubr.bf16.gmra.mrb[0].mxu0 %v4342
    %v4821 = vpop.f32.mrb[0].mxu0
    %v4822 = vadd.f32 0.0, %v4821
    %v4823 = vpop.f32.mrb[0].mxu0
    %v4824 = vadd.f32 0.0, %v4823
    %v4825 = vpop.f32.mrb[0].mxu0
    %v4826 = vpop.f32.mrb[0].mxu0
    %4827 = vdwg.mxu0
    %v4828 = vadd.f32 %v4269, %v4699
    %v4829 = vadd.f32 %v4270, %v4701
    %v4830 = vadd.f32 %v4271, %v4740
    %v4831 = vadd.f32 %v4272, %v4742
    %v4832 = vadd.f32 %v4273, %v4781
    %v4833 = vadd.f32 %v4274, %v4783
    %v4834 = vadd.f32 %v4275, %v4822
    %v4835 = vadd.f32 %v4276, %v4824
    %s4836 = scalar_lea.vmem [#allocation10], 2560
    %v4837 = vld [vmem:[%s4836] sm:$0xff]
    %v4838 = vld [vmem:[%s4836 + $0x8] sm:$0xff]
    %v4839 = vld [vmem:[%s4836 + $0x10] sm:$0xff]
    %v4840 = vld [vmem:[%s4836 + $0x18] sm:$0xff]
    %v4841 = vld [vmem:[%s4836 + $0x20] sm:$0xff]
    %v4842 = vld [vmem:[%s4836 + $0x28] sm:$0xff]
    %v4843 = vld [vmem:[%s4836 + $0x30] sm:$0xff]
    %v4844 = vld [vmem:[%s4836 + $0x38] sm:$0xff]
    %v4845 = vld [vmem:[%s4836 + $0x40] sm:$0xff]
    %v4846 = vld [vmem:[%s4836 + $0x48] sm:$0xff]
    %v4847 = vld [vmem:[%s4836 + $0x50] sm:$0xff]
    %v4848 = vld [vmem:[%s4836 + $0x58] sm:$0xff]
    %v4849 = vld [vmem:[%s4836 + $0x60] sm:$0xff]
    %v4850 = vld [vmem:[%s4836 + $0x68] sm:$0xff]
    %v4851 = vld [vmem:[%s4836 + $0x70] sm:$0xff]
    %v4852 = vld [vmem:[%s4836 + $0x78] sm:$0xff]
    %v4853 = vld [vmem:[%s4836 + $0x80] sm:$0xff]
    %v4854 = vld [vmem:[%s4836 + $0x88] sm:$0xff]
    %v4855 = vld [vmem:[%s4836 + $0x90] sm:$0xff]
    %v4856 = vld [vmem:[%s4836 + $0x98] sm:$0xff]
    %v4857 = vld [vmem:[%s4836 + $0xa0] sm:$0xff]
    %v4858 = vld [vmem:[%s4836 + $0xa8] sm:$0xff]
    %v4859 = vld [vmem:[%s4836 + $0xb0] sm:$0xff]
    %v4860 = vld [vmem:[%s4836 + $0xb8] sm:$0xff]
    %v4861 = vld [vmem:[%s4836 + $0xc0] sm:$0xff]
    %v4862 = vld [vmem:[%s4836 + $0xc8] sm:$0xff]
    %v4863 = vld [vmem:[%s4836 + $0xd0] sm:$0xff]
    %v4864 = vld [vmem:[%s4836 + $0xd8] sm:$0xff]
    %v4865 = vld [vmem:[%s4836 + $0xe0] sm:$0xff]
    %v4866 = vld [vmem:[%s4836 + $0xe8] sm:$0xff]
    %v4867 = vld [vmem:[%s4836 + $0xf0] sm:$0xff]
    %v4868 = vld [vmem:[%s4836 + $0xf8] sm:$0xff]
    %v4869 = vld [vmem:[%s4836 + $0x100] sm:$0xff]
    %v4870 = vld [vmem:[%s4836 + $0x108] sm:$0xff]
    %v4871 = vld [vmem:[%s4836 + $0x110] sm:$0xff]
    %v4872 = vld [vmem:[%s4836 + $0x118] sm:$0xff]
    %v4873 = vld [vmem:[%s4836 + $0x120] sm:$0xff]
    %v4874 = vld [vmem:[%s4836 + $0x128] sm:$0xff]
    %v4875 = vld [vmem:[%s4836 + $0x130] sm:$0xff]
    %v4876 = vld [vmem:[%s4836 + $0x138] sm:$0xff]
    %v4877 = vld [vmem:[%s4836 + $0x140] sm:$0xff]
    %v4878 = vld [vmem:[%s4836 + $0x148] sm:$0xff]
    %v4879 = vld [vmem:[%s4836 + $0x150] sm:$0xff]
    %v4880 = vld [vmem:[%s4836 + $0x158] sm:$0xff]
    %v4881 = vld [vmem:[%s4836 + $0x160] sm:$0xff]
    %v4882 = vld [vmem:[%s4836 + $0x168] sm:$0xff]
    %v4883 = vld [vmem:[%s4836 + $0x170] sm:$0xff]
    %v4884 = vld [vmem:[%s4836 + $0x178] sm:$0xff]
    %v4885 = vld [vmem:[%s4836 + $0x180] sm:$0xff]
    %v4886 = vld [vmem:[%s4836 + $0x188] sm:$0xff]
    %v4887 = vld [vmem:[%s4836 + $0x190] sm:$0xff]
    %v4888 = vld [vmem:[%s4836 + $0x198] sm:$0xff]
    %v4889 = vld [vmem:[%s4836 + $0x1a0] sm:$0xff]
    %v4890 = vld [vmem:[%s4836 + $0x1a8] sm:$0xff]
    %v4891 = vld [vmem:[%s4836 + $0x1b0] sm:$0xff]
    %v4892 = vld [vmem:[%s4836 + $0x1b8] sm:$0xff]
    %v4893 = vld [vmem:[%s4836 + $0x1c0] sm:$0xff]
    %v4894 = vld [vmem:[%s4836 + $0x1c8] sm:$0xff]
    %v4895 = vld [vmem:[%s4836 + $0x1d0] sm:$0xff]
    %v4896 = vld [vmem:[%s4836 + $0x1d8] sm:$0xff]
    %v4897 = vld [vmem:[%s4836 + $0x1e0] sm:$0xff]
    %v4898 = vld [vmem:[%s4836 + $0x1e8] sm:$0xff]
    %v4899 = vld [vmem:[%s4836 + $0x1f0] sm:$0xff]
    %v4900 = vld [vmem:[%s4836 + $0x1f8] sm:$0xff]
    %v4901 = vrot.slane %v2057, 5
    %v4967 = vunpack.c.l.b16 %v4837
    %v4968 = vunpack.c.h.b16 %v4837
    %v4969 = vunpack.c.l.b16 %v4838
    %v4970 = vunpack.c.h.b16 %v4838
    %v4971 = vunpack.c.l.b16 %v4839
    %v4972 = vunpack.c.h.b16 %v4839
    %v4973 = vunpack.c.l.b16 %v4840
    %v4974 = vunpack.c.h.b16 %v4840
    %v4975 = vunpack.c.l.b16 %v4841
    %v4976 = vunpack.c.h.b16 %v4841
    %v4977 = vunpack.c.l.b16 %v4842
    %v4978 = vunpack.c.h.b16 %v4842
    %v4979 = vunpack.c.l.b16 %v4843
    %v4980 = vunpack.c.h.b16 %v4843
    %v4981 = vunpack.c.l.b16 %v4844
    %v4982 = vunpack.c.h.b16 %v4844
    %v4983 = vunpack.c.l.b16 %v4845
    %v4984 = vunpack.c.h.b16 %v4845
    %v4985 = vunpack.c.l.b16 %v4846
    %v4986 = vunpack.c.h.b16 %v4846
    %v4987 = vunpack.c.l.b16 %v4847
    %v4988 = vunpack.c.h.b16 %v4847
    %v4989 = vunpack.c.l.b16 %v4848
    %v4990 = vunpack.c.h.b16 %v4848
    %v4991 = vunpack.c.l.b16 %v4849
    %v4992 = vunpack.c.h.b16 %v4849
    %v4993 = vunpack.c.l.b16 %v4850
    %v4994 = vunpack.c.h.b16 %v4850
    %v4995 = vunpack.c.l.b16 %v4851
    %v4996 = vunpack.c.h.b16 %v4851
    %v4997 = vunpack.c.l.b16 %v4852
    %v4998 = vunpack.c.h.b16 %v4852
    %v4999 = vunpack.c.l.b16 %v4853
    %v5000 = vunpack.c.h.b16 %v4853
    %v5001 = vunpack.c.l.b16 %v4854
    %v5002 = vunpack.c.h.b16 %v4854
    %v5003 = vunpack.c.l.b16 %v4855
    %v5004 = vunpack.c.h.b16 %v4855
    %v5005 = vunpack.c.l.b16 %v4856
    %v5006 = vunpack.c.h.b16 %v4856
    %v5007 = vunpack.c.l.b16 %v4857
    %v5008 = vunpack.c.h.b16 %v4857
    %v5009 = vunpack.c.l.b16 %v4858
    %v5010 = vunpack.c.h.b16 %v4858
    %v5011 = vunpack.c.l.b16 %v4859
    %v5012 = vunpack.c.h.b16 %v4859
    %v5013 = vunpack.c.l.b16 %v4860
    %v5014 = vunpack.c.h.b16 %v4860
    %v5015 = vunpack.c.l.b16 %v4861
    %v5016 = vunpack.c.h.b16 %v4861
    %v5017 = vunpack.c.l.b16 %v4862
    %v5018 = vunpack.c.h.b16 %v4862
    %v5019 = vunpack.c.l.b16 %v4863
    %v5020 = vunpack.c.h.b16 %v4863
    %v5021 = vunpack.c.l.b16 %v4864
    %v5022 = vunpack.c.h.b16 %v4864
    %v5023 = vunpack.c.l.b16 %v4865
    %v5024 = vunpack.c.h.b16 %v4865
    %v5025 = vunpack.c.l.b16 %v4866
    %v5026 = vunpack.c.h.b16 %v4866
    %v5027 = vunpack.c.l.b16 %v4867
    %v5028 = vunpack.c.h.b16 %v4867
    %v5029 = vunpack.c.l.b16 %v4868
    %v5030 = vunpack.c.h.b16 %v4868
    %v5031 = vunpack.c.l.b16 %v4869
    %v5032 = vunpack.c.h.b16 %v4869
    %v5033 = vunpack.c.l.b16 %v4870
    %v5034 = vunpack.c.h.b16 %v4870
    %v5035 = vunpack.c.l.b16 %v4871
    %v5036 = vunpack.c.h.b16 %v4871
    %v5037 = vunpack.c.l.b16 %v4872
    %v5038 = vunpack.c.h.b16 %v4872
    %v5039 = vunpack.c.l.b16 %v4873
    %v5040 = vunpack.c.h.b16 %v4873
    %v5041 = vunpack.c.l.b16 %v4874
    %v5042 = vunpack.c.h.b16 %v4874
    %v5043 = vunpack.c.l.b16 %v4875
    %v5044 = vunpack.c.h.b16 %v4875
    %v5045 = vunpack.c.l.b16 %v4876
    %v5046 = vunpack.c.h.b16 %v4876
    %v5047 = vunpack.c.l.b16 %v4877
    %v5048 = vunpack.c.h.b16 %v4877
    %v5049 = vunpack.c.l.b16 %v4878
    %v5050 = vunpack.c.h.b16 %v4878
    %v5051 = vunpack.c.l.b16 %v4879
    %v5052 = vunpack.c.h.b16 %v4879
    %v5053 = vunpack.c.l.b16 %v4880
    %v5054 = vunpack.c.h.b16 %v4880
    %v5055 = vunpack.c.l.b16 %v4881
    %v5056 = vunpack.c.h.b16 %v4881
    %v5057 = vunpack.c.l.b16 %v4882
    %v5058 = vunpack.c.h.b16 %v4882
    %v5059 = vunpack.c.l.b16 %v4883
    %v5060 = vunpack.c.h.b16 %v4883
    %v5061 = vunpack.c.l.b16 %v4884
    %v5062 = vunpack.c.h.b16 %v4884
    %v5063 = vunpack.c.l.b16 %v4885
    %v5064 = vunpack.c.h.b16 %v4885
    %v5065 = vunpack.c.l.b16 %v4886
    %v5066 = vunpack.c.h.b16 %v4886
    %v5067 = vunpack.c.l.b16 %v4887
    %v5068 = vunpack.c.h.b16 %v4887
    %v5069 = vunpack.c.l.b16 %v4888
    %v5070 = vunpack.c.h.b16 %v4888
    %v5071 = vunpack.c.l.b16 %v4889
    %v5072 = vunpack.c.h.b16 %v4889
    %v5073 = vunpack.c.l.b16 %v4890
    %v5074 = vunpack.c.h.b16 %v4890
    %v5075 = vunpack.c.l.b16 %v4891
    %v5076 = vunpack.c.h.b16 %v4891
    %v5077 = vunpack.c.l.b16 %v4892
    %v5078 = vunpack.c.h.b16 %v4892
    %v5079 = vunpack.c.l.b16 %v4893
    %v5080 = vunpack.c.h.b16 %v4893
    %v5081 = vunpack.c.l.b16 %v4894
    %v5082 = vunpack.c.h.b16 %v4894
    %v5083 = vunpack.c.l.b16 %v4895
    %v5084 = vunpack.c.h.b16 %v4895
    %v5085 = vunpack.c.l.b16 %v4896
    %v5086 = vunpack.c.h.b16 %v4896
    %v5087 = vunpack.c.l.b16 %v4897
    %v5088 = vunpack.c.h.b16 %v4897
    %v5089 = vunpack.c.l.b16 %v4898
    %v5090 = vunpack.c.h.b16 %v4898
    %v5091 = vunpack.c.l.b16 %v4899
    %v5092 = vunpack.c.h.b16 %v4899
    %v5093 = vunpack.c.l.b16 %v4900
    %v5094 = vunpack.c.h.b16 %v4900
    %v5095 = vpack.c.b16 %v4975, %v4967
    %v5096 = vpack.c.b16 %v4976, %v4968
    %v5097 = vpack.c.b16 %v4977, %v4969
    %v5098 = vpack.c.b16 %v4978, %v4970
    %v5099 = vpack.c.b16 %v4979, %v4971
    %v5100 = vpack.c.b16 %v4980, %v4972
    %v5101 = vpack.c.b16 %v4981, %v4973
    %v5102 = vpack.c.b16 %v4982, %v4974
    %v5103 = vpack.c.b16 %v4991, %v4983
    %v5104 = vpack.c.b16 %v4992, %v4984
    %v5105 = vpack.c.b16 %v4993, %v4985
    %v5106 = vpack.c.b16 %v4994, %v4986
    %v5107 = vpack.c.b16 %v4995, %v4987
    %v5108 = vpack.c.b16 %v4996, %v4988
    %v5109 = vpack.c.b16 %v4997, %v4989
    %v5110 = vpack.c.b16 %v4998, %v4990
    %v5111 = vpack.c.b16 %v5007, %v4999
    %v5112 = vpack.c.b16 %v5008, %v5000
    %v5113 = vpack.c.b16 %v5009, %v5001
    %v5114 = vpack.c.b16 %v5010, %v5002
    %v5115 = vpack.c.b16 %v5011, %v5003
    %v5116 = vpack.c.b16 %v5012, %v5004
    %v5117 = vpack.c.b16 %v5013, %v5005
    %v5118 = vpack.c.b16 %v5014, %v5006
    %v5119 = vpack.c.b16 %v5023, %v5015
    %v5120 = vpack.c.b16 %v5024, %v5016
    %v5121 = vpack.c.b16 %v5025, %v5017
    %v5122 = vpack.c.b16 %v5026, %v5018
    %v5123 = vpack.c.b16 %v5027, %v5019
    %v5124 = vpack.c.b16 %v5028, %v5020
    %v5125 = vpack.c.b16 %v5029, %v5021
    %v5126 = vpack.c.b16 %v5030, %v5022
    %v5127 = vpack.c.b16 %v5039, %v5031
    %v5128 = vpack.c.b16 %v5040, %v5032
    %v5129 = vpack.c.b16 %v5041, %v5033
    %v5130 = vpack.c.b16 %v5042, %v5034
    %v5131 = vpack.c.b16 %v5043, %v5035
    %v5132 = vpack.c.b16 %v5044, %v5036
    %v5133 = vpack.c.b16 %v5045, %v5037
    %v5134 = vpack.c.b16 %v5046, %v5038
    %v5135 = vpack.c.b16 %v5055, %v5047
    %v5136 = vpack.c.b16 %v5056, %v5048
    %v5137 = vpack.c.b16 %v5057, %v5049
    %v5138 = vpack.c.b16 %v5058, %v5050
    %v5139 = vpack.c.b16 %v5059, %v5051
    %v5140 = vpack.c.b16 %v5060, %v5052
    %v5141 = vpack.c.b16 %v5061, %v5053
    %v5142 = vpack.c.b16 %v5062, %v5054
    %v5143 = vpack.c.b16 %v5071, %v5063
    %v5144 = vpack.c.b16 %v5072, %v5064
    %v5145 = vpack.c.b16 %v5073, %v5065
    %v5146 = vpack.c.b16 %v5074, %v5066
    %v5147 = vpack.c.b16 %v5075, %v5067
    %v5148 = vpack.c.b16 %v5076, %v5068
    %v5149 = vpack.c.b16 %v5077, %v5069
    %v5150 = vpack.c.b16 %v5078, %v5070
    %v5151 = vpack.c.b16 %v5087, %v5079
    %v5152 = vpack.c.b16 %v5088, %v5080
    %v5153 = vpack.c.b16 %v5089, %v5081
    %v5154 = vpack.c.b16 %v5090, %v5082
    %v5155 = vpack.c.b16 %v5091, %v5083
    %v5156 = vpack.c.b16 %v5092, %v5084
    %v5157 = vpack.c.b16 %v5093, %v5085
    %v5158 = vpack.c.b16 %v5094, %v5086
    %5223 = vmatprep.subr.bf16.mxu0 %v5096
    %5224 = vmatpush1.bf16.msra.mxu0 %v5095
    %5225 = vmatprep.subr.bf16.mxu0 %v5104
    %5226 = vmatpush1.bf16.msra.mxu0 %v5103
    %5227 = vmatprep.subr.bf16.mxu0 %v5112
    %5228 = vmatpush1.bf16.msra.mxu0 %v5111
    %5229 = vmatprep.subr.bf16.mxu0 %v5120
    %5230 = vmatpush1.bf16.msra.mxu0 %v5119
    %5231 = vmatprep.subr.bf16.mxu0 %v5128
    %5232 = vmatpush1.bf16.msra.mxu0 %v5127
    %5233 = vmatprep.subr.bf16.mxu0 %v5136
    %5234 = vmatpush1.bf16.msra.mxu0 %v5135
    %5235 = vmatprep.subr.bf16.mxu0 %v5144
    %5236 = vmatpush1.bf16.msra.mxu0 %v5143
    %5237 = vmatprep.subr.bf16.mxu0 %v5152
    %5238 = vmatpush1.bf16.msra.mxu0 %v5151
    %5239 = vmatprep.subr.bf16.mxu0 0
    %5240 = vmatpush1.bf16.msra.mxu0 0
    %5241 = vmatprep.subr.bf16.mxu0 0
    %5242 = vmatpush1.bf16.msra.mxu0 0
    %5243 = vmatprep.subr.bf16.mxu0 0
    %5244 = vmatpush1.bf16.msra.mxu0 0
    %5245 = vmatprep.subr.bf16.mxu0 0
    %5246 = vmatpush1.bf16.msra.mxu0 0
    %5247 = vmatprep.subr.bf16.mxu0 0
    %5248 = vmatpush1.bf16.msra.mxu0 0
    %5249 = vmatprep.subr.bf16.mxu0 0
    %5250 = vmatpush1.bf16.msra.mxu0 0
    %5251 = vmatprep.subr.bf16.mxu0 0
    %5252 = vmatpush1.bf16.msra.mxu0 0
    %5253 = vmatprep.subr.bf16.mxu0 0
    %5254 = vmatpush1.bf16.msra.mxu0 0
    %5255 = vmatprep.mubr.bf16.mxu0 0
    %5256 = vmatmul.mubr.bf16.gmra.mrb[0].mxu0 %v4901
    %v5257 = vpop.f32.mrb[0].mxu0
    %v5258 = vadd.f32 0.0, %v5257
    %v5259 = vpop.f32.mrb[0].mxu0
    %v5260 = vadd.f32 0.0, %v5259
    %v5261 = vpop.f32.mrb[0].mxu0
    %v5262 = vpop.f32.mrb[0].mxu0
    %5263 = vdwg.mxu0
    %5264 = vmatprep.subr.bf16.mxu0 %v5098
    %5265 = vmatpush1.bf16.msra.mxu0 %v5097
    %5266 = vmatprep.subr.bf16.mxu0 %v5106
    %5267 = vmatpush1.bf16.msra.mxu0 %v5105
    %5268 = vmatprep.subr.bf16.mxu0 %v5114
    %5269 = vmatpush1.bf16.msra.mxu0 %v5113
    %5270 = vmatprep.subr.bf16.mxu0 %v5122
    %5271 = vmatpush1.bf16.msra.mxu0 %v5121
    %5272 = vmatprep.subr.bf16.mxu0 %v5130
    %5273 = vmatpush1.bf16.msra.mxu0 %v5129
    %5274 = vmatprep.subr.bf16.mxu0 %v5138
    %5275 = vmatpush1.bf16.msra.mxu0 %v5137
    %5276 = vmatprep.subr.bf16.mxu0 %v5146
    %5277 = vmatpush1.bf16.msra.mxu0 %v5145
    %5278 = vmatprep.subr.bf16.mxu0 %v5154
    %5279 = vmatpush1.bf16.msra.mxu0 %v5153
    %5280 = vmatprep.subr.bf16.mxu0 0
    %5281 = vmatpush1.bf16.msra.mxu0 0
    %5282 = vmatprep.subr.bf16.mxu0 0
    %5283 = vmatpush1.bf16.msra.mxu0 0
    %5284 = vmatprep.subr.bf16.mxu0 0
    %5285 = vmatpush1.bf16.msra.mxu0 0
    %5286 = vmatprep.subr.bf16.mxu0 0
    %5287 = vmatpush1.bf16.msra.mxu0 0
    %5288 = vmatprep.subr.bf16.mxu0 0
    %5289 = vmatpush1.bf16.msra.mxu0 0
    %5290 = vmatprep.subr.bf16.mxu0 0
    %5291 = vmatpush1.bf16.msra.mxu0 0
    %5292 = vmatprep.subr.bf16.mxu0 0
    %5293 = vmatpush1.bf16.msra.mxu0 0
    %5294 = vmatprep.subr.bf16.mxu0 0
    %5295 = vmatpush1.bf16.msra.mxu0 0
    %5296 = vmatprep.mubr.bf16.mxu0 0
    %5297 = vmatmul.mubr.bf16.gmra.mrb[0].mxu0 %v4901
    %v5298 = vpop.f32.mrb[0].mxu0
    %v5299 = vadd.f32 0.0, %v5298
    %v5300 = vpop.f32.mrb[0].mxu0
    %v5301 = vadd.f32 0.0, %v5300
    %v5302 = vpop.f32.mrb[0].mxu0
    %v5303 = vpop.f32.mrb[0].mxu0
    %5304 = vdwg.mxu0
    %5305 = vmatprep.subr.bf16.mxu0 %v5100
    %5306 = vmatpush1.bf16.msra.mxu0 %v5099
    %5307 = vmatprep.subr.bf16.mxu0 %v5108
    %5308 = vmatpush1.bf16.msra.mxu0 %v5107
    %5309 = vmatprep.subr.bf16.mxu0 %v5116
    %5310 = vmatpush1.bf16.msra.mxu0 %v5115
    %5311 = vmatprep.subr.bf16.mxu0 %v5124
    %5312 = vmatpush1.bf16.msra.mxu0 %v5123
    %5313 = vmatprep.subr.bf16.mxu0 %v5132
    %5314 = vmatpush1.bf16.msra.mxu0 %v5131
    %5315 = vmatprep.subr.bf16.mxu0 %v5140
    %5316 = vmatpush1.bf16.msra.mxu0 %v5139
    %5317 = vmatprep.subr.bf16.mxu0 %v5148
    %5318 = vmatpush1.bf16.msra.mxu0 %v5147
    %5319 = vmatprep.subr.bf16.mxu0 %v5156
    %5320 = vmatpush1.bf16.msra.mxu0 %v5155
    %5321 = vmatprep.subr.bf16.mxu0 0
    %5322 = vmatpush1.bf16.msra.mxu0 0
    %5323 = vmatprep.subr.bf16.mxu0 0
    %5324 = vmatpush1.bf16.msra.mxu0 0
    %5325 = vmatprep.subr.bf16.mxu0 0
    %5326 = vmatpush1.bf16.msra.mxu0 0
    %5327 = vmatprep.subr.bf16.mxu0 0
    %5328 = vmatpush1.bf16.msra.mxu0 0
    %5329 = vmatprep.subr.bf16.mxu0 0
    %5330 = vmatpush1.bf16.msra.mxu0 0
    %5331 = vmatprep.subr.bf16.mxu0 0
    %5332 = vmatpush1.bf16.msra.mxu0 0
    %5333 = vmatprep.subr.bf16.mxu0 0
    %5334 = vmatpush1.bf16.msra.mxu0 0
    %5335 = vmatprep.subr.bf16.mxu0 0
    %5336 = vmatpush1.bf16.msra.mxu0 0
    %5337 = vmatprep.mubr.bf16.mxu0 0
    %5338 = vmatmul.mubr.bf16.gmra.mrb[0].mxu0 %v4901
    %v5339 = vpop.f32.mrb[0].mxu0
    %v5340 = vadd.f32 0.0, %v5339
    %v5341 = vpop.f32.mrb[0].mxu0
    %v5342 = vadd.f32 0.0, %v5341
    %v5343 = vpop.f32.mrb[0].mxu0
    %v5344 = vpop.f32.mrb[0].mxu0
    %5345 = vdwg.mxu0
    %5346 = vmatprep.subr.bf16.mxu0 %v5102
    %5347 = vmatpush1.bf16.msra.mxu0 %v5101
    %5348 = vmatprep.subr.bf16.mxu0 %v5110
    %5349 = vmatpush1.bf16.msra.mxu0 %v5109
    %5350 = vmatprep.subr.bf16.mxu0 %v5118
    %5351 = vmatpush1.bf16.msra.mxu0 %v5117
    %5352 = vmatprep.subr.bf16.mxu0 %v5126
    %5353 = vmatpush1.bf16.msra.mxu0 %v5125
    %5354 = vmatprep.subr.bf16.mxu0 %v5134
    %5355 = vmatpush1.bf16.msra.mxu0 %v5133
    %5356 = vmatprep.subr.bf16.mxu0 %v5142
    %5357 = vmatpush1.bf16.msra.mxu0 %v5141
    %5358 = vmatprep.subr.bf16.mxu0 %v5150
    %5359 = vmatpush1.bf16.msra.mxu0 %v5149
    %5360 = vmatprep.subr.bf16.mxu0 %v5158
    %5361 = vmatpush1.bf16.msra.mxu0 %v5157
    %5362 = vmatprep.subr.bf16.mxu0 0
    %5363 = vmatpush1.bf16.msra.mxu0 0
    %5364 = vmatprep.subr.bf16.mxu0 0
    %5365 = vmatpush1.bf16.msra.mxu0 0
    %5366 = vmatprep.subr.bf16.mxu0 0
    %5367 = vmatpush1.bf16.msra.mxu0 0
    %5368 = vmatprep.subr.bf16.mxu0 0
    %5369 = vmatpush1.bf16.msra.mxu0 0
    %5370 = vmatprep.subr.bf16.mxu0 0
    %5371 = vmatpush1.bf16.msra.mxu0 0
    %5372 = vmatprep.subr.bf16.mxu0 0
    %5373 = vmatpush1.bf16.msra.mxu0 0
    %5374 = vmatprep.subr.bf16.mxu0 0
    %5375 = vmatpush1.bf16.msra.mxu0 0
    %5376 = vmatprep.subr.bf16.mxu0 0
    %5377 = vmatpush1.bf16.msra.mxu0 0
    %5378 = vmatprep.mubr.bf16.mxu0 0
    %5379 = vmatmul.mubr.bf16.gmra.mrb[0].mxu0 %v4901
    %v5380 = vpop.f32.mrb[0].mxu0
    %v5381 = vadd.f32 0.0, %v5380
    %v5382 = vpop.f32.mrb[0].mxu0
    %v5383 = vadd.f32 0.0, %v5382
    %v5384 = vpop.f32.mrb[0].mxu0
    %v5385 = vpop.f32.mrb[0].mxu0
    %5386 = vdwg.mxu0
    %v5387 = vadd.f32 %v4828, %v5258
    %v5388 = vadd.f32 %v4829, %v5260
    %v5389 = vadd.f32 %v4830, %v5299
    %v5390 = vadd.f32 %v4831, %v5301
    %v5391 = vadd.f32 %v4832, %v5340
    %v5392 = vadd.f32 %v4833, %v5342
    %v5393 = vadd.f32 %v4834, %v5381
    %v5394 = vadd.f32 %v4835, %v5383
    %s5395 = scalar_lea.vmem [#allocation10], 3072
    %v5396 = vld [vmem:[%s5395] sm:$0xff]
    %v5397 = vld [vmem:[%s5395 + $0x8] sm:$0xff]
    %v5398 = vld [vmem:[%s5395 + $0x10] sm:$0xff]
    %v5399 = vld [vmem:[%s5395 + $0x18] sm:$0xff]
    %v5400 = vld [vmem:[%s5395 + $0x20] sm:$0xff]
    %v5401 = vld [vmem:[%s5395 + $0x28] sm:$0xff]
    %v5402 = vld [vmem:[%s5395 + $0x30] sm:$0xff]
    %v5403 = vld [vmem:[%s5395 + $0x38] sm:$0xff]
    %v5404 = vld [vmem:[%s5395 + $0x40] sm:$0xff]
    %v5405 = vld [vmem:[%s5395 + $0x48] sm:$0xff]
    %v5406 = vld [vmem:[%s5395 + $0x50] sm:$0xff]
    %v5407 = vld [vmem:[%s5395 + $0x58] sm:$0xff]
    %v5408 = vld [vmem:[%s5395 + $0x60] sm:$0xff]
    %v5409 = vld [vmem:[%s5395 + $0x68] sm:$0xff]
    %v5410 = vld [vmem:[%s5395 + $0x70] sm:$0xff]
    %v5411 = vld [vmem:[%s5395 + $0x78] sm:$0xff]
    %v5412 = vld [vmem:[%s5395 + $0x80] sm:$0xff]
    %v5413 = vld [vmem:[%s5395 + $0x88] sm:$0xff]
    %v5414 = vld [vmem:[%s5395 + $0x90] sm:$0xff]
    %v5415 = vld [vmem:[%s5395 + $0x98] sm:$0xff]
    %v5416 = vld [vmem:[%s5395 + $0xa0] sm:$0xff]
    %v5417 = vld [vmem:[%s5395 + $0xa8] sm:$0xff]
    %v5418 = vld [vmem:[%s5395 + $0xb0] sm:$0xff]
    %v5419 = vld [vmem:[%s5395 + $0xb8] sm:$0xff]
    %v5420 = vld [vmem:[%s5395 + $0xc0] sm:$0xff]
    %v5421 = vld [vmem:[%s5395 + $0xc8] sm:$0xff]
    %v5422 = vld [vmem:[%s5395 + $0xd0] sm:$0xff]
    %v5423 = vld [vmem:[%s5395 + $0xd8] sm:$0xff]
    %v5424 = vld [vmem:[%s5395 + $0xe0] sm:$0xff]
    %v5425 = vld [vmem:[%s5395 + $0xe8] sm:$0xff]
    %v5426 = vld [vmem:[%s5395 + $0xf0] sm:$0xff]
    %v5427 = vld [vmem:[%s5395 + $0xf8] sm:$0xff]
    %v5428 = vld [vmem:[%s5395 + $0x100] sm:$0xff]
    %v5429 = vld [vmem:[%s5395 + $0x108] sm:$0xff]
    %v5430 = vld [vmem:[%s5395 + $0x110] sm:$0xff]
    %v5431 = vld [vmem:[%s5395 + $0x118] sm:$0xff]
    %v5432 = vld [vmem:[%s5395 + $0x120] sm:$0xff]
    %v5433 = vld [vmem:[%s5395 + $0x128] sm:$0xff]
    %v5434 = vld [vmem:[%s5395 + $0x130] sm:$0xff]
    %v5435 = vld [vmem:[%s5395 + $0x138] sm:$0xff]
    %v5436 = vld [vmem:[%s5395 + $0x140] sm:$0xff]
    %v5437 = vld [vmem:[%s5395 + $0x148] sm:$0xff]
    %v5438 = vld [vmem:[%s5395 + $0x150] sm:$0xff]
    %v5439 = vld [vmem:[%s5395 + $0x158] sm:$0xff]
    %v5440 = vld [vmem:[%s5395 + $0x160] sm:$0xff]
    %v5441 = vld [vmem:[%s5395 + $0x168] sm:$0xff]
    %v5442 = vld [vmem:[%s5395 + $0x170] sm:$0xff]
    %v5443 = vld [vmem:[%s5395 + $0x178] sm:$0xff]
    %v5444 = vld [vmem:[%s5395 + $0x180] sm:$0xff]
    %v5445 = vld [vmem:[%s5395 + $0x188] sm:$0xff]
    %v5446 = vld [vmem:[%s5395 + $0x190] sm:$0xff]
    %v5447 = vld [vmem:[%s5395 + $0x198] sm:$0xff]
    %v5448 = vld [vmem:[%s5395 + $0x1a0] sm:$0xff]
    %v5449 = vld [vmem:[%s5395 + $0x1a8] sm:$0xff]
    %v5450 = vld [vmem:[%s5395 + $0x1b0] sm:$0xff]
    %v5451 = vld [vmem:[%s5395 + $0x1b8] sm:$0xff]
    %v5452 = vld [vmem:[%s5395 + $0x1c0] sm:$0xff]
    %v5453 = vld [vmem:[%s5395 + $0x1c8] sm:$0xff]
    %v5454 = vld [vmem:[%s5395 + $0x1d0] sm:$0xff]
    %v5455 = vld [vmem:[%s5395 + $0x1d8] sm:$0xff]
    %v5456 = vld [vmem:[%s5395 + $0x1e0] sm:$0xff]
    %v5457 = vld [vmem:[%s5395 + $0x1e8] sm:$0xff]
    %v5458 = vld [vmem:[%s5395 + $0x1f0] sm:$0xff]
    %v5459 = vld [vmem:[%s5395 + $0x1f8] sm:$0xff]
    %v5460 = vrot.slane %v2057, 6
    %v5526 = vunpack.c.l.b16 %v5396
    %v5527 = vunpack.c.h.b16 %v5396
    %v5528 = vunpack.c.l.b16 %v5397
    %v5529 = vunpack.c.h.b16 %v5397
    %v5530 = vunpack.c.l.b16 %v5398
    %v5531 = vunpack.c.h.b16 %v5398
    %v5532 = vunpack.c.l.b16 %v5399
    %v5533 = vunpack.c.h.b16 %v5399
    %v5534 = vunpack.c.l.b16 %v5400
    %v5535 = vunpack.c.h.b16 %v5400
    %v5536 = vunpack.c.l.b16 %v5401
    %v5537 = vunpack.c.h.b16 %v5401
    %v5538 = vunpack.c.l.b16 %v5402
    %v5539 = vunpack.c.h.b16 %v5402
    %v5540 = vunpack.c.l.b16 %v5403
    %v5541 = vunpack.c.h.b16 %v5403
    %v5542 = vunpack.c.l.b16 %v5404
    %v5543 = vunpack.c.h.b16 %v5404
    %v5544 = vunpack.c.l.b16 %v5405
    %v5545 = vunpack.c.h.b16 %v5405
    %v5546 = vunpack.c.l.b16 %v5406
    %v5547 = vunpack.c.h.b16 %v5406
    %v5548 = vunpack.c.l.b16 %v5407
    %v5549 = vunpack.c.h.b16 %v5407
    %v5550 = vunpack.c.l.b16 %v5408
    %v5551 = vunpack.c.h.b16 %v5408
    %v5552 = vunpack.c.l.b16 %v5409
    %v5553 = vunpack.c.h.b16 %v5409
    %v5554 = vunpack.c.l.b16 %v5410
    %v5555 = vunpack.c.h.b16 %v5410
    %v5556 = vunpack.c.l.b16 %v5411
    %v5557 = vunpack.c.h.b16 %v5411
    %v5558 = vunpack.c.l.b16 %v5412
    %v5559 = vunpack.c.h.b16 %v5412
    %v5560 = vunpack.c.l.b16 %v5413
    %v5561 = vunpack.c.h.b16 %v5413
    %v5562 = vunpack.c.l.b16 %v5414
    %v5563 = vunpack.c.h.b16 %v5414
    %v5564 = vunpack.c.l.b16 %v5415
    %v5565 = vunpack.c.h.b16 %v5415
    %v5566 = vunpack.c.l.b16 %v5416
    %v5567 = vunpack.c.h.b16 %v5416
    %v5568 = vunpack.c.l.b16 %v5417
    %v5569 = vunpack.c.h.b16 %v5417
    %v5570 = vunpack.c.l.b16 %v5418
    %v5571 = vunpack.c.h.b16 %v5418
    %v5572 = vunpack.c.l.b16 %v5419
    %v5573 = vunpack.c.h.b16 %v5419
    %v5574 = vunpack.c.l.b16 %v5420
    %v5575 = vunpack.c.h.b16 %v5420
    %v5576 = vunpack.c.l.b16 %v5421
    %v5577 = vunpack.c.h.b16 %v5421
    %v5578 = vunpack.c.l.b16 %v5422
    %v5579 = vunpack.c.h.b16 %v5422
    %v5580 = vunpack.c.l.b16 %v5423
    %v5581 = vunpack.c.h.b16 %v5423
    %v5582 = vunpack.c.l.b16 %v5424
    %v5583 = vunpack.c.h.b16 %v5424
    %v5584 = vunpack.c.l.b16 %v5425
    %v5585 = vunpack.c.h.b16 %v5425
    %v5586 = vunpack.c.l.b16 %v5426
    %v5587 = vunpack.c.h.b16 %v5426
    %v5588 = vunpack.c.l.b16 %v5427
    %v5589 = vunpack.c.h.b16 %v5427
    %v5590 = vunpack.c.l.b16 %v5428
    %v5591 = vunpack.c.h.b16 %v5428
    %v5592 = vunpack.c.l.b16 %v5429
    %v5593 = vunpack.c.h.b16 %v5429
    %v5594 = vunpack.c.l.b16 %v5430
    %v5595 = vunpack.c.h.b16 %v5430
    %v5596 = vunpack.c.l.b16 %v5431
    %v5597 = vunpack.c.h.b16 %v5431
    %v5598 = vunpack.c.l.b16 %v5432
    %v5599 = vunpack.c.h.b16 %v5432
    %v5600 = vunpack.c.l.b16 %v5433
    %v5601 = vunpack.c.h.b16 %v5433
    %v5602 = vunpack.c.l.b16 %v5434
    %v5603 = vunpack.c.h.b16 %v5434
    %v5604 = vunpack.c.l.b16 %v5435
    %v5605 = vunpack.c.h.b16 %v5435
    %v5606 = vunpack.c.l.b16 %v5436
    %v5607 = vunpack.c.h.b16 %v5436
    %v5608 = vunpack.c.l.b16 %v5437
    %v5609 = vunpack.c.h.b16 %v5437
    %v5610 = vunpack.c.l.b16 %v5438
    %v5611 = vunpack.c.h.b16 %v5438
    %v5612 = vunpack.c.l.b16 %v5439
    %v5613 = vunpack.c.h.b16 %v5439
    %v5614 = vunpack.c.l.b16 %v5440
    %v5615 = vunpack.c.h.b16 %v5440
    %v5616 = vunpack.c.l.b16 %v5441
    %v5617 = vunpack.c.h.b16 %v5441
    %v5618 = vunpack.c.l.b16 %v5442
    %v5619 = vunpack.c.h.b16 %v5442
    %v5620 = vunpack.c.l.b16 %v5443
    %v5621 = vunpack.c.h.b16 %v5443
    %v5622 = vunpack.c.l.b16 %v5444
    %v5623 = vunpack.c.h.b16 %v5444
    %v5624 = vunpack.c.l.b16 %v5445
    %v5625 = vunpack.c.h.b16 %v5445
    %v5626 = vunpack.c.l.b16 %v5446
    %v5627 = vunpack.c.h.b16 %v5446
    %v5628 = vunpack.c.l.b16 %v5447
    %v5629 = vunpack.c.h.b16 %v5447
    %v5630 = vunpack.c.l.b16 %v5448
    %v5631 = vunpack.c.h.b16 %v5448
    %v5632 = vunpack.c.l.b16 %v5449
    %v5633 = vunpack.c.h.b16 %v5449
    %v5634 = vunpack.c.l.b16 %v5450
    %v5635 = vunpack.c.h.b16 %v5450
    %v5636 = vunpack.c.l.b16 %v5451
    %v5637 = vunpack.c.h.b16 %v5451
    %v5638 = vunpack.c.l.b16 %v5452
    %v5639 = vunpack.c.h.b16 %v5452
    %v5640 = vunpack.c.l.b16 %v5453
    %v5641 = vunpack.c.h.b16 %v5453
    %v5642 = vunpack.c.l.b16 %v5454
    %v5643 = vunpack.c.h.b16 %v5454
    %v5644 = vunpack.c.l.b16 %v5455
    %v5645 = vunpack.c.h.b16 %v5455
    %v5646 = vunpack.c.l.b16 %v5456
    %v5647 = vunpack.c.h.b16 %v5456
    %v5648 = vunpack.c.l.b16 %v5457
    %v5649 = vunpack.c.h.b16 %v5457
    %v5650 = vunpack.c.l.b16 %v5458
    %v5651 = vunpack.c.h.b16 %v5458
    %v5652 = vunpack.c.l.b16 %v5459
    %v5653 = vunpack.c.h.b16 %v5459
    %v5654 = vpack.c.b16 %v5534, %v5526
    %v5655 = vpack.c.b16 %v5535, %v5527
    %v5656 = vpack.c.b16 %v5536, %v5528
    %v5657 = vpack.c.b16 %v5537, %v5529
    %v5658 = vpack.c.b16 %v5538, %v5530
    %v5659 = vpack.c.b16 %v5539, %v5531
    %v5660 = vpack.c.b16 %v5540, %v5532
    %v5661 = vpack.c.b16 %v5541, %v5533
    %v5662 = vpack.c.b16 %v5550, %v5542
    %v5663 = vpack.c.b16 %v5551, %v5543
    %v5664 = vpack.c.b16 %v5552, %v5544
    %v5665 = vpack.c.b16 %v5553, %v5545
    %v5666 = vpack.c.b16 %v5554, %v5546
    %v5667 = vpack.c.b16 %v5555, %v5547
    %v5668 = vpack.c.b16 %v5556, %v5548
    %v5669 = vpack.c.b16 %v5557, %v5549
    %v5670 = vpack.c.b16 %v5566, %v5558
    %v5671 = vpack.c.b16 %v5567, %v5559
    %v5672 = vpack.c.b16 %v5568, %v5560
    %v5673 = vpack.c.b16 %v5569, %v5561
    %v5674 = vpack.c.b16 %v5570, %v5562
    %v5675 = vpack.c.b16 %v5571, %v5563
    %v5676 = vpack.c.b16 %v5572, %v5564
    %v5677 = vpack.c.b16 %v5573, %v5565
    %v5678 = vpack.c.b16 %v5582, %v5574
    %v5679 = vpack.c.b16 %v5583, %v5575
    %v5680 = vpack.c.b16 %v5584, %v5576
    %v5681 = vpack.c.b16 %v5585, %v5577
    %v5682 = vpack.c.b16 %v5586, %v5578
    %v5683 = vpack.c.b16 %v5587, %v5579
    %v5684 = vpack.c.b16 %v5588, %v5580
    %v5685 = vpack.c.b16 %v5589, %v5581
    %v5686 = vpack.c.b16 %v5598, %v5590
    %v5687 = vpack.c.b16 %v5599, %v5591
    %v5688 = vpack.c.b16 %v5600, %v5592
    %v5689 = vpack.c.b16 %v5601, %v5593
    %v5690 = vpack.c.b16 %v5602, %v5594
    %v5691 = vpack.c.b16 %v5603, %v5595
    %v5692 = vpack.c.b16 %v5604, %v5596
    %v5693 = vpack.c.b16 %v5605, %v5597
    %v5694 = vpack.c.b16 %v5614, %v5606
    %v5695 = vpack.c.b16 %v5615, %v5607
    %v5696 = vpack.c.b16 %v5616, %v5608
    %v5697 = vpack.c.b16 %v5617, %v5609
    %v5698 = vpack.c.b16 %v5618, %v5610
    %v5699 = vpack.c.b16 %v5619, %v5611
    %v5700 = vpack.c.b16 %v5620, %v5612
    %v5701 = vpack.c.b16 %v5621, %v5613
    %v5702 = vpack.c.b16 %v5630, %v5622
    %v5703 = vpack.c.b16 %v5631, %v5623
    %v5704 = vpack.c.b16 %v5632, %v5624
    %v5705 = vpack.c.b16 %v5633, %v5625
    %v5706 = vpack.c.b16 %v5634, %v5626
    %v5707 = vpack.c.b16 %v5635, %v5627
    %v5708 = vpack.c.b16 %v5636, %v5628
    %v5709 = vpack.c.b16 %v5637, %v5629
    %v5710 = vpack.c.b16 %v5646, %v5638
    %v5711 = vpack.c.b16 %v5647, %v5639
    %v5712 = vpack.c.b16 %v5648, %v5640
    %v5713 = vpack.c.b16 %v5649, %v5641
    %v5714 = vpack.c.b16 %v5650, %v5642
    %v5715 = vpack.c.b16 %v5651, %v5643
    %v5716 = vpack.c.b16 %v5652, %v5644
    %v5717 = vpack.c.b16 %v5653, %v5645
    %5782 = vmatprep.subr.bf16.mxu0 %v5655
    %5783 = vmatpush1.bf16.msra.mxu0 %v5654
    %5784 = vmatprep.subr.bf16.mxu0 %v5663
    %5785 = vmatpush1.bf16.msra.mxu0 %v5662
    %5786 = vmatprep.subr.bf16.mxu0 %v5671
    %5787 = vmatpush1.bf16.msra.mxu0 %v5670
    %5788 = vmatprep.subr.bf16.mxu0 %v5679
    %5789 = vmatpush1.bf16.msra.mxu0 %v5678
    %5790 = vmatprep.subr.bf16.mxu0 %v5687
    %5791 = vmatpush1.bf16.msra.mxu0 %v5686
    %5792 = vmatprep.subr.bf16.mxu0 %v5695
    %5793 = vmatpush1.bf16.msra.mxu0 %v5694
    %5794 = vmatprep.subr.bf16.mxu0 %v5703
    %5795 = vmatpush1.bf16.msra.mxu0 %v5702
    %5796 = vmatprep.subr.bf16.mxu0 %v5711
    %5797 = vmatpush1.bf16.msra.mxu0 %v5710
    %5798 = vmatprep.subr.bf16.mxu0 0
    %5799 = vmatpush1.bf16.msra.mxu0 0
    %5800 = vmatprep.subr.bf16.mxu0 0
    %5801 = vmatpush1.bf16.msra.mxu0 0
    %5802 = vmatprep.subr.bf16.mxu0 0
    %5803 = vmatpush1.bf16.msra.mxu0 0
    %5804 = vmatprep.subr.bf16.mxu0 0
    %5805 = vmatpush1.bf16.msra.mxu0 0
    %5806 = vmatprep.subr.bf16.mxu0 0
    %5807 = vmatpush1.bf16.msra.mxu0 0
    %5808 = vmatprep.subr.bf16.mxu0 0
    %5809 = vmatpush1.bf16.msra.mxu0 0
    %5810 = vmatprep.subr.bf16.mxu0 0
    %5811 = vmatpush1.bf16.msra.mxu0 0
    %5812 = vmatprep.subr.bf16.mxu0 0
    %5813 = vmatpush1.bf16.msra.mxu0 0
    %5814 = vmatprep.mubr.bf16.mxu0 0
    %5815 = vmatmul.mubr.bf16.gmra.mrb[0].mxu0 %v5460
    %v5816 = vpop.f32.mrb[0].mxu0
    %v5817 = vadd.f32 0.0, %v5816
    %v5818 = vpop.f32.mrb[0].mxu0
    %v5819 = vadd.f32 0.0, %v5818
    %v5820 = vpop.f32.mrb[0].mxu0
    %v5821 = vpop.f32.mrb[0].mxu0
    %5822 = vdwg.mxu0
    %5823 = vmatprep.subr.bf16.mxu0 %v5657
    %5824 = vmatpush1.bf16.msra.mxu0 %v5656
    %5825 = vmatprep.subr.bf16.mxu0 %v5665
    %5826 = vmatpush1.bf16.msra.mxu0 %v5664
    %5827 = vmatprep.subr.bf16.mxu0 %v5673
    %5828 = vmatpush1.bf16.msra.mxu0 %v5672
    %5829 = vmatprep.subr.bf16.mxu0 %v5681
    %5830 = vmatpush1.bf16.msra.mxu0 %v5680
    %5831 = vmatprep.subr.bf16.mxu0 %v5689
    %5832 = vmatpush1.bf16.msra.mxu0 %v5688
    %5833 = vmatprep.subr.bf16.mxu0 %v5697
    %5834 = vmatpush1.bf16.msra.mxu0 %v5696
    %5835 = vmatprep.subr.bf16.mxu0 %v5705
    %5836 = vmatpush1.bf16.msra.mxu0 %v5704
    %5837 = vmatprep.subr.bf16.mxu0 %v5713
    %5838 = vmatpush1.bf16.msra.mxu0 %v5712
    %5839 = vmatprep.subr.bf16.mxu0 0
    %5840 = vmatpush1.bf16.msra.mxu0 0
    %5841 = vmatprep.subr.bf16.mxu0 0
    %5842 = vmatpush1.bf16.msra.mxu0 0
    %5843 = vmatprep.subr.bf16.mxu0 0
    %5844 = vmatpush1.bf16.msra.mxu0 0
    %5845 = vmatprep.subr.bf16.mxu0 0
    %5846 = vmatpush1.bf16.msra.mxu0 0
    %5847 = vmatprep.subr.bf16.mxu0 0
    %5848 = vmatpush1.bf16.msra.mxu0 0
    %5849 = vmatprep.subr.bf16.mxu0 0
    %5850 = vmatpush1.bf16.msra.mxu0 0
    %5851 = vmatprep.subr.bf16.mxu0 0
    %5852 = vmatpush1.bf16.msra.mxu0 0
    %5853 = vmatprep.subr.bf16.mxu0 0
    %5854 = vmatpush1.bf16.msra.mxu0 0
    %5855 = vmatprep.mubr.bf16.mxu0 0
    %5856 = vmatmul.mubr.bf16.gmra.mrb[0].mxu0 %v5460
    %v5857 = vpop.f32.mrb[0].mxu0
    %v5858 = vadd.f32 0.0, %v5857
    %v5859 = vpop.f32.mrb[0].mxu0
    %v5860 = vadd.f32 0.0, %v5859
    %v5861 = vpop.f32.mrb[0].mxu0
    %v5862 = vpop.f32.mrb[0].mxu0
    %5863 = vdwg.mxu0
    %5864 = vmatprep.subr.bf16.mxu0 %v5659
    %5865 = vmatpush1.bf16.msra.mxu0 %v5658
    %5866 = vmatprep.subr.bf16.mxu0 %v5667
    %5867 = vmatpush1.bf16.msra.mxu0 %v5666
    %5868 = vmatprep.subr.bf16.mxu0 %v5675
    %5869 = vmatpush1.bf16.msra.mxu0 %v5674
    %5870 = vmatprep.subr.bf16.mxu0 %v5683
    %5871 = vmatpush1.bf16.msra.mxu0 %v5682
    %5872 = vmatprep.subr.bf16.mxu0 %v5691
    %5873 = vmatpush1.bf16.msra.mxu0 %v5690
    %5874 = vmatprep.subr.bf16.mxu0 %v5699
    %5875 = vmatpush1.bf16.msra.mxu0 %v5698
    %5876 = vmatprep.subr.bf16.mxu0 %v5707
    %5877 = vmatpush1.bf16.msra.mxu0 %v5706
    %5878 = vmatprep.subr.bf16.mxu0 %v5715
    %5879 = vmatpush1.bf16.msra.mxu0 %v5714
    %5880 = vmatprep.subr.bf16.mxu0 0
    %5881 = vmatpush1.bf16.msra.mxu0 0
    %5882 = vmatprep.subr.bf16.mxu0 0
    %5883 = vmatpush1.bf16.msra.mxu0 0
    %5884 = vmatprep.subr.bf16.mxu0 0
    %5885 = vmatpush1.bf16.msra.mxu0 0
    %5886 = vmatprep.subr.bf16.mxu0 0
    %5887 = vmatpush1.bf16.msra.mxu0 0
    %5888 = vmatprep.subr.bf16.mxu0 0
    %5889 = vmatpush1.bf16.msra.mxu0 0
    %5890 = vmatprep.subr.bf16.mxu0 0
    %5891 = vmatpush1.bf16.msra.mxu0 0
    %5892 = vmatprep.subr.bf16.mxu0 0
    %5893 = vmatpush1.bf16.msra.mxu0 0
    %5894 = vmatprep.subr.bf16.mxu0 0
    %5895 = vmatpush1.bf16.msra.mxu0 0
    %5896 = vmatprep.mubr.bf16.mxu0 0
    %5897 = vmatmul.mubr.bf16.gmra.mrb[0].mxu0 %v5460
    %v5898 = vpop.f32.mrb[0].mxu0
    %v5899 = vadd.f32 0.0, %v5898
    %v5900 = vpop.f32.mrb[0].mxu0
    %v5901 = vadd.f32 0.0, %v5900
    %v5902 = vpop.f32.mrb[0].mxu0
    %v5903 = vpop.f32.mrb[0].mxu0
    %5904 = vdwg.mxu0
    %5905 = vmatprep.subr.bf16.mxu0 %v5661
    %5906 = vmatpush1.bf16.msra.mxu0 %v5660
    %5907 = vmatprep.subr.bf16.mxu0 %v5669
    %5908 = vmatpush1.bf16.msra.mxu0 %v5668
    %5909 = vmatprep.subr.bf16.mxu0 %v5677
    %5910 = vmatpush1.bf16.msra.mxu0 %v5676
    %5911 = vmatprep.subr.bf16.mxu0 %v5685
    %5912 = vmatpush1.bf16.msra.mxu0 %v5684
    %5913 = vmatprep.subr.bf16.mxu0 %v5693
    %5914 = vmatpush1.bf16.msra.mxu0 %v5692
    %5915 = vmatprep.subr.bf16.mxu0 %v5701
    %5916 = vmatpush1.bf16.msra.mxu0 %v5700
    %5917 = vmatprep.subr.bf16.mxu0 %v5709
    %5918 = vmatpush1.bf16.msra.mxu0 %v5708
    %5919 = vmatprep.subr.bf16.mxu0 %v5717
    %5920 = vmatpush1.bf16.msra.mxu0 %v5716
    %5921 = vmatprep.subr.bf16.mxu0 0
    %5922 = vmatpush1.bf16.msra.mxu0 0
    %5923 = vmatprep.subr.bf16.mxu0 0
    %5924 = vmatpush1.bf16.msra.mxu0 0
    %5925 = vmatprep.subr.bf16.mxu0 0
    %5926 = vmatpush1.bf16.msra.mxu0 0
    %5927 = vmatprep.subr.bf16.mxu0 0
    %5928 = vmatpush1.bf16.msra.mxu0 0
    %5929 = vmatprep.subr.bf16.mxu0 0
    %5930 = vmatpush1.bf16.msra.mxu0 0
    %5931 = vmatprep.subr.bf16.mxu0 0
    %5932 = vmatpush1.bf16.msra.mxu0 0
    %5933 = vmatprep.subr.bf16.mxu0 0
    %5934 = vmatpush1.bf16.msra.mxu0 0
    %5935 = vmatprep.subr.bf16.mxu0 0
    %5936 = vmatpush1.bf16.msra.mxu0 0
    %5937 = vmatprep.mubr.bf16.mxu0 0
    %5938 = vmatmul.mubr.bf16.gmra.mrb[0].mxu0 %v5460
    %v5939 = vpop.f32.mrb[0].mxu0
    %v5940 = vadd.f32 0.0, %v5939
    %v5941 = vpop.f32.mrb[0].mxu0
    %v5942 = vadd.f32 0.0, %v5941
    %v5943 = vpop.f32.mrb[0].mxu0
    %v5944 = vpop.f32.mrb[0].mxu0
    %5945 = vdwg.mxu0
    %v5946 = vadd.f32 %v5387, %v5817
    %v5947 = vadd.f32 %v5388, %v5819
    %v5948 = vadd.f32 %v5389, %v5858
    %v5949 = vadd.f32 %v5390, %v5860
    %v5950 = vadd.f32 %v5391, %v5899
    %v5951 = vadd.f32 %v5392, %v5901
    %v5952 = vadd.f32 %v5393, %v5940
    %v5953 = vadd.f32 %v5394, %v5942
    %s5954 = scalar_lea.vmem [#allocation10], 3584
    %v5955 = vld [vmem:[%s5954] sm:$0xff]
    %v5956 = vld [vmem:[%s5954 + $0x8] sm:$0xff]
    %v5957 = vld [vmem:[%s5954 + $0x10] sm:$0xff]
    %v5958 = vld [vmem:[%s5954 + $0x18] sm:$0xff]
    %v5959 = vld [vmem:[%s5954 + $0x20] sm:$0xff]
    %v5960 = vld [vmem:[%s5954 + $0x28] sm:$0xff]
    %v5961 = vld [vmem:[%s5954 + $0x30] sm:$0xff]
    %v5962 = vld [vmem:[%s5954 + $0x38] sm:$0xff]
    %v5963 = vld [vmem:[%s5954 + $0x40] sm:$0xff]
    %v5964 = vld [vmem:[%s5954 + $0x48] sm:$0xff]
    %v5965 = vld [vmem:[%s5954 + $0x50] sm:$0xff]
    %v5966 = vld [vmem:[%s5954 + $0x58] sm:$0xff]
    %v5967 = vld [vmem:[%s5954 + $0x60] sm:$0xff]
    %v5968 = vld [vmem:[%s5954 + $0x68] sm:$0xff]
    %v5969 = vld [vmem:[%s5954 + $0x70] sm:$0xff]
    %v5970 = vld [vmem:[%s5954 + $0x78] sm:$0xff]
    %v5971 = vld [vmem:[%s5954 + $0x80] sm:$0xff]
    %v5972 = vld [vmem:[%s5954 + $0x88] sm:$0xff]
    %v5973 = vld [vmem:[%s5954 + $0x90] sm:$0xff]
    %v5974 = vld [vmem:[%s5954 + $0x98] sm:$0xff]
    %v5975 = vld [vmem:[%s5954 + $0xa0] sm:$0xff]
    %v5976 = vld [vmem:[%s5954 + $0xa8] sm:$0xff]
    %v5977 = vld [vmem:[%s5954 + $0xb0] sm:$0xff]
    %v5978 = vld [vmem:[%s5954 + $0xb8] sm:$0xff]
    %v5979 = vld [vmem:[%s5954 + $0xc0] sm:$0xff]
    %v5980 = vld [vmem:[%s5954 + $0xc8] sm:$0xff]
    %v5981 = vld [vmem:[%s5954 + $0xd0] sm:$0xff]
    %v5982 = vld [vmem:[%s5954 + $0xd8] sm:$0xff]
    %v5983 = vld [vmem:[%s5954 + $0xe0] sm:$0xff]
    %v5984 = vld [vmem:[%s5954 + $0xe8] sm:$0xff]
    %v5985 = vld [vmem:[%s5954 + $0xf0] sm:$0xff]
    %v5986 = vld [vmem:[%s5954 + $0xf8] sm:$0xff]
    %v5987 = vld [vmem:[%s5954 + $0x100] sm:$0xff]
    %v5988 = vld [vmem:[%s5954 + $0x108] sm:$0xff]
    %v5989 = vld [vmem:[%s5954 + $0x110] sm:$0xff]
    %v5990 = vld [vmem:[%s5954 + $0x118] sm:$0xff]
    %v5991 = vld [vmem:[%s5954 + $0x120] sm:$0xff]
    %v5992 = vld [vmem:[%s5954 + $0x128] sm:$0xff]
    %v5993 = vld [vmem:[%s5954 + $0x130] sm:$0xff]
    %v5994 = vld [vmem:[%s5954 + $0x138] sm:$0xff]
    %v5995 = vld [vmem:[%s5954 + $0x140] sm:$0xff]
    %v5996 = vld [vmem:[%s5954 + $0x148] sm:$0xff]
    %v5997 = vld [vmem:[%s5954 + $0x150] sm:$0xff]
    %v5998 = vld [vmem:[%s5954 + $0x158] sm:$0xff]
    %v5999 = vld [vmem:[%s5954 + $0x160] sm:$0xff]
    %v6000 = vld [vmem:[%s5954 + $0x168] sm:$0xff]
    %v6001 = vld [vmem:[%s5954 + $0x170] sm:$0xff]
    %v6002 = vld [vmem:[%s5954 + $0x178] sm:$0xff]
    %v6003 = vld [vmem:[%s5954 + $0x180] sm:$0xff]
    %v6004 = vld [vmem:[%s5954 + $0x188] sm:$0xff]
    %v6005 = vld [vmem:[%s5954 + $0x190] sm:$0xff]
    %v6006 = vld [vmem:[%s5954 + $0x198] sm:$0xff]
    %v6007 = vld [vmem:[%s5954 + $0x1a0] sm:$0xff]
    %v6008 = vld [vmem:[%s5954 + $0x1a8] sm:$0xff]
    %v6009 = vld [vmem:[%s5954 + $0x1b0] sm:$0xff]
    %v6010 = vld [vmem:[%s5954 + $0x1b8] sm:$0xff]
    %v6011 = vld [vmem:[%s5954 + $0x1c0] sm:$0xff]
    %v6012 = vld [vmem:[%s5954 + $0x1c8] sm:$0xff]
    %v6013 = vld [vmem:[%s5954 + $0x1d0] sm:$0xff]
    %v6014 = vld [vmem:[%s5954 + $0x1d8] sm:$0xff]
    %v6015 = vld [vmem:[%s5954 + $0x1e0] sm:$0xff]
    %v6016 = vld [vmem:[%s5954 + $0x1e8] sm:$0xff]
    %v6017 = vld [vmem:[%s5954 + $0x1f0] sm:$0xff]
    %v6018 = vld [vmem:[%s5954 + $0x1f8] sm:$0xff]
    %v6019 = vrot.slane %v2057, 7
    %v6085 = vunpack.c.l.b16 %v5955
    %v6086 = vunpack.c.h.b16 %v5955
    %v6087 = vunpack.c.l.b16 %v5956
    %v6088 = vunpack.c.h.b16 %v5956
    %v6089 = vunpack.c.l.b16 %v5957
    %v6090 = vunpack.c.h.b16 %v5957
    %v6091 = vunpack.c.l.b16 %v5958
    %v6092 = vunpack.c.h.b16 %v5958
    %v6093 = vunpack.c.l.b16 %v5959
    %v6094 = vunpack.c.h.b16 %v5959
    %v6095 = vunpack.c.l.b16 %v5960
    %v6096 = vunpack.c.h.b16 %v5960
    %v6097 = vunpack.c.l.b16 %v5961
    %v6098 = vunpack.c.h.b16 %v5961
    %v6099 = vunpack.c.l.b16 %v5962
    %v6100 = vunpack.c.h.b16 %v5962
    %v6101 = vunpack.c.l.b16 %v5963
    %v6102 = vunpack.c.h.b16 %v5963
    %v6103 = vunpack.c.l.b16 %v5964
    %v6104 = vunpack.c.h.b16 %v5964
    %v6105 = vunpack.c.l.b16 %v5965
    %v6106 = vunpack.c.h.b16 %v5965
    %v6107 = vunpack.c.l.b16 %v5966
    %v6108 = vunpack.c.h.b16 %v5966
    %v6109 = vunpack.c.l.b16 %v5967
    %v6110 = vunpack.c.h.b16 %v5967
    %v6111 = vunpack.c.l.b16 %v5968
    %v6112 = vunpack.c.h.b16 %v5968
    %v6113 = vunpack.c.l.b16 %v5969
    %v6114 = vunpack.c.h.b16 %v5969
    %v6115 = vunpack.c.l.b16 %v5970
    %v6116 = vunpack.c.h.b16 %v5970
    %v6117 = vunpack.c.l.b16 %v5971
    %v6118 = vunpack.c.h.b16 %v5971
    %v6119 = vunpack.c.l.b16 %v5972
    %v6120 = vunpack.c.h.b16 %v5972
    %v6121 = vunpack.c.l.b16 %v5973
    %v6122 = vunpack.c.h.b16 %v5973
    %v6123 = vunpack.c.l.b16 %v5974
    %v6124 = vunpack.c.h.b16 %v5974
    %v6125 = vunpack.c.l.b16 %v5975
    %v6126 = vunpack.c.h.b16 %v5975
    %v6127 = vunpack.c.l.b16 %v5976
    %v6128 = vunpack.c.h.b16 %v5976
    %v6129 = vunpack.c.l.b16 %v5977
    %v6130 = vunpack.c.h.b16 %v5977
    %v6131 = vunpack.c.l.b16 %v5978
    %v6132 = vunpack.c.h.b16 %v5978
    %v6133 = vunpack.c.l.b16 %v5979
    %v6134 = vunpack.c.h.b16 %v5979
    %v6135 = vunpack.c.l.b16 %v5980
    %v6136 = vunpack.c.h.b16 %v5980
    %v6137 = vunpack.c.l.b16 %v5981
    %v6138 = vunpack.c.h.b16 %v5981
    %v6139 = vunpack.c.l.b16 %v5982
    %v6140 = vunpack.c.h.b16 %v5982
    %v6141 = vunpack.c.l.b16 %v5983
    %v6142 = vunpack.c.h.b16 %v5983
    %v6143 = vunpack.c.l.b16 %v5984
    %v6144 = vunpack.c.h.b16 %v5984
    %v6145 = vunpack.c.l.b16 %v5985
    %v6146 = vunpack.c.h.b16 %v5985
    %v6147 = vunpack.c.l.b16 %v5986
    %v6148 = vunpack.c.h.b16 %v5986
    %v6149 = vunpack.c.l.b16 %v5987
    %v6150 = vunpack.c.h.b16 %v5987
    %v6151 = vunpack.c.l.b16 %v5988
    %v6152 = vunpack.c.h.b16 %v5988
    %v6153 = vunpack.c.l.b16 %v5989
    %v6154 = vunpack.c.h.b16 %v5989
    %v6155 = vunpack.c.l.b16 %v5990
    %v6156 = vunpack.c.h.b16 %v5990
    %v6157 = vunpack.c.l.b16 %v5991
    %v6158 = vunpack.c.h.b16 %v5991
    %v6159 = vunpack.c.l.b16 %v5992
    %v6160 = vunpack.c.h.b16 %v5992
    %v6161 = vunpack.c.l.b16 %v5993
    %v6162 = vunpack.c.h.b16 %v5993
    %v6163 = vunpack.c.l.b16 %v5994
    %v6164 = vunpack.c.h.b16 %v5994
    %v6165 = vunpack.c.l.b16 %v5995
    %v6166 = vunpack.c.h.b16 %v5995
    %v6167 = vunpack.c.l.b16 %v5996
    %v6168 = vunpack.c.h.b16 %v5996
    %v6169 = vunpack.c.l.b16 %v5997
    %v6170 = vunpack.c.h.b16 %v5997
    %v6171 = vunpack.c.l.b16 %v5998
    %v6172 = vunpack.c.h.b16 %v5998
    %v6173 = vunpack.c.l.b16 %v5999
    %v6174 = vunpack.c.h.b16 %v5999
    %v6175 = vunpack.c.l.b16 %v6000
    %v6176 = vunpack.c.h.b16 %v6000
    %v6177 = vunpack.c.l.b16 %v6001
    %v6178 = vunpack.c.h.b16 %v6001
    %v6179 = vunpack.c.l.b16 %v6002
    %v6180 = vunpack.c.h.b16 %v6002
    %v6181 = vunpack.c.l.b16 %v6003
    %v6182 = vunpack.c.h.b16 %v6003
    %v6183 = vunpack.c.l.b16 %v6004
    %v6184 = vunpack.c.h.b16 %v6004
    %v6185 = vunpack.c.l.b16 %v6005
    %v6186 = vunpack.c.h.b16 %v6005
    %v6187 = vunpack.c.l.b16 %v6006
    %v6188 = vunpack.c.h.b16 %v6006
    %v6189 = vunpack.c.l.b16 %v6007
    %v6190 = vunpack.c.h.b16 %v6007
    %v6191 = vunpack.c.l.b16 %v6008
    %v6192 = vunpack.c.h.b16 %v6008
    %v6193 = vunpack.c.l.b16 %v6009
    %v6194 = vunpack.c.h.b16 %v6009
    %v6195 = vunpack.c.l.b16 %v6010
    %v6196 = vunpack.c.h.b16 %v6010
    %v6197 = vunpack.c.l.b16 %v6011
    %v6198 = vunpack.c.h.b16 %v6011
    %v6199 = vunpack.c.l.b16 %v6012
    %v6200 = vunpack.c.h.b16 %v6012
    %v6201 = vunpack.c.l.b16 %v6013
    %v6202 = vunpack.c.h.b16 %v6013
    %v6203 = vunpack.c.l.b16 %v6014
    %v6204 = vunpack.c.h.b16 %v6014
    %v6205 = vunpack.c.l.b16 %v6015
    %v6206 = vunpack.c.h.b16 %v6015
    %v6207 = vunpack.c.l.b16 %v6016
    %v6208 = vunpack.c.h.b16 %v6016
    %v6209 = vunpack.c.l.b16 %v6017
    %v6210 = vunpack.c.h.b16 %v6017
    %v6211 = vunpack.c.l.b16 %v6018
    %v6212 = vunpack.c.h.b16 %v6018
    %v6213 = vpack.c.b16 %v6093, %v6085
    %v6214 = vpack.c.b16 %v6094, %v6086
    %v6215 = vpack.c.b16 %v6095, %v6087
    %v6216 = vpack.c.b16 %v6096, %v6088
    %v6217 = vpack.c.b16 %v6097, %v6089
    %v6218 = vpack.c.b16 %v6098, %v6090
    %v6219 = vpack.c.b16 %v6099, %v6091
    %v6220 = vpack.c.b16 %v6100, %v6092
    %v6221 = vpack.c.b16 %v6109, %v6101
    %v6222 = vpack.c.b16 %v6110, %v6102
    %v6223 = vpack.c.b16 %v6111, %v6103
    %v6224 = vpack.c.b16 %v6112, %v6104
    %v6225 = vpack.c.b16 %v6113, %v6105
    %v6226 = vpack.c.b16 %v6114, %v6106
    %v6227 = vpack.c.b16 %v6115, %v6107
    %v6228 = vpack.c.b16 %v6116, %v6108
    %v6229 = vpack.c.b16 %v6125, %v6117
    %v6230 = vpack.c.b16 %v6126, %v6118
    %v6231 = vpack.c.b16 %v6127, %v6119
    %v6232 = vpack.c.b16 %v6128, %v6120
    %v6233 = vpack.c.b16 %v6129, %v6121
    %v6234 = vpack.c.b16 %v6130, %v6122
    %v6235 = vpack.c.b16 %v6131, %v6123
    %v6236 = vpack.c.b16 %v6132, %v6124
    %v6237 = vpack.c.b16 %v6141, %v6133
    %v6238 = vpack.c.b16 %v6142, %v6134
    %v6239 = vpack.c.b16 %v6143, %v6135
    %v6240 = vpack.c.b16 %v6144, %v6136
    %v6241 = vpack.c.b16 %v6145, %v6137
    %v6242 = vpack.c.b16 %v6146, %v6138
    %v6243 = vpack.c.b16 %v6147, %v6139
    %v6244 = vpack.c.b16 %v6148, %v6140
    %v6245 = vpack.c.b16 %v6157, %v6149
    %v6246 = vpack.c.b16 %v6158, %v6150
    %v6247 = vpack.c.b16 %v6159, %v6151
    %v6248 = vpack.c.b16 %v6160, %v6152
    %v6249 = vpack.c.b16 %v6161, %v6153
    %v6250 = vpack.c.b16 %v6162, %v6154
    %v6251 = vpack.c.b16 %v6163, %v6155
    %v6252 = vpack.c.b16 %v6164, %v6156
    %v6253 = vpack.c.b16 %v6173, %v6165
    %v6254 = vpack.c.b16 %v6174, %v6166
    %v6255 = vpack.c.b16 %v6175, %v6167
    %v6256 = vpack.c.b16 %v6176, %v6168
    %v6257 = vpack.c.b16 %v6177, %v6169
    %v6258 = vpack.c.b16 %v6178, %v6170
    %v6259 = vpack.c.b16 %v6179, %v6171
    %v6260 = vpack.c.b16 %v6180, %v6172
    %v6261 = vpack.c.b16 %v6189, %v6181
    %v6262 = vpack.c.b16 %v6190, %v6182
    %v6263 = vpack.c.b16 %v6191, %v6183
    %v6264 = vpack.c.b16 %v6192, %v6184
    %v6265 = vpack.c.b16 %v6193, %v6185
    %v6266 = vpack.c.b16 %v6194, %v6186
    %v6267 = vpack.c.b16 %v6195, %v6187
    %v6268 = vpack.c.b16 %v6196, %v6188
    %v6269 = vpack.c.b16 %v6205, %v6197
    %v6270 = vpack.c.b16 %v6206, %v6198
    %v6271 = vpack.c.b16 %v6207, %v6199
    %v6272 = vpack.c.b16 %v6208, %v6200
    %v6273 = vpack.c.b16 %v6209, %v6201
    %v6274 = vpack.c.b16 %v6210, %v6202
    %v6275 = vpack.c.b16 %v6211, %v6203
    %v6276 = vpack.c.b16 %v6212, %v6204
    %6341 = vmatprep.subr.bf16.mxu0 %v6214
    %6342 = vmatpush1.bf16.msra.mxu0 %v6213
    %6343 = vmatprep.subr.bf16.mxu0 %v6222
    %6344 = vmatpush1.bf16.msra.mxu0 %v6221
    %6345 = vmatprep.subr.bf16.mxu0 %v6230
    %6346 = vmatpush1.bf16.msra.mxu0 %v6229
    %6347 = vmatprep.subr.bf16.mxu0 %v6238
    %6348 = vmatpush1.bf16.msra.mxu0 %v6237
    %6349 = vmatprep.subr.bf16.mxu0 %v6246
    %6350 = vmatpush1.bf16.msra.mxu0 %v6245
    %6351 = vmatprep.subr.bf16.mxu0 %v6254
    %6352 = vmatpush1.bf16.msra.mxu0 %v6253
    %6353 = vmatprep.subr.bf16.mxu0 %v6262
    %6354 = vmatpush1.bf16.msra.mxu0 %v6261
    %6355 = vmatprep.subr.bf16.mxu0 %v6270
    %6356 = vmatpush1.bf16.msra.mxu0 %v6269
    %6357 = vmatprep.subr.bf16.mxu0 0
    %6358 = vmatpush1.bf16.msra.mxu0 0
    %6359 = vmatprep.subr.bf16.mxu0 0
    %6360 = vmatpush1.bf16.msra.mxu0 0
    %6361 = vmatprep.subr.bf16.mxu0 0
    %6362 = vmatpush1.bf16.msra.mxu0 0
    %6363 = vmatprep.subr.bf16.mxu0 0
    %6364 = vmatpush1.bf16.msra.mxu0 0
    %6365 = vmatprep.subr.bf16.mxu0 0
    %6366 = vmatpush1.bf16.msra.mxu0 0
    %6367 = vmatprep.subr.bf16.mxu0 0
    %6368 = vmatpush1.bf16.msra.mxu0 0
    %6369 = vmatprep.subr.bf16.mxu0 0
    %6370 = vmatpush1.bf16.msra.mxu0 0
    %6371 = vmatprep.subr.bf16.mxu0 0
    %6372 = vmatpush1.bf16.msra.mxu0 0
    %6373 = vmatprep.mubr.bf16.mxu0 0
    %6374 = vmatmul.mubr.bf16.gmra.mrb[0].mxu0 %v6019
    %v6375 = vpop.f32.mrb[0].mxu0
    %v6376 = vadd.f32 0.0, %v6375
    %v6377 = vpop.f32.mrb[0].mxu0
    %v6378 = vadd.f32 0.0, %v6377
    %v6379 = vpop.f32.mrb[0].mxu0
    %v6380 = vpop.f32.mrb[0].mxu0
    %6381 = vdwg.mxu0
    %6382 = vmatprep.subr.bf16.mxu0 %v6216
    %6383 = vmatpush1.bf16.msra.mxu0 %v6215
    %6384 = vmatprep.subr.bf16.mxu0 %v6224
    %6385 = vmatpush1.bf16.msra.mxu0 %v6223
    %6386 = vmatprep.subr.bf16.mxu0 %v6232
    %6387 = vmatpush1.bf16.msra.mxu0 %v6231
    %6388 = vmatprep.subr.bf16.mxu0 %v6240
    %6389 = vmatpush1.bf16.msra.mxu0 %v6239
    %6390 = vmatprep.subr.bf16.mxu0 %v6248
    %6391 = vmatpush1.bf16.msra.mxu0 %v6247
    %6392 = vmatprep.subr.bf16.mxu0 %v6256
    %6393 = vmatpush1.bf16.msra.mxu0 %v6255
    %6394 = vmatprep.subr.bf16.mxu0 %v6264
    %6395 = vmatpush1.bf16.msra.mxu0 %v6263
    %6396 = vmatprep.subr.bf16.mxu0 %v6272
    %6397 = vmatpush1.bf16.msra.mxu0 %v6271
    %6398 = vmatprep.subr.bf16.mxu0 0
    %6399 = vmatpush1.bf16.msra.mxu0 0
    %6400 = vmatprep.subr.bf16.mxu0 0
    %6401 = vmatpush1.bf16.msra.mxu0 0
    %6402 = vmatprep.subr.bf16.mxu0 0
    %6403 = vmatpush1.bf16.msra.mxu0 0
    %6404 = vmatprep.subr.bf16.mxu0 0
    %6405 = vmatpush1.bf16.msra.mxu0 0
    %6406 = vmatprep.subr.bf16.mxu0 0
    %6407 = vmatpush1.bf16.msra.mxu0 0
    %6408 = vmatprep.subr.bf16.mxu0 0
    %6409 = vmatpush1.bf16.msra.mxu0 0
    %6410 = vmatprep.subr.bf16.mxu0 0
    %6411 = vmatpush1.bf16.msra.mxu0 0
    %6412 = vmatprep.subr.bf16.mxu0 0
    %6413 = vmatpush1.bf16.msra.mxu0 0
    %6414 = vmatprep.mubr.bf16.mxu0 0
    %6415 = vmatmul.mubr.bf16.gmra.mrb[0].mxu0 %v6019
    %v6416 = vpop.f32.mrb[0].mxu0
    %v6417 = vadd.f32 0.0, %v6416
    %v6418 = vpop.f32.mrb[0].mxu0
    %v6419 = vadd.f32 0.0, %v6418
    %v6420 = vpop.f32.mrb[0].mxu0
    %v6421 = vpop.f32.mrb[0].mxu0
    %6422 = vdwg.mxu0
    %6423 = vmatprep.subr.bf16.mxu0 %v6218
    %6424 = vmatpush1.bf16.msra.mxu0 %v6217
    %6425 = vmatprep.subr.bf16.mxu0 %v6226
    %6426 = vmatpush1.bf16.msra.mxu0 %v6225
    %6427 = vmatprep.subr.bf16.mxu0 %v6234
    %6428 = vmatpush1.bf16.msra.mxu0 %v6233
    %6429 = vmatprep.subr.bf16.mxu0 %v6242
    %6430 = vmatpush1.bf16.msra.mxu0 %v6241
    %6431 = vmatprep.subr.bf16.mxu0 %v6250
    %6432 = vmatpush1.bf16.msra.mxu0 %v6249
    %6433 = vmatprep.subr.bf16.mxu0 %v6258
    %6434 = vmatpush1.bf16.msra.mxu0 %v6257
    %6435 = vmatprep.subr.bf16.mxu0 %v6266
    %6436 = vmatpush1.bf16.msra.mxu0 %v6265
    %6437 = vmatprep.subr.bf16.mxu0 %v6274
    %6438 = vmatpush1.bf16.msra.mxu0 %v6273
    %6439 = vmatprep.subr.bf16.mxu0 0
    %6440 = vmatpush1.bf16.msra.mxu0 0
    %6441 = vmatprep.subr.bf16.mxu0 0
    %6442 = vmatpush1.bf16.msra.mxu0 0
    %6443 = vmatprep.subr.bf16.mxu0 0
    %6444 = vmatpush1.bf16.msra.mxu0 0
    %6445 = vmatprep.subr.bf16.mxu0 0
    %6446 = vmatpush1.bf16.msra.mxu0 0
    %6447 = vmatprep.subr.bf16.mxu0 0
    %6448 = vmatpush1.bf16.msra.mxu0 0
    %6449 = vmatprep.subr.bf16.mxu0 0
    %6450 = vmatpush1.bf16.msra.mxu0 0
    %6451 = vmatprep.subr.bf16.mxu0 0
    %6452 = vmatpush1.bf16.msra.mxu0 0
    %6453 = vmatprep.subr.bf16.mxu0 0
    %6454 = vmatpush1.bf16.msra.mxu0 0
    %6455 = vmatprep.mubr.bf16.mxu0 0
    %6456 = vmatmul.mubr.bf16.gmra.mrb[0].mxu0 %v6019
    %v6457 = vpop.f32.mrb[0].mxu0
    %v6458 = vadd.f32 0.0, %v6457
    %v6459 = vpop.f32.mrb[0].mxu0
    %v6460 = vadd.f32 0.0, %v6459
    %v6461 = vpop.f32.mrb[0].mxu0
    %v6462 = vpop.f32.mrb[0].mxu0
    %6463 = vdwg.mxu0
    %6464 = vmatprep.subr.bf16.mxu0 %v6220
    %6465 = vmatpush1.bf16.msra.mxu0 %v6219
    %6466 = vmatprep.subr.bf16.mxu0 %v6228
    %6467 = vmatpush1.bf16.msra.mxu0 %v6227
    %6468 = vmatprep.subr.bf16.mxu0 %v6236
    %6469 = vmatpush1.bf16.msra.mxu0 %v6235
    %6470 = vmatprep.subr.bf16.mxu0 %v6244
    %6471 = vmatpush1.bf16.msra.mxu0 %v6243
    %6472 = vmatprep.subr.bf16.mxu0 %v6252
    %6473 = vmatpush1.bf16.msra.mxu0 %v6251
    %6474 = vmatprep.subr.bf16.mxu0 %v6260
    %6475 = vmatpush1.bf16.msra.mxu0 %v6259
    %6476 = vmatprep.subr.bf16.mxu0 %v6268
    %6477 = vmatpush1.bf16.msra.mxu0 %v6267
    %6478 = vmatprep.subr.bf16.mxu0 %v6276
    %6479 = vmatpush1.bf16.msra.mxu0 %v6275
    %6480 = vmatprep.subr.bf16.mxu0 0
    %6481 = vmatpush1.bf16.msra.mxu0 0
    %6482 = vmatprep.subr.bf16.mxu0 0
    %6483 = vmatpush1.bf16.msra.mxu0 0
    %6484 = vmatprep.subr.bf16.mxu0 0
    %6485 = vmatpush1.bf16.msra.mxu0 0
    %6486 = vmatprep.subr.bf16.mxu0 0
    %6487 = vmatpush1.bf16.msra.mxu0 0
    %6488 = vmatprep.subr.bf16.mxu0 0
    %6489 = vmatpush1.bf16.msra.mxu0 0
    %6490 = vmatprep.subr.bf16.mxu0 0
    %6491 = vmatpush1.bf16.msra.mxu0 0
    %6492 = vmatprep.subr.bf16.mxu0 0
    %6493 = vmatpush1.bf16.msra.mxu0 0
    %6494 = vmatprep.subr.bf16.mxu0 0
    %6495 = vmatpush1.bf16.msra.mxu0 0
    %6496 = vmatprep.mubr.bf16.mxu0 0
    %6497 = vmatmul.mubr.bf16.gmra.mrb[0].mxu0 %v6019
    %v6498 = vpop.f32.mrb[0].mxu0
    %v6499 = vadd.f32 0.0, %v6498
    %v6500 = vpop.f32.mrb[0].mxu0
    %v6501 = vadd.f32 0.0, %v6500
    %v6502 = vpop.f32.mrb[0].mxu0
    %v6503 = vpop.f32.mrb[0].mxu0
    %6504 = vdwg.mxu0
    %v6505 = vadd.f32 %v5946, %v6376
    %v6506 = vadd.f32 %v5947, %v6378
    %v6507 = vadd.f32 %v5948, %v6417
    %v6508 = vadd.f32 %v5949, %v6419
    %v6509 = vadd.f32 %v5950, %v6458
    %v6510 = vadd.f32 %v5951, %v6460
    %v6511 = vadd.f32 %v5952, %v6499
    %v6512 = vadd.f32 %v5953, %v6501
    %s6513 = scalar_lea.vmem [#allocation10], 4096
    %v6514 = vld [vmem:[%s6513] sm:$0xff]
    %v6515 = vld [vmem:[%s6513 + $0x8] sm:$0xff]
    %v6516 = vld [vmem:[%s6513 + $0x10] sm:$0xff]
    %v6517 = vld [vmem:[%s6513 + $0x18] sm:$0xff]
    %v6518 = vld [vmem:[%s6513 + $0x20] sm:$0xff]
    %v6519 = vld [vmem:[%s6513 + $0x28] sm:$0xff]
    %v6520 = vld [vmem:[%s6513 + $0x30] sm:$0xff]
    %v6521 = vld [vmem:[%s6513 + $0x38] sm:$0xff]
    %v6522 = vld [vmem:[%s6513 + $0x40] sm:$0xff]
    %v6523 = vld [vmem:[%s6513 + $0x48] sm:$0xff]
    %v6524 = vld [vmem:[%s6513 + $0x50] sm:$0xff]
    %v6525 = vld [vmem:[%s6513 + $0x58] sm:$0xff]
    %v6526 = vld [vmem:[%s6513 + $0x60] sm:$0xff]
    %v6527 = vld [vmem:[%s6513 + $0x68] sm:$0xff]
    %v6528 = vld [vmem:[%s6513 + $0x70] sm:$0xff]
    %v6529 = vld [vmem:[%s6513 + $0x78] sm:$0xff]
    %v6530 = vld [vmem:[%s6513 + $0x80] sm:$0xff]
    %v6531 = vld [vmem:[%s6513 + $0x88] sm:$0xff]
    %v6532 = vld [vmem:[%s6513 + $0x90] sm:$0xff]
    %v6533 = vld [vmem:[%s6513 + $0x98] sm:$0xff]
    %v6534 = vld [vmem:[%s6513 + $0xa0] sm:$0xff]
    %v6535 = vld [vmem:[%s6513 + $0xa8] sm:$0xff]
    %v6536 = vld [vmem:[%s6513 + $0xb0] sm:$0xff]
    %v6537 = vld [vmem:[%s6513 + $0xb8] sm:$0xff]
    %v6538 = vld [vmem:[%s6513 + $0xc0] sm:$0xff]
    %v6539 = vld [vmem:[%s6513 + $0xc8] sm:$0xff]
    %v6540 = vld [vmem:[%s6513 + $0xd0] sm:$0xff]
    %v6541 = vld [vmem:[%s6513 + $0xd8] sm:$0xff]
    %v6542 = vld [vmem:[%s6513 + $0xe0] sm:$0xff]
    %v6543 = vld [vmem:[%s6513 + $0xe8] sm:$0xff]
    %v6544 = vld [vmem:[%s6513 + $0xf0] sm:$0xff]
    %v6545 = vld [vmem:[%s6513 + $0xf8] sm:$0xff]
    %v6546 = vld [vmem:[%s6513 + $0x100] sm:$0xff]
    %v6547 = vld [vmem:[%s6513 + $0x108] sm:$0xff]
    %v6548 = vld [vmem:[%s6513 + $0x110] sm:$0xff]
    %v6549 = vld [vmem:[%s6513 + $0x118] sm:$0xff]
    %v6550 = vld [vmem:[%s6513 + $0x120] sm:$0xff]
    %v6551 = vld [vmem:[%s6513 + $0x128] sm:$0xff]
    %v6552 = vld [vmem:[%s6513 + $0x130] sm:$0xff]
    %v6553 = vld [vmem:[%s6513 + $0x138] sm:$0xff]
    %v6554 = vld [vmem:[%s6513 + $0x140] sm:$0xff]
    %v6555 = vld [vmem:[%s6513 + $0x148] sm:$0xff]
    %v6556 = vld [vmem:[%s6513 + $0x150] sm:$0xff]
    %v6557 = vld [vmem:[%s6513 + $0x158] sm:$0xff]
    %v6558 = vld [vmem:[%s6513 + $0x160] sm:$0xff]
    %v6559 = vld [vmem:[%s6513 + $0x168] sm:$0xff]
    %v6560 = vld [vmem:[%s6513 + $0x170] sm:$0xff]
    %v6561 = vld [vmem:[%s6513 + $0x178] sm:$0xff]
    %v6562 = vld [vmem:[%s6513 + $0x180] sm:$0xff]
    %v6563 = vld [vmem:[%s6513 + $0x188] sm:$0xff]
    %v6564 = vld [vmem:[%s6513 + $0x190] sm:$0xff]
    %v6565 = vld [vmem:[%s6513 + $0x198] sm:$0xff]
    %v6566 = vld [vmem:[%s6513 + $0x1a0] sm:$0xff]
    %v6567 = vld [vmem:[%s6513 + $0x1a8] sm:$0xff]
    %v6568 = vld [vmem:[%s6513 + $0x1b0] sm:$0xff]
    %v6569 = vld [vmem:[%s6513 + $0x1b8] sm:$0xff]
    %v6570 = vld [vmem:[%s6513 + $0x1c0] sm:$0xff]
    %v6571 = vld [vmem:[%s6513 + $0x1c8] sm:$0xff]
    %v6572 = vld [vmem:[%s6513 + $0x1d0] sm:$0xff]
    %v6573 = vld [vmem:[%s6513 + $0x1d8] sm:$0xff]
    %v6574 = vld [vmem:[%s6513 + $0x1e0] sm:$0xff]
    %v6575 = vld [vmem:[%s6513 + $0x1e8] sm:$0xff]
    %v6576 = vld [vmem:[%s6513 + $0x1f0] sm:$0xff]
    %v6577 = vld [vmem:[%s6513 + $0x1f8] sm:$0xff]
    %v6642 = vunpack.c.l.b16 %v6514
    %v6643 = vunpack.c.h.b16 %v6514
    %v6644 = vunpack.c.l.b16 %v6515
    %v6645 = vunpack.c.h.b16 %v6515
    %v6646 = vunpack.c.l.b16 %v6516
    %v6647 = vunpack.c.h.b16 %v6516
    %v6648 = vunpack.c.l.b16 %v6517
    %v6649 = vunpack.c.h.b16 %v6517
    %v6650 = vunpack.c.l.b16 %v6518
    %v6651 = vunpack.c.h.b16 %v6518
    %v6652 = vunpack.c.l.b16 %v6519
    %v6653 = vunpack.c.h.b16 %v6519
    %v6654 = vunpack.c.l.b16 %v6520
    %v6655 = vunpack.c.h.b16 %v6520
    %v6656 = vunpack.c.l.b16 %v6521
    %v6657 = vunpack.c.h.b16 %v6521
    %v6658 = vunpack.c.l.b16 %v6522
    %v6659 = vunpack.c.h.b16 %v6522
    %v6660 = vunpack.c.l.b16 %v6523
    %v6661 = vunpack.c.h.b16 %v6523
    %v6662 = vunpack.c.l.b16 %v6524
    %v6663 = vunpack.c.h.b16 %v6524
    %v6664 = vunpack.c.l.b16 %v6525
    %v6665 = vunpack.c.h.b16 %v6525
    %v6666 = vunpack.c.l.b16 %v6526
    %v6667 = vunpack.c.h.b16 %v6526
    %v6668 = vunpack.c.l.b16 %v6527
    %v6669 = vunpack.c.h.b16 %v6527
    %v6670 = vunpack.c.l.b16 %v6528
    %v6671 = vunpack.c.h.b16 %v6528
    %v6672 = vunpack.c.l.b16 %v6529
    %v6673 = vunpack.c.h.b16 %v6529
    %v6674 = vunpack.c.l.b16 %v6530
    %v6675 = vunpack.c.h.b16 %v6530
    %v6676 = vunpack.c.l.b16 %v6531
    %v6677 = vunpack.c.h.b16 %v6531
    %v6678 = vunpack.c.l.b16 %v6532
    %v6679 = vunpack.c.h.b16 %v6532
    %v6680 = vunpack.c.l.b16 %v6533
    %v6681 = vunpack.c.h.b16 %v6533
    %v6682 = vunpack.c.l.b16 %v6534
    %v6683 = vunpack.c.h.b16 %v6534
    %v6684 = vunpack.c.l.b16 %v6535
    %v6685 = vunpack.c.h.b16 %v6535
    %v6686 = vunpack.c.l.b16 %v6536
    %v6687 = vunpack.c.h.b16 %v6536
    %v6688 = vunpack.c.l.b16 %v6537
    %v6689 = vunpack.c.h.b16 %v6537
    %v6690 = vunpack.c.l.b16 %v6538
    %v6691 = vunpack.c.h.b16 %v6538
    %v6692 = vunpack.c.l.b16 %v6539
    %v6693 = vunpack.c.h.b16 %v6539
    %v6694 = vunpack.c.l.b16 %v6540
    %v6695 = vunpack.c.h.b16 %v6540
    %v6696 = vunpack.c.l.b16 %v6541
    %v6697 = vunpack.c.h.b16 %v6541
    %v6698 = vunpack.c.l.b16 %v6542
    %v6699 = vunpack.c.h.b16 %v6542
    %v6700 = vunpack.c.l.b16 %v6543
    %v6701 = vunpack.c.h.b16 %v6543
    %v6702 = vunpack.c.l.b16 %v6544
    %v6703 = vunpack.c.h.b16 %v6544
    %v6704 = vunpack.c.l.b16 %v6545
    %v6705 = vunpack.c.h.b16 %v6545
    %v6706 = vunpack.c.l.b16 %v6546
    %v6707 = vunpack.c.h.b16 %v6546
    %v6708 = vunpack.c.l.b16 %v6547
    %v6709 = vunpack.c.h.b16 %v6547
    %v6710 = vunpack.c.l.b16 %v6548
    %v6711 = vunpack.c.h.b16 %v6548
    %v6712 = vunpack.c.l.b16 %v6549
    %v6713 = vunpack.c.h.b16 %v6549
    %v6714 = vunpack.c.l.b16 %v6550
    %v6715 = vunpack.c.h.b16 %v6550
    %v6716 = vunpack.c.l.b16 %v6551
    %v6717 = vunpack.c.h.b16 %v6551
    %v6718 = vunpack.c.l.b16 %v6552
    %v6719 = vunpack.c.h.b16 %v6552
    %v6720 = vunpack.c.l.b16 %v6553
    %v6721 = vunpack.c.h.b16 %v6553
    %v6722 = vunpack.c.l.b16 %v6554
    %v6723 = vunpack.c.h.b16 %v6554
    %v6724 = vunpack.c.l.b16 %v6555
    %v6725 = vunpack.c.h.b16 %v6555
    %v6726 = vunpack.c.l.b16 %v6556
    %v6727 = vunpack.c.h.b16 %v6556
    %v6728 = vunpack.c.l.b16 %v6557
    %v6729 = vunpack.c.h.b16 %v6557
    %v6730 = vunpack.c.l.b16 %v6558
    %v6731 = vunpack.c.h.b16 %v6558
    %v6732 = vunpack.c.l.b16 %v6559
    %v6733 = vunpack.c.h.b16 %v6559
    %v6734 = vunpack.c.l.b16 %v6560
    %v6735 = vunpack.c.h.b16 %v6560
    %v6736 = vunpack.c.l.b16 %v6561
    %v6737 = vunpack.c.h.b16 %v6561
    %v6738 = vunpack.c.l.b16 %v6562
    %v6739 = vunpack.c.h.b16 %v6562
    %v6740 = vunpack.c.l.b16 %v6563
    %v6741 = vunpack.c.h.b16 %v6563
    %v6742 = vunpack.c.l.b16 %v6564
    %v6743 = vunpack.c.h.b16 %v6564
    %v6744 = vunpack.c.l.b16 %v6565
    %v6745 = vunpack.c.h.b16 %v6565
    %v6746 = vunpack.c.l.b16 %v6566
    %v6747 = vunpack.c.h.b16 %v6566
    %v6748 = vunpack.c.l.b16 %v6567
    %v6749 = vunpack.c.h.b16 %v6567
    %v6750 = vunpack.c.l.b16 %v6568
    %v6751 = vunpack.c.h.b16 %v6568
    %v6752 = vunpack.c.l.b16 %v6569
    %v6753 = vunpack.c.h.b16 %v6569
    %v6754 = vunpack.c.l.b16 %v6570
    %v6755 = vunpack.c.h.b16 %v6570
    %v6756 = vunpack.c.l.b16 %v6571
    %v6757 = vunpack.c.h.b16 %v6571
    %v6758 = vunpack.c.l.b16 %v6572
    %v6759 = vunpack.c.h.b16 %v6572
    %v6760 = vunpack.c.l.b16 %v6573
    %v6761 = vunpack.c.h.b16 %v6573
    %v6762 = vunpack.c.l.b16 %v6574
    %v6763 = vunpack.c.h.b16 %v6574
    %v6764 = vunpack.c.l.b16 %v6575
    %v6765 = vunpack.c.h.b16 %v6575
    %v6766 = vunpack.c.l.b16 %v6576
    %v6767 = vunpack.c.h.b16 %v6576
    %v6768 = vunpack.c.l.b16 %v6577
    %v6769 = vunpack.c.h.b16 %v6577
    %v6770 = vpack.c.b16 %v6650, %v6642
    %v6771 = vpack.c.b16 %v6651, %v6643
    %v6772 = vpack.c.b16 %v6652, %v6644
    %v6773 = vpack.c.b16 %v6653, %v6645
    %v6774 = vpack.c.b16 %v6654, %v6646
    %v6775 = vpack.c.b16 %v6655, %v6647
    %v6776 = vpack.c.b16 %v6656, %v6648
    %v6777 = vpack.c.b16 %v6657, %v6649
    %v6778 = vpack.c.b16 %v6666, %v6658
    %v6779 = vpack.c.b16 %v6667, %v6659
    %v6780 = vpack.c.b16 %v6668, %v6660
    %v6781 = vpack.c.b16 %v6669, %v6661
    %v6782 = vpack.c.b16 %v6670, %v6662
    %v6783 = vpack.c.b16 %v6671, %v6663
    %v6784 = vpack.c.b16 %v6672, %v6664
    %v6785 = vpack.c.b16 %v6673, %v6665
    %v6786 = vpack.c.b16 %v6682, %v6674
    %v6787 = vpack.c.b16 %v6683, %v6675
    %v6788 = vpack.c.b16 %v6684, %v6676
    %v6789 = vpack.c.b16 %v6685, %v6677
    %v6790 = vpack.c.b16 %v6686, %v6678
    %v6791 = vpack.c.b16 %v6687, %v6679
    %v6792 = vpack.c.b16 %v6688, %v6680
    %v6793 = vpack.c.b16 %v6689, %v6681
    %v6794 = vpack.c.b16 %v6698, %v6690
    %v6795 = vpack.c.b16 %v6699, %v6691
    %v6796 = vpack.c.b16 %v6700, %v6692
    %v6797 = vpack.c.b16 %v6701, %v6693
    %v6798 = vpack.c.b16 %v6702, %v6694
    %v6799 = vpack.c.b16 %v6703, %v6695
    %v6800 = vpack.c.b16 %v6704, %v6696
    %v6801 = vpack.c.b16 %v6705, %v6697
    %v6802 = vpack.c.b16 %v6714, %v6706
    %v6803 = vpack.c.b16 %v6715, %v6707
    %v6804 = vpack.c.b16 %v6716, %v6708
    %v6805 = vpack.c.b16 %v6717, %v6709
    %v6806 = vpack.c.b16 %v6718, %v6710
    %v6807 = vpack.c.b16 %v6719, %v6711
    %v6808 = vpack.c.b16 %v6720, %v6712
    %v6809 = vpack.c.b16 %v6721, %v6713
    %v6810 = vpack.c.b16 %v6730, %v6722
    %v6811 = vpack.c.b16 %v6731, %v6723
    %v6812 = vpack.c.b16 %v6732, %v6724
    %v6813 = vpack.c.b16 %v6733, %v6725
    %v6814 = vpack.c.b16 %v6734, %v6726
    %v6815 = vpack.c.b16 %v6735, %v6727
    %v6816 = vpack.c.b16 %v6736, %v6728
    %v6817 = vpack.c.b16 %v6737, %v6729
    %v6818 = vpack.c.b16 %v6746, %v6738
    %v6819 = vpack.c.b16 %v6747, %v6739
    %v6820 = vpack.c.b16 %v6748, %v6740
    %v6821 = vpack.c.b16 %v6749, %v6741
    %v6822 = vpack.c.b16 %v6750, %v6742
    %v6823 = vpack.c.b16 %v6751, %v6743
    %v6824 = vpack.c.b16 %v6752, %v6744
    %v6825 = vpack.c.b16 %v6753, %v6745
    %v6826 = vpack.c.b16 %v6762, %v6754
    %v6827 = vpack.c.b16 %v6763, %v6755
    %v6828 = vpack.c.b16 %v6764, %v6756
    %v6829 = vpack.c.b16 %v6765, %v6757
    %v6830 = vpack.c.b16 %v6766, %v6758
    %v6831 = vpack.c.b16 %v6767, %v6759
    %v6832 = vpack.c.b16 %v6768, %v6760
    %v6833 = vpack.c.b16 %v6769, %v6761
    %6898 = vmatprep.subr.bf16.mxu0 %v6771
    %6899 = vmatpush1.bf16.msra.mxu0 %v6770
    %6900 = vmatprep.subr.bf16.mxu0 %v6779
    %6901 = vmatpush1.bf16.msra.mxu0 %v6778
    %6902 = vmatprep.subr.bf16.mxu0 %v6787
    %6903 = vmatpush1.bf16.msra.mxu0 %v6786
    %6904 = vmatprep.subr.bf16.mxu0 %v6795
    %6905 = vmatpush1.bf16.msra.mxu0 %v6794
    %6906 = vmatprep.subr.bf16.mxu0 %v6803
    %6907 = vmatpush1.bf16.msra.mxu0 %v6802
    %6908 = vmatprep.subr.bf16.mxu0 %v6811
    %6909 = vmatpush1.bf16.msra.mxu0 %v6810
    %6910 = vmatprep.subr.bf16.mxu0 %v6819
    %6911 = vmatpush1.bf16.msra.mxu0 %v6818
    %6912 = vmatprep.subr.bf16.mxu0 %v6827
    %6913 = vmatpush1.bf16.msra.mxu0 %v6826
    %6914 = vmatprep.subr.bf16.mxu0 0
    %6915 = vmatpush1.bf16.msra.mxu0 0
    %6916 = vmatprep.subr.bf16.mxu0 0
    %6917 = vmatpush1.bf16.msra.mxu0 0
    %6918 = vmatprep.subr.bf16.mxu0 0
    %6919 = vmatpush1.bf16.msra.mxu0 0
    %6920 = vmatprep.subr.bf16.mxu0 0
    %6921 = vmatpush1.bf16.msra.mxu0 0
    %6922 = vmatprep.subr.bf16.mxu0 0
    %6923 = vmatpush1.bf16.msra.mxu0 0
    %6924 = vmatprep.subr.bf16.mxu0 0
    %6925 = vmatpush1.bf16.msra.mxu0 0
    %6926 = vmatprep.subr.bf16.mxu0 0
    %6927 = vmatpush1.bf16.msra.mxu0 0
    %6928 = vmatprep.subr.bf16.mxu0 0
    %6929 = vmatpush1.bf16.msra.mxu0 0
    %6930 = vmatprep.mubr.bf16.mxu0 0
    %6931 = vmatmul.mubr.bf16.gmra.mrb[0].mxu0 %v2058
    %v6932 = vpop.f32.mrb[0].mxu0
    %v6933 = vadd.f32 0.0, %v6932
    %v6934 = vpop.f32.mrb[0].mxu0
    %v6935 = vadd.f32 0.0, %v6934
    %v6936 = vpop.f32.mrb[0].mxu0
    %v6937 = vpop.f32.mrb[0].mxu0
    %6938 = vdwg.mxu0
    %6939 = vmatprep.subr.bf16.mxu0 %v6773
    %6940 = vmatpush1.bf16.msra.mxu0 %v6772
    %6941 = vmatprep.subr.bf16.mxu0 %v6781
    %6942 = vmatpush1.bf16.msra.mxu0 %v6780
    %6943 = vmatprep.subr.bf16.mxu0 %v6789
    %6944 = vmatpush1.bf16.msra.mxu0 %v6788
    %6945 = vmatprep.subr.bf16.mxu0 %v6797
    %6946 = vmatpush1.bf16.msra.mxu0 %v6796
    %6947 = vmatprep.subr.bf16.mxu0 %v6805
    %6948 = vmatpush1.bf16.msra.mxu0 %v6804
    %6949 = vmatprep.subr.bf16.mxu0 %v6813
    %6950 = vmatpush1.bf16.msra.mxu0 %v6812
    %6951 = vmatprep.subr.bf16.mxu0 %v6821
    %6952 = vmatpush1.bf16.msra.mxu0 %v6820
    %6953 = vmatprep.subr.bf16.mxu0 %v6829
    %6954 = vmatpush1.bf16.msra.mxu0 %v6828
    %6955 = vmatprep.subr.bf16.mxu0 0
    %6956 = vmatpush1.bf16.msra.mxu0 0
    %6957 = vmatprep.subr.bf16.mxu0 0
    %6958 = vmatpush1.bf16.msra.mxu0 0
    %6959 = vmatprep.subr.bf16.mxu0 0
    %6960 = vmatpush1.bf16.msra.mxu0 0
    %6961 = vmatprep.subr.bf16.mxu0 0
    %6962 = vmatpush1.bf16.msra.mxu0 0
    %6963 = vmatprep.subr.bf16.mxu0 0
    %6964 = vmatpush1.bf16.msra.mxu0 0
    %6965 = vmatprep.subr.bf16.mxu0 0
    %6966 = vmatpush1.bf16.msra.mxu0 0
    %6967 = vmatprep.subr.bf16.mxu0 0
    %6968 = vmatpush1.bf16.msra.mxu0 0
    %6969 = vmatprep.subr.bf16.mxu0 0
    %6970 = vmatpush1.bf16.msra.mxu0 0
    %6971 = vmatprep.mubr.bf16.mxu0 0
    %6972 = vmatmul.mubr.bf16.gmra.mrb[0].mxu0 %v2058
    %v6973 = vpop.f32.mrb[0].mxu0
    %v6974 = vadd.f32 0.0, %v6973
    %v6975 = vpop.f32.mrb[0].mxu0
    %v6976 = vadd.f32 0.0, %v6975
    %v6977 = vpop.f32.mrb[0].mxu0
    %v6978 = vpop.f32.mrb[0].mxu0
    %6979 = vdwg.mxu0
    %6980 = vmatprep.subr.bf16.mxu0 %v6775
    %6981 = vmatpush1.bf16.msra.mxu0 %v6774
    %6982 = vmatprep.subr.bf16.mxu0 %v6783
    %6983 = vmatpush1.bf16.msra.mxu0 %v6782
    %6984 = vmatprep.subr.bf16.mxu0 %v6791
    %6985 = vmatpush1.bf16.msra.mxu0 %v6790
    %6986 = vmatprep.subr.bf16.mxu0 %v6799
    %6987 = vmatpush1.bf16.msra.mxu0 %v6798
    %6988 = vmatprep.subr.bf16.mxu0 %v6807
    %6989 = vmatpush1.bf16.msra.mxu0 %v6806
    %6990 = vmatprep.subr.bf16.mxu0 %v6815
    %6991 = vmatpush1.bf16.msra.mxu0 %v6814
    %6992 = vmatprep.subr.bf16.mxu0 %v6823
    %6993 = vmatpush1.bf16.msra.mxu0 %v6822
    %6994 = vmatprep.subr.bf16.mxu0 %v6831
    %6995 = vmatpush1.bf16.msra.mxu0 %v6830
    %6996 = vmatprep.subr.bf16.mxu0 0
    %6997 = vmatpush1.bf16.msra.mxu0 0
    %6998 = vmatprep.subr.bf16.mxu0 0
    %6999 = vmatpush1.bf16.msra.mxu0 0
    %7000 = vmatprep.subr.bf16.mxu0 0
    %7001 = vmatpush1.bf16.msra.mxu0 0
    %7002 = vmatprep.subr.bf16.mxu0 0
    %7003 = vmatpush1.bf16.msra.mxu0 0
    %7004 = vmatprep.subr.bf16.mxu0 0
    %7005 = vmatpush1.bf16.msra.mxu0 0
    %7006 = vmatprep.subr.bf16.mxu0 0
    %7007 = vmatpush1.bf16.msra.mxu0 0
    %7008 = vmatprep.subr.bf16.mxu0 0
    %7009 = vmatpush1.bf16.msra.mxu0 0
    %7010 = vmatprep.subr.bf16.mxu0 0
    %7011 = vmatpush1.bf16.msra.mxu0 0
    %7012 = vmatprep.mubr.bf16.mxu0 0
    %7013 = vmatmul.mubr.bf16.gmra.mrb[0].mxu0 %v2058
    %v7014 = vpop.f32.mrb[0].mxu0
    %v7015 = vadd.f32 0.0, %v7014
    %v7016 = vpop.f32.mrb[0].mxu0
    %v7017 = vadd.f32 0.0, %v7016
    %v7018 = vpop.f32.mrb[0].mxu0
    %v7019 = vpop.f32.mrb[0].mxu0
    %7020 = vdwg.mxu0
    %7021 = vmatprep.subr.bf16.mxu0 %v6777
    %7022 = vmatpush1.bf16.msra.mxu0 %v6776
    %7023 = vmatprep.subr.bf16.mxu0 %v6785
    %7024 = vmatpush1.bf16.msra.mxu0 %v6784
    %7025 = vmatprep.subr.bf16.mxu0 %v6793
    %7026 = vmatpush1.bf16.msra.mxu0 %v6792
    %7027 = vmatprep.subr.bf16.mxu0 %v6801
    %7028 = vmatpush1.bf16.msra.mxu0 %v6800
    %7029 = vmatprep.subr.bf16.mxu0 %v6809
    %7030 = vmatpush1.bf16.msra.mxu0 %v6808
    %7031 = vmatprep.subr.bf16.mxu0 %v6817
    %7032 = vmatpush1.bf16.msra.mxu0 %v6816
    %7033 = vmatprep.subr.bf16.mxu0 %v6825
    %7034 = vmatpush1.bf16.msra.mxu0 %v6824
    %7035 = vmatprep.subr.bf16.mxu0 %v6833
    %7036 = vmatpush1.bf16.msra.mxu0 %v6832
    %7037 = vmatprep.subr.bf16.mxu0 0
    %7038 = vmatpush1.bf16.msra.mxu0 0
    %7039 = vmatprep.subr.bf16.mxu0 0
    %7040 = vmatpush1.bf16.msra.mxu0 0
    %7041 = vmatprep.subr.bf16.mxu0 0
    %7042 = vmatpush1.bf16.msra.mxu0 0
    %7043 = vmatprep.subr.bf16.mxu0 0
    %7044 = vmatpush1.bf16.msra.mxu0 0
    %7045 = vmatprep.subr.bf16.mxu0 0
    %7046 = vmatpush1.bf16.msra.mxu0 0
    %7047 = vmatprep.subr.bf16.mxu0 0
    %7048 = vmatpush1.bf16.msra.mxu0 0
    %7049 = vmatprep.subr.bf16.mxu0 0
    %7050 = vmatpush1.bf16.msra.mxu0 0
    %7051 = vmatprep.subr.bf16.mxu0 0
    %7052 = vmatpush1.bf16.msra.mxu0 0
    %7053 = vmatprep.mubr.bf16.mxu0 0
    %7054 = vmatmul.mubr.bf16.gmra.mrb[0].mxu0 %v2058
    %v7055 = vpop.f32.mrb[0].mxu0
    %v7056 = vadd.f32 0.0, %v7055
    %v7057 = vpop.f32.mrb[0].mxu0
    %v7058 = vadd.f32 0.0, %v7057
    %v7059 = vpop.f32.mrb[0].mxu0
    %v7060 = vpop.f32.mrb[0].mxu0
    %7061 = vdwg.mxu0
    %v7062 = vadd.f32 %v6505, %v6933
    %v7063 = vadd.f32 %v6506, %v6935
    %v7064 = vadd.f32 %v6507, %v6974
    %v7065 = vadd.f32 %v6508, %v6976
    %v7066 = vadd.f32 %v6509, %v7015
    %v7067 = vadd.f32 %v6510, %v7017
    %v7068 = vadd.f32 %v6511, %v7056
    %v7069 = vadd.f32 %v6512, %v7058
    %s7070 = scalar_lea.vmem [#allocation10], 4608
    %v7071 = vld [vmem:[%s7070] sm:$0xff]
    %v7072 = vld [vmem:[%s7070 + $0x8] sm:$0xff]
    %v7073 = vld [vmem:[%s7070 + $0x10] sm:$0xff]
    %v7074 = vld [vmem:[%s7070 + $0x18] sm:$0xff]
    %v7075 = vld [vmem:[%s7070 + $0x20] sm:$0xff]
    %v7076 = vld [vmem:[%s7070 + $0x28] sm:$0xff]
    %v7077 = vld [vmem:[%s7070 + $0x30] sm:$0xff]
    %v7078 = vld [vmem:[%s7070 + $0x38] sm:$0xff]
    %v7079 = vld [vmem:[%s7070 + $0x40] sm:$0xff]
    %v7080 = vld [vmem:[%s7070 + $0x48] sm:$0xff]
    %v7081 = vld [vmem:[%s7070 + $0x50] sm:$0xff]
    %v7082 = vld [vmem:[%s7070 + $0x58] sm:$0xff]
    %v7083 = vld [vmem:[%s7070 + $0x60] sm:$0xff]
    %v7084 = vld [vmem:[%s7070 + $0x68] sm:$0xff]
    %v7085 = vld [vmem:[%s7070 + $0x70] sm:$0xff]
    %v7086 = vld [vmem:[%s7070 + $0x78] sm:$0xff]
    %v7087 = vld [vmem:[%s7070 + $0x80] sm:$0xff]
    %v7088 = vld [vmem:[%s7070 + $0x88] sm:$0xff]
    %v7089 = vld [vmem:[%s7070 + $0x90] sm:$0xff]
    %v7090 = vld [vmem:[%s7070 + $0x98] sm:$0xff]
    %v7091 = vld [vmem:[%s7070 + $0xa0] sm:$0xff]
    %v7092 = vld [vmem:[%s7070 + $0xa8] sm:$0xff]
    %v7093 = vld [vmem:[%s7070 + $0xb0] sm:$0xff]
    %v7094 = vld [vmem:[%s7070 + $0xb8] sm:$0xff]
    %v7095 = vld [vmem:[%s7070 + $0xc0] sm:$0xff]
    %v7096 = vld [vmem:[%s7070 + $0xc8] sm:$0xff]
    %v7097 = vld [vmem:[%s7070 + $0xd0] sm:$0xff]
    %v7098 = vld [vmem:[%s7070 + $0xd8] sm:$0xff]
    %v7099 = vld [vmem:[%s7070 + $0xe0] sm:$0xff]
    %v7100 = vld [vmem:[%s7070 + $0xe8] sm:$0xff]
    %v7101 = vld [vmem:[%s7070 + $0xf0] sm:$0xff]
    %v7102 = vld [vmem:[%s7070 + $0xf8] sm:$0xff]
    %v7103 = vld [vmem:[%s7070 + $0x100] sm:$0xff]
    %v7104 = vld [vmem:[%s7070 + $0x108] sm:$0xff]
    %v7105 = vld [vmem:[%s7070 + $0x110] sm:$0xff]
    %v7106 = vld [vmem:[%s7070 + $0x118] sm:$0xff]
    %v7107 = vld [vmem:[%s7070 + $0x120] sm:$0xff]
    %v7108 = vld [vmem:[%s7070 + $0x128] sm:$0xff]
    %v7109 = vld [vmem:[%s7070 + $0x130] sm:$0xff]
    %v7110 = vld [vmem:[%s7070 + $0x138] sm:$0xff]
    %v7111 = vld [vmem:[%s7070 + $0x140] sm:$0xff]
    %v7112 = vld [vmem:[%s7070 + $0x148] sm:$0xff]
    %v7113 = vld [vmem:[%s7070 + $0x150] sm:$0xff]
    %v7114 = vld [vmem:[%s7070 + $0x158] sm:$0xff]
    %v7115 = vld [vmem:[%s7070 + $0x160] sm:$0xff]
    %v7116 = vld [vmem:[%s7070 + $0x168] sm:$0xff]
    %v7117 = vld [vmem:[%s7070 + $0x170] sm:$0xff]
    %v7118 = vld [vmem:[%s7070 + $0x178] sm:$0xff]
    %v7119 = vld [vmem:[%s7070 + $0x180] sm:$0xff]
    %v7120 = vld [vmem:[%s7070 + $0x188] sm:$0xff]
    %v7121 = vld [vmem:[%s7070 + $0x190] sm:$0xff]
    %v7122 = vld [vmem:[%s7070 + $0x198] sm:$0xff]
    %v7123 = vld [vmem:[%s7070 + $0x1a0] sm:$0xff]
    %v7124 = vld [vmem:[%s7070 + $0x1a8] sm:$0xff]
    %v7125 = vld [vmem:[%s7070 + $0x1b0] sm:$0xff]
    %v7126 = vld [vmem:[%s7070 + $0x1b8] sm:$0xff]
    %v7127 = vld [vmem:[%s7070 + $0x1c0] sm:$0xff]
    %v7128 = vld [vmem:[%s7070 + $0x1c8] sm:$0xff]
    %v7129 = vld [vmem:[%s7070 + $0x1d0] sm:$0xff]
    %v7130 = vld [vmem:[%s7070 + $0x1d8] sm:$0xff]
    %v7131 = vld [vmem:[%s7070 + $0x1e0] sm:$0xff]
    %v7132 = vld [vmem:[%s7070 + $0x1e8] sm:$0xff]
    %v7133 = vld [vmem:[%s7070 + $0x1f0] sm:$0xff]
    %v7134 = vld [vmem:[%s7070 + $0x1f8] sm:$0xff]
    %v7136 = vrot.slane %v2058, 1
    %v7202 = vunpack.c.l.b16 %v7071
    %v7203 = vunpack.c.h.b16 %v7071
    %v7204 = vunpack.c.l.b16 %v7072
    %v7205 = vunpack.c.h.b16 %v7072
    %v7206 = vunpack.c.l.b16 %v7073
    %v7207 = vunpack.c.h.b16 %v7073
    %v7208 = vunpack.c.l.b16 %v7074
    %v7209 = vunpack.c.h.b16 %v7074
    %v7210 = vunpack.c.l.b16 %v7075
    %v7211 = vunpack.c.h.b16 %v7075
    %v7212 = vunpack.c.l.b16 %v7076
    %v7213 = vunpack.c.h.b16 %v7076
    %v7214 = vunpack.c.l.b16 %v7077
    %v7215 = vunpack.c.h.b16 %v7077
    %v7216 = vunpack.c.l.b16 %v7078
    %v7217 = vunpack.c.h.b16 %v7078
    %v7218 = vunpack.c.l.b16 %v7079
    %v7219 = vunpack.c.h.b16 %v7079
    %v7220 = vunpack.c.l.b16 %v7080
    %v7221 = vunpack.c.h.b16 %v7080
    %v7222 = vunpack.c.l.b16 %v7081
    %v7223 = vunpack.c.h.b16 %v7081
    %v7224 = vunpack.c.l.b16 %v7082
    %v7225 = vunpack.c.h.b16 %v7082
    %v7226 = vunpack.c.l.b16 %v7083
    %v7227 = vunpack.c.h.b16 %v7083
    %v7228 = vunpack.c.l.b16 %v7084
    %v7229 = vunpack.c.h.b16 %v7084
    %v7230 = vunpack.c.l.b16 %v7085
    %v7231 = vunpack.c.h.b16 %v7085
    %v7232 = vunpack.c.l.b16 %v7086
    %v7233 = vunpack.c.h.b16 %v7086
    %v7234 = vunpack.c.l.b16 %v7087
    %v7235 = vunpack.c.h.b16 %v7087
    %v7236 = vunpack.c.l.b16 %v7088
    %v7237 = vunpack.c.h.b16 %v7088
    %v7238 = vunpack.c.l.b16 %v7089
    %v7239 = vunpack.c.h.b16 %v7089
    %v7240 = vunpack.c.l.b16 %v7090
    %v7241 = vunpack.c.h.b16 %v7090
    %v7242 = vunpack.c.l.b16 %v7091
    %v7243 = vunpack.c.h.b16 %v7091
    %v7244 = vunpack.c.l.b16 %v7092
    %v7245 = vunpack.c.h.b16 %v7092
    %v7246 = vunpack.c.l.b16 %v7093
    %v7247 = vunpack.c.h.b16 %v7093
    %v7248 = vunpack.c.l.b16 %v7094
    %v7249 = vunpack.c.h.b16 %v7094
    %v7250 = vunpack.c.l.b16 %v7095
    %v7251 = vunpack.c.h.b16 %v7095
    %v7252 = vunpack.c.l.b16 %v7096
    %v7253 = vunpack.c.h.b16 %v7096
    %v7254 = vunpack.c.l.b16 %v7097
    %v7255 = vunpack.c.h.b16 %v7097
    %v7256 = vunpack.c.l.b16 %v7098
    %v7257 = vunpack.c.h.b16 %v7098
    %v7258 = vunpack.c.l.b16 %v7099
    %v7259 = vunpack.c.h.b16 %v7099
    %v7260 = vunpack.c.l.b16 %v7100
    %v7261 = vunpack.c.h.b16 %v7100
    %v7262 = vunpack.c.l.b16 %v7101
    %v7263 = vunpack.c.h.b16 %v7101
    %v7264 = vunpack.c.l.b16 %v7102
    %v7265 = vunpack.c.h.b16 %v7102
    %v7266 = vunpack.c.l.b16 %v7103
    %v7267 = vunpack.c.h.b16 %v7103
    %v7268 = vunpack.c.l.b16 %v7104
    %v7269 = vunpack.c.h.b16 %v7104
    %v7270 = vunpack.c.l.b16 %v7105
    %v7271 = vunpack.c.h.b16 %v7105
    %v7272 = vunpack.c.l.b16 %v7106
    %v7273 = vunpack.c.h.b16 %v7106
    %v7274 = vunpack.c.l.b16 %v7107
    %v7275 = vunpack.c.h.b16 %v7107
    %v7276 = vunpack.c.l.b16 %v7108
    %v7277 = vunpack.c.h.b16 %v7108
    %v7278 = vunpack.c.l.b16 %v7109
    %v7279 = vunpack.c.h.b16 %v7109
    %v7280 = vunpack.c.l.b16 %v7110
    %v7281 = vunpack.c.h.b16 %v7110
    %v7282 = vunpack.c.l.b16 %v7111
    %v7283 = vunpack.c.h.b16 %v7111
    %v7284 = vunpack.c.l.b16 %v7112
    %v7285 = vunpack.c.h.b16 %v7112
    %v7286 = vunpack.c.l.b16 %v7113
    %v7287 = vunpack.c.h.b16 %v7113
    %v7288 = vunpack.c.l.b16 %v7114
    %v7289 = vunpack.c.h.b16 %v7114
    %v7290 = vunpack.c.l.b16 %v7115
    %v7291 = vunpack.c.h.b16 %v7115
    %v7292 = vunpack.c.l.b16 %v7116
    %v7293 = vunpack.c.h.b16 %v7116
    %v7294 = vunpack.c.l.b16 %v7117
    %v7295 = vunpack.c.h.b16 %v7117
    %v7296 = vunpack.c.l.b16 %v7118
    %v7297 = vunpack.c.h.b16 %v7118
    %v7298 = vunpack.c.l.b16 %v7119
    %v7299 = vunpack.c.h.b16 %v7119
    %v7300 = vunpack.c.l.b16 %v7120
    %v7301 = vunpack.c.h.b16 %v7120
    %v7302 = vunpack.c.l.b16 %v7121
    %v7303 = vunpack.c.h.b16 %v7121
    %v7304 = vunpack.c.l.b16 %v7122
    %v7305 = vunpack.c.h.b16 %v7122
    %v7306 = vunpack.c.l.b16 %v7123
    %v7307 = vunpack.c.h.b16 %v7123
    %v7308 = vunpack.c.l.b16 %v7124
    %v7309 = vunpack.c.h.b16 %v7124
    %v7310 = vunpack.c.l.b16 %v7125
    %v7311 = vunpack.c.h.b16 %v7125
    %v7312 = vunpack.c.l.b16 %v7126
    %v7313 = vunpack.c.h.b16 %v7126
    %v7314 = vunpack.c.l.b16 %v7127
    %v7315 = vunpack.c.h.b16 %v7127
    %v7316 = vunpack.c.l.b16 %v7128
    %v7317 = vunpack.c.h.b16 %v7128
    %v7318 = vunpack.c.l.b16 %v7129
    %v7319 = vunpack.c.h.b16 %v7129
    %v7320 = vunpack.c.l.b16 %v7130
    %v7321 = vunpack.c.h.b16 %v7130
    %v7322 = vunpack.c.l.b16 %v7131
    %v7323 = vunpack.c.h.b16 %v7131
    %v7324 = vunpack.c.l.b16 %v7132
    %v7325 = vunpack.c.h.b16 %v7132
    %v7326 = vunpack.c.l.b16 %v7133
    %v7327 = vunpack.c.h.b16 %v7133
    %v7328 = vunpack.c.l.b16 %v7134
    %v7329 = vunpack.c.h.b16 %v7134
    %v7330 = vpack.c.b16 %v7210, %v7202
    %v7331 = vpack.c.b16 %v7211, %v7203
    %v7332 = vpack.c.b16 %v7212, %v7204
    %v7333 = vpack.c.b16 %v7213, %v7205
    %v7334 = vpack.c.b16 %v7214, %v7206
    %v7335 = vpack.c.b16 %v7215, %v7207
    %v7336 = vpack.c.b16 %v7216, %v7208
    %v7337 = vpack.c.b16 %v7217, %v7209
    %v7338 = vpack.c.b16 %v7226, %v7218
    %v7339 = vpack.c.b16 %v7227, %v7219
    %v7340 = vpack.c.b16 %v7228, %v7220
    %v7341 = vpack.c.b16 %v7229, %v7221
    %v7342 = vpack.c.b16 %v7230, %v7222
    %v7343 = vpack.c.b16 %v7231, %v7223
    %v7344 = vpack.c.b16 %v7232, %v7224
    %v7345 = vpack.c.b16 %v7233, %v7225
    %v7346 = vpack.c.b16 %v7242, %v7234
    %v7347 = vpack.c.b16 %v7243, %v7235
    %v7348 = vpack.c.b16 %v7244, %v7236
    %v7349 = vpack.c.b16 %v7245, %v7237
    %v7350 = vpack.c.b16 %v7246, %v7238
    %v7351 = vpack.c.b16 %v7247, %v7239
    %v7352 = vpack.c.b16 %v7248, %v7240
    %v7353 = vpack.c.b16 %v7249, %v7241
    %v7354 = vpack.c.b16 %v7258, %v7250
    %v7355 = vpack.c.b16 %v7259, %v7251
    %v7356 = vpack.c.b16 %v7260, %v7252
    %v7357 = vpack.c.b16 %v7261, %v7253
    %v7358 = vpack.c.b16 %v7262, %v7254
    %v7359 = vpack.c.b16 %v7263, %v7255
    %v7360 = vpack.c.b16 %v7264, %v7256
    %v7361 = vpack.c.b16 %v7265, %v7257
    %v7362 = vpack.c.b16 %v7274, %v7266
    %v7363 = vpack.c.b16 %v7275, %v7267
    %v7364 = vpack.c.b16 %v7276, %v7268
    %v7365 = vpack.c.b16 %v7277, %v7269
    %v7366 = vpack.c.b16 %v7278, %v7270
    %v7367 = vpack.c.b16 %v7279, %v7271
    %v7368 = vpack.c.b16 %v7280, %v7272
    %v7369 = vpack.c.b16 %v7281, %v7273
    %v7370 = vpack.c.b16 %v7290, %v7282
    %v7371 = vpack.c.b16 %v7291, %v7283
    %v7372 = vpack.c.b16 %v7292, %v7284
    %v7373 = vpack.c.b16 %v7293, %v7285
    %v7374 = vpack.c.b16 %v7294, %v7286
    %v7375 = vpack.c.b16 %v7295, %v7287
    %v7376 = vpack.c.b16 %v7296, %v7288
    %v7377 = vpack.c.b16 %v7297, %v7289
    %v7378 = vpack.c.b16 %v7306, %v7298
    %v7379 = vpack.c.b16 %v7307, %v7299
    %v7380 = vpack.c.b16 %v7308, %v7300
    %v7381 = vpack.c.b16 %v7309, %v7301
    %v7382 = vpack.c.b16 %v7310, %v7302
    %v7383 = vpack.c.b16 %v7311, %v7303
    %v7384 = vpack.c.b16 %v7312, %v7304
    %v7385 = vpack.c.b16 %v7313, %v7305
    %v7386 = vpack.c.b16 %v7322, %v7314
    %v7387 = vpack.c.b16 %v7323, %v7315
    %v7388 = vpack.c.b16 %v7324, %v7316
    %v7389 = vpack.c.b16 %v7325, %v7317
    %v7390 = vpack.c.b16 %v7326, %v7318
    %v7391 = vpack.c.b16 %v7327, %v7319
    %v7392 = vpack.c.b16 %v7328, %v7320
    %v7393 = vpack.c.b16 %v7329, %v7321
    %7458 = vmatprep.subr.bf16.mxu0 %v7331
    %7459 = vmatpush1.bf16.msra.mxu0 %v7330
    %7460 = vmatprep.subr.bf16.mxu0 %v7339
    %7461 = vmatpush1.bf16.msra.mxu0 %v7338
    %7462 = vmatprep.subr.bf16.mxu0 %v7347
    %7463 = vmatpush1.bf16.msra.mxu0 %v7346
    %7464 = vmatprep.subr.bf16.mxu0 %v7355
    %7465 = vmatpush1.bf16.msra.mxu0 %v7354
    %7466 = vmatprep.subr.bf16.mxu0 %v7363
    %7467 = vmatpush1.bf16.msra.mxu0 %v7362
    %7468 = vmatprep.subr.bf16.mxu0 %v7371
    %7469 = vmatpush1.bf16.msra.mxu0 %v7370
    %7470 = vmatprep.subr.bf16.mxu0 %v7379
    %7471 = vmatpush1.bf16.msra.mxu0 %v7378
    %7472 = vmatprep.subr.bf16.mxu0 %v7387
    %7473 = vmatpush1.bf16.msra.mxu0 %v7386
    %7474 = vmatprep.subr.bf16.mxu0 0
    %7475 = vmatpush1.bf16.msra.mxu0 0
    %7476 = vmatprep.subr.bf16.mxu0 0
    %7477 = vmatpush1.bf16.msra.mxu0 0
    %7478 = vmatprep.subr.bf16.mxu0 0
    %7479 = vmatpush1.bf16.msra.mxu0 0
    %7480 = vmatprep.subr.bf16.mxu0 0
    %7481 = vmatpush1.bf16.msra.mxu0 0
    %7482 = vmatprep.subr.bf16.mxu0 0
    %7483 = vmatpush1.bf16.msra.mxu0 0
    %7484 = vmatprep.subr.bf16.mxu0 0
    %7485 = vmatpush1.bf16.msra.mxu0 0
    %7486 = vmatprep.subr.bf16.mxu0 0
    %7487 = vmatpush1.bf16.msra.mxu0 0
    %7488 = vmatprep.subr.bf16.mxu0 0
    %7489 = vmatpush1.bf16.msra.mxu0 0
    %7490 = vmatprep.mubr.bf16.mxu0 0
    %7491 = vmatmul.mubr.bf16.gmra.mrb[0].mxu0 %v7136
    %v7492 = vpop.f32.mrb[0].mxu0
    %v7493 = vadd.f32 0.0, %v7492
    %v7494 = vpop.f32.mrb[0].mxu0
    %v7495 = vadd.f32 0.0, %v7494
    %v7496 = vpop.f32.mrb[0].mxu0
    %v7497 = vpop.f32.mrb[0].mxu0
    %7498 = vdwg.mxu0
    %7499 = vmatprep.subr.bf16.mxu0 %v7333
    %7500 = vmatpush1.bf16.msra.mxu0 %v7332
    %7501 = vmatprep.subr.bf16.mxu0 %v7341
    %7502 = vmatpush1.bf16.msra.mxu0 %v7340
    %7503 = vmatprep.subr.bf16.mxu0 %v7349
    %7504 = vmatpush1.bf16.msra.mxu0 %v7348
    %7505 = vmatprep.subr.bf16.mxu0 %v7357
    %7506 = vmatpush1.bf16.msra.mxu0 %v7356
    %7507 = vmatprep.subr.bf16.mxu0 %v7365
    %7508 = vmatpush1.bf16.msra.mxu0 %v7364
    %7509 = vmatprep.subr.bf16.mxu0 %v7373
    %7510 = vmatpush1.bf16.msra.mxu0 %v7372
    %7511 = vmatprep.subr.bf16.mxu0 %v7381
    %7512 = vmatpush1.bf16.msra.mxu0 %v7380
    %7513 = vmatprep.subr.bf16.mxu0 %v7389
    %7514 = vmatpush1.bf16.msra.mxu0 %v7388
    %7515 = vmatprep.subr.bf16.mxu0 0
    %7516 = vmatpush1.bf16.msra.mxu0 0
    %7517 = vmatprep.subr.bf16.mxu0 0
    %7518 = vmatpush1.bf16.msra.mxu0 0
    %7519 = vmatprep.subr.bf16.mxu0 0
    %7520 = vmatpush1.bf16.msra.mxu0 0
    %7521 = vmatprep.subr.bf16.mxu0 0
    %7522 = vmatpush1.bf16.msra.mxu0 0
    %7523 = vmatprep.subr.bf16.mxu0 0
    %7524 = vmatpush1.bf16.msra.mxu0 0
    %7525 = vmatprep.subr.bf16.mxu0 0
    %7526 = vmatpush1.bf16.msra.mxu0 0
    %7527 = vmatprep.subr.bf16.mxu0 0
    %7528 = vmatpush1.bf16.msra.mxu0 0
    %7529 = vmatprep.subr.bf16.mxu0 0
    %7530 = vmatpush1.bf16.msra.mxu0 0
    %7531 = vmatprep.mubr.bf16.mxu0 0
    %7532 = vmatmul.mubr.bf16.gmra.mrb[0].mxu0 %v7136
    %v7533 = vpop.f32.mrb[0].mxu0
    %v7534 = vadd.f32 0.0, %v7533
    %v7535 = vpop.f32.mrb[0].mxu0
    %v7536 = vadd.f32 0.0, %v7535
    %v7537 = vpop.f32.mrb[0].mxu0
    %v7538 = vpop.f32.mrb[0].mxu0
    %7539 = vdwg.mxu0
    %7540 = vmatprep.subr.bf16.mxu0 %v7335
    %7541 = vmatpush1.bf16.msra.mxu0 %v7334
    %7542 = vmatprep.subr.bf16.mxu0 %v7343
    %7543 = vmatpush1.bf16.msra.mxu0 %v7342
    %7544 = vmatprep.subr.bf16.mxu0 %v7351
    %7545 = vmatpush1.bf16.msra.mxu0 %v7350
    %7546 = vmatprep.subr.bf16.mxu0 %v7359
    %7547 = vmatpush1.bf16.msra.mxu0 %v7358
    %7548 = vmatprep.subr.bf16.mxu0 %v7367
    %7549 = vmatpush1.bf16.msra.mxu0 %v7366
    %7550 = vmatprep.subr.bf16.mxu0 %v7375
    %7551 = vmatpush1.bf16.msra.mxu0 %v7374
    %7552 = vmatprep.subr.bf16.mxu0 %v7383
    %7553 = vmatpush1.bf16.msra.mxu0 %v7382
    %7554 = vmatprep.subr.bf16.mxu0 %v7391
    %7555 = vmatpush1.bf16.msra.mxu0 %v7390
    %7556 = vmatprep.subr.bf16.mxu0 0
    %7557 = vmatpush1.bf16.msra.mxu0 0
    %7558 = vmatprep.subr.bf16.mxu0 0
    %7559 = vmatpush1.bf16.msra.mxu0 0
    %7560 = vmatprep.subr.bf16.mxu0 0
    %7561 = vmatpush1.bf16.msra.mxu0 0
    %7562 = vmatprep.subr.bf16.mxu0 0
    %7563 = vmatpush1.bf16.msra.mxu0 0
    %7564 = vmatprep.subr.bf16.mxu0 0
    %7565 = vmatpush1.bf16.msra.mxu0 0
    %7566 = vmatprep.subr.bf16.mxu0 0
    %7567 = vmatpush1.bf16.msra.mxu0 0
    %7568 = vmatprep.subr.bf16.mxu0 0
    %7569 = vmatpush1.bf16.msra.mxu0 0
    %7570 = vmatprep.subr.bf16.mxu0 0
    %7571 = vmatpush1.bf16.msra.mxu0 0
    %7572 = vmatprep.mubr.bf16.mxu0 0
    %7573 = vmatmul.mubr.bf16.gmra.mrb[0].mxu0 %v7136
    %v7574 = vpop.f32.mrb[0].mxu0
    %v7575 = vadd.f32 0.0, %v7574
    %v7576 = vpop.f32.mrb[0].mxu0
    %v7577 = vadd.f32 0.0, %v7576
    %v7578 = vpop.f32.mrb[0].mxu0
    %v7579 = vpop.f32.mrb[0].mxu0
    %7580 = vdwg.mxu0
    %7581 = vmatprep.subr.bf16.mxu0 %v7337
    %7582 = vmatpush1.bf16.msra.mxu0 %v7336
    %7583 = vmatprep.subr.bf16.mxu0 %v7345
    %7584 = vmatpush1.bf16.msra.mxu0 %v7344
    %7585 = vmatprep.subr.bf16.mxu0 %v7353
    %7586 = vmatpush1.bf16.msra.mxu0 %v7352
    %7587 = vmatprep.subr.bf16.mxu0 %v7361
    %7588 = vmatpush1.bf16.msra.mxu0 %v7360
    %7589 = vmatprep.subr.bf16.mxu0 %v7369
    %7590 = vmatpush1.bf16.msra.mxu0 %v7368
    %7591 = vmatprep.subr.bf16.mxu0 %v7377
    %7592 = vmatpush1.bf16.msra.mxu0 %v7376
    %7593 = vmatprep.subr.bf16.mxu0 %v7385
    %7594 = vmatpush1.bf16.msra.mxu0 %v7384
    %7595 = vmatprep.subr.bf16.mxu0 %v7393
    %7596 = vmatpush1.bf16.msra.mxu0 %v7392
    %7597 = vmatprep.subr.bf16.mxu0 0
    %7598 = vmatpush1.bf16.msra.mxu0 0
    %7599 = vmatprep.subr.bf16.mxu0 0
    %7600 = vmatpush1.bf16.msra.mxu0 0
    %7601 = vmatprep.subr.bf16.mxu0 0
    %7602 = vmatpush1.bf16.msra.mxu0 0
    %7603 = vmatprep.subr.bf16.mxu0 0
    %7604 = vmatpush1.bf16.msra.mxu0 0
    %7605 = vmatprep.subr.bf16.mxu0 0
    %7606 = vmatpush1.bf16.msra.mxu0 0
    %7607 = vmatprep.subr.bf16.mxu0 0
    %7608 = vmatpush1.bf16.msra.mxu0 0
    %7609 = vmatprep.subr.bf16.mxu0 0
    %7610 = vmatpush1.bf16.msra.mxu0 0
    %7611 = vmatprep.subr.bf16.mxu0 0
    %7612 = vmatpush1.bf16.msra.mxu0 0
    %7613 = vmatprep.mubr.bf16.mxu0 0
    %7614 = vmatmul.mubr.bf16.gmra.mrb[0].mxu0 %v7136
    %v7615 = vpop.f32.mrb[0].mxu0
    %v7616 = vadd.f32 0.0, %v7615
    %v7617 = vpop.f32.mrb[0].mxu0
    %v7618 = vadd.f32 0.0, %v7617
    %v7619 = vpop.f32.mrb[0].mxu0
    %v7620 = vpop.f32.mrb[0].mxu0
    %7621 = vdwg.mxu0
    %v7622 = vadd.f32 %v7062, %v7493
    %v7623 = vadd.f32 %v7063, %v7495
    %v7624 = vadd.f32 %v7064, %v7534
    %v7625 = vadd.f32 %v7065, %v7536
    %v7626 = vadd.f32 %v7066, %v7575
    %v7627 = vadd.f32 %v7067, %v7577
    %v7628 = vadd.f32 %v7068, %v7616
    %v7629 = vadd.f32 %v7069, %v7618
    %s7630 = scalar_lea.vmem [#allocation10], 5120
    %v7631 = vld [vmem:[%s7630] sm:$0xff]
    %v7632 = vld [vmem:[%s7630 + $0x8] sm:$0xff]
    %v7633 = vld [vmem:[%s7630 + $0x10] sm:$0xff]
    %v7634 = vld [vmem:[%s7630 + $0x18] sm:$0xff]
    %v7635 = vld [vmem:[%s7630 + $0x20] sm:$0xff]
    %v7636 = vld [vmem:[%s7630 + $0x28] sm:$0xff]
    %v7637 = vld [vmem:[%s7630 + $0x30] sm:$0xff]
    %v7638 = vld [vmem:[%s7630 + $0x38] sm:$0xff]
    %v7639 = vld [vmem:[%s7630 + $0x40] sm:$0xff]
    %v7640 = vld [vmem:[%s7630 + $0x48] sm:$0xff]
    %v7641 = vld [vmem:[%s7630 + $0x50] sm:$0xff]
    %v7642 = vld [vmem:[%s7630 + $0x58] sm:$0xff]
    %v7643 = vld [vmem:[%s7630 + $0x60] sm:$0xff]
    %v7644 = vld [vmem:[%s7630 + $0x68] sm:$0xff]
    %v7645 = vld [vmem:[%s7630 + $0x70] sm:$0xff]
    %v7646 = vld [vmem:[%s7630 + $0x78] sm:$0xff]
    %v7647 = vld [vmem:[%s7630 + $0x80] sm:$0xff]
    %v7648 = vld [vmem:[%s7630 + $0x88] sm:$0xff]
    %v7649 = vld [vmem:[%s7630 + $0x90] sm:$0xff]
    %v7650 = vld [vmem:[%s7630 + $0x98] sm:$0xff]
    %v7651 = vld [vmem:[%s7630 + $0xa0] sm:$0xff]
    %v7652 = vld [vmem:[%s7630 + $0xa8] sm:$0xff]
    %v7653 = vld [vmem:[%s7630 + $0xb0] sm:$0xff]
    %v7654 = vld [vmem:[%s7630 + $0xb8] sm:$0xff]
    %v7655 = vld [vmem:[%s7630 + $0xc0] sm:$0xff]
    %v7656 = vld [vmem:[%s7630 + $0xc8] sm:$0xff]
    %v7657 = vld [vmem:[%s7630 + $0xd0] sm:$0xff]
    %v7658 = vld [vmem:[%s7630 + $0xd8] sm:$0xff]
    %v7659 = vld [vmem:[%s7630 + $0xe0] sm:$0xff]
    %v7660 = vld [vmem:[%s7630 + $0xe8] sm:$0xff]
    %v7661 = vld [vmem:[%s7630 + $0xf0] sm:$0xff]
    %v7662 = vld [vmem:[%s7630 + $0xf8] sm:$0xff]
    %v7663 = vld [vmem:[%s7630 + $0x100] sm:$0xff]
    %v7664 = vld [vmem:[%s7630 + $0x108] sm:$0xff]
    %v7665 = vld [vmem:[%s7630 + $0x110] sm:$0xff]
    %v7666 = vld [vmem:[%s7630 + $0x118] sm:$0xff]
    %v7667 = vld [vmem:[%s7630 + $0x120] sm:$0xff]
    %v7668 = vld [vmem:[%s7630 + $0x128] sm:$0xff]
    %v7669 = vld [vmem:[%s7630 + $0x130] sm:$0xff]
    %v7670 = vld [vmem:[%s7630 + $0x138] sm:$0xff]
    %v7671 = vld [vmem:[%s7630 + $0x140] sm:$0xff]
    %v7672 = vld [vmem:[%s7630 + $0x148] sm:$0xff]
    %v7673 = vld [vmem:[%s7630 + $0x150] sm:$0xff]
    %v7674 = vld [vmem:[%s7630 + $0x158] sm:$0xff]
    %v7675 = vld [vmem:[%s7630 + $0x160] sm:$0xff]
    %v7676 = vld [vmem:[%s7630 + $0x168] sm:$0xff]
    %v7677 = vld [vmem:[%s7630 + $0x170] sm:$0xff]
    %v7678 = vld [vmem:[%s7630 + $0x178] sm:$0xff]
    %v7679 = vld [vmem:[%s7630 + $0x180] sm:$0xff]
    %v7680 = vld [vmem:[%s7630 + $0x188] sm:$0xff]
    %v7681 = vld [vmem:[%s7630 + $0x190] sm:$0xff]
    %v7682 = vld [vmem:[%s7630 + $0x198] sm:$0xff]
    %v7683 = vld [vmem:[%s7630 + $0x1a0] sm:$0xff]
    %v7684 = vld [vmem:[%s7630 + $0x1a8] sm:$0xff]
    %v7685 = vld [vmem:[%s7630 + $0x1b0] sm:$0xff]
    %v7686 = vld [vmem:[%s7630 + $0x1b8] sm:$0xff]
    %v7687 = vld [vmem:[%s7630 + $0x1c0] sm:$0xff]
    %v7688 = vld [vmem:[%s7630 + $0x1c8] sm:$0xff]
    %v7689 = vld [vmem:[%s7630 + $0x1d0] sm:$0xff]
    %v7690 = vld [vmem:[%s7630 + $0x1d8] sm:$0xff]
    %v7691 = vld [vmem:[%s7630 + $0x1e0] sm:$0xff]
    %v7692 = vld [vmem:[%s7630 + $0x1e8] sm:$0xff]
    %v7693 = vld [vmem:[%s7630 + $0x1f0] sm:$0xff]
    %v7694 = vld [vmem:[%s7630 + $0x1f8] sm:$0xff]
    %v7695 = vrot.slane %v2058, 2
    %v7761 = vunpack.c.l.b16 %v7631
    %v7762 = vunpack.c.h.b16 %v7631
    %v7763 = vunpack.c.l.b16 %v7632
    %v7764 = vunpack.c.h.b16 %v7632
    %v7765 = vunpack.c.l.b16 %v7633
    %v7766 = vunpack.c.h.b16 %v7633
    %v7767 = vunpack.c.l.b16 %v7634
    %v7768 = vunpack.c.h.b16 %v7634
    %v7769 = vunpack.c.l.b16 %v7635
    %v7770 = vunpack.c.h.b16 %v7635
    %v7771 = vunpack.c.l.b16 %v7636
    %v7772 = vunpack.c.h.b16 %v7636
    %v7773 = vunpack.c.l.b16 %v7637
    %v7774 = vunpack.c.h.b16 %v7637
    %v7775 = vunpack.c.l.b16 %v7638
    %v7776 = vunpack.c.h.b16 %v7638
    %v7777 = vunpack.c.l.b16 %v7639
    %v7778 = vunpack.c.h.b16 %v7639
    %v7779 = vunpack.c.l.b16 %v7640
    %v7780 = vunpack.c.h.b16 %v7640
    %v7781 = vunpack.c.l.b16 %v7641
    %v7782 = vunpack.c.h.b16 %v7641
    %v7783 = vunpack.c.l.b16 %v7642
    %v7784 = vunpack.c.h.b16 %v7642
    %v7785 = vunpack.c.l.b16 %v7643
    %v7786 = vunpack.c.h.b16 %v7643
    %v7787 = vunpack.c.l.b16 %v7644
    %v7788 = vunpack.c.h.b16 %v7644
    %v7789 = vunpack.c.l.b16 %v7645
    %v7790 = vunpack.c.h.b16 %v7645
    %v7791 = vunpack.c.l.b16 %v7646
    %v7792 = vunpack.c.h.b16 %v7646
    %v7793 = vunpack.c.l.b16 %v7647
    %v7794 = vunpack.c.h.b16 %v7647
    %v7795 = vunpack.c.l.b16 %v7648
    %v7796 = vunpack.c.h.b16 %v7648
    %v7797 = vunpack.c.l.b16 %v7649
    %v7798 = vunpack.c.h.b16 %v7649
    %v7799 = vunpack.c.l.b16 %v7650
    %v7800 = vunpack.c.h.b16 %v7650
    %v7801 = vunpack.c.l.b16 %v7651
    %v7802 = vunpack.c.h.b16 %v7651
    %v7803 = vunpack.c.l.b16 %v7652
    %v7804 = vunpack.c.h.b16 %v7652
    %v7805 = vunpack.c.l.b16 %v7653
    %v7806 = vunpack.c.h.b16 %v7653
    %v7807 = vunpack.c.l.b16 %v7654
    %v7808 = vunpack.c.h.b16 %v7654
    %v7809 = vunpack.c.l.b16 %v7655
    %v7810 = vunpack.c.h.b16 %v7655
    %v7811 = vunpack.c.l.b16 %v7656
    %v7812 = vunpack.c.h.b16 %v7656
    %v7813 = vunpack.c.l.b16 %v7657
    %v7814 = vunpack.c.h.b16 %v7657
    %v7815 = vunpack.c.l.b16 %v7658
    %v7816 = vunpack.c.h.b16 %v7658
    %v7817 = vunpack.c.l.b16 %v7659
    %v7818 = vunpack.c.h.b16 %v7659
    %v7819 = vunpack.c.l.b16 %v7660
    %v7820 = vunpack.c.h.b16 %v7660
    %v7821 = vunpack.c.l.b16 %v7661
    %v7822 = vunpack.c.h.b16 %v7661
    %v7823 = vunpack.c.l.b16 %v7662
    %v7824 = vunpack.c.h.b16 %v7662
    %v7825 = vunpack.c.l.b16 %v7663
    %v7826 = vunpack.c.h.b16 %v7663
    %v7827 = vunpack.c.l.b16 %v7664
    %v7828 = vunpack.c.h.b16 %v7664
    %v7829 = vunpack.c.l.b16 %v7665
    %v7830 = vunpack.c.h.b16 %v7665
    %v7831 = vunpack.c.l.b16 %v7666
    %v7832 = vunpack.c.h.b16 %v7666
    %v7833 = vunpack.c.l.b16 %v7667
    %v7834 = vunpack.c.h.b16 %v7667
    %v7835 = vunpack.c.l.b16 %v7668
    %v7836 = vunpack.c.h.b16 %v7668
    %v7837 = vunpack.c.l.b16 %v7669
    %v7838 = vunpack.c.h.b16 %v7669
    %v7839 = vunpack.c.l.b16 %v7670
    %v7840 = vunpack.c.h.b16 %v7670
    %v7841 = vunpack.c.l.b16 %v7671
    %v7842 = vunpack.c.h.b16 %v7671
    %v7843 = vunpack.c.l.b16 %v7672
    %v7844 = vunpack.c.h.b16 %v7672
    %v7845 = vunpack.c.l.b16 %v7673
    %v7846 = vunpack.c.h.b16 %v7673
    %v7847 = vunpack.c.l.b16 %v7674
    %v7848 = vunpack.c.h.b16 %v7674
    %v7849 = vunpack.c.l.b16 %v7675
    %v7850 = vunpack.c.h.b16 %v7675
    %v7851 = vunpack.c.l.b16 %v7676
    %v7852 = vunpack.c.h.b16 %v7676
    %v7853 = vunpack.c.l.b16 %v7677
    %v7854 = vunpack.c.h.b16 %v7677
    %v7855 = vunpack.c.l.b16 %v7678
    %v7856 = vunpack.c.h.b16 %v7678
    %v7857 = vunpack.c.l.b16 %v7679
    %v7858 = vunpack.c.h.b16 %v7679
    %v7859 = vunpack.c.l.b16 %v7680
    %v7860 = vunpack.c.h.b16 %v7680
    %v7861 = vunpack.c.l.b16 %v7681
    %v7862 = vunpack.c.h.b16 %v7681
    %v7863 = vunpack.c.l.b16 %v7682
    %v7864 = vunpack.c.h.b16 %v7682
    %v7865 = vunpack.c.l.b16 %v7683
    %v7866 = vunpack.c.h.b16 %v7683
    %v7867 = vunpack.c.l.b16 %v7684
    %v7868 = vunpack.c.h.b16 %v7684
    %v7869 = vunpack.c.l.b16 %v7685
    %v7870 = vunpack.c.h.b16 %v7685
    %v7871 = vunpack.c.l.b16 %v7686
    %v7872 = vunpack.c.h.b16 %v7686
    %v7873 = vunpack.c.l.b16 %v7687
    %v7874 = vunpack.c.h.b16 %v7687
    %v7875 = vunpack.c.l.b16 %v7688
    %v7876 = vunpack.c.h.b16 %v7688
    %v7877 = vunpack.c.l.b16 %v7689
    %v7878 = vunpack.c.h.b16 %v7689
    %v7879 = vunpack.c.l.b16 %v7690
    %v7880 = vunpack.c.h.b16 %v7690
    %v7881 = vunpack.c.l.b16 %v7691
    %v7882 = vunpack.c.h.b16 %v7691
    %v7883 = vunpack.c.l.b16 %v7692
    %v7884 = vunpack.c.h.b16 %v7692
    %v7885 = vunpack.c.l.b16 %v7693
    %v7886 = vunpack.c.h.b16 %v7693
    %v7887 = vunpack.c.l.b16 %v7694
    %v7888 = vunpack.c.h.b16 %v7694
    %v7889 = vpack.c.b16 %v7769, %v7761
    %v7890 = vpack.c.b16 %v7770, %v7762
    %v7891 = vpack.c.b16 %v7771, %v7763
    %v7892 = vpack.c.b16 %v7772, %v7764
    %v7893 = vpack.c.b16 %v7773, %v7765
    %v7894 = vpack.c.b16 %v7774, %v7766
    %v7895 = vpack.c.b16 %v7775, %v7767
    %v7896 = vpack.c.b16 %v7776, %v7768
    %v7897 = vpack.c.b16 %v7785, %v7777
    %v7898 = vpack.c.b16 %v7786, %v7778
    %v7899 = vpack.c.b16 %v7787, %v7779
    %v7900 = vpack.c.b16 %v7788, %v7780
    %v7901 = vpack.c.b16 %v7789, %v7781
    %v7902 = vpack.c.b16 %v7790, %v7782
    %v7903 = vpack.c.b16 %v7791, %v7783
    %v7904 = vpack.c.b16 %v7792, %v7784
    %v7905 = vpack.c.b16 %v7801, %v7793
    %v7906 = vpack.c.b16 %v7802, %v7794
    %v7907 = vpack.c.b16 %v7803, %v7795
    %v7908 = vpack.c.b16 %v7804, %v7796
    %v7909 = vpack.c.b16 %v7805, %v7797
    %v7910 = vpack.c.b16 %v7806, %v7798
    %v7911 = vpack.c.b16 %v7807, %v7799
    %v7912 = vpack.c.b16 %v7808, %v7800
    %v7913 = vpack.c.b16 %v7817, %v7809
    %v7914 = vpack.c.b16 %v7818, %v7810
    %v7915 = vpack.c.b16 %v7819, %v7811
    %v7916 = vpack.c.b16 %v7820, %v7812
    %v7917 = vpack.c.b16 %v7821, %v7813
    %v7918 = vpack.c.b16 %v7822, %v7814
    %v7919 = vpack.c.b16 %v7823, %v7815
    %v7920 = vpack.c.b16 %v7824, %v7816
    %v7921 = vpack.c.b16 %v7833, %v7825
    %v7922 = vpack.c.b16 %v7834, %v7826
    %v7923 = vpack.c.b16 %v7835, %v7827
    %v7924 = vpack.c.b16 %v7836, %v7828
    %v7925 = vpack.c.b16 %v7837, %v7829
    %v7926 = vpack.c.b16 %v7838, %v7830
    %v7927 = vpack.c.b16 %v7839, %v7831
    %v7928 = vpack.c.b16 %v7840, %v7832
    %v7929 = vpack.c.b16 %v7849, %v7841
    %v7930 = vpack.c.b16 %v7850, %v7842
    %v7931 = vpack.c.b16 %v7851, %v7843
    %v7932 = vpack.c.b16 %v7852, %v7844
    %v7933 = vpack.c.b16 %v7853, %v7845
    %v7934 = vpack.c.b16 %v7854, %v7846
    %v7935 = vpack.c.b16 %v7855, %v7847
    %v7936 = vpack.c.b16 %v7856, %v7848
    %v7937 = vpack.c.b16 %v7865, %v7857
    %v7938 = vpack.c.b16 %v7866, %v7858
    %v7939 = vpack.c.b16 %v7867, %v7859
    %v7940 = vpack.c.b16 %v7868, %v7860
    %v7941 = vpack.c.b16 %v7869, %v7861
    %v7942 = vpack.c.b16 %v7870, %v7862
    %v7943 = vpack.c.b16 %v7871, %v7863
    %v7944 = vpack.c.b16 %v7872, %v7864
    %v7945 = vpack.c.b16 %v7881, %v7873
    %v7946 = vpack.c.b16 %v7882, %v7874
    %v7947 = vpack.c.b16 %v7883, %v7875
    %v7948 = vpack.c.b16 %v7884, %v7876
    %v7949 = vpack.c.b16 %v7885, %v7877
    %v7950 = vpack.c.b16 %v7886, %v7878
    %v7951 = vpack.c.b16 %v7887, %v7879
    %v7952 = vpack.c.b16 %v7888, %v7880
    %8017 = vmatprep.subr.bf16.mxu0 %v7890
    %8018 = vmatpush1.bf16.msra.mxu0 %v7889
    %8019 = vmatprep.subr.bf16.mxu0 %v7898
    %8020 = vmatpush1.bf16.msra.mxu0 %v7897
    %8021 = vmatprep.subr.bf16.mxu0 %v7906
    %8022 = vmatpush1.bf16.msra.mxu0 %v7905
    %8023 = vmatprep.subr.bf16.mxu0 %v7914
    %8024 = vmatpush1.bf16.msra.mxu0 %v7913
    %8025 = vmatprep.subr.bf16.mxu0 %v7922
    %8026 = vmatpush1.bf16.msra.mxu0 %v7921
    %8027 = vmatprep.subr.bf16.mxu0 %v7930
    %8028 = vmatpush1.bf16.msra.mxu0 %v7929
    %8029 = vmatprep.subr.bf16.mxu0 %v7938
    %8030 = vmatpush1.bf16.msra.mxu0 %v7937
    %8031 = vmatprep.subr.bf16.mxu0 %v7946
    %8032 = vmatpush1.bf16.msra.mxu0 %v7945
    %8033 = vmatprep.subr.bf16.mxu0 0
    %8034 = vmatpush1.bf16.msra.mxu0 0
    %8035 = vmatprep.subr.bf16.mxu0 0
    %8036 = vmatpush1.bf16.msra.mxu0 0
    %8037 = vmatprep.subr.bf16.mxu0 0
    %8038 = vmatpush1.bf16.msra.mxu0 0
    %8039 = vmatprep.subr.bf16.mxu0 0
    %8040 = vmatpush1.bf16.msra.mxu0 0
    %8041 = vmatprep.subr.bf16.mxu0 0
    %8042 = vmatpush1.bf16.msra.mxu0 0
    %8043 = vmatprep.subr.bf16.mxu0 0
    %8044 = vmatpush1.bf16.msra.mxu0 0
    %8045 = vmatprep.subr.bf16.mxu0 0
    %8046 = vmatpush1.bf16.msra.mxu0 0
    %8047 = vmatprep.subr.bf16.mxu0 0
    %8048 = vmatpush1.bf16.msra.mxu0 0
    %8049 = vmatprep.mubr.bf16.mxu0 0
    %8050 = vmatmul.mubr.bf16.gmra.mrb[0].mxu0 %v7695
    %v8051 = vpop.f32.mrb[0].mxu0
    %v8052 = vadd.f32 0.0, %v8051
    %v8053 = vpop.f32.mrb[0].mxu0
    %v8054 = vadd.f32 0.0, %v8053
    %v8055 = vpop.f32.mrb[0].mxu0
    %v8056 = vpop.f32.mrb[0].mxu0
    %8057 = vdwg.mxu0
    %8058 = vmatprep.subr.bf16.mxu0 %v7892
    %8059 = vmatpush1.bf16.msra.mxu0 %v7891
    %8060 = vmatprep.subr.bf16.mxu0 %v7900
    %8061 = vmatpush1.bf16.msra.mxu0 %v7899
    %8062 = vmatprep.subr.bf16.mxu0 %v7908
    %8063 = vmatpush1.bf16.msra.mxu0 %v7907
    %8064 = vmatprep.subr.bf16.mxu0 %v7916
    %8065 = vmatpush1.bf16.msra.mxu0 %v7915
    %8066 = vmatprep.subr.bf16.mxu0 %v7924
    %8067 = vmatpush1.bf16.msra.mxu0 %v7923
    %8068 = vmatprep.subr.bf16.mxu0 %v7932
    %8069 = vmatpush1.bf16.msra.mxu0 %v7931
    %8070 = vmatprep.subr.bf16.mxu0 %v7940
    %8071 = vmatpush1.bf16.msra.mxu0 %v7939
    %8072 = vmatprep.subr.bf16.mxu0 %v7948
    %8073 = vmatpush1.bf16.msra.mxu0 %v7947
    %8074 = vmatprep.subr.bf16.mxu0 0
    %8075 = vmatpush1.bf16.msra.mxu0 0
    %8076 = vmatprep.subr.bf16.mxu0 0
    %8077 = vmatpush1.bf16.msra.mxu0 0
    %8078 = vmatprep.subr.bf16.mxu0 0
    %8079 = vmatpush1.bf16.msra.mxu0 0
    %8080 = vmatprep.subr.bf16.mxu0 0
    %8081 = vmatpush1.bf16.msra.mxu0 0
    %8082 = vmatprep.subr.bf16.mxu0 0
    %8083 = vmatpush1.bf16.msra.mxu0 0
    %8084 = vmatprep.subr.bf16.mxu0 0
    %8085 = vmatpush1.bf16.msra.mxu0 0
    %8086 = vmatprep.subr.bf16.mxu0 0
    %8087 = vmatpush1.bf16.msra.mxu0 0
    %8088 = vmatprep.subr.bf16.mxu0 0
    %8089 = vmatpush1.bf16.msra.mxu0 0
    %8090 = vmatprep.mubr.bf16.mxu0 0
    %8091 = vmatmul.mubr.bf16.gmra.mrb[0].mxu0 %v7695
    %v8092 = vpop.f32.mrb[0].mxu0
    %v8093 = vadd.f32 0.0, %v8092
    %v8094 = vpop.f32.mrb[0].mxu0
    %v8095 = vadd.f32 0.0, %v8094
    %v8096 = vpop.f32.mrb[0].mxu0
    %v8097 = vpop.f32.mrb[0].mxu0
    %8098 = vdwg.mxu0
    %8099 = vmatprep.subr.bf16.mxu0 %v7894
    %8100 = vmatpush1.bf16.msra.mxu0 %v7893
    %8101 = vmatprep.subr.bf16.mxu0 %v7902
    %8102 = vmatpush1.bf16.msra.mxu0 %v7901
    %8103 = vmatprep.subr.bf16.mxu0 %v7910
    %8104 = vmatpush1.bf16.msra.mxu0 %v7909
    %8105 = vmatprep.subr.bf16.mxu0 %v7918
    %8106 = vmatpush1.bf16.msra.mxu0 %v7917
    %8107 = vmatprep.subr.bf16.mxu0 %v7926
    %8108 = vmatpush1.bf16.msra.mxu0 %v7925
    %8109 = vmatprep.subr.bf16.mxu0 %v7934
    %8110 = vmatpush1.bf16.msra.mxu0 %v7933
    %8111 = vmatprep.subr.bf16.mxu0 %v7942
    %8112 = vmatpush1.bf16.msra.mxu0 %v7941
    %8113 = vmatprep.subr.bf16.mxu0 %v7950
    %8114 = vmatpush1.bf16.msra.mxu0 %v7949
    %8115 = vmatprep.subr.bf16.mxu0 0
    %8116 = vmatpush1.bf16.msra.mxu0 0
    %8117 = vmatprep.subr.bf16.mxu0 0
    %8118 = vmatpush1.bf16.msra.mxu0 0
    %8119 = vmatprep.subr.bf16.mxu0 0
    %8120 = vmatpush1.bf16.msra.mxu0 0
    %8121 = vmatprep.subr.bf16.mxu0 0
    %8122 = vmatpush1.bf16.msra.mxu0 0
    %8123 = vmatprep.subr.bf16.mxu0 0
    %8124 = vmatpush1.bf16.msra.mxu0 0
    %8125 = vmatprep.subr.bf16.mxu0 0
    %8126 = vmatpush1.bf16.msra.mxu0 0
    %8127 = vmatprep.subr.bf16.mxu0 0
    %8128 = vmatpush1.bf16.msra.mxu0 0
    %8129 = vmatprep.subr.bf16.mxu0 0
    %8130 = vmatpush1.bf16.msra.mxu0 0
    %8131 = vmatprep.mubr.bf16.mxu0 0
    %8132 = vmatmul.mubr.bf16.gmra.mrb[0].mxu0 %v7695
    %v8133 = vpop.f32.mrb[0].mxu0
    %v8134 = vadd.f32 0.0, %v8133
    %v8135 = vpop.f32.mrb[0].mxu0
    %v8136 = vadd.f32 0.0, %v8135
    %v8137 = vpop.f32.mrb[0].mxu0
    %v8138 = vpop.f32.mrb[0].mxu0
    %8139 = vdwg.mxu0
    %8140 = vmatprep.subr.bf16.mxu0 %v7896
    %8141 = vmatpush1.bf16.msra.mxu0 %v7895
    %8142 = vmatprep.subr.bf16.mxu0 %v7904
    %8143 = vmatpush1.bf16.msra.mxu0 %v7903
    %8144 = vmatprep.subr.bf16.mxu0 %v7912
    %8145 = vmatpush1.bf16.msra.mxu0 %v7911
    %8146 = vmatprep.subr.bf16.mxu0 %v7920
    %8147 = vmatpush1.bf16.msra.mxu0 %v7919
    %8148 = vmatprep.subr.bf16.mxu0 %v7928
    %8149 = vmatpush1.bf16.msra.mxu0 %v7927
    %8150 = vmatprep.subr.bf16.mxu0 %v7936
    %8151 = vmatpush1.bf16.msra.mxu0 %v7935
    %8152 = vmatprep.subr.bf16.mxu0 %v7944
    %8153 = vmatpush1.bf16.msra.mxu0 %v7943
    %8154 = vmatprep.subr.bf16.mxu0 %v7952
    %8155 = vmatpush1.bf16.msra.mxu0 %v7951
    %8156 = vmatprep.subr.bf16.mxu0 0
    %8157 = vmatpush1.bf16.msra.mxu0 0
    %8158 = vmatprep.subr.bf16.mxu0 0
    %8159 = vmatpush1.bf16.msra.mxu0 0
    %8160 = vmatprep.subr.bf16.mxu0 0
    %8161 = vmatpush1.bf16.msra.mxu0 0
    %8162 = vmatprep.subr.bf16.mxu0 0
    %8163 = vmatpush1.bf16.msra.mxu0 0
    %8164 = vmatprep.subr.bf16.mxu0 0
    %8165 = vmatpush1.bf16.msra.mxu0 0
    %8166 = vmatprep.subr.bf16.mxu0 0
    %8167 = vmatpush1.bf16.msra.mxu0 0
    %8168 = vmatprep.subr.bf16.mxu0 0
    %8169 = vmatpush1.bf16.msra.mxu0 0
    %8170 = vmatprep.subr.bf16.mxu0 0
    %8171 = vmatpush1.bf16.msra.mxu0 0
    %8172 = vmatprep.mubr.bf16.mxu0 0
    %8173 = vmatmul.mubr.bf16.gmra.mrb[0].mxu0 %v7695
    %v8174 = vpop.f32.mrb[0].mxu0
    %v8175 = vadd.f32 0.0, %v8174
    %v8176 = vpop.f32.mrb[0].mxu0
    %v8177 = vadd.f32 0.0, %v8176
    %v8178 = vpop.f32.mrb[0].mxu0
    %v8179 = vpop.f32.mrb[0].mxu0
    %8180 = vdwg.mxu0
    %v8181 = vadd.f32 %v7622, %v8052
    %v8182 = vadd.f32 %v7623, %v8054
    %v8183 = vadd.f32 %v7624, %v8093
    %v8184 = vadd.f32 %v7625, %v8095
    %v8185 = vadd.f32 %v7626, %v8134
    %v8186 = vadd.f32 %v7627, %v8136
    %v8187 = vadd.f32 %v7628, %v8175
    %v8188 = vadd.f32 %v7629, %v8177
    %s8189 = scalar_lea.vmem [#allocation10], 5632
    %v8190 = vld [vmem:[%s8189] sm:$0xff]
    %v8191 = vld [vmem:[%s8189 + $0x8] sm:$0xff]
    %v8192 = vld [vmem:[%s8189 + $0x10] sm:$0xff]
    %v8193 = vld [vmem:[%s8189 + $0x18] sm:$0xff]
    %v8194 = vld [vmem:[%s8189 + $0x20] sm:$0xff]
    %v8195 = vld [vmem:[%s8189 + $0x28] sm:$0xff]
    %v8196 = vld [vmem:[%s8189 + $0x30] sm:$0xff]
    %v8197 = vld [vmem:[%s8189 + $0x38] sm:$0xff]
    %v8198 = vld [vmem:[%s8189 + $0x40] sm:$0xff]
    %v8199 = vld [vmem:[%s8189 + $0x48] sm:$0xff]
    %v8200 = vld [vmem:[%s8189 + $0x50] sm:$0xff]
    %v8201 = vld [vmem:[%s8189 + $0x58] sm:$0xff]
    %v8202 = vld [vmem:[%s8189 + $0x60] sm:$0xff]
    %v8203 = vld [vmem:[%s8189 + $0x68] sm:$0xff]
    %v8204 = vld [vmem:[%s8189 + $0x70] sm:$0xff]
    %v8205 = vld [vmem:[%s8189 + $0x78] sm:$0xff]
    %v8206 = vld [vmem:[%s8189 + $0x80] sm:$0xff]
    %v8207 = vld [vmem:[%s8189 + $0x88] sm:$0xff]
    %v8208 = vld [vmem:[%s8189 + $0x90] sm:$0xff]
    %v8209 = vld [vmem:[%s8189 + $0x98] sm:$0xff]
    %v8210 = vld [vmem:[%s8189 + $0xa0] sm:$0xff]
    %v8211 = vld [vmem:[%s8189 + $0xa8] sm:$0xff]
    %v8212 = vld [vmem:[%s8189 + $0xb0] sm:$0xff]
    %v8213 = vld [vmem:[%s8189 + $0xb8] sm:$0xff]
    %v8214 = vld [vmem:[%s8189 + $0xc0] sm:$0xff]
    %v8215 = vld [vmem:[%s8189 + $0xc8] sm:$0xff]
    %v8216 = vld [vmem:[%s8189 + $0xd0] sm:$0xff]
    %v8217 = vld [vmem:[%s8189 + $0xd8] sm:$0xff]
    %v8218 = vld [vmem:[%s8189 + $0xe0] sm:$0xff]
    %v8219 = vld [vmem:[%s8189 + $0xe8] sm:$0xff]
    %v8220 = vld [vmem:[%s8189 + $0xf0] sm:$0xff]
    %v8221 = vld [vmem:[%s8189 + $0xf8] sm:$0xff]
    %v8222 = vld [vmem:[%s8189 + $0x100] sm:$0xff]
    %v8223 = vld [vmem:[%s8189 + $0x108] sm:$0xff]
    %v8224 = vld [vmem:[%s8189 + $0x110] sm:$0xff]
    %v8225 = vld [vmem:[%s8189 + $0x118] sm:$0xff]
    %v8226 = vld [vmem:[%s8189 + $0x120] sm:$0xff]
    %v8227 = vld [vmem:[%s8189 + $0x128] sm:$0xff]
    %v8228 = vld [vmem:[%s8189 + $0x130] sm:$0xff]
    %v8229 = vld [vmem:[%s8189 + $0x138] sm:$0xff]
    %v8230 = vld [vmem:[%s8189 + $0x140] sm:$0xff]
    %v8231 = vld [vmem:[%s8189 + $0x148] sm:$0xff]
    %v8232 = vld [vmem:[%s8189 + $0x150] sm:$0xff]
    %v8233 = vld [vmem:[%s8189 + $0x158] sm:$0xff]
    %v8234 = vld [vmem:[%s8189 + $0x160] sm:$0xff]
    %v8235 = vld [vmem:[%s8189 + $0x168] sm:$0xff]
    %v8236 = vld [vmem:[%s8189 + $0x170] sm:$0xff]
    %v8237 = vld [vmem:[%s8189 + $0x178] sm:$0xff]
    %v8238 = vld [vmem:[%s8189 + $0x180] sm:$0xff]
    %v8239 = vld [vmem:[%s8189 + $0x188] sm:$0xff]
    %v8240 = vld [vmem:[%s8189 + $0x190] sm:$0xff]
    %v8241 = vld [vmem:[%s8189 + $0x198] sm:$0xff]
    %v8242 = vld [vmem:[%s8189 + $0x1a0] sm:$0xff]
    %v8243 = vld [vmem:[%s8189 + $0x1a8] sm:$0xff]
    %v8244 = vld [vmem:[%s8189 + $0x1b0] sm:$0xff]
    %v8245 = vld [vmem:[%s8189 + $0x1b8] sm:$0xff]
    %v8246 = vld [vmem:[%s8189 + $0x1c0] sm:$0xff]
    %v8247 = vld [vmem:[%s8189 + $0x1c8] sm:$0xff]
    %v8248 = vld [vmem:[%s8189 + $0x1d0] sm:$0xff]
    %v8249 = vld [vmem:[%s8189 + $0x1d8] sm:$0xff]
    %v8250 = vld [vmem:[%s8189 + $0x1e0] sm:$0xff]
    %v8251 = vld [vmem:[%s8189 + $0x1e8] sm:$0xff]
    %v8252 = vld [vmem:[%s8189 + $0x1f0] sm:$0xff]
    %v8253 = vld [vmem:[%s8189 + $0x1f8] sm:$0xff]
    %v8254 = vrot.slane %v2058, 3
    %v8320 = vunpack.c.l.b16 %v8190
    %v8321 = vunpack.c.h.b16 %v8190
    %v8322 = vunpack.c.l.b16 %v8191
    %v8323 = vunpack.c.h.b16 %v8191
    %v8324 = vunpack.c.l.b16 %v8192
    %v8325 = vunpack.c.h.b16 %v8192
    %v8326 = vunpack.c.l.b16 %v8193
    %v8327 = vunpack.c.h.b16 %v8193
    %v8328 = vunpack.c.l.b16 %v8194
    %v8329 = vunpack.c.h.b16 %v8194
    %v8330 = vunpack.c.l.b16 %v8195
    %v8331 = vunpack.c.h.b16 %v8195
    %v8332 = vunpack.c.l.b16 %v8196
    %v8333 = vunpack.c.h.b16 %v8196
    %v8334 = vunpack.c.l.b16 %v8197
    %v8335 = vunpack.c.h.b16 %v8197
    %v8336 = vunpack.c.l.b16 %v8198
    %v8337 = vunpack.c.h.b16 %v8198
    %v8338 = vunpack.c.l.b16 %v8199
    %v8339 = vunpack.c.h.b16 %v8199
    %v8340 = vunpack.c.l.b16 %v8200
    %v8341 = vunpack.c.h.b16 %v8200
    %v8342 = vunpack.c.l.b16 %v8201
    %v8343 = vunpack.c.h.b16 %v8201
    %v8344 = vunpack.c.l.b16 %v8202
    %v8345 = vunpack.c.h.b16 %v8202
    %v8346 = vunpack.c.l.b16 %v8203
    %v8347 = vunpack.c.h.b16 %v8203
    %v8348 = vunpack.c.l.b16 %v8204
    %v8349 = vunpack.c.h.b16 %v8204
    %v8350 = vunpack.c.l.b16 %v8205
    %v8351 = vunpack.c.h.b16 %v8205
    %v8352 = vunpack.c.l.b16 %v8206
    %v8353 = vunpack.c.h.b16 %v8206
    %v8354 = vunpack.c.l.b16 %v8207
    %v8355 = vunpack.c.h.b16 %v8207
    %v8356 = vunpack.c.l.b16 %v8208
    %v8357 = vunpack.c.h.b16 %v8208
    %v8358 = vunpack.c.l.b16 %v8209
    %v8359 = vunpack.c.h.b16 %v8209
    %v8360 = vunpack.c.l.b16 %v8210
    %v8361 = vunpack.c.h.b16 %v8210
    %v8362 = vunpack.c.l.b16 %v8211
    %v8363 = vunpack.c.h.b16 %v8211
    %v8364 = vunpack.c.l.b16 %v8212
    %v8365 = vunpack.c.h.b16 %v8212
    %v8366 = vunpack.c.l.b16 %v8213
    %v8367 = vunpack.c.h.b16 %v8213
    %v8368 = vunpack.c.l.b16 %v8214
    %v8369 = vunpack.c.h.b16 %v8214
    %v8370 = vunpack.c.l.b16 %v8215
    %v8371 = vunpack.c.h.b16 %v8215
    %v8372 = vunpack.c.l.b16 %v8216
    %v8373 = vunpack.c.h.b16 %v8216
    %v8374 = vunpack.c.l.b16 %v8217
    %v8375 = vunpack.c.h.b16 %v8217
    %v8376 = vunpack.c.l.b16 %v8218
    %v8377 = vunpack.c.h.b16 %v8218
    %v8378 = vunpack.c.l.b16 %v8219
    %v8379 = vunpack.c.h.b16 %v8219
    %v8380 = vunpack.c.l.b16 %v8220
    %v8381 = vunpack.c.h.b16 %v8220
    %v8382 = vunpack.c.l.b16 %v8221
    %v8383 = vunpack.c.h.b16 %v8221
    %v8384 = vunpack.c.l.b16 %v8222
    %v8385 = vunpack.c.h.b16 %v8222
    %v8386 = vunpack.c.l.b16 %v8223
    %v8387 = vunpack.c.h.b16 %v8223
    %v8388 = vunpack.c.l.b16 %v8224
    %v8389 = vunpack.c.h.b16 %v8224
    %v8390 = vunpack.c.l.b16 %v8225
    %v8391 = vunpack.c.h.b16 %v8225
    %v8392 = vunpack.c.l.b16 %v8226
    %v8393 = vunpack.c.h.b16 %v8226
    %v8394 = vunpack.c.l.b16 %v8227
    %v8395 = vunpack.c.h.b16 %v8227
    %v8396 = vunpack.c.l.b16 %v8228
    %v8397 = vunpack.c.h.b16 %v8228
    %v8398 = vunpack.c.l.b16 %v8229
    %v8399 = vunpack.c.h.b16 %v8229
    %v8400 = vunpack.c.l.b16 %v8230
    %v8401 = vunpack.c.h.b16 %v8230
    %v8402 = vunpack.c.l.b16 %v8231
    %v8403 = vunpack.c.h.b16 %v8231
    %v8404 = vunpack.c.l.b16 %v8232
    %v8405 = vunpack.c.h.b16 %v8232
    %v8406 = vunpack.c.l.b16 %v8233
    %v8407 = vunpack.c.h.b16 %v8233
    %v8408 = vunpack.c.l.b16 %v8234
    %v8409 = vunpack.c.h.b16 %v8234
    %v8410 = vunpack.c.l.b16 %v8235
    %v8411 = vunpack.c.h.b16 %v8235
    %v8412 = vunpack.c.l.b16 %v8236
    %v8413 = vunpack.c.h.b16 %v8236
    %v8414 = vunpack.c.l.b16 %v8237
    %v8415 = vunpack.c.h.b16 %v8237
    %v8416 = vunpack.c.l.b16 %v8238
    %v8417 = vunpack.c.h.b16 %v8238
    %v8418 = vunpack.c.l.b16 %v8239
    %v8419 = vunpack.c.h.b16 %v8239
    %v8420 = vunpack.c.l.b16 %v8240
    %v8421 = vunpack.c.h.b16 %v8240
    %v8422 = vunpack.c.l.b16 %v8241
    %v8423 = vunpack.c.h.b16 %v8241
    %v8424 = vunpack.c.l.b16 %v8242
    %v8425 = vunpack.c.h.b16 %v8242
    %v8426 = vunpack.c.l.b16 %v8243
    %v8427 = vunpack.c.h.b16 %v8243
    %v8428 = vunpack.c.l.b16 %v8244
    %v8429 = vunpack.c.h.b16 %v8244
    %v8430 = vunpack.c.l.b16 %v8245
    %v8431 = vunpack.c.h.b16 %v8245
    %v8432 = vunpack.c.l.b16 %v8246
    %v8433 = vunpack.c.h.b16 %v8246
    %v8434 = vunpack.c.l.b16 %v8247
    %v8435 = vunpack.c.h.b16 %v8247
    %v8436 = vunpack.c.l.b16 %v8248
    %v8437 = vunpack.c.h.b16 %v8248
    %v8438 = vunpack.c.l.b16 %v8249
    %v8439 = vunpack.c.h.b16 %v8249
    %v8440 = vunpack.c.l.b16 %v8250
    %v8441 = vunpack.c.h.b16 %v8250
    %v8442 = vunpack.c.l.b16 %v8251
    %v8443 = vunpack.c.h.b16 %v8251
    %v8444 = vunpack.c.l.b16 %v8252
    %v8445 = vunpack.c.h.b16 %v8252
    %v8446 = vunpack.c.l.b16 %v8253
    %v8447 = vunpack.c.h.b16 %v8253
    %v8448 = vpack.c.b16 %v8328, %v8320
    %v8449 = vpack.c.b16 %v8329, %v8321
    %v8450 = vpack.c.b16 %v8330, %v8322
    %v8451 = vpack.c.b16 %v8331, %v8323
    %v8452 = vpack.c.b16 %v8332, %v8324
    %v8453 = vpack.c.b16 %v8333, %v8325
    %v8454 = vpack.c.b16 %v8334, %v8326
    %v8455 = vpack.c.b16 %v8335, %v8327
    %v8456 = vpack.c.b16 %v8344, %v8336
    %v8457 = vpack.c.b16 %v8345, %v8337
    %v8458 = vpack.c.b16 %v8346, %v8338
    %v8459 = vpack.c.b16 %v8347, %v8339
    %v8460 = vpack.c.b16 %v8348, %v8340
    %v8461 = vpack.c.b16 %v8349, %v8341
    %v8462 = vpack.c.b16 %v8350, %v8342
    %v8463 = vpack.c.b16 %v8351, %v8343
    %v8464 = vpack.c.b16 %v8360, %v8352
    %v8465 = vpack.c.b16 %v8361, %v8353
    %v8466 = vpack.c.b16 %v8362, %v8354
    %v8467 = vpack.c.b16 %v8363, %v8355
    %v8468 = vpack.c.b16 %v8364, %v8356
    %v8469 = vpack.c.b16 %v8365, %v8357
    %v8470 = vpack.c.b16 %v8366, %v8358
    %v8471 = vpack.c.b16 %v8367, %v8359
    %v8472 = vpack.c.b16 %v8376, %v8368
    %v8473 = vpack.c.b16 %v8377, %v8369
    %v8474 = vpack.c.b16 %v8378, %v8370
    %v8475 = vpack.c.b16 %v8379, %v8371
    %v8476 = vpack.c.b16 %v8380, %v8372
    %v8477 = vpack.c.b16 %v8381, %v8373
    %v8478 = vpack.c.b16 %v8382, %v8374
    %v8479 = vpack.c.b16 %v8383, %v8375
    %v8480 = vpack.c.b16 %v8392, %v8384
    %v8481 = vpack.c.b16 %v8393, %v8385
    %v8482 = vpack.c.b16 %v8394, %v8386
    %v8483 = vpack.c.b16 %v8395, %v8387
    %v8484 = vpack.c.b16 %v8396, %v8388
    %v8485 = vpack.c.b16 %v8397, %v8389
    %v8486 = vpack.c.b16 %v8398, %v8390
    %v8487 = vpack.c.b16 %v8399, %v8391
    %v8488 = vpack.c.b16 %v8408, %v8400
    %v8489 = vpack.c.b16 %v8409, %v8401
    %v8490 = vpack.c.b16 %v8410, %v8402
    %v8491 = vpack.c.b16 %v8411, %v8403
    %v8492 = vpack.c.b16 %v8412, %v8404
    %v8493 = vpack.c.b16 %v8413, %v8405
    %v8494 = vpack.c.b16 %v8414, %v8406
    %v8495 = vpack.c.b16 %v8415, %v8407
    %v8496 = vpack.c.b16 %v8424, %v8416
    %v8497 = vpack.c.b16 %v8425, %v8417
    %v8498 = vpack.c.b16 %v8426, %v8418
    %v8499 = vpack.c.b16 %v8427, %v8419
    %v8500 = vpack.c.b16 %v8428, %v8420
    %v8501 = vpack.c.b16 %v8429, %v8421
    %v8502 = vpack.c.b16 %v8430, %v8422
    %v8503 = vpack.c.b16 %v8431, %v8423
    %v8504 = vpack.c.b16 %v8440, %v8432
    %v8505 = vpack.c.b16 %v8441, %v8433
    %v8506 = vpack.c.b16 %v8442, %v8434
    %v8507 = vpack.c.b16 %v8443, %v8435
    %v8508 = vpack.c.b16 %v8444, %v8436
    %v8509 = vpack.c.b16 %v8445, %v8437
    %v8510 = vpack.c.b16 %v8446, %v8438
    %v8511 = vpack.c.b16 %v8447, %v8439
    %8576 = vmatprep.subr.bf16.mxu0 %v8449
    %8577 = vmatpush1.bf16.msra.mxu0 %v8448
    %8578 = vmatprep.subr.bf16.mxu0 %v8457
    %8579 = vmatpush1.bf16.msra.mxu0 %v8456
    %8580 = vmatprep.subr.bf16.mxu0 %v8465
    %8581 = vmatpush1.bf16.msra.mxu0 %v8464
    %8582 = vmatprep.subr.bf16.mxu0 %v8473
    %8583 = vmatpush1.bf16.msra.mxu0 %v8472
    %8584 = vmatprep.subr.bf16.mxu0 %v8481
    %8585 = vmatpush1.bf16.msra.mxu0 %v8480
    %8586 = vmatprep.subr.bf16.mxu0 %v8489
    %8587 = vmatpush1.bf16.msra.mxu0 %v8488
    %8588 = vmatprep.subr.bf16.mxu0 %v8497
    %8589 = vmatpush1.bf16.msra.mxu0 %v8496
    %8590 = vmatprep.subr.bf16.mxu0 %v8505
    %8591 = vmatpush1.bf16.msra.mxu0 %v8504
    %8592 = vmatprep.subr.bf16.mxu0 0
    %8593 = vmatpush1.bf16.msra.mxu0 0
    %8594 = vmatprep.subr.bf16.mxu0 0
    %8595 = vmatpush1.bf16.msra.mxu0 0
    %8596 = vmatprep.subr.bf16.mxu0 0
    %8597 = vmatpush1.bf16.msra.mxu0 0
    %8598 = vmatprep.subr.bf16.mxu0 0
    %8599 = vmatpush1.bf16.msra.mxu0 0
    %8600 = vmatprep.subr.bf16.mxu0 0
    %8601 = vmatpush1.bf16.msra.mxu0 0
    %8602 = vmatprep.subr.bf16.mxu0 0
    %8603 = vmatpush1.bf16.msra.mxu0 0
    %8604 = vmatprep.subr.bf16.mxu0 0
    %8605 = vmatpush1.bf16.msra.mxu0 0
    %8606 = vmatprep.subr.bf16.mxu0 0
    %8607 = vmatpush1.bf16.msra.mxu0 0
    %8608 = vmatprep.mubr.bf16.mxu0 0
    %8609 = vmatmul.mubr.bf16.gmra.mrb[0].mxu0 %v8254
    %v8610 = vpop.f32.mrb[0].mxu0
    %v8611 = vadd.f32 0.0, %v8610
    %v8612 = vpop.f32.mrb[0].mxu0
    %v8613 = vadd.f32 0.0, %v8612
    %v8614 = vpop.f32.mrb[0].mxu0
    %v8615 = vpop.f32.mrb[0].mxu0
    %8616 = vdwg.mxu0
    %8617 = vmatprep.subr.bf16.mxu0 %v8451
    %8618 = vmatpush1.bf16.msra.mxu0 %v8450
    %8619 = vmatprep.subr.bf16.mxu0 %v8459
    %8620 = vmatpush1.bf16.msra.mxu0 %v8458
    %8621 = vmatprep.subr.bf16.mxu0 %v8467
    %8622 = vmatpush1.bf16.msra.mxu0 %v8466
    %8623 = vmatprep.subr.bf16.mxu0 %v8475
    %8624 = vmatpush1.bf16.msra.mxu0 %v8474
    %8625 = vmatprep.subr.bf16.mxu0 %v8483
    %8626 = vmatpush1.bf16.msra.mxu0 %v8482
    %8627 = vmatprep.subr.bf16.mxu0 %v8491
    %8628 = vmatpush1.bf16.msra.mxu0 %v8490
    %8629 = vmatprep.subr.bf16.mxu0 %v8499
    %8630 = vmatpush1.bf16.msra.mxu0 %v8498
    %8631 = vmatprep.subr.bf16.mxu0 %v8507
    %8632 = vmatpush1.bf16.msra.mxu0 %v8506
    %8633 = vmatprep.subr.bf16.mxu0 0
    %8634 = vmatpush1.bf16.msra.mxu0 0
    %8635 = vmatprep.subr.bf16.mxu0 0
    %8636 = vmatpush1.bf16.msra.mxu0 0
    %8637 = vmatprep.subr.bf16.mxu0 0
    %8638 = vmatpush1.bf16.msra.mxu0 0
    %8639 = vmatprep.subr.bf16.mxu0 0
    %8640 = vmatpush1.bf16.msra.mxu0 0
    %8641 = vmatprep.subr.bf16.mxu0 0
    %8642 = vmatpush1.bf16.msra.mxu0 0
    %8643 = vmatprep.subr.bf16.mxu0 0
    %8644 = vmatpush1.bf16.msra.mxu0 0
    %8645 = vmatprep.subr.bf16.mxu0 0
    %8646 = vmatpush1.bf16.msra.mxu0 0
    %8647 = vmatprep.subr.bf16.mxu0 0
    %8648 = vmatpush1.bf16.msra.mxu0 0
    %8649 = vmatprep.mubr.bf16.mxu0 0
    %8650 = vmatmul.mubr.bf16.gmra.mrb[0].mxu0 %v8254
    %v8651 = vpop.f32.mrb[0].mxu0
    %v8652 = vadd.f32 0.0, %v8651
    %v8653 = vpop.f32.mrb[0].mxu0
    %v8654 = vadd.f32 0.0, %v8653
    %v8655 = vpop.f32.mrb[0].mxu0
    %v8656 = vpop.f32.mrb[0].mxu0
    %8657 = vdwg.mxu0
    %8658 = vmatprep.subr.bf16.mxu0 %v8453
    %8659 = vmatpush1.bf16.msra.mxu0 %v8452
    %8660 = vmatprep.subr.bf16.mxu0 %v8461
    %8661 = vmatpush1.bf16.msra.mxu0 %v8460
    %8662 = vmatprep.subr.bf16.mxu0 %v8469
    %8663 = vmatpush1.bf16.msra.mxu0 %v8468
    %8664 = vmatprep.subr.bf16.mxu0 %v8477
    %8665 = vmatpush1.bf16.msra.mxu0 %v8476
    %8666 = vmatprep.subr.bf16.mxu0 %v8485
    %8667 = vmatpush1.bf16.msra.mxu0 %v8484
    %8668 = vmatprep.subr.bf16.mxu0 %v8493
    %8669 = vmatpush1.bf16.msra.mxu0 %v8492
    %8670 = vmatprep.subr.bf16.mxu0 %v8501
    %8671 = vmatpush1.bf16.msra.mxu0 %v8500
    %8672 = vmatprep.subr.bf16.mxu0 %v8509
    %8673 = vmatpush1.bf16.msra.mxu0 %v8508
    %8674 = vmatprep.subr.bf16.mxu0 0
    %8675 = vmatpush1.bf16.msra.mxu0 0
    %8676 = vmatprep.subr.bf16.mxu0 0
    %8677 = vmatpush1.bf16.msra.mxu0 0
    %8678 = vmatprep.subr.bf16.mxu0 0
    %8679 = vmatpush1.bf16.msra.mxu0 0
    %8680 = vmatprep.subr.bf16.mxu0 0
    %8681 = vmatpush1.bf16.msra.mxu0 0
    %8682 = vmatprep.subr.bf16.mxu0 0
    %8683 = vmatpush1.bf16.msra.mxu0 0
    %8684 = vmatprep.subr.bf16.mxu0 0
    %8685 = vmatpush1.bf16.msra.mxu0 0
    %8686 = vmatprep.subr.bf16.mxu0 0
    %8687 = vmatpush1.bf16.msra.mxu0 0
    %8688 = vmatprep.subr.bf16.mxu0 0
    %8689 = vmatpush1.bf16.msra.mxu0 0
    %8690 = vmatprep.mubr.bf16.mxu0 0
    %8691 = vmatmul.mubr.bf16.gmra.mrb[0].mxu0 %v8254
    %v8692 = vpop.f32.mrb[0].mxu0
    %v8693 = vadd.f32 0.0, %v8692
    %v8694 = vpop.f32.mrb[0].mxu0
    %v8695 = vadd.f32 0.0, %v8694
    %v8696 = vpop.f32.mrb[0].mxu0
    %v8697 = vpop.f32.mrb[0].mxu0
    %8698 = vdwg.mxu0
    %8699 = vmatprep.subr.bf16.mxu0 %v8455
    %8700 = vmatpush1.bf16.msra.mxu0 %v8454
    %8701 = vmatprep.subr.bf16.mxu0 %v8463
    %8702 = vmatpush1.bf16.msra.mxu0 %v8462
    %8703 = vmatprep.subr.bf16.mxu0 %v8471
    %8704 = vmatpush1.bf16.msra.mxu0 %v8470
    %8705 = vmatprep.subr.bf16.mxu0 %v8479
    %8706 = vmatpush1.bf16.msra.mxu0 %v8478
    %8707 = vmatprep.subr.bf16.mxu0 %v8487
    %8708 = vmatpush1.bf16.msra.mxu0 %v8486
    %8709 = vmatprep.subr.bf16.mxu0 %v8495
    %8710 = vmatpush1.bf16.msra.mxu0 %v8494
    %8711 = vmatprep.subr.bf16.mxu0 %v8503
    %8712 = vmatpush1.bf16.msra.mxu0 %v8502
    %8713 = vmatprep.subr.bf16.mxu0 %v8511
    %8714 = vmatpush1.bf16.msra.mxu0 %v8510
    %8715 = vmatprep.subr.bf16.mxu0 0
    %8716 = vmatpush1.bf16.msra.mxu0 0
    %8717 = vmatprep.subr.bf16.mxu0 0
    %8718 = vmatpush1.bf16.msra.mxu0 0
    %8719 = vmatprep.subr.bf16.mxu0 0
    %8720 = vmatpush1.bf16.msra.mxu0 0
    %8721 = vmatprep.subr.bf16.mxu0 0
    %8722 = vmatpush1.bf16.msra.mxu0 0
    %8723 = vmatprep.subr.bf16.mxu0 0
    %8724 = vmatpush1.bf16.msra.mxu0 0
    %8725 = vmatprep.subr.bf16.mxu0 0
    %8726 = vmatpush1.bf16.msra.mxu0 0
    %8727 = vmatprep.subr.bf16.mxu0 0
    %8728 = vmatpush1.bf16.msra.mxu0 0
    %8729 = vmatprep.subr.bf16.mxu0 0
    %8730 = vmatpush1.bf16.msra.mxu0 0
    %8731 = vmatprep.mubr.bf16.mxu0 0
    %8732 = vmatmul.mubr.bf16.gmra.mrb[0].mxu0 %v8254
    %v8733 = vpop.f32.mrb[0].mxu0
    %v8734 = vadd.f32 0.0, %v8733
    %v8735 = vpop.f32.mrb[0].mxu0
    %v8736 = vadd.f32 0.0, %v8735
    %v8737 = vpop.f32.mrb[0].mxu0
    %v8738 = vpop.f32.mrb[0].mxu0
    %8739 = vdwg.mxu0
    %v8740 = vadd.f32 %v8181, %v8611
    %v8741 = vadd.f32 %v8182, %v8613
    %v8742 = vadd.f32 %v8183, %v8652
    %v8743 = vadd.f32 %v8184, %v8654
    %v8744 = vadd.f32 %v8185, %v8693
    %v8745 = vadd.f32 %v8186, %v8695
    %v8746 = vadd.f32 %v8187, %v8734
    %v8747 = vadd.f32 %v8188, %v8736
    %s8748 = scalar_lea.vmem [#allocation10], 6144
    %v8749 = vld [vmem:[%s8748] sm:$0xff]
    %v8750 = vld [vmem:[%s8748 + $0x8] sm:$0xff]
    %v8751 = vld [vmem:[%s8748 + $0x10] sm:$0xff]
    %v8752 = vld [vmem:[%s8748 + $0x18] sm:$0xff]
    %v8753 = vld [vmem:[%s8748 + $0x20] sm:$0xff]
    %v8754 = vld [vmem:[%s8748 + $0x28] sm:$0xff]
    %v8755 = vld [vmem:[%s8748 + $0x30] sm:$0xff]
    %v8756 = vld [vmem:[%s8748 + $0x38] sm:$0xff]
    %v8757 = vld [vmem:[%s8748 + $0x40] sm:$0xff]
    %v8758 = vld [vmem:[%s8748 + $0x48] sm:$0xff]
    %v8759 = vld [vmem:[%s8748 + $0x50] sm:$0xff]
    %v8760 = vld [vmem:[%s8748 + $0x58] sm:$0xff]
    %v8761 = vld [vmem:[%s8748 + $0x60] sm:$0xff]
    %v8762 = vld [vmem:[%s8748 + $0x68] sm:$0xff]
    %v8763 = vld [vmem:[%s8748 + $0x70] sm:$0xff]
    %v8764 = vld [vmem:[%s8748 + $0x78] sm:$0xff]
    %v8765 = vld [vmem:[%s8748 + $0x80] sm:$0xff]
    %v8766 = vld [vmem:[%s8748 + $0x88] sm:$0xff]
    %v8767 = vld [vmem:[%s8748 + $0x90] sm:$0xff]
    %v8768 = vld [vmem:[%s8748 + $0x98] sm:$0xff]
    %v8769 = vld [vmem:[%s8748 + $0xa0] sm:$0xff]
    %v8770 = vld [vmem:[%s8748 + $0xa8] sm:$0xff]
    %v8771 = vld [vmem:[%s8748 + $0xb0] sm:$0xff]
    %v8772 = vld [vmem:[%s8748 + $0xb8] sm:$0xff]
    %v8773 = vld [vmem:[%s8748 + $0xc0] sm:$0xff]
    %v8774 = vld [vmem:[%s8748 + $0xc8] sm:$0xff]
    %v8775 = vld [vmem:[%s8748 + $0xd0] sm:$0xff]
    %v8776 = vld [vmem:[%s8748 + $0xd8] sm:$0xff]
    %v8777 = vld [vmem:[%s8748 + $0xe0] sm:$0xff]
    %v8778 = vld [vmem:[%s8748 + $0xe8] sm:$0xff]
    %v8779 = vld [vmem:[%s8748 + $0xf0] sm:$0xff]
    %v8780 = vld [vmem:[%s8748 + $0xf8] sm:$0xff]
    %v8781 = vld [vmem:[%s8748 + $0x100] sm:$0xff]
    %v8782 = vld [vmem:[%s8748 + $0x108] sm:$0xff]
    %v8783 = vld [vmem:[%s8748 + $0x110] sm:$0xff]
    %v8784 = vld [vmem:[%s8748 + $0x118] sm:$0xff]
    %v8785 = vld [vmem:[%s8748 + $0x120] sm:$0xff]
    %v8786 = vld [vmem:[%s8748 + $0x128] sm:$0xff]
    %v8787 = vld [vmem:[%s8748 + $0x130] sm:$0xff]
    %v8788 = vld [vmem:[%s8748 + $0x138] sm:$0xff]
    %v8789 = vld [vmem:[%s8748 + $0x140] sm:$0xff]
    %v8790 = vld [vmem:[%s8748 + $0x148] sm:$0xff]
    %v8791 = vld [vmem:[%s8748 + $0x150] sm:$0xff]
    %v8792 = vld [vmem:[%s8748 + $0x158] sm:$0xff]
    %v8793 = vld [vmem:[%s8748 + $0x160] sm:$0xff]
    %v8794 = vld [vmem:[%s8748 + $0x168] sm:$0xff]
    %v8795 = vld [vmem:[%s8748 + $0x170] sm:$0xff]
    %v8796 = vld [vmem:[%s8748 + $0x178] sm:$0xff]
    %v8797 = vld [vmem:[%s8748 + $0x180] sm:$0xff]
    %v8798 = vld [vmem:[%s8748 + $0x188] sm:$0xff]
    %v8799 = vld [vmem:[%s8748 + $0x190] sm:$0xff]
    %v8800 = vld [vmem:[%s8748 + $0x198] sm:$0xff]
    %v8801 = vld [vmem:[%s8748 + $0x1a0] sm:$0xff]
    %v8802 = vld [vmem:[%s8748 + $0x1a8] sm:$0xff]
    %v8803 = vld [vmem:[%s8748 + $0x1b0] sm:$0xff]
    %v8804 = vld [vmem:[%s8748 + $0x1b8] sm:$0xff]
    %v8805 = vld [vmem:[%s8748 + $0x1c0] sm:$0xff]
    %v8806 = vld [vmem:[%s8748 + $0x1c8] sm:$0xff]
    %v8807 = vld [vmem:[%s8748 + $0x1d0] sm:$0xff]
    %v8808 = vld [vmem:[%s8748 + $0x1d8] sm:$0xff]
    %v8809 = vld [vmem:[%s8748 + $0x1e0] sm:$0xff]
    %v8810 = vld [vmem:[%s8748 + $0x1e8] sm:$0xff]
    %v8811 = vld [vmem:[%s8748 + $0x1f0] sm:$0xff]
    %v8812 = vld [vmem:[%s8748 + $0x1f8] sm:$0xff]
    %v8813 = vrot.slane %v2058, 4
    %v8879 = vunpack.c.l.b16 %v8749
    %v8880 = vunpack.c.h.b16 %v8749
    %v8881 = vunpack.c.l.b16 %v8750
    %v8882 = vunpack.c.h.b16 %v8750
    %v8883 = vunpack.c.l.b16 %v8751
    %v8884 = vunpack.c.h.b16 %v8751
    %v8885 = vunpack.c.l.b16 %v8752
    %v8886 = vunpack.c.h.b16 %v8752
    %v8887 = vunpack.c.l.b16 %v8753
    %v8888 = vunpack.c.h.b16 %v8753
    %v8889 = vunpack.c.l.b16 %v8754
    %v8890 = vunpack.c.h.b16 %v8754
    %v8891 = vunpack.c.l.b16 %v8755
    %v8892 = vunpack.c.h.b16 %v8755
    %v8893 = vunpack.c.l.b16 %v8756
    %v8894 = vunpack.c.h.b16 %v8756
    %v8895 = vunpack.c.l.b16 %v8757
    %v8896 = vunpack.c.h.b16 %v8757
    %v8897 = vunpack.c.l.b16 %v8758
    %v8898 = vunpack.c.h.b16 %v8758
    %v8899 = vunpack.c.l.b16 %v8759
    %v8900 = vunpack.c.h.b16 %v8759
    %v8901 = vunpack.c.l.b16 %v8760
    %v8902 = vunpack.c.h.b16 %v8760
    %v8903 = vunpack.c.l.b16 %v8761
    %v8904 = vunpack.c.h.b16 %v8761
    %v8905 = vunpack.c.l.b16 %v8762
    %v8906 = vunpack.c.h.b16 %v8762
    %v8907 = vunpack.c.l.b16 %v8763
    %v8908 = vunpack.c.h.b16 %v8763
    %v8909 = vunpack.c.l.b16 %v8764
    %v8910 = vunpack.c.h.b16 %v8764
    %v8911 = vunpack.c.l.b16 %v8765
    %v8912 = vunpack.c.h.b16 %v8765
    %v8913 = vunpack.c.l.b16 %v8766
    %v8914 = vunpack.c.h.b16 %v8766
    %v8915 = vunpack.c.l.b16 %v8767
    %v8916 = vunpack.c.h.b16 %v8767
    %v8917 = vunpack.c.l.b16 %v8768
    %v8918 = vunpack.c.h.b16 %v8768
    %v8919 = vunpack.c.l.b16 %v8769
    %v8920 = vunpack.c.h.b16 %v8769
    %v8921 = vunpack.c.l.b16 %v8770
    %v8922 = vunpack.c.h.b16 %v8770
    %v8923 = vunpack.c.l.b16 %v8771
    %v8924 = vunpack.c.h.b16 %v8771
    %v8925 = vunpack.c.l.b16 %v8772
    %v8926 = vunpack.c.h.b16 %v8772
    %v8927 = vunpack.c.l.b16 %v8773
    %v8928 = vunpack.c.h.b16 %v8773
    %v8929 = vunpack.c.l.b16 %v8774
    %v8930 = vunpack.c.h.b16 %v8774
    %v8931 = vunpack.c.l.b16 %v8775
    %v8932 = vunpack.c.h.b16 %v8775
    %v8933 = vunpack.c.l.b16 %v8776
    %v8934 = vunpack.c.h.b16 %v8776
    %v8935 = vunpack.c.l.b16 %v8777
    %v8936 = vunpack.c.h.b16 %v8777
    %v8937 = vunpack.c.l.b16 %v8778
    %v8938 = vunpack.c.h.b16 %v8778
    %v8939 = vunpack.c.l.b16 %v8779
    %v8940 = vunpack.c.h.b16 %v8779
    %v8941 = vunpack.c.l.b16 %v8780
    %v8942 = vunpack.c.h.b16 %v8780
    %v8943 = vunpack.c.l.b16 %v8781
    %v8944 = vunpack.c.h.b16 %v8781
    %v8945 = vunpack.c.l.b16 %v8782
    %v8946 = vunpack.c.h.b16 %v8782
    %v8947 = vunpack.c.l.b16 %v8783
    %v8948 = vunpack.c.h.b16 %v8783
    %v8949 = vunpack.c.l.b16 %v8784
    %v8950 = vunpack.c.h.b16 %v8784
    %v8951 = vunpack.c.l.b16 %v8785
    %v8952 = vunpack.c.h.b16 %v8785
    %v8953 = vunpack.c.l.b16 %v8786
    %v8954 = vunpack.c.h.b16 %v8786
    %v8955 = vunpack.c.l.b16 %v8787
    %v8956 = vunpack.c.h.b16 %v8787
    %v8957 = vunpack.c.l.b16 %v8788
    %v8958 = vunpack.c.h.b16 %v8788
    %v8959 = vunpack.c.l.b16 %v8789
    %v8960 = vunpack.c.h.b16 %v8789
    %v8961 = vunpack.c.l.b16 %v8790
    %v8962 = vunpack.c.h.b16 %v8790
    %v8963 = vunpack.c.l.b16 %v8791
    %v8964 = vunpack.c.h.b16 %v8791
    %v8965 = vunpack.c.l.b16 %v8792
    %v8966 = vunpack.c.h.b16 %v8792
    %v8967 = vunpack.c.l.b16 %v8793
    %v8968 = vunpack.c.h.b16 %v8793
    %v8969 = vunpack.c.l.b16 %v8794
    %v8970 = vunpack.c.h.b16 %v8794
    %v8971 = vunpack.c.l.b16 %v8795
    %v8972 = vunpack.c.h.b16 %v8795
    %v8973 = vunpack.c.l.b16 %v8796
    %v8974 = vunpack.c.h.b16 %v8796
    %v8975 = vunpack.c.l.b16 %v8797
    %v8976 = vunpack.c.h.b16 %v8797
    %v8977 = vunpack.c.l.b16 %v8798
    %v8978 = vunpack.c.h.b16 %v8798
    %v8979 = vunpack.c.l.b16 %v8799
    %v8980 = vunpack.c.h.b16 %v8799
    %v8981 = vunpack.c.l.b16 %v8800
    %v8982 = vunpack.c.h.b16 %v8800
    %v8983 = vunpack.c.l.b16 %v8801
    %v8984 = vunpack.c.h.b16 %v8801
    %v8985 = vunpack.c.l.b16 %v8802
    %v8986 = vunpack.c.h.b16 %v8802
    %v8987 = vunpack.c.l.b16 %v8803
    %v8988 = vunpack.c.h.b16 %v8803
    %v8989 = vunpack.c.l.b16 %v8804
    %v8990 = vunpack.c.h.b16 %v8804
    %v8991 = vunpack.c.l.b16 %v8805
    %v8992 = vunpack.c.h.b16 %v8805
    %v8993 = vunpack.c.l.b16 %v8806
    %v8994 = vunpack.c.h.b16 %v8806
    %v8995 = vunpack.c.l.b16 %v8807
    %v8996 = vunpack.c.h.b16 %v8807
    %v8997 = vunpack.c.l.b16 %v8808
    %v8998 = vunpack.c.h.b16 %v8808
    %v8999 = vunpack.c.l.b16 %v8809
    %v9000 = vunpack.c.h.b16 %v8809
    %v9001 = vunpack.c.l.b16 %v8810
    %v9002 = vunpack.c.h.b16 %v8810
    %v9003 = vunpack.c.l.b16 %v8811
    %v9004 = vunpack.c.h.b16 %v8811
    %v9005 = vunpack.c.l.b16 %v8812
    %v9006 = vunpack.c.h.b16 %v8812
    %v9007 = vpack.c.b16 %v8887, %v8879
    %v9008 = vpack.c.b16 %v8888, %v8880
    %v9009 = vpack.c.b16 %v8889, %v8881
    %v9010 = vpack.c.b16 %v8890, %v8882
    %v9011 = vpack.c.b16 %v8891, %v8883
    %v9012 = vpack.c.b16 %v8892, %v8884
    %v9013 = vpack.c.b16 %v8893, %v8885
    %v9014 = vpack.c.b16 %v8894, %v8886
    %v9015 = vpack.c.b16 %v8903, %v8895
    %v9016 = vpack.c.b16 %v8904, %v8896
    %v9017 = vpack.c.b16 %v8905, %v8897
    %v9018 = vpack.c.b16 %v8906, %v8898
    %v9019 = vpack.c.b16 %v8907, %v8899
    %v9020 = vpack.c.b16 %v8908, %v8900
    %v9021 = vpack.c.b16 %v8909, %v8901
    %v9022 = vpack.c.b16 %v8910, %v8902
    %v9023 = vpack.c.b16 %v8919, %v8911
    %v9024 = vpack.c.b16 %v8920, %v8912
    %v9025 = vpack.c.b16 %v8921, %v8913
    %v9026 = vpack.c.b16 %v8922, %v8914
    %v9027 = vpack.c.b16 %v8923, %v8915
    %v9028 = vpack.c.b16 %v8924, %v8916
    %v9029 = vpack.c.b16 %v8925, %v8917
    %v9030 = vpack.c.b16 %v8926, %v8918
    %v9031 = vpack.c.b16 %v8935, %v8927
    %v9032 = vpack.c.b16 %v8936, %v8928
    %v9033 = vpack.c.b16 %v8937, %v8929
    %v9034 = vpack.c.b16 %v8938, %v8930
    %v9035 = vpack.c.b16 %v8939, %v8931
    %v9036 = vpack.c.b16 %v8940, %v8932
    %v9037 = vpack.c.b16 %v8941, %v8933
    %v9038 = vpack.c.b16 %v8942, %v8934
    %v9039 = vpack.c.b16 %v8951, %v8943
    %v9040 = vpack.c.b16 %v8952, %v8944
    %v9041 = vpack.c.b16 %v8953, %v8945
    %v9042 = vpack.c.b16 %v8954, %v8946
    %v9043 = vpack.c.b16 %v8955, %v8947
    %v9044 = vpack.c.b16 %v8956, %v8948
    %v9045 = vpack.c.b16 %v8957, %v8949
    %v9046 = vpack.c.b16 %v8958, %v8950
    %v9047 = vpack.c.b16 %v8967, %v8959
    %v9048 = vpack.c.b16 %v8968, %v8960
    %v9049 = vpack.c.b16 %v8969, %v8961
    %v9050 = vpack.c.b16 %v8970, %v8962
    %v9051 = vpack.c.b16 %v8971, %v8963
    %v9052 = vpack.c.b16 %v8972, %v8964
    %v9053 = vpack.c.b16 %v8973, %v8965
    %v9054 = vpack.c.b16 %v8974, %v8966
    %v9055 = vpack.c.b16 %v8983, %v8975
    %v9056 = vpack.c.b16 %v8984, %v8976
    %v9057 = vpack.c.b16 %v8985, %v8977
    %v9058 = vpack.c.b16 %v8986, %v8978
    %v9059 = vpack.c.b16 %v8987, %v8979
    %v9060 = vpack.c.b16 %v8988, %v8980
    %v9061 = vpack.c.b16 %v8989, %v8981
    %v9062 = vpack.c.b16 %v8990, %v8982
    %v9063 = vpack.c.b16 %v8999, %v8991
    %v9064 = vpack.c.b16 %v9000, %v8992
    %v9065 = vpack.c.b16 %v9001, %v8993
    %v9066 = vpack.c.b16 %v9002, %v8994
    %v9067 = vpack.c.b16 %v9003, %v8995
    %v9068 = vpack.c.b16 %v9004, %v8996
    %v9069 = vpack.c.b16 %v9005, %v8997
    %v9070 = vpack.c.b16 %v9006, %v8998
    %9135 = vmatprep.subr.bf16.mxu0 %v9008
    %9136 = vmatpush1.bf16.msra.mxu0 %v9007
    %9137 = vmatprep.subr.bf16.mxu0 %v9016
    %9138 = vmatpush1.bf16.msra.mxu0 %v9015
    %9139 = vmatprep.subr.bf16.mxu0 %v9024
    %9140 = vmatpush1.bf16.msra.mxu0 %v9023
    %9141 = vmatprep.subr.bf16.mxu0 %v9032
    %9142 = vmatpush1.bf16.msra.mxu0 %v9031
    %9143 = vmatprep.subr.bf16.mxu0 %v9040
    %9144 = vmatpush1.bf16.msra.mxu0 %v9039
    %9145 = vmatprep.subr.bf16.mxu0 %v9048
    %9146 = vmatpush1.bf16.msra.mxu0 %v9047
    %9147 = vmatprep.subr.bf16.mxu0 %v9056
    %9148 = vmatpush1.bf16.msra.mxu0 %v9055
    %9149 = vmatprep.subr.bf16.mxu0 %v9064
    %9150 = vmatpush1.bf16.msra.mxu0 %v9063
    %9151 = vmatprep.subr.bf16.mxu0 0
    %9152 = vmatpush1.bf16.msra.mxu0 0
    %9153 = vmatprep.subr.bf16.mxu0 0
    %9154 = vmatpush1.bf16.msra.mxu0 0
    %9155 = vmatprep.subr.bf16.mxu0 0
    %9156 = vmatpush1.bf16.msra.mxu0 0
    %9157 = vmatprep.subr.bf16.mxu0 0
    %9158 = vmatpush1.bf16.msra.mxu0 0
    %9159 = vmatprep.subr.bf16.mxu0 0
    %9160 = vmatpush1.bf16.msra.mxu0 0
    %9161 = vmatprep.subr.bf16.mxu0 0
    %9162 = vmatpush1.bf16.msra.mxu0 0
    %9163 = vmatprep.subr.bf16.mxu0 0
    %9164 = vmatpush1.bf16.msra.mxu0 0
    %9165 = vmatprep.subr.bf16.mxu0 0
    %9166 = vmatpush1.bf16.msra.mxu0 0
    %9167 = vmatprep.mubr.bf16.mxu0 0
    %9168 = vmatmul.mubr.bf16.gmra.mrb[0].mxu0 %v8813
    %v9169 = vpop.f32.mrb[0].mxu0
    %v9170 = vadd.f32 0.0, %v9169
    %v9171 = vpop.f32.mrb[0].mxu0
    %v9172 = vadd.f32 0.0, %v9171
    %v9173 = vpop.f32.mrb[0].mxu0
    %v9174 = vpop.f32.mrb[0].mxu0
    %9175 = vdwg.mxu0
    %9176 = vmatprep.subr.bf16.mxu0 %v9010
    %9177 = vmatpush1.bf16.msra.mxu0 %v9009
    %9178 = vmatprep.subr.bf16.mxu0 %v9018
    %9179 = vmatpush1.bf16.msra.mxu0 %v9017
    %9180 = vmatprep.subr.bf16.mxu0 %v9026
    %9181 = vmatpush1.bf16.msra.mxu0 %v9025
    %9182 = vmatprep.subr.bf16.mxu0 %v9034
    %9183 = vmatpush1.bf16.msra.mxu0 %v9033
    %9184 = vmatprep.subr.bf16.mxu0 %v9042
    %9185 = vmatpush1.bf16.msra.mxu0 %v9041
    %9186 = vmatprep.subr.bf16.mxu0 %v9050
    %9187 = vmatpush1.bf16.msra.mxu0 %v9049
    %9188 = vmatprep.subr.bf16.mxu0 %v9058
    %9189 = vmatpush1.bf16.msra.mxu0 %v9057
    %9190 = vmatprep.subr.bf16.mxu0 %v9066
    %9191 = vmatpush1.bf16.msra.mxu0 %v9065
    %9192 = vmatprep.subr.bf16.mxu0 0
    %9193 = vmatpush1.bf16.msra.mxu0 0
    %9194 = vmatprep.subr.bf16.mxu0 0
    %9195 = vmatpush1.bf16.msra.mxu0 0
    %9196 = vmatprep.subr.bf16.mxu0 0
    %9197 = vmatpush1.bf16.msra.mxu0 0
    %9198 = vmatprep.subr.bf16.mxu0 0
    %9199 = vmatpush1.bf16.msra.mxu0 0
    %9200 = vmatprep.subr.bf16.mxu0 0
    %9201 = vmatpush1.bf16.msra.mxu0 0
    %9202 = vmatprep.subr.bf16.mxu0 0
    %9203 = vmatpush1.bf16.msra.mxu0 0
    %9204 = vmatprep.subr.bf16.mxu0 0
    %9205 = vmatpush1.bf16.msra.mxu0 0
    %9206 = vmatprep.subr.bf16.mxu0 0
    %9207 = vmatpush1.bf16.msra.mxu0 0
    %9208 = vmatprep.mubr.bf16.mxu0 0
    %9209 = vmatmul.mubr.bf16.gmra.mrb[0].mxu0 %v8813
    %v9210 = vpop.f32.mrb[0].mxu0
    %v9211 = vadd.f32 0.0, %v9210
    %v9212 = vpop.f32.mrb[0].mxu0
    %v9213 = vadd.f32 0.0, %v9212
    %v9214 = vpop.f32.mrb[0].mxu0
    %v9215 = vpop.f32.mrb[0].mxu0
    %9216 = vdwg.mxu0
    %9217 = vmatprep.subr.bf16.mxu0 %v9012
    %9218 = vmatpush1.bf16.msra.mxu0 %v9011
    %9219 = vmatprep.subr.bf16.mxu0 %v9020
    %9220 = vmatpush1.bf16.msra.mxu0 %v9019
    %9221 = vmatprep.subr.bf16.mxu0 %v9028
    %9222 = vmatpush1.bf16.msra.mxu0 %v9027
    %9223 = vmatprep.subr.bf16.mxu0 %v9036
    %9224 = vmatpush1.bf16.msra.mxu0 %v9035
    %9225 = vmatprep.subr.bf16.mxu0 %v9044
    %9226 = vmatpush1.bf16.msra.mxu0 %v9043
    %9227 = vmatprep.subr.bf16.mxu0 %v9052
    %9228 = vmatpush1.bf16.msra.mxu0 %v9051
    %9229 = vmatprep.subr.bf16.mxu0 %v9060
    %9230 = vmatpush1.bf16.msra.mxu0 %v9059
    %9231 = vmatprep.subr.bf16.mxu0 %v9068
    %9232 = vmatpush1.bf16.msra.mxu0 %v9067
    %9233 = vmatprep.subr.bf16.mxu0 0
    %9234 = vmatpush1.bf16.msra.mxu0 0
    %9235 = vmatprep.subr.bf16.mxu0 0
    %9236 = vmatpush1.bf16.msra.mxu0 0
    %9237 = vmatprep.subr.bf16.mxu0 0
    %9238 = vmatpush1.bf16.msra.mxu0 0
    %9239 = vmatprep.subr.bf16.mxu0 0
    %9240 = vmatpush1.bf16.msra.mxu0 0
    %9241 = vmatprep.subr.bf16.mxu0 0
    %9242 = vmatpush1.bf16.msra.mxu0 0
    %9243 = vmatprep.subr.bf16.mxu0 0
    %9244 = vmatpush1.bf16.msra.mxu0 0
    %9245 = vmatprep.subr.bf16.mxu0 0
    %9246 = vmatpush1.bf16.msra.mxu0 0
    %9247 = vmatprep.subr.bf16.mxu0 0
    %9248 = vmatpush1.bf16.msra.mxu0 0
    %9249 = vmatprep.mubr.bf16.mxu0 0
    %9250 = vmatmul.mubr.bf16.gmra.mrb[0].mxu0 %v8813
    %v9251 = vpop.f32.mrb[0].mxu0
    %v9252 = vadd.f32 0.0, %v9251
    %v9253 = vpop.f32.mrb[0].mxu0
    %v9254 = vadd.f32 0.0, %v9253
    %v9255 = vpop.f32.mrb[0].mxu0
    %v9256 = vpop.f32.mrb[0].mxu0
    %9257 = vdwg.mxu0
    %9258 = vmatprep.subr.bf16.mxu0 %v9014
    %9259 = vmatpush1.bf16.msra.mxu0 %v9013
    %9260 = vmatprep.subr.bf16.mxu0 %v9022
    %9261 = vmatpush1.bf16.msra.mxu0 %v9021
    %9262 = vmatprep.subr.bf16.mxu0 %v9030
    %9263 = vmatpush1.bf16.msra.mxu0 %v9029
    %9264 = vmatprep.subr.bf16.mxu0 %v9038
    %9265 = vmatpush1.bf16.msra.mxu0 %v9037
    %9266 = vmatprep.subr.bf16.mxu0 %v9046
    %9267 = vmatpush1.bf16.msra.mxu0 %v9045
    %9268 = vmatprep.subr.bf16.mxu0 %v9054
    %9269 = vmatpush1.bf16.msra.mxu0 %v9053
    %9270 = vmatprep.subr.bf16.mxu0 %v9062
    %9271 = vmatpush1.bf16.msra.mxu0 %v9061
    %9272 = vmatprep.subr.bf16.mxu0 %v9070
    %9273 = vmatpush1.bf16.msra.mxu0 %v9069
    %9274 = vmatprep.subr.bf16.mxu0 0
    %9275 = vmatpush1.bf16.msra.mxu0 0
    %9276 = vmatprep.subr.bf16.mxu0 0
    %9277 = vmatpush1.bf16.msra.mxu0 0
    %9278 = vmatprep.subr.bf16.mxu0 0
    %9279 = vmatpush1.bf16.msra.mxu0 0
    %9280 = vmatprep.subr.bf16.mxu0 0
    %9281 = vmatpush1.bf16.msra.mxu0 0
    %9282 = vmatprep.subr.bf16.mxu0 0
    %9283 = vmatpush1.bf16.msra.mxu0 0
    %9284 = vmatprep.subr.bf16.mxu0 0
    %9285 = vmatpush1.bf16.msra.mxu0 0
    %9286 = vmatprep.subr.bf16.mxu0 0
    %9287 = vmatpush1.bf16.msra.mxu0 0
    %9288 = vmatprep.subr.bf16.mxu0 0
    %9289 = vmatpush1.bf16.msra.mxu0 0
    %9290 = vmatprep.mubr.bf16.mxu0 0
    %9291 = vmatmul.mubr.bf16.gmra.mrb[0].mxu0 %v8813
    %v9292 = vpop.f32.mrb[0].mxu0
    %v9293 = vadd.f32 0.0, %v9292
    %v9294 = vpop.f32.mrb[0].mxu0
    %v9295 = vadd.f32 0.0, %v9294
    %v9296 = vpop.f32.mrb[0].mxu0
    %v9297 = vpop.f32.mrb[0].mxu0
    %9298 = vdwg.mxu0
    %v9299 = vadd.f32 %v8740, %v9170
    %v9300 = vadd.f32 %v8741, %v9172
    %v9301 = vadd.f32 %v8742, %v9211
    %v9302 = vadd.f32 %v8743, %v9213
    %v9303 = vadd.f32 %v8744, %v9252
    %v9304 = vadd.f32 %v8745, %v9254
    %v9305 = vadd.f32 %v8746, %v9293
    %v9306 = vadd.f32 %v8747, %v9295
    %s9307 = scalar_lea.vmem [#allocation10], 6656
    %v9308 = vld [vmem:[%s9307] sm:$0xff]
    %v9309 = vld [vmem:[%s9307 + $0x8] sm:$0xff]
    %v9310 = vld [vmem:[%s9307 + $0x10] sm:$0xff]
    %v9311 = vld [vmem:[%s9307 + $0x18] sm:$0xff]
    %v9312 = vld [vmem:[%s9307 + $0x20] sm:$0xff]
    %v9313 = vld [vmem:[%s9307 + $0x28] sm:$0xff]
    %v9314 = vld [vmem:[%s9307 + $0x30] sm:$0xff]
    %v9315 = vld [vmem:[%s9307 + $0x38] sm:$0xff]
    %v9316 = vld [vmem:[%s9307 + $0x40] sm:$0xff]
    %v9317 = vld [vmem:[%s9307 + $0x48] sm:$0xff]
    %v9318 = vld [vmem:[%s9307 + $0x50] sm:$0xff]
    %v9319 = vld [vmem:[%s9307 + $0x58] sm:$0xff]
    %v9320 = vld [vmem:[%s9307 + $0x60] sm:$0xff]
    %v9321 = vld [vmem:[%s9307 + $0x68] sm:$0xff]
    %v9322 = vld [vmem:[%s9307 + $0x70] sm:$0xff]
    %v9323 = vld [vmem:[%s9307 + $0x78] sm:$0xff]
    %v9324 = vld [vmem:[%s9307 + $0x80] sm:$0xff]
    %v9325 = vld [vmem:[%s9307 + $0x88] sm:$0xff]
    %v9326 = vld [vmem:[%s9307 + $0x90] sm:$0xff]
    %v9327 = vld [vmem:[%s9307 + $0x98] sm:$0xff]
    %v9328 = vld [vmem:[%s9307 + $0xa0] sm:$0xff]
    %v9329 = vld [vmem:[%s9307 + $0xa8] sm:$0xff]
    %v9330 = vld [vmem:[%s9307 + $0xb0] sm:$0xff]
    %v9331 = vld [vmem:[%s9307 + $0xb8] sm:$0xff]
    %v9332 = vld [vmem:[%s9307 + $0xc0] sm:$0xff]
    %v9333 = vld [vmem:[%s9307 + $0xc8] sm:$0xff]
    %v9334 = vld [vmem:[%s9307 + $0xd0] sm:$0xff]
    %v9335 = vld [vmem:[%s9307 + $0xd8] sm:$0xff]
    %v9336 = vld [vmem:[%s9307 + $0xe0] sm:$0xff]
    %v9337 = vld [vmem:[%s9307 + $0xe8] sm:$0xff]
    %v9338 = vld [vmem:[%s9307 + $0xf0] sm:$0xff]
    %v9339 = vld [vmem:[%s9307 + $0xf8] sm:$0xff]
    %v9340 = vld [vmem:[%s9307 + $0x100] sm:$0xff]
    %v9341 = vld [vmem:[%s9307 + $0x108] sm:$0xff]
    %v9342 = vld [vmem:[%s9307 + $0x110] sm:$0xff]
    %v9343 = vld [vmem:[%s9307 + $0x118] sm:$0xff]
    %v9344 = vld [vmem:[%s9307 + $0x120] sm:$0xff]
    %v9345 = vld [vmem:[%s9307 + $0x128] sm:$0xff]
    %v9346 = vld [vmem:[%s9307 + $0x130] sm:$0xff]
    %v9347 = vld [vmem:[%s9307 + $0x138] sm:$0xff]
    %v9348 = vld [vmem:[%s9307 + $0x140] sm:$0xff]
    %v9349 = vld [vmem:[%s9307 + $0x148] sm:$0xff]
    %v9350 = vld [vmem:[%s9307 + $0x150] sm:$0xff]
    %v9351 = vld [vmem:[%s9307 + $0x158] sm:$0xff]
    %v9352 = vld [vmem:[%s9307 + $0x160] sm:$0xff]
    %v9353 = vld [vmem:[%s9307 + $0x168] sm:$0xff]
    %v9354 = vld [vmem:[%s9307 + $0x170] sm:$0xff]
    %v9355 = vld [vmem:[%s9307 + $0x178] sm:$0xff]
    %v9356 = vld [vmem:[%s9307 + $0x180] sm:$0xff]
    %v9357 = vld [vmem:[%s9307 + $0x188] sm:$0xff]
    %v9358 = vld [vmem:[%s9307 + $0x190] sm:$0xff]
    %v9359 = vld [vmem:[%s9307 + $0x198] sm:$0xff]
    %v9360 = vld [vmem:[%s9307 + $0x1a0] sm:$0xff]
    %v9361 = vld [vmem:[%s9307 + $0x1a8] sm:$0xff]
    %v9362 = vld [vmem:[%s9307 + $0x1b0] sm:$0xff]
    %v9363 = vld [vmem:[%s9307 + $0x1b8] sm:$0xff]
    %v9364 = vld [vmem:[%s9307 + $0x1c0] sm:$0xff]
    %v9365 = vld [vmem:[%s9307 + $0x1c8] sm:$0xff]
    %v9366 = vld [vmem:[%s9307 + $0x1d0] sm:$0xff]
    %v9367 = vld [vmem:[%s9307 + $0x1d8] sm:$0xff]
    %v9368 = vld [vmem:[%s9307 + $0x1e0] sm:$0xff]
    %v9369 = vld [vmem:[%s9307 + $0x1e8] sm:$0xff]
    %v9370 = vld [vmem:[%s9307 + $0x1f0] sm:$0xff]
    %v9371 = vld [vmem:[%s9307 + $0x1f8] sm:$0xff]
    %v9372 = vrot.slane %v2058, 5
    %v9438 = vunpack.c.l.b16 %v9308
    %v9439 = vunpack.c.h.b16 %v9308
    %v9440 = vunpack.c.l.b16 %v9309
    %v9441 = vunpack.c.h.b16 %v9309
    %v9442 = vunpack.c.l.b16 %v9310
    %v9443 = vunpack.c.h.b16 %v9310
    %v9444 = vunpack.c.l.b16 %v9311
    %v9445 = vunpack.c.h.b16 %v9311
    %v9446 = vunpack.c.l.b16 %v9312
    %v9447 = vunpack.c.h.b16 %v9312
    %v9448 = vunpack.c.l.b16 %v9313
    %v9449 = vunpack.c.h.b16 %v9313
    %v9450 = vunpack.c.l.b16 %v9314
    %v9451 = vunpack.c.h.b16 %v9314
    %v9452 = vunpack.c.l.b16 %v9315
    %v9453 = vunpack.c.h.b16 %v9315
    %v9454 = vunpack.c.l.b16 %v9316
    %v9455 = vunpack.c.h.b16 %v9316
    %v9456 = vunpack.c.l.b16 %v9317
    %v9457 = vunpack.c.h.b16 %v9317
    %v9458 = vunpack.c.l.b16 %v9318
    %v9459 = vunpack.c.h.b16 %v9318
    %v9460 = vunpack.c.l.b16 %v9319
    %v9461 = vunpack.c.h.b16 %v9319
    %v9462 = vunpack.c.l.b16 %v9320
    %v9463 = vunpack.c.h.b16 %v9320
    %v9464 = vunpack.c.l.b16 %v9321
    %v9465 = vunpack.c.h.b16 %v9321
    %v9466 = vunpack.c.l.b16 %v9322
    %v9467 = vunpack.c.h.b16 %v9322
    %v9468 = vunpack.c.l.b16 %v9323
    %v9469 = vunpack.c.h.b16 %v9323
    %v9470 = vunpack.c.l.b16 %v9324
    %v9471 = vunpack.c.h.b16 %v9324
    %v9472 = vunpack.c.l.b16 %v9325
    %v9473 = vunpack.c.h.b16 %v9325
    %v9474 = vunpack.c.l.b16 %v9326
    %v9475 = vunpack.c.h.b16 %v9326
    %v9476 = vunpack.c.l.b16 %v9327
    %v9477 = vunpack.c.h.b16 %v9327
    %v9478 = vunpack.c.l.b16 %v9328
    %v9479 = vunpack.c.h.b16 %v9328
    %v9480 = vunpack.c.l.b16 %v9329
    %v9481 = vunpack.c.h.b16 %v9329
    %v9482 = vunpack.c.l.b16 %v9330
    %v9483 = vunpack.c.h.b16 %v9330
    %v9484 = vunpack.c.l.b16 %v9331
    %v9485 = vunpack.c.h.b16 %v9331
    %v9486 = vunpack.c.l.b16 %v9332
    %v9487 = vunpack.c.h.b16 %v9332
    %v9488 = vunpack.c.l.b16 %v9333
    %v9489 = vunpack.c.h.b16 %v9333
    %v9490 = vunpack.c.l.b16 %v9334
    %v9491 = vunpack.c.h.b16 %v9334
    %v9492 = vunpack.c.l.b16 %v9335
    %v9493 = vunpack.c.h.b16 %v9335
    %v9494 = vunpack.c.l.b16 %v9336
    %v9495 = vunpack.c.h.b16 %v9336
    %v9496 = vunpack.c.l.b16 %v9337
    %v9497 = vunpack.c.h.b16 %v9337
    %v9498 = vunpack.c.l.b16 %v9338
    %v9499 = vunpack.c.h.b16 %v9338
    %v9500 = vunpack.c.l.b16 %v9339
    %v9501 = vunpack.c.h.b16 %v9339
    %v9502 = vunpack.c.l.b16 %v9340
    %v9503 = vunpack.c.h.b16 %v9340
    %v9504 = vunpack.c.l.b16 %v9341
    %v9505 = vunpack.c.h.b16 %v9341
    %v9506 = vunpack.c.l.b16 %v9342
    %v9507 = vunpack.c.h.b16 %v9342
    %v9508 = vunpack.c.l.b16 %v9343
    %v9509 = vunpack.c.h.b16 %v9343
    %v9510 = vunpack.c.l.b16 %v9344
    %v9511 = vunpack.c.h.b16 %v9344
    %v9512 = vunpack.c.l.b16 %v9345
    %v9513 = vunpack.c.h.b16 %v9345
    %v9514 = vunpack.c.l.b16 %v9346
    %v9515 = vunpack.c.h.b16 %v9346
    %v9516 = vunpack.c.l.b16 %v9347
    %v9517 = vunpack.c.h.b16 %v9347
    %v9518 = vunpack.c.l.b16 %v9348
    %v9519 = vunpack.c.h.b16 %v9348
    %v9520 = vunpack.c.l.b16 %v9349
    %v9521 = vunpack.c.h.b16 %v9349
    %v9522 = vunpack.c.l.b16 %v9350
    %v9523 = vunpack.c.h.b16 %v9350
    %v9524 = vunpack.c.l.b16 %v9351
    %v9525 = vunpack.c.h.b16 %v9351
    %v9526 = vunpack.c.l.b16 %v9352
    %v9527 = vunpack.c.h.b16 %v9352
    %v9528 = vunpack.c.l.b16 %v9353
    %v9529 = vunpack.c.h.b16 %v9353
    %v9530 = vunpack.c.l.b16 %v9354
    %v9531 = vunpack.c.h.b16 %v9354
    %v9532 = vunpack.c.l.b16 %v9355
    %v9533 = vunpack.c.h.b16 %v9355
    %v9534 = vunpack.c.l.b16 %v9356
    %v9535 = vunpack.c.h.b16 %v9356
    %v9536 = vunpack.c.l.b16 %v9357
    %v9537 = vunpack.c.h.b16 %v9357
    %v9538 = vunpack.c.l.b16 %v9358
    %v9539 = vunpack.c.h.b16 %v9358
    %v9540 = vunpack.c.l.b16 %v9359
    %v9541 = vunpack.c.h.b16 %v9359
    %v9542 = vunpack.c.l.b16 %v9360
    %v9543 = vunpack.c.h.b16 %v9360
    %v9544 = vunpack.c.l.b16 %v9361
    %v9545 = vunpack.c.h.b16 %v9361
    %v9546 = vunpack.c.l.b16 %v9362
    %v9547 = vunpack.c.h.b16 %v9362
    %v9548 = vunpack.c.l.b16 %v9363
    %v9549 = vunpack.c.h.b16 %v9363
    %v9550 = vunpack.c.l.b16 %v9364
    %v9551 = vunpack.c.h.b16 %v9364
    %v9552 = vunpack.c.l.b16 %v9365
    %v9553 = vunpack.c.h.b16 %v9365
    %v9554 = vunpack.c.l.b16 %v9366
    %v9555 = vunpack.c.h.b16 %v9366
    %v9556 = vunpack.c.l.b16 %v9367
    %v9557 = vunpack.c.h.b16 %v9367
    %v9558 = vunpack.c.l.b16 %v9368
    %v9559 = vunpack.c.h.b16 %v9368
    %v9560 = vunpack.c.l.b16 %v9369
    %v9561 = vunpack.c.h.b16 %v9369
    %v9562 = vunpack.c.l.b16 %v9370
    %v9563 = vunpack.c.h.b16 %v9370
    %v9564 = vunpack.c.l.b16 %v9371
    %v9565 = vunpack.c.h.b16 %v9371
    %v9566 = vpack.c.b16 %v9446, %v9438
    %v9567 = vpack.c.b16 %v9447, %v9439
    %v9568 = vpack.c.b16 %v9448, %v9440
    %v9569 = vpack.c.b16 %v9449, %v9441
    %v9570 = vpack.c.b16 %v9450, %v9442
    %v9571 = vpack.c.b16 %v9451, %v9443
    %v9572 = vpack.c.b16 %v9452, %v9444
    %v9573 = vpack.c.b16 %v9453, %v9445
    %v9574 = vpack.c.b16 %v9462, %v9454
    %v9575 = vpack.c.b16 %v9463, %v9455
    %v9576 = vpack.c.b16 %v9464, %v9456
    %v9577 = vpack.c.b16 %v9465, %v9457
    %v9578 = vpack.c.b16 %v9466, %v9458
    %v9579 = vpack.c.b16 %v9467, %v9459
    %v9580 = vpack.c.b16 %v9468, %v9460
    %v9581 = vpack.c.b16 %v9469, %v9461
    %v9582 = vpack.c.b16 %v9478, %v9470
    %v9583 = vpack.c.b16 %v9479, %v9471
    %v9584 = vpack.c.b16 %v9480, %v9472
    %v9585 = vpack.c.b16 %v9481, %v9473
    %v9586 = vpack.c.b16 %v9482, %v9474
    %v9587 = vpack.c.b16 %v9483, %v9475
    %v9588 = vpack.c.b16 %v9484, %v9476
    %v9589 = vpack.c.b16 %v9485, %v9477
    %v9590 = vpack.c.b16 %v9494, %v9486
    %v9591 = vpack.c.b16 %v9495, %v9487
    %v9592 = vpack.c.b16 %v9496, %v9488
    %v9593 = vpack.c.b16 %v9497, %v9489
    %v9594 = vpack.c.b16 %v9498, %v9490
    %v9595 = vpack.c.b16 %v9499, %v9491
    %v9596 = vpack.c.b16 %v9500, %v9492
    %v9597 = vpack.c.b16 %v9501, %v9493
    %v9598 = vpack.c.b16 %v9510, %v9502
    %v9599 = vpack.c.b16 %v9511, %v9503
    %v9600 = vpack.c.b16 %v9512, %v9504
    %v9601 = vpack.c.b16 %v9513, %v9505
    %v9602 = vpack.c.b16 %v9514, %v9506
    %v9603 = vpack.c.b16 %v9515, %v9507
    %v9604 = vpack.c.b16 %v9516, %v9508
    %v9605 = vpack.c.b16 %v9517, %v9509
    %v9606 = vpack.c.b16 %v9526, %v9518
    %v9607 = vpack.c.b16 %v9527, %v9519
    %v9608 = vpack.c.b16 %v9528, %v9520
    %v9609 = vpack.c.b16 %v9529, %v9521
    %v9610 = vpack.c.b16 %v9530, %v9522
    %v9611 = vpack.c.b16 %v9531, %v9523
    %v9612 = vpack.c.b16 %v9532, %v9524
    %v9613 = vpack.c.b16 %v9533, %v9525
    %v9614 = vpack.c.b16 %v9542, %v9534
    %v9615 = vpack.c.b16 %v9543, %v9535
    %v9616 = vpack.c.b16 %v9544, %v9536
    %v9617 = vpack.c.b16 %v9545, %v9537
    %v9618 = vpack.c.b16 %v9546, %v9538
    %v9619 = vpack.c.b16 %v9547, %v9539
    %v9620 = vpack.c.b16 %v9548, %v9540
    %v9621 = vpack.c.b16 %v9549, %v9541
    %v9622 = vpack.c.b16 %v9558, %v9550
    %v9623 = vpack.c.b16 %v9559, %v9551
    %v9624 = vpack.c.b16 %v9560, %v9552
    %v9625 = vpack.c.b16 %v9561, %v9553
    %v9626 = vpack.c.b16 %v9562, %v9554
    %v9627 = vpack.c.b16 %v9563, %v9555
    %v9628 = vpack.c.b16 %v9564, %v9556
    %v9629 = vpack.c.b16 %v9565, %v9557
    %9694 = vmatprep.subr.bf16.mxu0 %v9567
    %9695 = vmatpush1.bf16.msra.mxu0 %v9566
    %9696 = vmatprep.subr.bf16.mxu0 %v9575
    %9697 = vmatpush1.bf16.msra.mxu0 %v9574
    %9698 = vmatprep.subr.bf16.mxu0 %v9583
    %9699 = vmatpush1.bf16.msra.mxu0 %v9582
    %9700 = vmatprep.subr.bf16.mxu0 %v9591
    %9701 = vmatpush1.bf16.msra.mxu0 %v9590
    %9702 = vmatprep.subr.bf16.mxu0 %v9599
    %9703 = vmatpush1.bf16.msra.mxu0 %v9598
    %9704 = vmatprep.subr.bf16.mxu0 %v9607
    %9705 = vmatpush1.bf16.msra.mxu0 %v9606
    %9706 = vmatprep.subr.bf16.mxu0 %v9615
    %9707 = vmatpush1.bf16.msra.mxu0 %v9614
    %9708 = vmatprep.subr.bf16.mxu0 %v9623
    %9709 = vmatpush1.bf16.msra.mxu0 %v9622
    %9710 = vmatprep.subr.bf16.mxu0 0
    %9711 = vmatpush1.bf16.msra.mxu0 0
    %9712 = vmatprep.subr.bf16.mxu0 0
    %9713 = vmatpush1.bf16.msra.mxu0 0
    %9714 = vmatprep.subr.bf16.mxu0 0
    %9715 = vmatpush1.bf16.msra.mxu0 0
    %9716 = vmatprep.subr.bf16.mxu0 0
    %9717 = vmatpush1.bf16.msra.mxu0 0
    %9718 = vmatprep.subr.bf16.mxu0 0
    %9719 = vmatpush1.bf16.msra.mxu0 0
    %9720 = vmatprep.subr.bf16.mxu0 0
    %9721 = vmatpush1.bf16.msra.mxu0 0
    %9722 = vmatprep.subr.bf16.mxu0 0
    %9723 = vmatpush1.bf16.msra.mxu0 0
    %9724 = vmatprep.subr.bf16.mxu0 0
    %9725 = vmatpush1.bf16.msra.mxu0 0
    %9726 = vmatprep.mubr.bf16.mxu0 0
    %9727 = vmatmul.mubr.bf16.gmra.mrb[0].mxu0 %v9372
    %v9728 = vpop.f32.mrb[0].mxu0
    %v9729 = vadd.f32 0.0, %v9728
    %v9730 = vpop.f32.mrb[0].mxu0
    %v9731 = vadd.f32 0.0, %v9730
    %v9732 = vpop.f32.mrb[0].mxu0
    %v9733 = vpop.f32.mrb[0].mxu0
    %9734 = vdwg.mxu0
    %9735 = vmatprep.subr.bf16.mxu0 %v9569
    %9736 = vmatpush1.bf16.msra.mxu0 %v9568
    %9737 = vmatprep.subr.bf16.mxu0 %v9577
    %9738 = vmatpush1.bf16.msra.mxu0 %v9576
    %9739 = vmatprep.subr.bf16.mxu0 %v9585
    %9740 = vmatpush1.bf16.msra.mxu0 %v9584
    %9741 = vmatprep.subr.bf16.mxu0 %v9593
    %9742 = vmatpush1.bf16.msra.mxu0 %v9592
    %9743 = vmatprep.subr.bf16.mxu0 %v9601
    %9744 = vmatpush1.bf16.msra.mxu0 %v9600
    %9745 = vmatprep.subr.bf16.mxu0 %v9609
    %9746 = vmatpush1.bf16.msra.mxu0 %v9608
    %9747 = vmatprep.subr.bf16.mxu0 %v9617
    %9748 = vmatpush1.bf16.msra.mxu0 %v9616
    %9749 = vmatprep.subr.bf16.mxu0 %v9625
    %9750 = vmatpush1.bf16.msra.mxu0 %v9624
    %9751 = vmatprep.subr.bf16.mxu0 0
    %9752 = vmatpush1.bf16.msra.mxu0 0
    %9753 = vmatprep.subr.bf16.mxu0 0
    %9754 = vmatpush1.bf16.msra.mxu0 0
    %9755 = vmatprep.subr.bf16.mxu0 0
    %9756 = vmatpush1.bf16.msra.mxu0 0
    %9757 = vmatprep.subr.bf16.mxu0 0
    %9758 = vmatpush1.bf16.msra.mxu0 0
    %9759 = vmatprep.subr.bf16.mxu0 0
    %9760 = vmatpush1.bf16.msra.mxu0 0
    %9761 = vmatprep.subr.bf16.mxu0 0
    %9762 = vmatpush1.bf16.msra.mxu0 0
    %9763 = vmatprep.subr.bf16.mxu0 0
    %9764 = vmatpush1.bf16.msra.mxu0 0
    %9765 = vmatprep.subr.bf16.mxu0 0
    %9766 = vmatpush1.bf16.msra.mxu0 0
    %9767 = vmatprep.mubr.bf16.mxu0 0
    %9768 = vmatmul.mubr.bf16.gmra.mrb[0].mxu0 %v9372
    %v9769 = vpop.f32.mrb[0].mxu0
    %v9770 = vadd.f32 0.0, %v9769
    %v9771 = vpop.f32.mrb[0].mxu0
    %v9772 = vadd.f32 0.0, %v9771
    %v9773 = vpop.f32.mrb[0].mxu0
    %v9774 = vpop.f32.mrb[0].mxu0
    %9775 = vdwg.mxu0
    %9776 = vmatprep.subr.bf16.mxu0 %v9571
    %9777 = vmatpush1.bf16.msra.mxu0 %v9570
    %9778 = vmatprep.subr.bf16.mxu0 %v9579
    %9779 = vmatpush1.bf16.msra.mxu0 %v9578
    %9780 = vmatprep.subr.bf16.mxu0 %v9587
    %9781 = vmatpush1.bf16.msra.mxu0 %v9586
    %9782 = vmatprep.subr.bf16.mxu0 %v9595
    %9783 = vmatpush1.bf16.msra.mxu0 %v9594
    %9784 = vmatprep.subr.bf16.mxu0 %v9603
    %9785 = vmatpush1.bf16.msra.mxu0 %v9602
    %9786 = vmatprep.subr.bf16.mxu0 %v9611
    %9787 = vmatpush1.bf16.msra.mxu0 %v9610
    %9788 = vmatprep.subr.bf16.mxu0 %v9619
    %9789 = vmatpush1.bf16.msra.mxu0 %v9618
    %9790 = vmatprep.subr.bf16.mxu0 %v9627
    %9791 = vmatpush1.bf16.msra.mxu0 %v9626
    %9792 = vmatprep.subr.bf16.mxu0 0
    %9793 = vmatpush1.bf16.msra.mxu0 0
    %9794 = vmatprep.subr.bf16.mxu0 0
    %9795 = vmatpush1.bf16.msra.mxu0 0
    %9796 = vmatprep.subr.bf16.mxu0 0
    %9797 = vmatpush1.bf16.msra.mxu0 0
    %9798 = vmatprep.subr.bf16.mxu0 0
    %9799 = vmatpush1.bf16.msra.mxu0 0
    %9800 = vmatprep.subr.bf16.mxu0 0
    %9801 = vmatpush1.bf16.msra.mxu0 0
    %9802 = vmatprep.subr.bf16.mxu0 0
    %9803 = vmatpush1.bf16.msra.mxu0 0
    %9804 = vmatprep.subr.bf16.mxu0 0
    %9805 = vmatpush1.bf16.msra.mxu0 0
    %9806 = vmatprep.subr.bf16.mxu0 0
    %9807 = vmatpush1.bf16.msra.mxu0 0
    %9808 = vmatprep.mubr.bf16.mxu0 0
    %9809 = vmatmul.mubr.bf16.gmra.mrb[0].mxu0 %v9372
    %v9810 = vpop.f32.mrb[0].mxu0
    %v9811 = vadd.f32 0.0, %v9810
    %v9812 = vpop.f32.mrb[0].mxu0
    %v9813 = vadd.f32 0.0, %v9812
    %v9814 = vpop.f32.mrb[0].mxu0
    %v9815 = vpop.f32.mrb[0].mxu0
    %9816 = vdwg.mxu0
    %9817 = vmatprep.subr.bf16.mxu0 %v9573
    %9818 = vmatpush1.bf16.msra.mxu0 %v9572
    %9819 = vmatprep.subr.bf16.mxu0 %v9581
    %9820 = vmatpush1.bf16.msra.mxu0 %v9580
    %9821 = vmatprep.subr.bf16.mxu0 %v9589
    %9822 = vmatpush1.bf16.msra.mxu0 %v9588
    %9823 = vmatprep.subr.bf16.mxu0 %v9597
    %9824 = vmatpush1.bf16.msra.mxu0 %v9596
    %9825 = vmatprep.subr.bf16.mxu0 %v9605
    %9826 = vmatpush1.bf16.msra.mxu0 %v9604
    %9827 = vmatprep.subr.bf16.mxu0 %v9613
    %9828 = vmatpush1.bf16.msra.mxu0 %v9612
    %9829 = vmatprep.subr.bf16.mxu0 %v9621
    %9830 = vmatpush1.bf16.msra.mxu0 %v9620
    %9831 = vmatprep.subr.bf16.mxu0 %v9629
    %9832 = vmatpush1.bf16.msra.mxu0 %v9628
    %9833 = vmatprep.subr.bf16.mxu0 0
    %9834 = vmatpush1.bf16.msra.mxu0 0
    %9835 = vmatprep.subr.bf16.mxu0 0
    %9836 = vmatpush1.bf16.msra.mxu0 0
    %9837 = vmatprep.subr.bf16.mxu0 0
    %9838 = vmatpush1.bf16.msra.mxu0 0
    %9839 = vmatprep.subr.bf16.mxu0 0
    %9840 = vmatpush1.bf16.msra.mxu0 0
    %9841 = vmatprep.subr.bf16.mxu0 0
    %9842 = vmatpush1.bf16.msra.mxu0 0
    %9843 = vmatprep.subr.bf16.mxu0 0
    %9844 = vmatpush1.bf16.msra.mxu0 0
    %9845 = vmatprep.subr.bf16.mxu0 0
    %9846 = vmatpush1.bf16.msra.mxu0 0
    %9847 = vmatprep.subr.bf16.mxu0 0
    %9848 = vmatpush1.bf16.msra.mxu0 0
    %9849 = vmatprep.mubr.bf16.mxu0 0
    %9850 = vmatmul.mubr.bf16.gmra.mrb[0].mxu0 %v9372
    %v9851 = vpop.f32.mrb[0].mxu0
    %v9852 = vadd.f32 0.0, %v9851
    %v9853 = vpop.f32.mrb[0].mxu0
    %v9854 = vadd.f32 0.0, %v9853
    %v9855 = vpop.f32.mrb[0].mxu0
    %v9856 = vpop.f32.mrb[0].mxu0
    %9857 = vdwg.mxu0
    %v9858 = vadd.f32 %v9299, %v9729
    %v9859 = vadd.f32 %v9300, %v9731
    %v9860 = vadd.f32 %v9301, %v9770
    %v9861 = vadd.f32 %v9302, %v9772
    %v9862 = vadd.f32 %v9303, %v9811
    %v9863 = vadd.f32 %v9304, %v9813
    %v9864 = vadd.f32 %v9305, %v9852
    %v9865 = vadd.f32 %v9306, %v9854
    %s9866 = scalar_lea.vmem [#allocation10], 7168
    %v9867 = vld [vmem:[%s9866] sm:$0xff]
    %v9868 = vld [vmem:[%s9866 + $0x8] sm:$0xff]
    %v9869 = vld [vmem:[%s9866 + $0x10] sm:$0xff]
    %v9870 = vld [vmem:[%s9866 + $0x18] sm:$0xff]
    %v9871 = vld [vmem:[%s9866 + $0x20] sm:$0xff]
    %v9872 = vld [vmem:[%s9866 + $0x28] sm:$0xff]
    %v9873 = vld [vmem:[%s9866 + $0x30] sm:$0xff]
    %v9874 = vld [vmem:[%s9866 + $0x38] sm:$0xff]
    %v9875 = vld [vmem:[%s9866 + $0x40] sm:$0xff]
    %v9876 = vld [vmem:[%s9866 + $0x48] sm:$0xff]
    %v9877 = vld [vmem:[%s9866 + $0x50] sm:$0xff]
    %v9878 = vld [vmem:[%s9866 + $0x58] sm:$0xff]
    %v9879 = vld [vmem:[%s9866 + $0x60] sm:$0xff]
    %v9880 = vld [vmem:[%s9866 + $0x68] sm:$0xff]
    %v9881 = vld [vmem:[%s9866 + $0x70] sm:$0xff]
    %v9882 = vld [vmem:[%s9866 + $0x78] sm:$0xff]
    %v9883 = vld [vmem:[%s9866 + $0x80] sm:$0xff]
    %v9884 = vld [vmem:[%s9866 + $0x88] sm:$0xff]
    %v9885 = vld [vmem:[%s9866 + $0x90] sm:$0xff]
    %v9886 = vld [vmem:[%s9866 + $0x98] sm:$0xff]
    %v9887 = vld [vmem:[%s9866 + $0xa0] sm:$0xff]
    %v9888 = vld [vmem:[%s9866 + $0xa8] sm:$0xff]
    %v9889 = vld [vmem:[%s9866 + $0xb0] sm:$0xff]
    %v9890 = vld [vmem:[%s9866 + $0xb8] sm:$0xff]
    %v9891 = vld [vmem:[%s9866 + $0xc0] sm:$0xff]
    %v9892 = vld [vmem:[%s9866 + $0xc8] sm:$0xff]
    %v9893 = vld [vmem:[%s9866 + $0xd0] sm:$0xff]
    %v9894 = vld [vmem:[%s9866 + $0xd8] sm:$0xff]
    %v9895 = vld [vmem:[%s9866 + $0xe0] sm:$0xff]
    %v9896 = vld [vmem:[%s9866 + $0xe8] sm:$0xff]
    %v9897 = vld [vmem:[%s9866 + $0xf0] sm:$0xff]
    %v9898 = vld [vmem:[%s9866 + $0xf8] sm:$0xff]
    %v9899 = vld [vmem:[%s9866 + $0x100] sm:$0xff]
    %v9900 = vld [vmem:[%s9866 + $0x108] sm:$0xff]
    %v9901 = vld [vmem:[%s9866 + $0x110] sm:$0xff]
    %v9902 = vld [vmem:[%s9866 + $0x118] sm:$0xff]
    %v9903 = vld [vmem:[%s9866 + $0x120] sm:$0xff]
    %v9904 = vld [vmem:[%s9866 + $0x128] sm:$0xff]
    %v9905 = vld [vmem:[%s9866 + $0x130] sm:$0xff]
    %v9906 = vld [vmem:[%s9866 + $0x138] sm:$0xff]
    %v9907 = vld [vmem:[%s9866 + $0x140] sm:$0xff]
    %v9908 = vld [vmem:[%s9866 + $0x148] sm:$0xff]
    %v9909 = vld [vmem:[%s9866 + $0x150] sm:$0xff]
    %v9910 = vld [vmem:[%s9866 + $0x158] sm:$0xff]
    %v9911 = vld [vmem:[%s9866 + $0x160] sm:$0xff]
    %v9912 = vld [vmem:[%s9866 + $0x168] sm:$0xff]
    %v9913 = vld [vmem:[%s9866 + $0x170] sm:$0xff]
    %v9914 = vld [vmem:[%s9866 + $0x178] sm:$0xff]
    %v9915 = vld [vmem:[%s9866 + $0x180] sm:$0xff]
    %v9916 = vld [vmem:[%s9866 + $0x188] sm:$0xff]
    %v9917 = vld [vmem:[%s9866 + $0x190] sm:$0xff]
    %v9918 = vld [vmem:[%s9866 + $0x198] sm:$0xff]
    %v9919 = vld [vmem:[%s9866 + $0x1a0] sm:$0xff]
    %v9920 = vld [vmem:[%s9866 + $0x1a8] sm:$0xff]
    %v9921 = vld [vmem:[%s9866 + $0x1b0] sm:$0xff]
    %v9922 = vld [vmem:[%s9866 + $0x1b8] sm:$0xff]
    %v9923 = vld [vmem:[%s9866 + $0x1c0] sm:$0xff]
    %v9924 = vld [vmem:[%s9866 + $0x1c8] sm:$0xff]
    %v9925 = vld [vmem:[%s9866 + $0x1d0] sm:$0xff]
    %v9926 = vld [vmem:[%s9866 + $0x1d8] sm:$0xff]
    %v9927 = vld [vmem:[%s9866 + $0x1e0] sm:$0xff]
    %v9928 = vld [vmem:[%s9866 + $0x1e8] sm:$0xff]
    %v9929 = vld [vmem:[%s9866 + $0x1f0] sm:$0xff]
    %v9930 = vld [vmem:[%s9866 + $0x1f8] sm:$0xff]
    %v9931 = vrot.slane %v2058, 6
    %v9997 = vunpack.c.l.b16 %v9867
    %v9998 = vunpack.c.h.b16 %v9867
    %v9999 = vunpack.c.l.b16 %v9868
    %v10000 = vunpack.c.h.b16 %v9868
    %v10001 = vunpack.c.l.b16 %v9869
    %v10002 = vunpack.c.h.b16 %v9869
    %v10003 = vunpack.c.l.b16 %v9870
    %v10004 = vunpack.c.h.b16 %v9870
    %v10005 = vunpack.c.l.b16 %v9871
    %v10006 = vunpack.c.h.b16 %v9871
    %v10007 = vunpack.c.l.b16 %v9872
    %v10008 = vunpack.c.h.b16 %v9872
    %v10009 = vunpack.c.l.b16 %v9873
    %v10010 = vunpack.c.h.b16 %v9873
    %v10011 = vunpack.c.l.b16 %v9874
    %v10012 = vunpack.c.h.b16 %v9874
    %v10013 = vunpack.c.l.b16 %v9875
    %v10014 = vunpack.c.h.b16 %v9875
    %v10015 = vunpack.c.l.b16 %v9876
    %v10016 = vunpack.c.h.b16 %v9876
    %v10017 = vunpack.c.l.b16 %v9877
    %v10018 = vunpack.c.h.b16 %v9877
    %v10019 = vunpack.c.l.b16 %v9878
    %v10020 = vunpack.c.h.b16 %v9878
    %v10021 = vunpack.c.l.b16 %v9879
    %v10022 = vunpack.c.h.b16 %v9879
    %v10023 = vunpack.c.l.b16 %v9880
    %v10024 = vunpack.c.h.b16 %v9880
    %v10025 = vunpack.c.l.b16 %v9881
    %v10026 = vunpack.c.h.b16 %v9881
    %v10027 = vunpack.c.l.b16 %v9882
    %v10028 = vunpack.c.h.b16 %v9882
    %v10029 = vunpack.c.l.b16 %v9883
    %v10030 = vunpack.c.h.b16 %v9883
    %v10031 = vunpack.c.l.b16 %v9884
    %v10032 = vunpack.c.h.b16 %v9884
    %v10033 = vunpack.c.l.b16 %v9885
    %v10034 = vunpack.c.h.b16 %v9885
    %v10035 = vunpack.c.l.b16 %v9886
    %v10036 = vunpack.c.h.b16 %v9886
    %v10037 = vunpack.c.l.b16 %v9887
    %v10038 = vunpack.c.h.b16 %v9887
    %v10039 = vunpack.c.l.b16 %v9888
    %v10040 = vunpack.c.h.b16 %v9888
    %v10041 = vunpack.c.l.b16 %v9889
    %v10042 = vunpack.c.h.b16 %v9889
    %v10043 = vunpack.c.l.b16 %v9890
    %v10044 = vunpack.c.h.b16 %v9890
    %v10045 = vunpack.c.l.b16 %v9891
    %v10046 = vunpack.c.h.b16 %v9891
    %v10047 = vunpack.c.l.b16 %v9892
    %v10048 = vunpack.c.h.b16 %v9892
    %v10049 = vunpack.c.l.b16 %v9893
    %v10050 = vunpack.c.h.b16 %v9893
    %v10051 = vunpack.c.l.b16 %v9894
    %v10052 = vunpack.c.h.b16 %v9894
    %v10053 = vunpack.c.l.b16 %v9895
    %v10054 = vunpack.c.h.b16 %v9895
    %v10055 = vunpack.c.l.b16 %v9896
    %v10056 = vunpack.c.h.b16 %v9896
    %v10057 = vunpack.c.l.b16 %v9897
    %v10058 = vunpack.c.h.b16 %v9897
    %v10059 = vunpack.c.l.b16 %v9898
    %v10060 = vunpack.c.h.b16 %v9898
    %v10061 = vunpack.c.l.b16 %v9899
    %v10062 = vunpack.c.h.b16 %v9899
    %v10063 = vunpack.c.l.b16 %v9900
    %v10064 = vunpack.c.h.b16 %v9900
    %v10065 = vunpack.c.l.b16 %v9901
    %v10066 = vunpack.c.h.b16 %v9901
    %v10067 = vunpack.c.l.b16 %v9902
    %v10068 = vunpack.c.h.b16 %v9902
    %v10069 = vunpack.c.l.b16 %v9903
    %v10070 = vunpack.c.h.b16 %v9903
    %v10071 = vunpack.c.l.b16 %v9904
    %v10072 = vunpack.c.h.b16 %v9904
    %v10073 = vunpack.c.l.b16 %v9905
    %v10074 = vunpack.c.h.b16 %v9905
    %v10075 = vunpack.c.l.b16 %v9906
    %v10076 = vunpack.c.h.b16 %v9906
    %v10077 = vunpack.c.l.b16 %v9907
    %v10078 = vunpack.c.h.b16 %v9907
    %v10079 = vunpack.c.l.b16 %v9908
    %v10080 = vunpack.c.h.b16 %v9908
    %v10081 = vunpack.c.l.b16 %v9909
    %v10082 = vunpack.c.h.b16 %v9909
    %v10083 = vunpack.c.l.b16 %v9910
    %v10084 = vunpack.c.h.b16 %v9910
    %v10085 = vunpack.c.l.b16 %v9911
    %v10086 = vunpack.c.h.b16 %v9911
    %v10087 = vunpack.c.l.b16 %v9912
    %v10088 = vunpack.c.h.b16 %v9912
    %v10089 = vunpack.c.l.b16 %v9913
    %v10090 = vunpack.c.h.b16 %v9913
    %v10091 = vunpack.c.l.b16 %v9914
    %v10092 = vunpack.c.h.b16 %v9914
    %v10093 = vunpack.c.l.b16 %v9915
    %v10094 = vunpack.c.h.b16 %v9915
    %v10095 = vunpack.c.l.b16 %v9916
    %v10096 = vunpack.c.h.b16 %v9916
    %v10097 = vunpack.c.l.b16 %v9917
    %v10098 = vunpack.c.h.b16 %v9917
    %v10099 = vunpack.c.l.b16 %v9918
    %v10100 = vunpack.c.h.b16 %v9918
    %v10101 = vunpack.c.l.b16 %v9919
    %v10102 = vunpack.c.h.b16 %v9919
    %v10103 = vunpack.c.l.b16 %v9920
    %v10104 = vunpack.c.h.b16 %v9920
    %v10105 = vunpack.c.l.b16 %v9921
    %v10106 = vunpack.c.h.b16 %v9921
    %v10107 = vunpack.c.l.b16 %v9922
    %v10108 = vunpack.c.h.b16 %v9922
    %v10109 = vunpack.c.l.b16 %v9923
    %v10110 = vunpack.c.h.b16 %v9923
    %v10111 = vunpack.c.l.b16 %v9924
    %v10112 = vunpack.c.h.b16 %v9924
    %v10113 = vunpack.c.l.b16 %v9925
    %v10114 = vunpack.c.h.b16 %v9925
    %v10115 = vunpack.c.l.b16 %v9926
    %v10116 = vunpack.c.h.b16 %v9926
    %v10117 = vunpack.c.l.b16 %v9927
    %v10118 = vunpack.c.h.b16 %v9927
    %v10119 = vunpack.c.l.b16 %v9928
    %v10120 = vunpack.c.h.b16 %v9928
    %v10121 = vunpack.c.l.b16 %v9929
    %v10122 = vunpack.c.h.b16 %v9929
    %v10123 = vunpack.c.l.b16 %v9930
    %v10124 = vunpack.c.h.b16 %v9930
    %v10125 = vpack.c.b16 %v10005, %v9997
    %v10126 = vpack.c.b16 %v10006, %v9998
    %v10127 = vpack.c.b16 %v10007, %v9999
    %v10128 = vpack.c.b16 %v10008, %v10000
    %v10129 = vpack.c.b16 %v10009, %v10001
    %v10130 = vpack.c.b16 %v10010, %v10002
    %v10131 = vpack.c.b16 %v10011, %v10003
    %v10132 = vpack.c.b16 %v10012, %v10004
    %v10133 = vpack.c.b16 %v10021, %v10013
    %v10134 = vpack.c.b16 %v10022, %v10014
    %v10135 = vpack.c.b16 %v10023, %v10015
    %v10136 = vpack.c.b16 %v10024, %v10016
    %v10137 = vpack.c.b16 %v10025, %v10017
    %v10138 = vpack.c.b16 %v10026, %v10018
    %v10139 = vpack.c.b16 %v10027, %v10019
    %v10140 = vpack.c.b16 %v10028, %v10020
    %v10141 = vpack.c.b16 %v10037, %v10029
    %v10142 = vpack.c.b16 %v10038, %v10030
    %v10143 = vpack.c.b16 %v10039, %v10031
    %v10144 = vpack.c.b16 %v10040, %v10032
    %v10145 = vpack.c.b16 %v10041, %v10033
    %v10146 = vpack.c.b16 %v10042, %v10034
    %v10147 = vpack.c.b16 %v10043, %v10035
    %v10148 = vpack.c.b16 %v10044, %v10036
    %v10149 = vpack.c.b16 %v10053, %v10045
    %v10150 = vpack.c.b16 %v10054, %v10046
    %v10151 = vpack.c.b16 %v10055, %v10047
    %v10152 = vpack.c.b16 %v10056, %v10048
    %v10153 = vpack.c.b16 %v10057, %v10049
    %v10154 = vpack.c.b16 %v10058, %v10050
    %v10155 = vpack.c.b16 %v10059, %v10051
    %v10156 = vpack.c.b16 %v10060, %v10052
    %v10157 = vpack.c.b16 %v10069, %v10061
    %v10158 = vpack.c.b16 %v10070, %v10062
    %v10159 = vpack.c.b16 %v10071, %v10063
    %v10160 = vpack.c.b16 %v10072, %v10064
    %v10161 = vpack.c.b16 %v10073, %v10065
    %v10162 = vpack.c.b16 %v10074, %v10066
    %v10163 = vpack.c.b16 %v10075, %v10067
    %v10164 = vpack.c.b16 %v10076, %v10068
    %v10165 = vpack.c.b16 %v10085, %v10077
    %v10166 = vpack.c.b16 %v10086, %v10078
    %v10167 = vpack.c.b16 %v10087, %v10079
    %v10168 = vpack.c.b16 %v10088, %v10080
    %v10169 = vpack.c.b16 %v10089, %v10081
    %v10170 = vpack.c.b16 %v10090, %v10082
    %v10171 = vpack.c.b16 %v10091, %v10083
    %v10172 = vpack.c.b16 %v10092, %v10084
    %v10173 = vpack.c.b16 %v10101, %v10093
    %v10174 = vpack.c.b16 %v10102, %v10094
    %v10175 = vpack.c.b16 %v10103, %v10095
    %v10176 = vpack.c.b16 %v10104, %v10096
    %v10177 = vpack.c.b16 %v10105, %v10097
    %v10178 = vpack.c.b16 %v10106, %v10098
    %v10179 = vpack.c.b16 %v10107, %v10099
    %v10180 = vpack.c.b16 %v10108, %v10100
    %v10181 = vpack.c.b16 %v10117, %v10109
    %v10182 = vpack.c.b16 %v10118, %v10110
    %v10183 = vpack.c.b16 %v10119, %v10111
    %v10184 = vpack.c.b16 %v10120, %v10112
    %v10185 = vpack.c.b16 %v10121, %v10113
    %v10186 = vpack.c.b16 %v10122, %v10114
    %v10187 = vpack.c.b16 %v10123, %v10115
    %v10188 = vpack.c.b16 %v10124, %v10116
    %10253 = vmatprep.subr.bf16.mxu0 %v10126
    %10254 = vmatpush1.bf16.msra.mxu0 %v10125
    %10255 = vmatprep.subr.bf16.mxu0 %v10134
    %10256 = vmatpush1.bf16.msra.mxu0 %v10133
    %10257 = vmatprep.subr.bf16.mxu0 %v10142
    %10258 = vmatpush1.bf16.msra.mxu0 %v10141
    %10259 = vmatprep.subr.bf16.mxu0 %v10150
    %10260 = vmatpush1.bf16.msra.mxu0 %v10149
    %10261 = vmatprep.subr.bf16.mxu0 %v10158
    %10262 = vmatpush1.bf16.msra.mxu0 %v10157
    %10263 = vmatprep.subr.bf16.mxu0 %v10166
    %10264 = vmatpush1.bf16.msra.mxu0 %v10165
    %10265 = vmatprep.subr.bf16.mxu0 %v10174
    %10266 = vmatpush1.bf16.msra.mxu0 %v10173
    %10267 = vmatprep.subr.bf16.mxu0 %v10182
    %10268 = vmatpush1.bf16.msra.mxu0 %v10181
    %10269 = vmatprep.subr.bf16.mxu0 0
    %10270 = vmatpush1.bf16.msra.mxu0 0
    %10271 = vmatprep.subr.bf16.mxu0 0
    %10272 = vmatpush1.bf16.msra.mxu0 0
    %10273 = vmatprep.subr.bf16.mxu0 0
    %10274 = vmatpush1.bf16.msra.mxu0 0
    %10275 = vmatprep.subr.bf16.mxu0 0
    %10276 = vmatpush1.bf16.msra.mxu0 0
    %10277 = vmatprep.subr.bf16.mxu0 0
    %10278 = vmatpush1.bf16.msra.mxu0 0
    %10279 = vmatprep.subr.bf16.mxu0 0
    %10280 = vmatpush1.bf16.msra.mxu0 0
    %10281 = vmatprep.subr.bf16.mxu0 0
    %10282 = vmatpush1.bf16.msra.mxu0 0
    %10283 = vmatprep.subr.bf16.mxu0 0
    %10284 = vmatpush1.bf16.msra.mxu0 0
    %10285 = vmatprep.mubr.bf16.mxu0 0
    %10286 = vmatmul.mubr.bf16.gmra.mrb[0].mxu0 %v9931
    %v10287 = vpop.f32.mrb[0].mxu0
    %v10288 = vadd.f32 0.0, %v10287
    %v10289 = vpop.f32.mrb[0].mxu0
    %v10290 = vadd.f32 0.0, %v10289
    %v10291 = vpop.f32.mrb[0].mxu0
    %v10292 = vpop.f32.mrb[0].mxu0
    %10293 = vdwg.mxu0
    %10294 = vmatprep.subr.bf16.mxu0 %v10128
    %10295 = vmatpush1.bf16.msra.mxu0 %v10127
    %10296 = vmatprep.subr.bf16.mxu0 %v10136
    %10297 = vmatpush1.bf16.msra.mxu0 %v10135
    %10298 = vmatprep.subr.bf16.mxu0 %v10144
    %10299 = vmatpush1.bf16.msra.mxu0 %v10143
    %10300 = vmatprep.subr.bf16.mxu0 %v10152
    %10301 = vmatpush1.bf16.msra.mxu0 %v10151
    %10302 = vmatprep.subr.bf16.mxu0 %v10160
    %10303 = vmatpush1.bf16.msra.mxu0 %v10159
    %10304 = vmatprep.subr.bf16.mxu0 %v10168
    %10305 = vmatpush1.bf16.msra.mxu0 %v10167
    %10306 = vmatprep.subr.bf16.mxu0 %v10176
    %10307 = vmatpush1.bf16.msra.mxu0 %v10175
    %10308 = vmatprep.subr.bf16.mxu0 %v10184
    %10309 = vmatpush1.bf16.msra.mxu0 %v10183
    %10310 = vmatprep.subr.bf16.mxu0 0
    %10311 = vmatpush1.bf16.msra.mxu0 0
    %10312 = vmatprep.subr.bf16.mxu0 0
    %10313 = vmatpush1.bf16.msra.mxu0 0
    %10314 = vmatprep.subr.bf16.mxu0 0
    %10315 = vmatpush1.bf16.msra.mxu0 0
    %10316 = vmatprep.subr.bf16.mxu0 0
    %10317 = vmatpush1.bf16.msra.mxu0 0
    %10318 = vmatprep.subr.bf16.mxu0 0
    %10319 = vmatpush1.bf16.msra.mxu0 0
    %10320 = vmatprep.subr.bf16.mxu0 0
    %10321 = vmatpush1.bf16.msra.mxu0 0
    %10322 = vmatprep.subr.bf16.mxu0 0
    %10323 = vmatpush1.bf16.msra.mxu0 0
    %10324 = vmatprep.subr.bf16.mxu0 0
    %10325 = vmatpush1.bf16.msra.mxu0 0
    %10326 = vmatprep.mubr.bf16.mxu0 0
    %10327 = vmatmul.mubr.bf16.gmra.mrb[0].mxu0 %v9931
    %v10328 = vpop.f32.mrb[0].mxu0
    %v10329 = vadd.f32 0.0, %v10328
    %v10330 = vpop.f32.mrb[0].mxu0
    %v10331 = vadd.f32 0.0, %v10330
    %v10332 = vpop.f32.mrb[0].mxu0
    %v10333 = vpop.f32.mrb[0].mxu0
    %10334 = vdwg.mxu0
    %10335 = vmatprep.subr.bf16.mxu0 %v10130
    %10336 = vmatpush1.bf16.msra.mxu0 %v10129
    %10337 = vmatprep.subr.bf16.mxu0 %v10138
    %10338 = vmatpush1.bf16.msra.mxu0 %v10137
    %10339 = vmatprep.subr.bf16.mxu0 %v10146
    %10340 = vmatpush1.bf16.msra.mxu0 %v10145
    %10341 = vmatprep.subr.bf16.mxu0 %v10154
    %10342 = vmatpush1.bf16.msra.mxu0 %v10153
    %10343 = vmatprep.subr.bf16.mxu0 %v10162
    %10344 = vmatpush1.bf16.msra.mxu0 %v10161
    %10345 = vmatprep.subr.bf16.mxu0 %v10170
    %10346 = vmatpush1.bf16.msra.mxu0 %v10169
    %10347 = vmatprep.subr.bf16.mxu0 %v10178
    %10348 = vmatpush1.bf16.msra.mxu0 %v10177
    %10349 = vmatprep.subr.bf16.mxu0 %v10186
    %10350 = vmatpush1.bf16.msra.mxu0 %v10185
    %10351 = vmatprep.subr.bf16.mxu0 0
    %10352 = vmatpush1.bf16.msra.mxu0 0
    %10353 = vmatprep.subr.bf16.mxu0 0
    %10354 = vmatpush1.bf16.msra.mxu0 0
    %10355 = vmatprep.subr.bf16.mxu0 0
    %10356 = vmatpush1.bf16.msra.mxu0 0
    %10357 = vmatprep.subr.bf16.mxu0 0
    %10358 = vmatpush1.bf16.msra.mxu0 0
    %10359 = vmatprep.subr.bf16.mxu0 0
    %10360 = vmatpush1.bf16.msra.mxu0 0
    %10361 = vmatprep.subr.bf16.mxu0 0
    %10362 = vmatpush1.bf16.msra.mxu0 0
    %10363 = vmatprep.subr.bf16.mxu0 0
    %10364 = vmatpush1.bf16.msra.mxu0 0
    %10365 = vmatprep.subr.bf16.mxu0 0
    %10366 = vmatpush1.bf16.msra.mxu0 0
    %10367 = vmatprep.mubr.bf16.mxu0 0
    %10368 = vmatmul.mubr.bf16.gmra.mrb[0].mxu0 %v9931
    %v10369 = vpop.f32.mrb[0].mxu0
    %v10370 = vadd.f32 0.0, %v10369
    %v10371 = vpop.f32.mrb[0].mxu0
    %v10372 = vadd.f32 0.0, %v10371
    %v10373 = vpop.f32.mrb[0].mxu0
    %v10374 = vpop.f32.mrb[0].mxu0
    %10375 = vdwg.mxu0
    %10376 = vmatprep.subr.bf16.mxu0 %v10132
    %10377 = vmatpush1.bf16.msra.mxu0 %v10131
    %10378 = vmatprep.subr.bf16.mxu0 %v10140
    %10379 = vmatpush1.bf16.msra.mxu0 %v10139
    %10380 = vmatprep.subr.bf16.mxu0 %v10148
    %10381 = vmatpush1.bf16.msra.mxu0 %v10147
    %10382 = vmatprep.subr.bf16.mxu0 %v10156
    %10383 = vmatpush1.bf16.msra.mxu0 %v10155
    %10384 = vmatprep.subr.bf16.mxu0 %v10164
    %10385 = vmatpush1.bf16.msra.mxu0 %v10163
    %10386 = vmatprep.subr.bf16.mxu0 %v10172
    %10387 = vmatpush1.bf16.msra.mxu0 %v10171
    %10388 = vmatprep.subr.bf16.mxu0 %v10180
    %10389 = vmatpush1.bf16.msra.mxu0 %v10179
    %10390 = vmatprep.subr.bf16.mxu0 %v10188
    %10391 = vmatpush1.bf16.msra.mxu0 %v10187
    %10392 = vmatprep.subr.bf16.mxu0 0
    %10393 = vmatpush1.bf16.msra.mxu0 0
    %10394 = vmatprep.subr.bf16.mxu0 0
    %10395 = vmatpush1.bf16.msra.mxu0 0
    %10396 = vmatprep.subr.bf16.mxu0 0
    %10397 = vmatpush1.bf16.msra.mxu0 0
    %10398 = vmatprep.subr.bf16.mxu0 0
    %10399 = vmatpush1.bf16.msra.mxu0 0
    %10400 = vmatprep.subr.bf16.mxu0 0
    %10401 = vmatpush1.bf16.msra.mxu0 0
    %10402 = vmatprep.subr.bf16.mxu0 0
    %10403 = vmatpush1.bf16.msra.mxu0 0
    %10404 = vmatprep.subr.bf16.mxu0 0
    %10405 = vmatpush1.bf16.msra.mxu0 0
    %10406 = vmatprep.subr.bf16.mxu0 0
    %10407 = vmatpush1.bf16.msra.mxu0 0
    %10408 = vmatprep.mubr.bf16.mxu0 0
    %10409 = vmatmul.mubr.bf16.gmra.mrb[0].mxu0 %v9931
    %v10410 = vpop.f32.mrb[0].mxu0
    %v10411 = vadd.f32 0.0, %v10410
    %v10412 = vpop.f32.mrb[0].mxu0
    %v10413 = vadd.f32 0.0, %v10412
    %v10414 = vpop.f32.mrb[0].mxu0
    %v10415 = vpop.f32.mrb[0].mxu0
    %10416 = vdwg.mxu0
    %v10417 = vadd.f32 %v9858, %v10288
    %v10418 = vadd.f32 %v9859, %v10290
    %v10419 = vadd.f32 %v9860, %v10329
    %v10420 = vadd.f32 %v9861, %v10331
    %v10421 = vadd.f32 %v9862, %v10370
    %v10422 = vadd.f32 %v9863, %v10372
    %v10423 = vadd.f32 %v9864, %v10411
    %v10424 = vadd.f32 %v9865, %v10413
    %s10425 = scalar_lea.vmem [#allocation10], 7680
    %v10426 = vld [vmem:[%s10425] sm:$0xff]
    %v10427 = vld [vmem:[%s10425 + $0x8] sm:$0xff]
    %v10428 = vld [vmem:[%s10425 + $0x10] sm:$0xff]
    %v10429 = vld [vmem:[%s10425 + $0x18] sm:$0xff]
    %v10430 = vld [vmem:[%s10425 + $0x20] sm:$0xff]
    %v10431 = vld [vmem:[%s10425 + $0x28] sm:$0xff]
    %v10432 = vld [vmem:[%s10425 + $0x30] sm:$0xff]
    %v10433 = vld [vmem:[%s10425 + $0x38] sm:$0xff]
    %v10434 = vld [vmem:[%s10425 + $0x40] sm:$0xff]
    %v10435 = vld [vmem:[%s10425 + $0x48] sm:$0xff]
    %v10436 = vld [vmem:[%s10425 + $0x50] sm:$0xff]
    %v10437 = vld [vmem:[%s10425 + $0x58] sm:$0xff]
    %v10438 = vld [vmem:[%s10425 + $0x60] sm:$0xff]
    %v10439 = vld [vmem:[%s10425 + $0x68] sm:$0xff]
    %v10440 = vld [vmem:[%s10425 + $0x70] sm:$0xff]
    %v10441 = vld [vmem:[%s10425 + $0x78] sm:$0xff]
    %v10442 = vld [vmem:[%s10425 + $0x80] sm:$0xff]
    %v10443 = vld [vmem:[%s10425 + $0x88] sm:$0xff]
    %v10444 = vld [vmem:[%s10425 + $0x90] sm:$0xff]
    %v10445 = vld [vmem:[%s10425 + $0x98] sm:$0xff]
    %v10446 = vld [vmem:[%s10425 + $0xa0] sm:$0xff]
    %v10447 = vld [vmem:[%s10425 + $0xa8] sm:$0xff]
    %v10448 = vld [vmem:[%s10425 + $0xb0] sm:$0xff]
    %v10449 = vld [vmem:[%s10425 + $0xb8] sm:$0xff]
    %v10450 = vld [vmem:[%s10425 + $0xc0] sm:$0xff]
    %v10451 = vld [vmem:[%s10425 + $0xc8] sm:$0xff]
    %v10452 = vld [vmem:[%s10425 + $0xd0] sm:$0xff]
    %v10453 = vld [vmem:[%s10425 + $0xd8] sm:$0xff]
    %v10454 = vld [vmem:[%s10425 + $0xe0] sm:$0xff]
    %v10455 = vld [vmem:[%s10425 + $0xe8] sm:$0xff]
    %v10456 = vld [vmem:[%s10425 + $0xf0] sm:$0xff]
    %v10457 = vld [vmem:[%s10425 + $0xf8] sm:$0xff]
    %v10458 = vld [vmem:[%s10425 + $0x100] sm:$0xff]
    %v10459 = vld [vmem:[%s10425 + $0x108] sm:$0xff]
    %v10460 = vld [vmem:[%s10425 + $0x110] sm:$0xff]
    %v10461 = vld [vmem:[%s10425 + $0x118] sm:$0xff]
    %v10462 = vld [vmem:[%s10425 + $0x120] sm:$0xff]
    %v10463 = vld [vmem:[%s10425 + $0x128] sm:$0xff]
    %v10464 = vld [vmem:[%s10425 + $0x130] sm:$0xff]
    %v10465 = vld [vmem:[%s10425 + $0x138] sm:$0xff]
    %v10466 = vld [vmem:[%s10425 + $0x140] sm:$0xff]
    %v10467 = vld [vmem:[%s10425 + $0x148] sm:$0xff]
    %v10468 = vld [vmem:[%s10425 + $0x150] sm:$0xff]
    %v10469 = vld [vmem:[%s10425 + $0x158] sm:$0xff]
    %v10470 = vld [vmem:[%s10425 + $0x160] sm:$0xff]
    %v10471 = vld [vmem:[%s10425 + $0x168] sm:$0xff]
    %v10472 = vld [vmem:[%s10425 + $0x170] sm:$0xff]
    %v10473 = vld [vmem:[%s10425 + $0x178] sm:$0xff]
    %v10474 = vld [vmem:[%s10425 + $0x180] sm:$0xff]
    %v10475 = vld [vmem:[%s10425 + $0x188] sm:$0xff]
    %v10476 = vld [vmem:[%s10425 + $0x190] sm:$0xff]
    %v10477 = vld [vmem:[%s10425 + $0x198] sm:$0xff]
    %v10478 = vld [vmem:[%s10425 + $0x1a0] sm:$0xff]
    %v10479 = vld [vmem:[%s10425 + $0x1a8] sm:$0xff]
    %v10480 = vld [vmem:[%s10425 + $0x1b0] sm:$0xff]
    %v10481 = vld [vmem:[%s10425 + $0x1b8] sm:$0xff]
    %v10482 = vld [vmem:[%s10425 + $0x1c0] sm:$0xff]
    %v10483 = vld [vmem:[%s10425 + $0x1c8] sm:$0xff]
    %v10484 = vld [vmem:[%s10425 + $0x1d0] sm:$0xff]
    %v10485 = vld [vmem:[%s10425 + $0x1d8] sm:$0xff]
    %v10486 = vld [vmem:[%s10425 + $0x1e0] sm:$0xff]
    %v10487 = vld [vmem:[%s10425 + $0x1e8] sm:$0xff]
    %v10488 = vld [vmem:[%s10425 + $0x1f0] sm:$0xff]
    %v10489 = vld [vmem:[%s10425 + $0x1f8] sm:$0xff]
    %v10490 = vrot.slane %v2058, 7
    %v10556 = vunpack.c.l.b16 %v10426
    %v10557 = vunpack.c.h.b16 %v10426
    %v10558 = vunpack.c.l.b16 %v10427
    %v10559 = vunpack.c.h.b16 %v10427
    %v10560 = vunpack.c.l.b16 %v10428
    %v10561 = vunpack.c.h.b16 %v10428
    %v10562 = vunpack.c.l.b16 %v10429
    %v10563 = vunpack.c.h.b16 %v10429
    %v10564 = vunpack.c.l.b16 %v10430
    %v10565 = vunpack.c.h.b16 %v10430
    %v10566 = vunpack.c.l.b16 %v10431
    %v10567 = vunpack.c.h.b16 %v10431
    %v10568 = vunpack.c.l.b16 %v10432
    %v10569 = vunpack.c.h.b16 %v10432
    %v10570 = vunpack.c.l.b16 %v10433
    %v10571 = vunpack.c.h.b16 %v10433
    %v10572 = vunpack.c.l.b16 %v10434
    %v10573 = vunpack.c.h.b16 %v10434
    %v10574 = vunpack.c.l.b16 %v10435
    %v10575 = vunpack.c.h.b16 %v10435
    %v10576 = vunpack.c.l.b16 %v10436
    %v10577 = vunpack.c.h.b16 %v10436
    %v10578 = vunpack.c.l.b16 %v10437
    %v10579 = vunpack.c.h.b16 %v10437
    %v10580 = vunpack.c.l.b16 %v10438
    %v10581 = vunpack.c.h.b16 %v10438
    %v10582 = vunpack.c.l.b16 %v10439
    %v10583 = vunpack.c.h.b16 %v10439
    %v10584 = vunpack.c.l.b16 %v10440
    %v10585 = vunpack.c.h.b16 %v10440
    %v10586 = vunpack.c.l.b16 %v10441
    %v10587 = vunpack.c.h.b16 %v10441
    %v10588 = vunpack.c.l.b16 %v10442
    %v10589 = vunpack.c.h.b16 %v10442
    %v10590 = vunpack.c.l.b16 %v10443
    %v10591 = vunpack.c.h.b16 %v10443
    %v10592 = vunpack.c.l.b16 %v10444
    %v10593 = vunpack.c.h.b16 %v10444
    %v10594 = vunpack.c.l.b16 %v10445
    %v10595 = vunpack.c.h.b16 %v10445
    %v10596 = vunpack.c.l.b16 %v10446
    %v10597 = vunpack.c.h.b16 %v10446
    %v10598 = vunpack.c.l.b16 %v10447
    %v10599 = vunpack.c.h.b16 %v10447
    %v10600 = vunpack.c.l.b16 %v10448
    %v10601 = vunpack.c.h.b16 %v10448
    %v10602 = vunpack.c.l.b16 %v10449
    %v10603 = vunpack.c.h.b16 %v10449
    %v10604 = vunpack.c.l.b16 %v10450
    %v10605 = vunpack.c.h.b16 %v10450
    %v10606 = vunpack.c.l.b16 %v10451
    %v10607 = vunpack.c.h.b16 %v10451
    %v10608 = vunpack.c.l.b16 %v10452
    %v10609 = vunpack.c.h.b16 %v10452
    %v10610 = vunpack.c.l.b16 %v10453
    %v10611 = vunpack.c.h.b16 %v10453
    %v10612 = vunpack.c.l.b16 %v10454
    %v10613 = vunpack.c.h.b16 %v10454
    %v10614 = vunpack.c.l.b16 %v10455
    %v10615 = vunpack.c.h.b16 %v10455
    %v10616 = vunpack.c.l.b16 %v10456
    %v10617 = vunpack.c.h.b16 %v10456
    %v10618 = vunpack.c.l.b16 %v10457
    %v10619 = vunpack.c.h.b16 %v10457
    %v10620 = vunpack.c.l.b16 %v10458
    %v10621 = vunpack.c.h.b16 %v10458
    %v10622 = vunpack.c.l.b16 %v10459
    %v10623 = vunpack.c.h.b16 %v10459
    %v10624 = vunpack.c.l.b16 %v10460
    %v10625 = vunpack.c.h.b16 %v10460
    %v10626 = vunpack.c.l.b16 %v10461
    %v10627 = vunpack.c.h.b16 %v10461
    %v10628 = vunpack.c.l.b16 %v10462
    %v10629 = vunpack.c.h.b16 %v10462
    %v10630 = vunpack.c.l.b16 %v10463
    %v10631 = vunpack.c.h.b16 %v10463
    %v10632 = vunpack.c.l.b16 %v10464
    %v10633 = vunpack.c.h.b16 %v10464
    %v10634 = vunpack.c.l.b16 %v10465
    %v10635 = vunpack.c.h.b16 %v10465
    %v10636 = vunpack.c.l.b16 %v10466
    %v10637 = vunpack.c.h.b16 %v10466
    %v10638 = vunpack.c.l.b16 %v10467
    %v10639 = vunpack.c.h.b16 %v10467
    %v10640 = vunpack.c.l.b16 %v10468
    %v10641 = vunpack.c.h.b16 %v10468
    %v10642 = vunpack.c.l.b16 %v10469
    %v10643 = vunpack.c.h.b16 %v10469
    %v10644 = vunpack.c.l.b16 %v10470
    %v10645 = vunpack.c.h.b16 %v10470
    %v10646 = vunpack.c.l.b16 %v10471
    %v10647 = vunpack.c.h.b16 %v10471
    %v10648 = vunpack.c.l.b16 %v10472
    %v10649 = vunpack.c.h.b16 %v10472
    %v10650 = vunpack.c.l.b16 %v10473
    %v10651 = vunpack.c.h.b16 %v10473
    %v10652 = vunpack.c.l.b16 %v10474
    %v10653 = vunpack.c.h.b16 %v10474
    %v10654 = vunpack.c.l.b16 %v10475
    %v10655 = vunpack.c.h.b16 %v10475
    %v10656 = vunpack.c.l.b16 %v10476
    %v10657 = vunpack.c.h.b16 %v10476
    %v10658 = vunpack.c.l.b16 %v10477
    %v10659 = vunpack.c.h.b16 %v10477
    %v10660 = vunpack.c.l.b16 %v10478
    %v10661 = vunpack.c.h.b16 %v10478
    %v10662 = vunpack.c.l.b16 %v10479
    %v10663 = vunpack.c.h.b16 %v10479
    %v10664 = vunpack.c.l.b16 %v10480
    %v10665 = vunpack.c.h.b16 %v10480
    %v10666 = vunpack.c.l.b16 %v10481
    %v10667 = vunpack.c.h.b16 %v10481
    %v10668 = vunpack.c.l.b16 %v10482
    %v10669 = vunpack.c.h.b16 %v10482
    %v10670 = vunpack.c.l.b16 %v10483
    %v10671 = vunpack.c.h.b16 %v10483
    %v10672 = vunpack.c.l.b16 %v10484
    %v10673 = vunpack.c.h.b16 %v10484
    %v10674 = vunpack.c.l.b16 %v10485
    %v10675 = vunpack.c.h.b16 %v10485
    %v10676 = vunpack.c.l.b16 %v10486
    %v10677 = vunpack.c.h.b16 %v10486
    %v10678 = vunpack.c.l.b16 %v10487
    %v10679 = vunpack.c.h.b16 %v10487
    %v10680 = vunpack.c.l.b16 %v10488
    %v10681 = vunpack.c.h.b16 %v10488
    %v10682 = vunpack.c.l.b16 %v10489
    %v10683 = vunpack.c.h.b16 %v10489
    %v10684 = vpack.c.b16 %v10564, %v10556
    %v10685 = vpack.c.b16 %v10565, %v10557
    %v10686 = vpack.c.b16 %v10566, %v10558
    %v10687 = vpack.c.b16 %v10567, %v10559
    %v10688 = vpack.c.b16 %v10568, %v10560
    %v10689 = vpack.c.b16 %v10569, %v10561
    %v10690 = vpack.c.b16 %v10570, %v10562
    %v10691 = vpack.c.b16 %v10571, %v10563
    %v10692 = vpack.c.b16 %v10580, %v10572
    %v10693 = vpack.c.b16 %v10581, %v10573
    %v10694 = vpack.c.b16 %v10582, %v10574
    %v10695 = vpack.c.b16 %v10583, %v10575
    %v10696 = vpack.c.b16 %v10584, %v10576
    %v10697 = vpack.c.b16 %v10585, %v10577
    %v10698 = vpack.c.b16 %v10586, %v10578
    %v10699 = vpack.c.b16 %v10587, %v10579
    %v10700 = vpack.c.b16 %v10596, %v10588
    %v10701 = vpack.c.b16 %v10597, %v10589
    %v10702 = vpack.c.b16 %v10598, %v10590
    %v10703 = vpack.c.b16 %v10599, %v10591
    %v10704 = vpack.c.b16 %v10600, %v10592
    %v10705 = vpack.c.b16 %v10601, %v10593
    %v10706 = vpack.c.b16 %v10602, %v10594
    %v10707 = vpack.c.b16 %v10603, %v10595
    %v10708 = vpack.c.b16 %v10612, %v10604
    %v10709 = vpack.c.b16 %v10613, %v10605
    %v10710 = vpack.c.b16 %v10614, %v10606
    %v10711 = vpack.c.b16 %v10615, %v10607
    %v10712 = vpack.c.b16 %v10616, %v10608
    %v10713 = vpack.c.b16 %v10617, %v10609
    %v10714 = vpack.c.b16 %v10618, %v10610
    %v10715 = vpack.c.b16 %v10619, %v10611
    %v10716 = vpack.c.b16 %v10628, %v10620
    %v10717 = vpack.c.b16 %v10629, %v10621
    %v10718 = vpack.c.b16 %v10630, %v10622
    %v10719 = vpack.c.b16 %v10631, %v10623
    %v10720 = vpack.c.b16 %v10632, %v10624
    %v10721 = vpack.c.b16 %v10633, %v10625
    %v10722 = vpack.c.b16 %v10634, %v10626
    %v10723 = vpack.c.b16 %v10635, %v10627
    %v10724 = vpack.c.b16 %v10644, %v10636
    %v10725 = vpack.c.b16 %v10645, %v10637
    %v10726 = vpack.c.b16 %v10646, %v10638
    %v10727 = vpack.c.b16 %v10647, %v10639
    %v10728 = vpack.c.b16 %v10648, %v10640
    %v10729 = vpack.c.b16 %v10649, %v10641
    %v10730 = vpack.c.b16 %v10650, %v10642
    %v10731 = vpack.c.b16 %v10651, %v10643
    %v10732 = vpack.c.b16 %v10660, %v10652
    %v10733 = vpack.c.b16 %v10661, %v10653
    %v10734 = vpack.c.b16 %v10662, %v10654
    %v10735 = vpack.c.b16 %v10663, %v10655
    %v10736 = vpack.c.b16 %v10664, %v10656
    %v10737 = vpack.c.b16 %v10665, %v10657
    %v10738 = vpack.c.b16 %v10666, %v10658
    %v10739 = vpack.c.b16 %v10667, %v10659
    %v10740 = vpack.c.b16 %v10676, %v10668
    %v10741 = vpack.c.b16 %v10677, %v10669
    %v10742 = vpack.c.b16 %v10678, %v10670
    %v10743 = vpack.c.b16 %v10679, %v10671
    %v10744 = vpack.c.b16 %v10680, %v10672
    %v10745 = vpack.c.b16 %v10681, %v10673
    %v10746 = vpack.c.b16 %v10682, %v10674
    %v10747 = vpack.c.b16 %v10683, %v10675
    %10812 = vmatprep.subr.bf16.mxu0 %v10685
    %10813 = vmatpush1.bf16.msra.mxu0 %v10684
    %10814 = vmatprep.subr.bf16.mxu0 %v10693
    %10815 = vmatpush1.bf16.msra.mxu0 %v10692
    %10816 = vmatprep.subr.bf16.mxu0 %v10701
    %10817 = vmatpush1.bf16.msra.mxu0 %v10700
    %10818 = vmatprep.subr.bf16.mxu0 %v10709
    %10819 = vmatpush1.bf16.msra.mxu0 %v10708
    %10820 = vmatprep.subr.bf16.mxu0 %v10717
    %10821 = vmatpush1.bf16.msra.mxu0 %v10716
    %10822 = vmatprep.subr.bf16.mxu0 %v10725
    %10823 = vmatpush1.bf16.msra.mxu0 %v10724
    %10824 = vmatprep.subr.bf16.mxu0 %v10733
    %10825 = vmatpush1.bf16.msra.mxu0 %v10732
    %10826 = vmatprep.subr.bf16.mxu0 %v10741
    %10827 = vmatpush1.bf16.msra.mxu0 %v10740
    %10828 = vmatprep.subr.bf16.mxu0 0
    %10829 = vmatpush1.bf16.msra.mxu0 0
    %10830 = vmatprep.subr.bf16.mxu0 0
    %10831 = vmatpush1.bf16.msra.mxu0 0
    %10832 = vmatprep.subr.bf16.mxu0 0
    %10833 = vmatpush1.bf16.msra.mxu0 0
    %10834 = vmatprep.subr.bf16.mxu0 0
    %10835 = vmatpush1.bf16.msra.mxu0 0
    %10836 = vmatprep.subr.bf16.mxu0 0
    %10837 = vmatpush1.bf16.msra.mxu0 0
    %10838 = vmatprep.subr.bf16.mxu0 0
    %10839 = vmatpush1.bf16.msra.mxu0 0
    %10840 = vmatprep.subr.bf16.mxu0 0
    %10841 = vmatpush1.bf16.msra.mxu0 0
    %10842 = vmatprep.subr.bf16.mxu0 0
    %10843 = vmatpush1.bf16.msra.mxu0 0
    %10844 = vmatprep.mubr.bf16.mxu0 0
    %10845 = vmatmul.mubr.bf16.gmra.mrb[0].mxu0 %v10490
    %v10846 = vpop.f32.mrb[0].mxu0
    %v10847 = vadd.f32 0.0, %v10846
    %v10848 = vpop.f32.mrb[0].mxu0
    %v10849 = vadd.f32 0.0, %v10848
    %v10850 = vpop.f32.mrb[0].mxu0
    %v10851 = vpop.f32.mrb[0].mxu0
    %10852 = vdwg.mxu0
    %10853 = vmatprep.subr.bf16.mxu0 %v10687
    %10854 = vmatpush1.bf16.msra.mxu0 %v10686
    %10855 = vmatprep.subr.bf16.mxu0 %v10695
    %10856 = vmatpush1.bf16.msra.mxu0 %v10694
    %10857 = vmatprep.subr.bf16.mxu0 %v10703
    %10858 = vmatpush1.bf16.msra.mxu0 %v10702
    %10859 = vmatprep.subr.bf16.mxu0 %v10711
    %10860 = vmatpush1.bf16.msra.mxu0 %v10710
    %10861 = vmatprep.subr.bf16.mxu0 %v10719
    %10862 = vmatpush1.bf16.msra.mxu0 %v10718
    %10863 = vmatprep.subr.bf16.mxu0 %v10727
    %10864 = vmatpush1.bf16.msra.mxu0 %v10726
    %10865 = vmatprep.subr.bf16.mxu0 %v10735
    %10866 = vmatpush1.bf16.msra.mxu0 %v10734
    %10867 = vmatprep.subr.bf16.mxu0 %v10743
    %10868 = vmatpush1.bf16.msra.mxu0 %v10742
    %10869 = vmatprep.subr.bf16.mxu0 0
    %10870 = vmatpush1.bf16.msra.mxu0 0
    %10871 = vmatprep.subr.bf16.mxu0 0
    %10872 = vmatpush1.bf16.msra.mxu0 0
    %10873 = vmatprep.subr.bf16.mxu0 0
    %10874 = vmatpush1.bf16.msra.mxu0 0
    %10875 = vmatprep.subr.bf16.mxu0 0
    %10876 = vmatpush1.bf16.msra.mxu0 0
    %10877 = vmatprep.subr.bf16.mxu0 0
    %10878 = vmatpush1.bf16.msra.mxu0 0
    %10879 = vmatprep.subr.bf16.mxu0 0
    %10880 = vmatpush1.bf16.msra.mxu0 0
    %10881 = vmatprep.subr.bf16.mxu0 0
    %10882 = vmatpush1.bf16.msra.mxu0 0
    %10883 = vmatprep.subr.bf16.mxu0 0
    %10884 = vmatpush1.bf16.msra.mxu0 0
    %10885 = vmatprep.mubr.bf16.mxu0 0
    %10886 = vmatmul.mubr.bf16.gmra.mrb[0].mxu0 %v10490
    %v10887 = vpop.f32.mrb[0].mxu0
    %v10888 = vadd.f32 0.0, %v10887
    %v10889 = vpop.f32.mrb[0].mxu0
    %v10890 = vadd.f32 0.0, %v10889
    %v10891 = vpop.f32.mrb[0].mxu0
    %v10892 = vpop.f32.mrb[0].mxu0
    %10893 = vdwg.mxu0
    %10894 = vmatprep.subr.bf16.mxu0 %v10689
    %10895 = vmatpush1.bf16.msra.mxu0 %v10688
    %10896 = vmatprep.subr.bf16.mxu0 %v10697
    %10897 = vmatpush1.bf16.msra.mxu0 %v10696
    %10898 = vmatprep.subr.bf16.mxu0 %v10705
    %10899 = vmatpush1.bf16.msra.mxu0 %v10704
    %10900 = vmatprep.subr.bf16.mxu0 %v10713
    %10901 = vmatpush1.bf16.msra.mxu0 %v10712
    %10902 = vmatprep.subr.bf16.mxu0 %v10721
    %10903 = vmatpush1.bf16.msra.mxu0 %v10720
    %10904 = vmatprep.subr.bf16.mxu0 %v10729
    %10905 = vmatpush1.bf16.msra.mxu0 %v10728
    %10906 = vmatprep.subr.bf16.mxu0 %v10737
    %10907 = vmatpush1.bf16.msra.mxu0 %v10736
    %10908 = vmatprep.subr.bf16.mxu0 %v10745
    %10909 = vmatpush1.bf16.msra.mxu0 %v10744
    %10910 = vmatprep.subr.bf16.mxu0 0
    %10911 = vmatpush1.bf16.msra.mxu0 0
    %10912 = vmatprep.subr.bf16.mxu0 0
    %10913 = vmatpush1.bf16.msra.mxu0 0
    %10914 = vmatprep.subr.bf16.mxu0 0
    %10915 = vmatpush1.bf16.msra.mxu0 0
    %10916 = vmatprep.subr.bf16.mxu0 0
    %10917 = vmatpush1.bf16.msra.mxu0 0
    %10918 = vmatprep.subr.bf16.mxu0 0
    %10919 = vmatpush1.bf16.msra.mxu0 0
    %10920 = vmatprep.subr.bf16.mxu0 0
    %10921 = vmatpush1.bf16.msra.mxu0 0
    %10922 = vmatprep.subr.bf16.mxu0 0
    %10923 = vmatpush1.bf16.msra.mxu0 0
    %10924 = vmatprep.subr.bf16.mxu0 0
    %10925 = vmatpush1.bf16.msra.mxu0 0
    %10926 = vmatprep.mubr.bf16.mxu0 0
    %10927 = vmatmul.mubr.bf16.gmra.mrb[0].mxu0 %v10490
    %v10928 = vpop.f32.mrb[0].mxu0
    %v10929 = vadd.f32 0.0, %v10928
    %v10930 = vpop.f32.mrb[0].mxu0
    %v10931 = vadd.f32 0.0, %v10930
    %v10932 = vpop.f32.mrb[0].mxu0
    %v10933 = vpop.f32.mrb[0].mxu0
    %10934 = vdwg.mxu0
    %10935 = vmatprep.subr.bf16.mxu0 %v10691
    %10936 = vmatpush1.bf16.msra.mxu0 %v10690
    %10937 = vmatprep.subr.bf16.mxu0 %v10699
    %10938 = vmatpush1.bf16.msra.mxu0 %v10698
    %10939 = vmatprep.subr.bf16.mxu0 %v10707
    %10940 = vmatpush1.bf16.msra.mxu0 %v10706
    %10941 = vmatprep.subr.bf16.mxu0 %v10715
    %10942 = vmatpush1.bf16.msra.mxu0 %v10714
    %10943 = vmatprep.subr.bf16.mxu0 %v10723
    %10944 = vmatpush1.bf16.msra.mxu0 %v10722
    %10945 = vmatprep.subr.bf16.mxu0 %v10731
    %10946 = vmatpush1.bf16.msra.mxu0 %v10730
    %10947 = vmatprep.subr.bf16.mxu0 %v10739
    %10948 = vmatpush1.bf16.msra.mxu0 %v10738
    %10949 = vmatprep.subr.bf16.mxu0 %v10747
    %10950 = vmatpush1.bf16.msra.mxu0 %v10746
    %10951 = vmatprep.subr.bf16.mxu0 0
    %10952 = vmatpush1.bf16.msra.mxu0 0
    %10953 = vmatprep.subr.bf16.mxu0 0
    %10954 = vmatpush1.bf16.msra.mxu0 0
    %10955 = vmatprep.subr.bf16.mxu0 0
    %10956 = vmatpush1.bf16.msra.mxu0 0
    %10957 = vmatprep.subr.bf16.mxu0 0
    %10958 = vmatpush1.bf16.msra.mxu0 0
    %10959 = vmatprep.subr.bf16.mxu0 0
    %10960 = vmatpush1.bf16.msra.mxu0 0
    %10961 = vmatprep.subr.bf16.mxu0 0
    %10962 = vmatpush1.bf16.msra.mxu0 0
    %10963 = vmatprep.subr.bf16.mxu0 0
    %10964 = vmatpush1.bf16.msra.mxu0 0
    %10965 = vmatprep.subr.bf16.mxu0 0
    %10966 = vmatpush1.bf16.msra.mxu0 0
    %10967 = vmatprep.mubr.bf16.mxu0 0
    %10968 = vmatmul.mubr.bf16.gmra.mrb[0].mxu0 %v10490
    %v10969 = vpop.f32.mrb[0].mxu0
    %v10970 = vadd.f32 0.0, %v10969
    %v10971 = vpop.f32.mrb[0].mxu0
    %v10972 = vadd.f32 0.0, %v10971
    %v10973 = vpop.f32.mrb[0].mxu0
    %v10974 = vpop.f32.mrb[0].mxu0
    %10975 = vdwg.mxu0
    %v10976 = vadd.f32 %v10417, %v10847
    %v10977 = vadd.f32 %v10418, %v10849
    %v10978 = vadd.f32 %v10419, %v10888
    %v10979 = vadd.f32 %v10420, %v10890
    %v10980 = vadd.f32 %v10421, %v10929
    %v10981 = vadd.f32 %v10422, %v10931
    %v10982 = vadd.f32 %v10423, %v10970
    %v10983 = vadd.f32 %v10424, %v10972
    %v10984 = vld [vmem:[#allocation11] sm:$0xff]
    %v10986 = vlaneseq
    %v10987 = vshrl.u32 %v10986, 7
    %v10988 = vsub.s32 0, %v10987
    %v10989 = vrot.slane %v10984, %v10988
    %v10990 = vlaneseq
    %v10991 = vshrl.u32 %v10990, 7
    %v10992 = vsub.s32 1, %v10991
    %v10993 = vrot.slane %v10984, %v10992
    %v10994 = vlaneseq
    %v10995 = vshrl.u32 %v10994, 7
    %v10996 = vsub.s32 2, %v10995
    %v10997 = vrot.slane %v10984, %v10996
    %v10998 = vlaneseq
    %v10999 = vshrl.u32 %v10998, 7
    %v11000 = vsub.s32 3, %v10999
    %v11001 = vrot.slane %v10984, %v11000
    %v11002 = vlaneseq
    %v11003 = vshrl.u32 %v11002, 7
    %v11004 = vsub.s32 4, %v11003
    %v11005 = vrot.slane %v10984, %v11004
    %v11006 = vlaneseq
    %v11007 = vshrl.u32 %v11006, 7
    %v11008 = vsub.s32 5, %v11007
    %v11009 = vrot.slane %v10984, %v11008
    %v11010 = vlaneseq
    %v11011 = vshrl.u32 %v11010, 7
    %v11012 = vsub.s32 6, %v11011
    %v11013 = vrot.slane %v10984, %v11012
    %v11014 = vlaneseq
    %v11015 = vshrl.u32 %v11014, 7
    %v11016 = vsub.s32 7, %v11015
    %v11017 = vrot.slane %v10984, %v11016
    %v11026 = vadd.f32 %v10976, %v10989
    %v11027 = vadd.f32 %v10977, %v10993
    %v11028 = vadd.f32 %v10978, %v10997
    %v11029 = vadd.f32 %v10979, %v11001
    %v11030 = vadd.f32 %v10980, %v11005
    %v11031 = vadd.f32 %v10981, %v11009
    %v11032 = vadd.f32 %v10982, %v11013
    %v11033 = vadd.f32 %v10983, %v11017
    %vm11034 = vcmask 1041408
    %v11035 = vsel %vm11034, %v11026, 0.0
    %v11036 = vrot.slane %v11035, 4
    %v11037 = vadd.f32 %v11035, %v11036
    %v11038 = vrot.slane %v11037, 2
    %v11039 = vadd.f32 %v11037, %v11038
    %v11040 = vrot.slane %v11039, 1
    %v11041 = vadd.f32 %v11039, %v11040
    %v11042 = vsel %vm11034, %v11027, 0.0
    %v11043 = vrot.slane %v11042, 4
    %v11044 = vadd.f32 %v11042, %v11043
    %v11045 = vrot.slane %v11044, 2
    %v11046 = vadd.f32 %v11044, %v11045
    %v11047 = vrot.slane %v11046, 1
    %v11048 = vadd.f32 %v11046, %v11047
    %v11049 = vsel %vm11034, %v11028, 0.0
    %v11050 = vrot.slane %v11049, 4
    %v11051 = vadd.f32 %v11049, %v11050
    %v11052 = vrot.slane %v11051, 2
    %v11053 = vadd.f32 %v11051, %v11052
    %v11054 = vrot.slane %v11053, 1
    %v11055 = vadd.f32 %v11053, %v11054
    %v11056 = vsel %vm11034, %v11029, 0.0
    %v11057 = vrot.slane %v11056, 4
    %v11058 = vadd.f32 %v11056, %v11057
    %v11059 = vrot.slane %v11058, 2
    %v11060 = vadd.f32 %v11058, %v11059
    %v11061 = vrot.slane %v11060, 1
    %v11062 = vadd.f32 %v11060, %v11061
    %v11063 = vsel %vm11034, %v11030, 0.0
    %v11064 = vrot.slane %v11063, 4
    %v11065 = vadd.f32 %v11063, %v11064
    %v11066 = vrot.slane %v11065, 2
    %v11067 = vadd.f32 %v11065, %v11066
    %v11068 = vrot.slane %v11067, 1
    %v11069 = vadd.f32 %v11067, %v11068
    %v11070 = vsel %vm11034, %v11031, 0.0
    %v11071 = vrot.slane %v11070, 4
    %v11072 = vadd.f32 %v11070, %v11071
    %v11073 = vrot.slane %v11072, 2
    %v11074 = vadd.f32 %v11072, %v11073
    %v11075 = vrot.slane %v11074, 1
    %v11076 = vadd.f32 %v11074, %v11075
    %v11077 = vsel %vm11034, %v11032, 0.0
    %v11078 = vrot.slane %v11077, 4
    %v11079 = vadd.f32 %v11077, %v11078
    %v11080 = vrot.slane %v11079, 2
    %v11081 = vadd.f32 %v11079, %v11080
    %v11082 = vrot.slane %v11081, 1
    %v11083 = vadd.f32 %v11081, %v11082
    %v11084 = vsel %vm11034, %v11033, 0.0
    %v11085 = vrot.slane %v11084, 4
    %v11086 = vadd.f32 %v11084, %v11085
    %v11087 = vrot.slane %v11086, 2
    %v11088 = vadd.f32 %v11086, %v11087
    %v11089 = vrot.slane %v11088, 1
    %v11090 = vadd.f32 %v11088, %v11089
    %v11091 = vrcp.pop 2.0
    %v11092 = vmul.f32 %v11041, %v11091
    %v11093 = vmul.f32 %v11048, %v11091
    %v11094 = vmul.f32 %v11055, %v11091
    %v11095 = vmul.f32 %v11062, %v11091
    %v11096 = vmul.f32 %v11069, %v11091
    %v11097 = vmul.f32 %v11076, %v11091
    %v11098 = vmul.f32 %v11083, %v11091
    %v11099 = vmul.f32 %v11090, %v11091
    %v11100 = vsub.f32 %v11026, %v11092
    %v11101 = vsub.f32 %v11027, %v11093
    %v11102 = vsub.f32 %v11028, %v11094
    %v11103 = vsub.f32 %v11029, %v11095
    %v11104 = vsub.f32 %v11030, %v11096
    %v11105 = vsub.f32 %v11031, %v11097
    %v11106 = vsub.f32 %v11032, %v11098
    %v11107 = vsub.f32 %v11033, %v11099
    %v11108 = vmul.f32 %v11100, %v11100
    %v11109 = vmul.f32 %v11101, %v11101
    %v11110 = vmul.f32 %v11102, %v11102
    %v11111 = vmul.f32 %v11103, %v11103
    %v11112 = vmul.f32 %v11104, %v11104
    %v11113 = vmul.f32 %v11105, %v11105
    %v11114 = vmul.f32 %v11106, %v11106
    %v11115 = vmul.f32 %v11107, %v11107
    %v11116 = vsel %vm11034, %v11108, 0.0
    %v11117 = vrot.slane %v11116, 4
    %v11118 = vadd.f32 %v11116, %v11117
    %v11119 = vrot.slane %v11118, 2
    %v11120 = vadd.f32 %v11118, %v11119
    %v11121 = vrot.slane %v11120, 1
    %v11122 = vadd.f32 %v11120, %v11121
    %v11123 = vsel %vm11034, %v11109, 0.0
    %v11124 = vrot.slane %v11123, 4
    %v11125 = vadd.f32 %v11123, %v11124
    %v11126 = vrot.slane %v11125, 2
    %v11127 = vadd.f32 %v11125, %v11126
    %v11128 = vrot.slane %v11127, 1
    %v11129 = vadd.f32 %v11127, %v11128
    %v11130 = vsel %vm11034, %v11110, 0.0
    %v11131 = vrot.slane %v11130, 4
    %v11132 = vadd.f32 %v11130, %v11131
    %v11133 = vrot.slane %v11132, 2
    %v11134 = vadd.f32 %v11132, %v11133
    %v11135 = vrot.slane %v11134, 1
    %v11136 = vadd.f32 %v11134, %v11135
    %v11137 = vsel %vm11034, %v11111, 0.0
    %v11138 = vrot.slane %v11137, 4
    %v11139 = vadd.f32 %v11137, %v11138
    %v11140 = vrot.slane %v11139, 2
    %v11141 = vadd.f32 %v11139, %v11140
    %v11142 = vrot.slane %v11141, 1
    %v11143 = vadd.f32 %v11141, %v11142
    %v11144 = vsel %vm11034, %v11112, 0.0
    %v11145 = vrot.slane %v11144, 4
    %v11146 = vadd.f32 %v11144, %v11145
    %v11147 = vrot.slane %v11146, 2
    %v11148 = vadd.f32 %v11146, %v11147
    %v11149 = vrot.slane %v11148, 1
    %v11150 = vadd.f32 %v11148, %v11149
    %v11151 = vsel %vm11034, %v11113, 0.0
    %v11152 = vrot.slane %v11151, 4
    %v11153 = vadd.f32 %v11151, %v11152
    %v11154 = vrot.slane %v11153, 2
    %v11155 = vadd.f32 %v11153, %v11154
    %v11156 = vrot.slane %v11155, 1
    %v11157 = vadd.f32 %v11155, %v11156
    %v11158 = vsel %vm11034, %v11114, 0.0
    %v11159 = vrot.slane %v11158, 4
    %v11160 = vadd.f32 %v11158, %v11159
    %v11161 = vrot.slane %v11160, 2
    %v11162 = vadd.f32 %v11160, %v11161
    %v11163 = vrot.slane %v11162, 1
    %v11164 = vadd.f32 %v11162, %v11163
    %v11165 = vsel %vm11034, %v11115, 0.0
    %v11166 = vrot.slane %v11165, 4
    %v11167 = vadd.f32 %v11165, %v11166
    %v11168 = vrot.slane %v11167, 2
    %v11169 = vadd.f32 %v11167, %v11168
    %v11170 = vrot.slane %v11169, 1
    %v11171 = vadd.f32 %v11169, %v11170
    %v11172 = vmul.f32 %v11122, %v11091
    %v11173 = vmul.f32 %v11129, %v11091
    %v11174 = vmul.f32 %v11136, %v11091
    %v11175 = vmul.f32 %v11143, %v11091
    %v11176 = vmul.f32 %v11150, %v11091
    %v11177 = vmul.f32 %v11157, %v11091
    %v11178 = vmul.f32 %v11164, %v11091
    %v11179 = vmul.f32 %v11171, %v11091
    %v11180 = vadd.f32 %v11172, 1e-05
    %v11181 = vadd.f32 %v11173, 1e-05
    %v11182 = vadd.f32 %v11174, 1e-05
    %v11183 = vadd.f32 %v11175, 1e-05
    %v11184 = vadd.f32 %v11176, 1e-05
    %v11185 = vadd.f32 %v11177, 1e-05
    %v11186 = vadd.f32 %v11178, 1e-05
    %v11187 = vadd.f32 %v11179, 1e-05
    %v11188 = vrsqrt.pop %v11180
    %v11189 = vrsqrt.pop %v11181
    %v11190 = vrsqrt.pop %v11182
    %v11191 = vrsqrt.pop %v11183
    %v11192 = vrsqrt.pop %v11184
    %v11193 = vrsqrt.pop %v11185
    %v11194 = vrsqrt.pop %v11186
    %v11195 = vrsqrt.pop %v11187
    %v11196 = vmul.f32 %v11100, %v11188
    %v11197 = vmul.f32 %v11101, %v11189
    %v11198 = vmul.f32 %v11102, %v11190
    %v11199 = vmul.f32 %v11103, %v11191
    %v11200 = vmul.f32 %v11104, %v11192
    %v11201 = vmul.f32 %v11105, %v11193
    %v11202 = vmul.f32 %v11106, %v11194
    %v11203 = vmul.f32 %v11107, %v11195
    %vm11204 = vcmp.ge.f32.partialorder %v11196, 0.0
    %vm11205 = vcmp.ge.f32.partialorder %v11197, 0.0
    %vm11206 = vcmp.ge.f32.partialorder %v11198, 0.0
    %vm11207 = vcmp.ge.f32.partialorder %v11199, 0.0
    %vm11208 = vcmp.ge.f32.partialorder %v11200, 0.0
    %vm11209 = vcmp.ge.f32.partialorder %v11201, 0.0
    %vm11210 = vcmp.ge.f32.partialorder %v11202, 0.0
    %vm11211 = vcmp.ge.f32.partialorder %v11203, 0.0
    %v11212 = vmul.f32 %v11196, 0.2
    %v11213 = vmul.f32 %v11197, 0.2
    %v11214 = vmul.f32 %v11198, 0.2
    %v11215 = vmul.f32 %v11199, 0.2
    %v11216 = vmul.f32 %v11200, 0.2
    %v11217 = vmul.f32 %v11201, 0.2
    %v11218 = vmul.f32 %v11202, 0.2
    %v11219 = vmul.f32 %v11203, 0.2
    %v11220 = vsel %vm11204, %v11196, %v11212
    %v11221 = vsel %vm11205, %v11197, %v11213
    %v11222 = vsel %vm11206, %v11198, %v11214
    %v11223 = vsel %vm11207, %v11199, %v11215
    %v11224 = vsel %vm11208, %v11200, %v11216
    %v11225 = vsel %vm11209, %v11201, %v11217
    %v11226 = vsel %vm11210, %v11202, %v11218
    %v11227 = vsel %vm11211, %v11203, %v11219
    %v11228 = vpack.c.bf16 %v11220, %v11220
    %v11229 = vpack.c.bf16 %v11221, %v11221
    %v11230 = vpack.c.bf16 %v11222, %v11222
    %v11231 = vpack.c.bf16 %v11223, %v11223
    %v11232 = vpack.c.bf16 %v11224, %v11224
    %v11233 = vpack.c.bf16 %v11225, %v11225
    %v11234 = vpack.c.bf16 %v11226, %v11226
    %v11235 = vpack.c.bf16 %v11227, %v11227
    %v11236 = vld [vmem:[#allocation13] sm:$0xf]
    %v11237 = vld [vmem:[#allocation13 + $0x4] sm:$0xf]
    %v11238 = vld [vmem:[#allocation13 + $0x8] sm:$0xf]
    %v11239 = vld [vmem:[#allocation13 + $0xc] sm:$0xf]
    %v11240 = vld [vmem:[#allocation13 + $0x10] sm:$0xf]
    %v11241 = vld [vmem:[#allocation13 + $0x14] sm:$0xf]
    %v11242 = vld [vmem:[#allocation13 + $0x18] sm:$0xf]
    %v11243 = vld [vmem:[#allocation13 + $0x1c] sm:$0xf]
    %v11244 = vld [vmem:[#allocation13 + $0x20] sm:$0xf]
    %v11245 = vld [vmem:[#allocation13 + $0x24] sm:$0xf]
    %v11246 = vld [vmem:[#allocation13 + $0x28] sm:$0xf]
    %v11247 = vld [vmem:[#allocation13 + $0x2c] sm:$0xf]
    %v11248 = vld [vmem:[#allocation13 + $0x30] sm:$0xf]
    %v11249 = vld [vmem:[#allocation13 + $0x34] sm:$0xf]
    %v11250 = vld [vmem:[#allocation13 + $0x38] sm:$0xf]
    %v11251 = vld [vmem:[#allocation13 + $0x3c] sm:$0xf]
    %v11252 = vld [vmem:[#allocation13 + $0x40] sm:$0xf]
    %v11253 = vld [vmem:[#allocation13 + $0x44] sm:$0xf]
    %v11254 = vld [vmem:[#allocation13 + $0x48] sm:$0xf]
    %v11255 = vld [vmem:[#allocation13 + $0x4c] sm:$0xf]
    %v11256 = vld [vmem:[#allocation13 + $0x50] sm:$0xf]
    %v11257 = vld [vmem:[#allocation13 + $0x54] sm:$0xf]
    %v11258 = vld [vmem:[#allocation13 + $0x58] sm:$0xf]
    %v11259 = vld [vmem:[#allocation13 + $0x5c] sm:$0xf]
    %v11260 = vld [vmem:[#allocation13 + $0x60] sm:$0xf]
    %v11261 = vld [vmem:[#allocation13 + $0x64] sm:$0xf]
    %v11262 = vld [vmem:[#allocation13 + $0x68] sm:$0xf]
    %v11263 = vld [vmem:[#allocation13 + $0x6c] sm:$0xf]
    %v11264 = vld [vmem:[#allocation13 + $0x70] sm:$0xf]
    %v11265 = vld [vmem:[#allocation13 + $0x74] sm:$0xf]
    %v11266 = vld [vmem:[#allocation13 + $0x78] sm:$0xf]
    %v11267 = vld [vmem:[#allocation13 + $0x7c] sm:$0xf]
    %v11268 = vld [vmem:[#allocation13 + $0x80] sm:$0xf]
    %v11269 = vld [vmem:[#allocation13 + $0x84] sm:$0xf]
    %v11270 = vld [vmem:[#allocation13 + $0x88] sm:$0xf]
    %v11271 = vld [vmem:[#allocation13 + $0x8c] sm:$0xf]
    %v11272 = vld [vmem:[#allocation13 + $0x90] sm:$0xf]
    %v11273 = vld [vmem:[#allocation13 + $0x94] sm:$0xf]
    %v11274 = vld [vmem:[#allocation13 + $0x98] sm:$0xf]
    %v11275 = vld [vmem:[#allocation13 + $0x9c] sm:$0xf]
    %v11276 = vld [vmem:[#allocation13 + $0xa0] sm:$0xf]
    %v11277 = vld [vmem:[#allocation13 + $0xa4] sm:$0xf]
    %v11278 = vld [vmem:[#allocation13 + $0xa8] sm:$0xf]
    %v11279 = vld [vmem:[#allocation13 + $0xac] sm:$0xf]
    %v11280 = vld [vmem:[#allocation13 + $0xb0] sm:$0xf]
    %v11281 = vld [vmem:[#allocation13 + $0xb4] sm:$0xf]
    %v11282 = vld [vmem:[#allocation13 + $0xb8] sm:$0xf]
    %v11283 = vld [vmem:[#allocation13 + $0xbc] sm:$0xf]
    %v11284 = vld [vmem:[#allocation13 + $0xc0] sm:$0xf]
    %v11285 = vld [vmem:[#allocation13 + $0xc4] sm:$0xf]
    %v11286 = vld [vmem:[#allocation13 + $0xc8] sm:$0xf]
    %v11287 = vld [vmem:[#allocation13 + $0xcc] sm:$0xf]
    %v11288 = vld [vmem:[#allocation13 + $0xd0] sm:$0xf]
    %v11289 = vld [vmem:[#allocation13 + $0xd4] sm:$0xf]
    %v11290 = vld [vmem:[#allocation13 + $0xd8] sm:$0xf]
    %v11291 = vld [vmem:[#allocation13 + $0xdc] sm:$0xf]
    %v11292 = vld [vmem:[#allocation13 + $0xe0] sm:$0xf]
    %v11293 = vld [vmem:[#allocation13 + $0xe4] sm:$0xf]
    %v11294 = vld [vmem:[#allocation13 + $0xe8] sm:$0xf]
    %v11295 = vld [vmem:[#allocation13 + $0xec] sm:$0xf]
    %v11296 = vld [vmem:[#allocation13 + $0xf0] sm:$0xf]
    %v11297 = vld [vmem:[#allocation13 + $0xf4] sm:$0xf]
    %v11298 = vld [vmem:[#allocation13 + $0xf8] sm:$0xf]
    %v11299 = vld [vmem:[#allocation13 + $0xfc] sm:$0xf]
    %v11300 = vld [vmem:[#allocation13 + $0x100] sm:$0xf]
    %v11301 = vld [vmem:[#allocation13 + $0x104] sm:$0xf]
    %v11302 = vld [vmem:[#allocation13 + $0x108] sm:$0xf]
    %v11303 = vld [vmem:[#allocation13 + $0x10c] sm:$0xf]
    %v11304 = vld [vmem:[#allocation13 + $0x110] sm:$0xf]
    %v11305 = vld [vmem:[#allocation13 + $0x114] sm:$0xf]
    %v11306 = vld [vmem:[#allocation13 + $0x118] sm:$0xf]
    %v11307 = vld [vmem:[#allocation13 + $0x11c] sm:$0xf]
    %v11308 = vld [vmem:[#allocation13 + $0x120] sm:$0xf]
    %v11309 = vld [vmem:[#allocation13 + $0x124] sm:$0xf]
    %v11310 = vld [vmem:[#allocation13 + $0x128] sm:$0xf]
    %v11311 = vld [vmem:[#allocation13 + $0x12c] sm:$0xf]
    %v11312 = vld [vmem:[#allocation13 + $0x130] sm:$0xf]
    %v11313 = vld [vmem:[#allocation13 + $0x134] sm:$0xf]
    %v11314 = vld [vmem:[#allocation13 + $0x138] sm:$0xf]
    %v11315 = vld [vmem:[#allocation13 + $0x13c] sm:$0xf]
    %v11316 = vld [vmem:[#allocation13 + $0x140] sm:$0xf]
    %v11317 = vld [vmem:[#allocation13 + $0x144] sm:$0xf]
    %v11318 = vld [vmem:[#allocation13 + $0x148] sm:$0xf]
    %v11319 = vld [vmem:[#allocation13 + $0x14c] sm:$0xf]
    %v11320 = vld [vmem:[#allocation13 + $0x150] sm:$0xf]
    %v11321 = vld [vmem:[#allocation13 + $0x154] sm:$0xf]
    %v11322 = vld [vmem:[#allocation13 + $0x158] sm:$0xf]
    %v11323 = vld [vmem:[#allocation13 + $0x15c] sm:$0xf]
    %v11324 = vld [vmem:[#allocation13 + $0x160] sm:$0xf]
    %v11325 = vld [vmem:[#allocation13 + $0x164] sm:$0xf]
    %v11326 = vld [vmem:[#allocation13 + $0x168] sm:$0xf]
    %v11327 = vld [vmem:[#allocation13 + $0x16c] sm:$0xf]
    %v11328 = vld [vmem:[#allocation13 + $0x170] sm:$0xf]
    %v11329 = vld [vmem:[#allocation13 + $0x174] sm:$0xf]
    %v11330 = vld [vmem:[#allocation13 + $0x178] sm:$0xf]
    %v11331 = vld [vmem:[#allocation13 + $0x17c] sm:$0xf]
    %v11332 = vld [vmem:[#allocation13 + $0x180] sm:$0xf]
    %v11333 = vld [vmem:[#allocation13 + $0x184] sm:$0xf]
    %v11334 = vld [vmem:[#allocation13 + $0x188] sm:$0xf]
    %v11335 = vld [vmem:[#allocation13 + $0x18c] sm:$0xf]
    %v11336 = vld [vmem:[#allocation13 + $0x190] sm:$0xf]
    %v11337 = vld [vmem:[#allocation13 + $0x194] sm:$0xf]
    %v11338 = vld [vmem:[#allocation13 + $0x198] sm:$0xf]
    %v11339 = vld [vmem:[#allocation13 + $0x19c] sm:$0xf]
    %v11340 = vld [vmem:[#allocation13 + $0x1a0] sm:$0xf]
    %v11341 = vld [vmem:[#allocation13 + $0x1a4] sm:$0xf]
    %v11342 = vld [vmem:[#allocation13 + $0x1a8] sm:$0xf]
    %v11343 = vld [vmem:[#allocation13 + $0x1ac] sm:$0xf]
    %v11344 = vld [vmem:[#allocation13 + $0x1b0] sm:$0xf]
    %v11345 = vld [vmem:[#allocation13 + $0x1b4] sm:$0xf]
    %v11346 = vld [vmem:[#allocation13 + $0x1b8] sm:$0xf]
    %v11347 = vld [vmem:[#allocation13 + $0x1bc] sm:$0xf]
    %v11348 = vld [vmem:[#allocation13 + $0x1c0] sm:$0xf]
    %v11349 = vld [vmem:[#allocation13 + $0x1c4] sm:$0xf]
    %v11350 = vld [vmem:[#allocation13 + $0x1c8] sm:$0xf]
    %v11351 = vld [vmem:[#allocation13 + $0x1cc] sm:$0xf]
    %v11352 = vld [vmem:[#allocation13 + $0x1d0] sm:$0xf]
    %v11353 = vld [vmem:[#allocation13 + $0x1d4] sm:$0xf]
    %v11354 = vld [vmem:[#allocation13 + $0x1d8] sm:$0xf]
    %v11355 = vld [vmem:[#allocation13 + $0x1dc] sm:$0xf]
    %v11356 = vld [vmem:[#allocation13 + $0x1e0] sm:$0xf]
    %v11357 = vld [vmem:[#allocation13 + $0x1e4] sm:$0xf]
    %v11358 = vld [vmem:[#allocation13 + $0x1e8] sm:$0xf]
    %v11359 = vld [vmem:[#allocation13 + $0x1ec] sm:$0xf]
    %v11360 = vld [vmem:[#allocation13 + $0x1f0] sm:$0xf]
    %v11361 = vld [vmem:[#allocation13 + $0x1f4] sm:$0xf]
    %v11362 = vld [vmem:[#allocation13 + $0x1f8] sm:$0xf]
    %v11363 = vld [vmem:[#allocation13 + $0x1fc] sm:$0xf]
    %v11364 = vld [vmem:[#allocation14] sm:$0x1]
    %v11366 = vlaneseq
    %v11367 = vshrl.u32 %v11366, 7
    %v11368 = vsub.s32 0, %v11367
    %v11369 = vrot.slane %v11364, %v11368
    %v11499 = vunpack.c.l.b16 %v11236
    %v11500 = vunpack.c.l.b16 %v11237
    %v11501 = vunpack.c.l.b16 %v11238
    %v11502 = vunpack.c.l.b16 %v11239
    %v11503 = vunpack.c.l.b16 %v11240
    %v11504 = vunpack.c.l.b16 %v11241
    %v11505 = vunpack.c.l.b16 %v11242
    %v11506 = vunpack.c.l.b16 %v11243
    %v11507 = vunpack.c.l.b16 %v11244
    %v11508 = vunpack.c.l.b16 %v11245
    %v11509 = vunpack.c.l.b16 %v11246
    %v11510 = vunpack.c.l.b16 %v11247
    %v11511 = vunpack.c.l.b16 %v11248
    %v11512 = vunpack.c.l.b16 %v11249
    %v11513 = vunpack.c.l.b16 %v11250
    %v11514 = vunpack.c.l.b16 %v11251
    %v11515 = vunpack.c.l.b16 %v11252
    %v11516 = vunpack.c.l.b16 %v11253
    %v11517 = vunpack.c.l.b16 %v11254
    %v11518 = vunpack.c.l.b16 %v11255
    %v11519 = vunpack.c.l.b16 %v11256
    %v11520 = vunpack.c.l.b16 %v11257
    %v11521 = vunpack.c.l.b16 %v11258
    %v11522 = vunpack.c.l.b16 %v11259
    %v11523 = vunpack.c.l.b16 %v11260
    %v11524 = vunpack.c.l.b16 %v11261
    %v11525 = vunpack.c.l.b16 %v11262
    %v11526 = vunpack.c.l.b16 %v11263
    %v11527 = vunpack.c.l.b16 %v11264
    %v11528 = vunpack.c.l.b16 %v11265
    %v11529 = vunpack.c.l.b16 %v11266
    %v11530 = vunpack.c.l.b16 %v11267
    %v11531 = vunpack.c.l.b16 %v11268
    %v11532 = vunpack.c.l.b16 %v11269
    %v11533 = vunpack.c.l.b16 %v11270
    %v11534 = vunpack.c.l.b16 %v11271
    %v11535 = vunpack.c.l.b16 %v11272
    %v11536 = vunpack.c.l.b16 %v11273
    %v11537 = vunpack.c.l.b16 %v11274
    %v11538 = vunpack.c.l.b16 %v11275
    %v11539 = vunpack.c.l.b16 %v11276
    %v11540 = vunpack.c.l.b16 %v11277
    %v11541 = vunpack.c.l.b16 %v11278
    %v11542 = vunpack.c.l.b16 %v11279
    %v11543 = vunpack.c.l.b16 %v11280
    %v11544 = vunpack.c.l.b16 %v11281
    %v11545 = vunpack.c.l.b16 %v11282
    %v11546 = vunpack.c.l.b16 %v11283
    %v11547 = vunpack.c.l.b16 %v11284
    %v11548 = vunpack.c.l.b16 %v11285
    %v11549 = vunpack.c.l.b16 %v11286
    %v11550 = vunpack.c.l.b16 %v11287
    %v11551 = vunpack.c.l.b16 %v11288
    %v11552 = vunpack.c.l.b16 %v11289
    %v11553 = vunpack.c.l.b16 %v11290
    %v11554 = vunpack.c.l.b16 %v11291
    %v11555 = vunpack.c.l.b16 %v11292
    %v11556 = vunpack.c.l.b16 %v11293
    %v11557 = vunpack.c.l.b16 %v11294
    %v11558 = vunpack.c.l.b16 %v11295
    %v11559 = vunpack.c.l.b16 %v11296
    %v11560 = vunpack.c.l.b16 %v11297
    %v11561 = vunpack.c.l.b16 %v11298
    %v11562 = vunpack.c.l.b16 %v11299
    %v11563 = vunpack.c.l.b16 %v11300
    %v11564 = vunpack.c.l.b16 %v11301
    %v11565 = vunpack.c.l.b16 %v11302
    %v11566 = vunpack.c.l.b16 %v11303
    %v11567 = vunpack.c.l.b16 %v11304
    %v11568 = vunpack.c.l.b16 %v11305
    %v11569 = vunpack.c.l.b16 %v11306
    %v11570 = vunpack.c.l.b16 %v11307
    %v11571 = vunpack.c.l.b16 %v11308
    %v11572 = vunpack.c.l.b16 %v11309
    %v11573 = vunpack.c.l.b16 %v11310
    %v11574 = vunpack.c.l.b16 %v11311
    %v11575 = vunpack.c.l.b16 %v11312
    %v11576 = vunpack.c.l.b16 %v11313
    %v11577 = vunpack.c.l.b16 %v11314
    %v11578 = vunpack.c.l.b16 %v11315
    %v11579 = vunpack.c.l.b16 %v11316
    %v11580 = vunpack.c.l.b16 %v11317
    %v11581 = vunpack.c.l.b16 %v11318
    %v11582 = vunpack.c.l.b16 %v11319
    %v11583 = vunpack.c.l.b16 %v11320
    %v11584 = vunpack.c.l.b16 %v11321
    %v11585 = vunpack.c.l.b16 %v11322
    %v11586 = vunpack.c.l.b16 %v11323
    %v11587 = vunpack.c.l.b16 %v11324
    %v11588 = vunpack.c.l.b16 %v11325
    %v11589 = vunpack.c.l.b16 %v11326
    %v11590 = vunpack.c.l.b16 %v11327
    %v11591 = vunpack.c.l.b16 %v11328
    %v11592 = vunpack.c.l.b16 %v11329
    %v11593 = vunpack.c.l.b16 %v11330
    %v11594 = vunpack.c.l.b16 %v11331
    %v11595 = vunpack.c.l.b16 %v11332
    %v11596 = vunpack.c.l.b16 %v11333
    %v11597 = vunpack.c.l.b16 %v11334
    %v11598 = vunpack.c.l.b16 %v11335
    %v11599 = vunpack.c.l.b16 %v11336
    %v11600 = vunpack.c.l.b16 %v11337
    %v11601 = vunpack.c.l.b16 %v11338
    %v11602 = vunpack.c.l.b16 %v11339
    %v11603 = vunpack.c.l.b16 %v11340
    %v11604 = vunpack.c.l.b16 %v11341
    %v11605 = vunpack.c.l.b16 %v11342
    %v11606 = vunpack.c.l.b16 %v11343
    %v11607 = vunpack.c.l.b16 %v11344
    %v11608 = vunpack.c.l.b16 %v11345
    %v11609 = vunpack.c.l.b16 %v11346
    %v11610 = vunpack.c.l.b16 %v11347
    %v11611 = vunpack.c.l.b16 %v11348
    %v11612 = vunpack.c.l.b16 %v11349
    %v11613 = vunpack.c.l.b16 %v11350
    %v11614 = vunpack.c.l.b16 %v11351
    %v11615 = vunpack.c.l.b16 %v11352
    %v11616 = vunpack.c.l.b16 %v11353
    %v11617 = vunpack.c.l.b16 %v11354
    %v11618 = vunpack.c.l.b16 %v11355
    %v11619 = vunpack.c.l.b16 %v11356
    %v11620 = vunpack.c.l.b16 %v11357
    %v11621 = vunpack.c.l.b16 %v11358
    %v11622 = vunpack.c.l.b16 %v11359
    %v11623 = vunpack.c.l.b16 %v11360
    %v11624 = vunpack.c.l.b16 %v11361
    %v11625 = vunpack.c.l.b16 %v11362
    %v11626 = vunpack.c.l.b16 %v11363
    %v11627 = vpack.c.b16 %v11500, %v11499
    %v11628 = vpack.c.b16 %v11502, %v11501
    %v11629 = vpack.c.b16 %v11504, %v11503
    %v11630 = vpack.c.b16 %v11506, %v11505
    %v11631 = vpack.c.b16 %v11508, %v11507
    %v11632 = vpack.c.b16 %v11510, %v11509
    %v11633 = vpack.c.b16 %v11512, %v11511
    %v11634 = vpack.c.b16 %v11514, %v11513
    %v11635 = vpack.c.b16 %v11516, %v11515
    %v11636 = vpack.c.b16 %v11518, %v11517
    %v11637 = vpack.c.b16 %v11520, %v11519
    %v11638 = vpack.c.b16 %v11522, %v11521
    %v11639 = vpack.c.b16 %v11524, %v11523
    %v11640 = vpack.c.b16 %v11526, %v11525
    %v11641 = vpack.c.b16 %v11528, %v11527
    %v11642 = vpack.c.b16 %v11530, %v11529
    %v11643 = vpack.c.b16 %v11532, %v11531
    %v11644 = vpack.c.b16 %v11534, %v11533
    %v11645 = vpack.c.b16 %v11536, %v11535
    %v11646 = vpack.c.b16 %v11538, %v11537
    %v11647 = vpack.c.b16 %v11540, %v11539
    %v11648 = vpack.c.b16 %v11542, %v11541
    %v11649 = vpack.c.b16 %v11544, %v11543
    %v11650 = vpack.c.b16 %v11546, %v11545
    %v11651 = vpack.c.b16 %v11548, %v11547
    %v11652 = vpack.c.b16 %v11550, %v11549
    %v11653 = vpack.c.b16 %v11552, %v11551
    %v11654 = vpack.c.b16 %v11554, %v11553
    %v11655 = vpack.c.b16 %v11556, %v11555
    %v11656 = vpack.c.b16 %v11558, %v11557
    %v11657 = vpack.c.b16 %v11560, %v11559
    %v11658 = vpack.c.b16 %v11562, %v11561
    %v11659 = vpack.c.b16 %v11564, %v11563
    %v11660 = vpack.c.b16 %v11566, %v11565
    %v11661 = vpack.c.b16 %v11568, %v11567
    %v11662 = vpack.c.b16 %v11570, %v11569
    %v11663 = vpack.c.b16 %v11572, %v11571
    %v11664 = vpack.c.b16 %v11574, %v11573
    %v11665 = vpack.c.b16 %v11576, %v11575
    %v11666 = vpack.c.b16 %v11578, %v11577
    %v11667 = vpack.c.b16 %v11580, %v11579
    %v11668 = vpack.c.b16 %v11582, %v11581
    %v11669 = vpack.c.b16 %v11584, %v11583
    %v11670 = vpack.c.b16 %v11586, %v11585
    %v11671 = vpack.c.b16 %v11588, %v11587
    %v11672 = vpack.c.b16 %v11590, %v11589
    %v11673 = vpack.c.b16 %v11592, %v11591
    %v11674 = vpack.c.b16 %v11594, %v11593
    %v11675 = vpack.c.b16 %v11596, %v11595
    %v11676 = vpack.c.b16 %v11598, %v11597
    %v11677 = vpack.c.b16 %v11600, %v11599
    %v11678 = vpack.c.b16 %v11602, %v11601
    %v11679 = vpack.c.b16 %v11604, %v11603
    %v11680 = vpack.c.b16 %v11606, %v11605
    %v11681 = vpack.c.b16 %v11608, %v11607
    %v11682 = vpack.c.b16 %v11610, %v11609
    %v11683 = vpack.c.b16 %v11612, %v11611
    %v11684 = vpack.c.b16 %v11614, %v11613
    %v11685 = vpack.c.b16 %v11616, %v11615
    %v11686 = vpack.c.b16 %v11618, %v11617
    %v11687 = vpack.c.b16 %v11620, %v11619
    %v11688 = vpack.c.b16 %v11622, %v11621
    %v11689 = vpack.c.b16 %v11624, %v11623
    %v11690 = vpack.c.b16 %v11626, %v11625
    %11755 = vmatprep.subr.bf16.mxu0 0
    %11756 = vmatpush1.bf16.msra.mxu0 %v11627
    %11757 = vmatprep.subr.bf16.mxu0 0
    %11758 = vmatpush1.bf16.msra.mxu0 %v11628
    %11759 = vmatprep.subr.bf16.mxu0 0
    %11760 = vmatpush1.bf16.msra.mxu0 %v11629
    %11761 = vmatprep.subr.bf16.mxu0 0
    %11762 = vmatpush1.bf16.msra.mxu0 %v11630
    %11763 = vmatprep.subr.bf16.mxu0 0
    %11764 = vmatpush1.bf16.msra.mxu0 %v11631
    %11765 = vmatprep.subr.bf16.mxu0 0
    %11766 = vmatpush1.bf16.msra.mxu0 %v11632
    %11767 = vmatprep.subr.bf16.mxu0 0
    %11768 = vmatpush1.bf16.msra.mxu0 %v11633
    %11769 = vmatprep.subr.bf16.mxu0 0
    %11770 = vmatpush1.bf16.msra.mxu0 %v11634
    %11771 = vmatprep.subr.bf16.mxu0 0
    %11772 = vmatpush1.bf16.msra.mxu0 %v11635
    %11773 = vmatprep.subr.bf16.mxu0 0
    %11774 = vmatpush1.bf16.msra.mxu0 %v11636
    %11775 = vmatprep.subr.bf16.mxu0 0
    %11776 = vmatpush1.bf16.msra.mxu0 %v11637
    %11777 = vmatprep.subr.bf16.mxu0 0
    %11778 = vmatpush1.bf16.msra.mxu0 %v11638
    %11779 = vmatprep.subr.bf16.mxu0 0
    %11780 = vmatpush1.bf16.msra.mxu0 %v11639
    %11781 = vmatprep.subr.bf16.mxu0 0
    %11782 = vmatpush1.bf16.msra.mxu0 %v11640
    %11783 = vmatprep.subr.bf16.mxu0 0
    %11784 = vmatpush1.bf16.msra.mxu0 %v11641
    %11785 = vmatprep.subr.bf16.mxu0 0
    %11786 = vmatpush1.bf16.msra.mxu0 %v11642
    %11787 = vmatprep.mubr.bf16.mxu0 %v11229
    %11788 = vmatmul.mubr.bf16.gmra.mrb[0].mxu0 %v11228
    %v11789 = vpop.f32.mrb[0].mxu0
    %v11790 = vadd.f32 %v11369, %v11789
    %v11791 = vpop.f32.mrb[0].mxu0
    %v11792 = vpop.f32.mrb[0].mxu0
    %v11793 = vpop.f32.mrb[0].mxu0
    %11794 = vdwg.mxu0
    %11795 = vmatprep.subr.bf16.mxu0 0
    %11796 = vmatpush1.bf16.msra.mxu0 %v11643
    %11797 = vmatprep.subr.bf16.mxu0 0
    %11798 = vmatpush1.bf16.msra.mxu0 %v11644
    %11799 = vmatprep.subr.bf16.mxu0 0
    %11800 = vmatpush1.bf16.msra.mxu0 %v11645
    %11801 = vmatprep.subr.bf16.mxu0 0
    %11802 = vmatpush1.bf16.msra.mxu0 %v11646
    %11803 = vmatprep.subr.bf16.mxu0 0
    %11804 = vmatpush1.bf16.msra.mxu0 %v11647
    %11805 = vmatprep.subr.bf16.mxu0 0
    %11806 = vmatpush1.bf16.msra.mxu0 %v11648
    %11807 = vmatprep.subr.bf16.mxu0 0
    %11808 = vmatpush1.bf16.msra.mxu0 %v11649
    %11809 = vmatprep.subr.bf16.mxu0 0
    %11810 = vmatpush1.bf16.msra.mxu0 %v11650
    %11811 = vmatprep.subr.bf16.mxu0 0
    %11812 = vmatpush1.bf16.msra.mxu0 %v11651
    %11813 = vmatprep.subr.bf16.mxu0 0
    %11814 = vmatpush1.bf16.msra.mxu0 %v11652
    %11815 = vmatprep.subr.bf16.mxu0 0
    %11816 = vmatpush1.bf16.msra.mxu0 %v11653
    %11817 = vmatprep.subr.bf16.mxu0 0
    %11818 = vmatpush1.bf16.msra.mxu0 %v11654
    %11819 = vmatprep.subr.bf16.mxu0 0
    %11820 = vmatpush1.bf16.msra.mxu0 %v11655
    %11821 = vmatprep.subr.bf16.mxu0 0
    %11822 = vmatpush1.bf16.msra.mxu0 %v11656
    %11823 = vmatprep.subr.bf16.mxu0 0
    %11824 = vmatpush1.bf16.msra.mxu0 %v11657
    %11825 = vmatprep.subr.bf16.mxu0 0
    %11826 = vmatpush1.bf16.msra.mxu0 %v11658
    %11827 = vmatprep.mubr.bf16.mxu0 %v11231
    %11828 = vmatmul.mubr.bf16.gmra.mrb[0].mxu0 %v11230
    %v11829 = vpop.f32.mrb[0].mxu0
    %v11830 = vadd.f32 %v11790, %v11829
    %v11831 = vpop.f32.mrb[0].mxu0
    %v11832 = vpop.f32.mrb[0].mxu0
    %v11833 = vpop.f32.mrb[0].mxu0
    %11834 = vdwg.mxu0
    %11835 = vmatprep.subr.bf16.mxu0 0
    %11836 = vmatpush1.bf16.msra.mxu0 %v11659
    %11837 = vmatprep.subr.bf16.mxu0 0
    %11838 = vmatpush1.bf16.msra.mxu0 %v11660
    %11839 = vmatprep.subr.bf16.mxu0 0
    %11840 = vmatpush1.bf16.msra.mxu0 %v11661
    %11841 = vmatprep.subr.bf16.mxu0 0
    %11842 = vmatpush1.bf16.msra.mxu0 %v11662
    %11843 = vmatprep.subr.bf16.mxu0 0
    %11844 = vmatpush1.bf16.msra.mxu0 %v11663
    %11845 = vmatprep.subr.bf16.mxu0 0
    %11846 = vmatpush1.bf16.msra.mxu0 %v11664
    %11847 = vmatprep.subr.bf16.mxu0 0
    %11848 = vmatpush1.bf16.msra.mxu0 %v11665
    %11849 = vmatprep.subr.bf16.mxu0 0
    %11850 = vmatpush1.bf16.msra.mxu0 %v11666
    %11851 = vmatprep.subr.bf16.mxu0 0
    %11852 = vmatpush1.bf16.msra.mxu0 %v11667
    %11853 = vmatprep.subr.bf16.mxu0 0
    %11854 = vmatpush1.bf16.msra.mxu0 %v11668
    %11855 = vmatprep.subr.bf16.mxu0 0
    %11856 = vmatpush1.bf16.msra.mxu0 %v11669
    %11857 = vmatprep.subr.bf16.mxu0 0
    %11858 = vmatpush1.bf16.msra.mxu0 %v11670
    %11859 = vmatprep.subr.bf16.mxu0 0
    %11860 = vmatpush1.bf16.msra.mxu0 %v11671
    %11861 = vmatprep.subr.bf16.mxu0 0
    %11862 = vmatpush1.bf16.msra.mxu0 %v11672
    %11863 = vmatprep.subr.bf16.mxu0 0
    %11864 = vmatpush1.bf16.msra.mxu0 %v11673
    %11865 = vmatprep.subr.bf16.mxu0 0
    %11866 = vmatpush1.bf16.msra.mxu0 %v11674
    %11867 = vmatprep.mubr.bf16.mxu0 %v11233
    %11868 = vmatmul.mubr.bf16.gmra.mrb[0].mxu0 %v11232
    %v11869 = vpop.f32.mrb[0].mxu0
    %v11870 = vadd.f32 %v11830, %v11869
    %v11871 = vpop.f32.mrb[0].mxu0
    %v11872 = vpop.f32.mrb[0].mxu0
    %v11873 = vpop.f32.mrb[0].mxu0
    %11874 = vdwg.mxu0
    %11875 = vmatprep.subr.bf16.mxu0 0
    %11876 = vmatpush1.bf16.msra.mxu0 %v11675
    %11877 = vmatprep.subr.bf16.mxu0 0
    %11878 = vmatpush1.bf16.msra.mxu0 %v11676
    %11879 = vmatprep.subr.bf16.mxu0 0
    %11880 = vmatpush1.bf16.msra.mxu0 %v11677
    %11881 = vmatprep.subr.bf16.mxu0 0
    %11882 = vmatpush1.bf16.msra.mxu0 %v11678
    %11883 = vmatprep.subr.bf16.mxu0 0
    %11884 = vmatpush1.bf16.msra.mxu0 %v11679
    %11885 = vmatprep.subr.bf16.mxu0 0
    %11886 = vmatpush1.bf16.msra.mxu0 %v11680
    %11887 = vmatprep.subr.bf16.mxu0 0
    %11888 = vmatpush1.bf16.msra.mxu0 %v11681
    %11889 = vmatprep.subr.bf16.mxu0 0
    %11890 = vmatpush1.bf16.msra.mxu0 %v11682
    %11891 = vmatprep.subr.bf16.mxu0 0
    %11892 = vmatpush1.bf16.msra.mxu0 %v11683
    %11893 = vmatprep.subr.bf16.mxu0 0
    %11894 = vmatpush1.bf16.msra.mxu0 %v11684
    %11895 = vmatprep.subr.bf16.mxu0 0
    %11896 = vmatpush1.bf16.msra.mxu0 %v11685
    %11897 = vmatprep.subr.bf16.mxu0 0
    %11898 = vmatpush1.bf16.msra.mxu0 %v11686
    %11899 = vmatprep.subr.bf16.mxu0 0
    %11900 = vmatpush1.bf16.msra.mxu0 %v11687
    %11901 = vmatprep.subr.bf16.mxu0 0
    %11902 = vmatpush1.bf16.msra.mxu0 %v11688
    %11903 = vmatprep.subr.bf16.mxu0 0
    %11904 = vmatpush1.bf16.msra.mxu0 %v11689
    %11905 = vmatprep.subr.bf16.mxu0 0
    %11906 = vmatpush1.bf16.msra.mxu0 %v11690
    %11907 = vmatprep.mubr.bf16.mxu0 %v11235
    %11908 = vmatmul.mubr.bf16.gmra.mrb[0].mxu0 %v11234
    %v11909 = vpop.f32.mrb[0].mxu0
    %v11910 = vadd.f32 %v11870, %v11909
    %v11911 = vpop.f32.mrb[0].mxu0
    %v11912 = vpop.f32.mrb[0].mxu0
    %v11913 = vpop.f32.mrb[0].mxu0
    %11914 = vdwg.mxu0
    %v11915 = vxor.u32 %v11910, 2147483648
    %v11916 = vmul.f32 %v11915, 1.442695
    %v11917 = vpow.pop %v11916
    %v11918 = vadd.f32 %v11917, 1.0
    %v11919 = vrcp.pop %v11918
    %v11920 = vmul.f32 1.0, %v11919
    %11921 = vst [vmem:[%s9] sm:$0x3] %v11920
    // Predicated region
    $region70: #{discriminator_forward.1} parent=1 // pred_check
      _
    $region71: #{discriminator_forward.1} parent=1 // pred_check_branch
      %11923 = sbr.rel (0) target = $region73
    $region72: #{discriminator_forward.1} parent=1 // pred_region
      _
    $region73: #{discriminator_forward.1} parent=1 // pred_fallthru
      _
    // Predicated region
    $region74: #{discriminator_forward.1} parent=1 // pred_check
      _
    $region75: #{discriminator_forward.1} parent=1 // pred_check_branch
      %11925 = sbr.rel (0) target = $region77
    $region76: #{discriminator_forward.1} parent=1 // pred_region
      _
    $region77: #{discriminator_forward.1} parent=1 // pred_fallthru
      _
    %11926 = vsyncpa [#allocation4], 1
    %11927 = vsyncpa [#allocation6], 1
    %11928 = vsyncpa [#allocation9], 1
    %11929 = vsyncpa [#allocation12], 1
    %11930 = vsyncpa [#allocation15], 1

</llo_original>
